<compile_context>
chip_gen: v7x
topology: tpu7x:2x2x1
jax: 0.10.0
libtpu: 0.0.40
codegen_flags: <defaults>
</compile_context>

<pallas_src>
import jax
import jax.numpy as jnp
from jax.experimental import pallas as pl
from jax.experimental.pallas import tpu as pltpu

TIMESTEPS = 200
IMG_SIZE = 16
INPUT_DIM = IMG_SIZE * IMG_SIZE          # 256
HID_T = TIMESTEPS * 4                    # 800
HID1, HID2, HID3 = 1024, 512, 1024
MAX_TILE_B = 256   # 256-wide MXU on v6e/v7x; fits v5e's 16 MiB scoped-VMEM default


def _silu(v):
    # x * sigmoid(x); exp lands on the EUP slot inside the kernel.
    return v * (1.0 / (1.0 + jnp.exp(-v)))


# ---------------------------------------------------------------------------
# Kernel: one grid step processes TILE_B rows; all weights are VMEM-resident.
# ---------------------------------------------------------------------------
def denoise_kernel(
    x_ref,        # (TILE_B, INPUT_DIM)   bf16
    h1t_ref,      # (TILE_B, HID1)        bf16  (folded t_emb @ W1t + b1, per row)
    w1x_ref,      # (INPUT_DIM, HID1)     bf16
    w2_ref, b2_ref,     # (HID1, HID2) bf16, (1, HID2) f32
    w3_ref, b3_ref,     # (HID2, HID3) bf16, (1, HID3) f32
    w4_ref, b4_ref,     # (HID3, INPUT_DIM) bf16, (1, INPUT_DIM) f32
    out_ref,      # (TILE_B, INPUT_DIM)   f32
):
    f32, bf16 = jnp.float32, jnp.bfloat16

    # cat(x, t_emb) @ W1 + b1  ==  x @ W1[:D]  +  (t_emb @ W1[D:] + b1)
    # and the second term is the pre-gathered h1t row.
    h1 = _silu(jnp.dot(x_ref[...], w1x_ref[...], preferred_element_type=f32)
               + h1t_ref[...].astype(f32))
    h2 = _silu(jnp.dot(h1.astype(bf16), w2_ref[...],
                       preferred_element_type=f32) + b2_ref[...])
    h3 = _silu(jnp.dot(h2.astype(bf16), w3_ref[...],
                       preferred_element_type=f32) + b3_ref[...])
    out_ref[...] = jnp.tanh(jnp.dot(h3.astype(bf16), w4_ref[...],
                                    preferred_element_type=f32) + b4_ref[...])


# ---------------------------------------------------------------------------
# Parameters
# ---------------------------------------------------------------------------
def init_params(key):
    """f32 master parameters (nn.Linear-equivalent; stored pre-transposed as
    (in, out) so forward is y = x @ W + b)."""
    def lin(k, fan_in, fan_out):
        k1, k2 = jax.random.split(k)
        bound = 1.0 / jnp.sqrt(fan_in)
        w = jax.random.uniform(k1, (fan_in, fan_out), jnp.float32, -bound, bound)
        b = jax.random.uniform(k2, (1, fan_out), jnp.float32, -bound, bound)
        return w, b

    keys = jax.random.split(key, 6)
    wt1, bt1 = lin(keys[0], TIMESTEPS, HID_T)
    wt2, bt2 = lin(keys[1], HID_T, TIMESTEPS)
    w1,  b1  = lin(keys[2], INPUT_DIM + TIMESTEPS, HID1)
    w2,  b2  = lin(keys[3], HID1, HID2)
    w3,  b3  = lin(keys[4], HID2, HID3)
    w4,  b4  = lin(keys[5], HID3, INPUT_DIM)
    w1x, w1t = w1[:INPUT_DIM], w1[INPUT_DIM:]
    return dict(wt1=wt1, bt1=bt1, wt2=wt2, bt2=bt2,
                w1x=w1x, w1t=w1t, b1=b1,
                w2=w2, b2=b2, w3=w3, b3=b3, w4=w4, b4=b4)


def prepare_kernel_params(params):
    """Derive kernel-side parameters:
       - the time MLP input is one-hot, so silu(onehot@Wt1+bt1)@Wt2+bt2 is an
         exact (TIMESTEPS, TIMESTEPS) row-lookup table,
       - fold one level further: the entire time contribution to layer 1,
         t_emb @ W1t + b1, is a (TIMESTEPS, HID1) table computed in f32 and
         stored bf16 (it is streamed per batch row alongside x),
       - cast weight matrices to bf16 (remaining biases stay f32)."""
    p = params
    t_emb_table = _silu(p["wt1"] + p["bt1"]) @ p["wt2"] + p["bt2"]        # (200, 200) f32
    h1t_table = (t_emb_table @ p["w1t"] + p["b1"]).astype(jnp.bfloat16)   # (200, 1024) bf16

    bf = lambda w: w.astype(jnp.bfloat16)
    return dict(
        h1t_table=h1t_table,
        w1x=bf(p["w1x"]),
        w2=bf(p["w2"]), b2=p["b2"],
        w3=bf(p["w3"]), b3=p["b3"],
        w4=bf(p["w4"]), b4=p["b4"],
    )


# ---------------------------------------------------------------------------
# Forward wrapper
# ---------------------------------------------------------------------------
_WEIGHT_SINGLE_BUFFER = True   # flipped off if pl.Buffered(1) is rejected


def _choose_tile(B):
    """Batch tile: <= MAX_TILE_B rows, multiple of 16 (bf16 sublane packing),
    chosen to minimise padding (no whole wasted tile just past a boundary)."""
    num_tiles = pl.cdiv(B, MAX_TILE_B)
    tile_b = 16 * pl.cdiv(pl.cdiv(B, num_tiles), 16)
    return tile_b, num_tiles


def denoise_forward(x_nchw, t, kparams):
    """x_nchw: (B, 1, H, W) float32, t: (B,) int32 timesteps in [0, TIMESTEPS)."""
    global _WEIGHT_SINGLE_BUFFER
    B = x_nchw.shape[0]
    x_flat = x_nchw.reshape(B, -1).astype(jnp.bfloat16)     # (B, 256)  bf16
    h1t = kparams["h1t_table"][t]                           # (B, 1024) bf16, exact fold

    tile_b, num_tiles = _choose_tile(B)
    b_pad = tile_b * num_tiles
    if b_pad != B:
        x_flat = jnp.pad(x_flat, ((0, b_pad - B), (0, 0)))
        h1t = jnp.pad(h1t, ((0, b_pad - B), (0, 0)))

    kp = kparams
    weights = (kp["w1x"], kp["w2"], kp["b2"], kp["w3"], kp["b3"],
               kp["w4"], kp["b4"])

    def row_spec(cols):
        return pl.BlockSpec((tile_b, cols), lambda i: (i, 0))

    def resident(arr, single_buffer):
        # Whole array at a constant block index -> pinned in VMEM across the
        # batch grid.  Buffered(1): the block never changes, so the second
        # pipeline buffer Pallas allocates by default is pure VMEM waste.
        if single_buffer:
            return pl.BlockSpec(arr.shape, lambda i: (0, 0),
                                pipeline_mode=pl.Buffered(1))
        return pl.BlockSpec(arr.shape, lambda i: (0, 0))

    def run(single_buffer):
        in_specs = ([row_spec(INPUT_DIM), row_spec(HID1)]
                    + [resident(a, single_buffer) for a in weights])
        return pl.pallas_call(
            denoise_kernel,
            out_shape=jax.ShapeDtypeStruct((b_pad, INPUT_DIM), jnp.float32),
            grid=(num_tiles,),
            in_specs=in_specs,
            out_specs=row_spec(INPUT_DIM),
            compiler_params=pltpu.CompilerParams(
                dimension_semantics=("parallel",)),
        )(x_flat, h1t, *weights)

    if _WEIGHT_SINGLE_BUFFER:
        try:
            out_flat = run(True)
        except Exception:   # jax build without Buffered(1) support: double-buffer
            _WEIGHT_SINGLE_BUFFER = False
            out_flat = run(False)
    else:
        out_flat = run(False)

    # TODO(synk): for a multi-step sampling loop at small B, keep the ~3 MB bf16
    # weight set resident across denoise steps (fuse the timestep loop into one
    # pallas_call or use a cross-call VMEM/semaphore future), and optionally use
    # fp8 (e4m3) weights on v7x; a single forward call cannot express that.
    return out_flat[:B].reshape(B, 1, IMG_SIZE, IMG_SIZE)


# ---------------------------------------------------------------------------
# References
# ---------------------------------------------------------------------------
def denoise_forward_ref(x_nchw, t, params):
    """Pure-JAX f32 reference mirroring the PyTorch forward exactly."""
    B = x_nchw.shape[0]
    x = x_nchw.reshape(B, -1).astype(jnp.float32)
    emb = jax.nn.one_hot(t, TIMESTEPS, dtype=jnp.float32)
    p = params
    h = _silu(emb @ p["wt1"] + p["bt1"])
    t_emb = h @ p["wt2"] + p["bt2"]
    xt = jnp.concatenate([x, t_emb], axis=-1)
    w1 = jnp.concatenate([p["w1x"], p["w1t"]], axis=0)
    h1 = _silu(xt @ w1 + p["b1"])
    h2 = _silu(h1 @ p["w2"] + p["b2"])
    h3 = _silu(h2 @ p["w3"] + p["b3"])
    out = jnp.tanh(h3 @ p["w4"] + p["b4"])
    return out.reshape(B, 1, IMG_SIZE, IMG_SIZE)


def denoise_forward_ref_bf16(x_nchw, t, kparams):
    """Plain-JAX reference mirroring the kernel's bf16 numerics exactly."""
    B = x_nchw.shape[0]
    bf16, f32 = jnp.bfloat16, jnp.float32
    dot = lambda a, b: jnp.dot(a, b, preferred_element_type=f32)
    kp = kparams
    x = x_nchw.reshape(B, -1).astype(bf16)
    h1 = _silu(dot(x, kp["w1x"]) + kp["h1t_table"][t].astype(f32))
    h2 = _silu(dot(h1.astype(bf16), kp["w2"]) + kp["b2"])
    h3 = _silu(dot(h2.astype(bf16), kp["w3"]) + kp["b3"])
    out = jnp.tanh(dot(h3.astype(bf16), kp["w4"]) + kp["b4"])
    return out.reshape(B, 1, IMG_SIZE, IMG_SIZE)


if __name__ == "__main__":
    key = jax.random.PRNGKey(0)
    k_params, k_x, k_t = jax.random.split(key, 3)

    params = init_params(k_params)
    kparams = prepare_kernel_params(params)

    # B=2: primary small-shape case (single 16-row tile).
    # B=300: exercises the multi-tile grid + minimal-padding path (2 x 160 rows).
    for B in (2, 300):
        kx = jax.random.fold_in(k_x, B)
        kt = jax.random.fold_in(k_t, B)
        x = jax.random.normal(kx, (B, 1, IMG_SIZE, IMG_SIZE), jnp.float32)
        t = jax.random.randint(kt, (B,), 0, TIMESTEPS, jnp.int32)

        out = jax.block_until_ready(denoise_forward(x, t, kparams))
        assert out.shape == (B, 1, IMG_SIZE, IMG_SIZE)

        ref_bf16 = jax.block_until_ready(denoise_forward_ref_bf16(x, t, kparams))
        ref_f32 = jax.block_until_ready(denoise_forward_ref(x, t, params))

        assert jnp.allclose(out, ref_bf16, atol=2e-3, rtol=2e-3), \
            f"B={B}: mismatch vs bf16-weight JAX reference"
        # bf16 weights/activations + the (exact-structure) h1t fold vs pure f32.
        assert jnp.allclose(out, ref_f32, atol=4e-2, rtol=0.0), \
            f"B={B}: mismatch vs f32 (PyTorch-equivalent) reference"

    print("KERNEL_OK")
</pallas_src>

<mosaic_0001>
module attributes {stable_mosaic.version = 11 : i64} {
  func.func @denoise_kernel(%arg0: i32, %arg1: memref<16x256xbf16, #tpu.memory_space<vmem>>, %arg2: memref<16x1024xbf16, #tpu.memory_space<vmem>>, %arg3: memref<256x1024xbf16, #tpu.memory_space<vmem>>, %arg4: memref<1024x512xbf16, #tpu.memory_space<vmem>>, %arg5: memref<1x512xf32, #tpu.memory_space<vmem>>, %arg6: memref<512x1024xbf16, #tpu.memory_space<vmem>>, %arg7: memref<1x1024xf32, #tpu.memory_space<vmem>>, %arg8: memref<1024x256xbf16, #tpu.memory_space<vmem>>, %arg9: memref<1x256xf32, #tpu.memory_space<vmem>>, %arg10: memref<16x256xf32, #tpu.memory_space<vmem>>) attributes {dimension_semantics = [#tpu.dimension_semantics<parallel>], iteration_bounds = array<i64: 1>, scalar_prefetch = 0 : i64, scratch_operands = 0 : i64, tpu.core_type = #tpu.core_type<tc>, window_params = [{transform_indices = @transform_0, window_bounds = array<i64: 16, 256>}, {transform_indices = @transform_1, window_bounds = array<i64: 16, 1024>}, {pipeline_mode = #tpu.pipeline_mode<synchronous>, transform_indices = @transform_2, window_bounds = array<i64: 256, 1024>}, {pipeline_mode = #tpu.pipeline_mode<synchronous>, transform_indices = @transform_3, window_bounds = array<i64: 1024, 512>}, {pipeline_mode = #tpu.pipeline_mode<synchronous>, transform_indices = @transform_4, window_bounds = array<i64: 1, 512>}, {pipeline_mode = #tpu.pipeline_mode<synchronous>, transform_indices = @transform_5, window_bounds = array<i64: 512, 1024>}, {pipeline_mode = #tpu.pipeline_mode<synchronous>, transform_indices = @transform_6, window_bounds = array<i64: 1, 1024>}, {pipeline_mode = #tpu.pipeline_mode<synchronous>, transform_indices = @transform_7, window_bounds = array<i64: 1024, 256>}, {pipeline_mode = #tpu.pipeline_mode<synchronous>, transform_indices = @transform_8, window_bounds = array<i64: 1, 256>}, {transform_indices = @transform_9, window_bounds = array<i64: 16, 256>}]} {
    %c0 = arith.constant 0 : index
    %c0_0 = arith.constant 0 : index
    %0 = vector.load %arg1[%c0, %c0_0] : memref<16x256xbf16, #tpu.memory_space<vmem>>, vector<16x256xbf16>
    %c0_1 = arith.constant 0 : index
    %c0_2 = arith.constant 0 : index
    %1 = vector.load %arg3[%c0_1, %c0_2] : memref<256x1024xbf16, #tpu.memory_space<vmem>>, vector<256x1024xbf16>
    %cst = arith.constant dense<0.000000e+00> : vector<16x1024xf32>
    %2 = tpu.matmul %0, %1, %cst {dimension_numbers = #tpu.dot_dimension_numbers<[1], [0], [0], [1], [0, 0, 1, 1], [], []>} : vector<16x256xbf16>, vector<256x1024xbf16>, vector<16x1024xf32> -> vector<16x1024xf32>
    %c0_3 = arith.constant 0 : index
    %c0_4 = arith.constant 0 : index
    %3 = vector.load %arg2[%c0_3, %c0_4] : memref<16x1024xbf16, #tpu.memory_space<vmem>>, vector<16x1024xbf16>
    %4 = arith.extf %3 : vector<16x1024xbf16> to vector<16x1024xf32>
    %5 = arith.addf %2, %4 : vector<16x1024xf32>
    %cst_5 = arith.constant 0.000000e+00 : f32
    %6 = vector.broadcast %cst_5 : f32 to vector<16x1024xf32>
    %7 = arith.subf %6, %5 : vector<16x1024xf32>
    %8 = math.exp %7 : vector<16x1024xf32>
    %cst_6 = arith.constant 1.000000e+00 : f32
    %9 = vector.broadcast %cst_6 : f32 to vector<16x1024xf32>
    %10 = arith.addf %9, %8 : vector<16x1024xf32>
    %cst_7 = arith.constant 1.000000e+00 : f32
    %11 = vector.broadcast %cst_7 : f32 to vector<16x1024xf32>
    %12 = arith.divf %11, %10 : vector<16x1024xf32>
    %13 = arith.mulf %5, %12 : vector<16x1024xf32>
    %14 = arith.truncf %13 : vector<16x1024xf32> to vector<16x1024xbf16>
    %c0_8 = arith.constant 0 : index
    %c0_9 = arith.constant 0 : index
    %15 = vector.load %arg4[%c0_8, %c0_9] : memref<1024x512xbf16, #tpu.memory_space<vmem>>, vector<1024x512xbf16>
    %cst_10 = arith.constant dense<0.000000e+00> : vector<16x512xf32>
    %16 = tpu.matmul %14, %15, %cst_10 {dimension_numbers = #tpu.dot_dimension_numbers<[1], [0], [0], [1], [0, 0, 1, 1], [], []>} : vector<16x1024xbf16>, vector<1024x512xbf16>, vector<16x512xf32> -> vector<16x512xf32>
    %c0_11 = arith.constant 0 : index
    %c0_12 = arith.constant 0 : index
    %17 = vector.load %arg5[%c0_11, %c0_12] : memref<1x512xf32, #tpu.memory_space<vmem>>, vector<1x512xf32>
    %18 = vector.broadcast %17 : vector<1x512xf32> to vector<16x512xf32>
    %19 = arith.addf %16, %18 : vector<16x512xf32>
    %cst_13 = arith.constant 0.000000e+00 : f32
    %20 = vector.broadcast %cst_13 : f32 to vector<16x512xf32>
    %21 = arith.subf %20, %19 : vector<16x512xf32>
    %22 = math.exp %21 : vector<16x512xf32>
    %cst_14 = arith.constant 1.000000e+00 : f32
    %23 = vector.broadcast %cst_14 : f32 to vector<16x512xf32>
    %24 = arith.addf %23, %22 : vector<16x512xf32>
    %cst_15 = arith.constant 1.000000e+00 : f32
    %25 = vector.broadcast %cst_15 : f32 to vector<16x512xf32>
    %26 = arith.divf %25, %24 : vector<16x512xf32>
    %27 = arith.mulf %19, %26 : vector<16x512xf32>
    %28 = arith.truncf %27 : vector<16x512xf32> to vector<16x512xbf16>
    %c0_16 = arith.constant 0 : index
    %c0_17 = arith.constant 0 : index
    %29 = vector.load %arg6[%c0_16, %c0_17] : memref<512x1024xbf16, #tpu.memory_space<vmem>>, vector<512x1024xbf16>
    %cst_18 = arith.constant dense<0.000000e+00> : vector<16x1024xf32>
    %30 = tpu.matmul %28, %29, %cst_18 {dimension_numbers = #tpu.dot_dimension_numbers<[1], [0], [0], [1], [0, 0, 1, 1], [], []>} : vector<16x512xbf16>, vector<512x1024xbf16>, vector<16x1024xf32> -> vector<16x1024xf32>
    %c0_19 = arith.constant 0 : index
    %c0_20 = arith.constant 0 : index
    %31 = vector.load %arg7[%c0_19, %c0_20] : memref<1x1024xf32, #tpu.memory_space<vmem>>, vector<1x1024xf32>
    %32 = vector.broadcast %31 : vector<1x1024xf32> to vector<16x1024xf32>
    %33 = arith.addf %30, %32 : vector<16x1024xf32>
    %cst_21 = arith.constant 0.000000e+00 : f32
    %34 = vector.broadcast %cst_21 : f32 to vector<16x1024xf32>
    %35 = arith.subf %34, %33 : vector<16x1024xf32>
    %36 = math.exp %35 : vector<16x1024xf32>
    %cst_22 = arith.constant 1.000000e+00 : f32
    %37 = vector.broadcast %cst_22 : f32 to vector<16x1024xf32>
    %38 = arith.addf %37, %36 : vector<16x1024xf32>
    %cst_23 = arith.constant 1.000000e+00 : f32
    %39 = vector.broadcast %cst_23 : f32 to vector<16x1024xf32>
    %40 = arith.divf %39, %38 : vector<16x1024xf32>
    %41 = arith.mulf %33, %40 : vector<16x1024xf32>
    %42 = arith.truncf %41 : vector<16x1024xf32> to vector<16x1024xbf16>
    %c0_24 = arith.constant 0 : index
    %c0_25 = arith.constant 0 : index
    %43 = vector.load %arg8[%c0_24, %c0_25] : memref<1024x256xbf16, #tpu.memory_space<vmem>>, vector<1024x256xbf16>
    %cst_26 = arith.constant dense<0.000000e+00> : vector<16x256xf32>
    %44 = tpu.matmul %42, %43, %cst_26 {dimension_numbers = #tpu.dot_dimension_numbers<[1], [0], [0], [1], [0, 0, 1, 1], [], []>} : vector<16x1024xbf16>, vector<1024x256xbf16>, vector<16x256xf32> -> vector<16x256xf32>
    %c0_27 = arith.constant 0 : index
    %c0_28 = arith.constant 0 : index
    %45 = vector.load %arg9[%c0_27, %c0_28] : memref<1x256xf32, #tpu.memory_space<vmem>>, vector<1x256xf32>
    %46 = vector.broadcast %45 : vector<1x256xf32> to vector<16x256xf32>
    %47 = arith.addf %44, %46 : vector<16x256xf32>
    %48 = math.tanh %47 : vector<16x256xf32>
    %c0_29 = arith.constant 0 : index
    %c0_30 = arith.constant 0 : index
    %49 = vector.load %arg10[%c0_29, %c0_30] : memref<16x256xf32, #tpu.memory_space<vmem>>, vector<16x256xf32>
    tpu.vector_store %arg10[%c0_29, %c0_30], %48 {strides = array<i32>} : memref<16x256xf32, #tpu.memory_space<vmem>>, vector<16x256xf32>,
    return
  }
  func.func @transform_0(%arg0: i32) -> (i32, i32) {
    %c0_i32 = arith.constant 0 : i32
    %c0_i32_0 = arith.constant 0 : i32
    return %arg0, %c0_i32 : i32, i32
  }
  func.func @transform_1(%arg0: i32) -> (i32, i32) {
    %c0_i32 = arith.constant 0 : i32
    %c0_i32_0 = arith.constant 0 : i32
    return %arg0, %c0_i32 : i32, i32
  }
  func.func @transform_2(%arg0: i32) -> (i32, i32) {
    %c0_i32 = arith.constant 0 : i32
    %c0_i32_0 = arith.constant 0 : i32
    %c0_i32_1 = arith.constant 0 : i32
    return %c0_i32, %c0_i32_0 : i32, i32
  }
  func.func @transform_3(%arg0: i32) -> (i32, i32) {
    %c0_i32 = arith.constant 0 : i32
    %c0_i32_0 = arith.constant 0 : i32
    %c0_i32_1 = arith.constant 0 : i32
    return %c0_i32, %c0_i32_0 : i32, i32
  }
  func.func @transform_4(%arg0: i32) -> (i32, i32) {
    %c0_i32 = arith.constant 0 : i32
    %c0_i32_0 = arith.constant 0 : i32
    %c0_i32_1 = arith.constant 0 : i32
    return %c0_i32, %c0_i32_0 : i32, i32
  }
  func.func @transform_5(%arg0: i32) -> (i32, i32) {
    %c0_i32 = arith.constant 0 : i32
    %c0_i32_0 = arith.constant 0 : i32
    %c0_i32_1 = arith.constant 0 : i32
    return %c0_i32, %c0_i32_0 : i32, i32
  }
  func.func @transform_6(%arg0: i32) -> (i32, i32) {
    %c0_i32 = arith.constant 0 : i32
    %c0_i32_0 = arith.constant 0 : i32
    %c0_i32_1 = arith.constant 0 : i32
    return %c0_i32, %c0_i32_0 : i32, i32
  }
  func.func @transform_7(%arg0: i32) -> (i32, i32) {
    %c0_i32 = arith.constant 0 : i32
    %c0_i32_0 = arith.constant 0 : i32
    %c0_i32_1 = arith.constant 0 : i32
    return %c0_i32, %c0_i32_0 : i32, i32
  }
  func.func @transform_8(%arg0: i32) -> (i32, i32) {
    %c0_i32 = arith.constant 0 : i32
    %c0_i32_0 = arith.constant 0 : i32
    %c0_i32_1 = arith.constant 0 : i32
    return %c0_i32, %c0_i32_0 : i32, i32
  }
  func.func @transform_9(%arg0: i32) -> (i32, i32) {
    %c0_i32 = arith.constant 0 : i32
    %c0_i32_0 = arith.constant 0 : i32
    return %arg0, %c0_i32 : i32, i32
  }
}

module attributes {stable_mosaic.version = 11 : i64} {
  func.func @denoise_kernel(%arg0: i32, %arg1: memref<16x256xbf16, #tpu.memory_space<vmem>>, %arg2: memref<16x1024xbf16, #tpu.memory_space<vmem>>, %arg3: memref<256x1024xbf16, #tpu.memory_space<vmem>>, %arg4: memref<1024x512xbf16, #tpu.memory_space<vmem>>, %arg5: memref<1x512xf32, #tpu.memory_space<vmem>>, %arg6: memref<512x1024xbf16, #tpu.memory_space<vmem>>, %arg7: memref<1x1024xf32, #tpu.memory_space<vmem>>, %arg8: memref<1024x256xbf16, #tpu.memory_space<vmem>>, %arg9: memref<1x256xf32, #tpu.memory_space<vmem>>, %arg10: memref<16x256xf32, #tpu.memory_space<vmem>>) attributes {dimension_semantics = [#tpu.dimension_semantics<parallel>], iteration_bounds = array<i64: 1>, scalar_prefetch = 0 : i64, scratch_operands = 0 : i64, tpu.core_type = #tpu.core_type<tc>, window_params = [{transform_indices = @transform_0, window_bounds = array<i64: 16, 256>}, {transform_indices = @transform_1, window_bounds = array<i64: 16, 1024>}, {pipeline_mode = #tpu.pipeline_mode<synchronous>, transform_indices = @transform_2, window_bounds = array<i64: 256, 1024>}, {pipeline_mode = #tpu.pipeline_mode<synchronous>, transform_indices = @transform_3, window_bounds = array<i64: 1024, 512>}, {pipeline_mode = #tpu.pipeline_mode<synchronous>, transform_indices = @transform_4, window_bounds = array<i64: 1, 512>}, {pipeline_mode = #tpu.pipeline_mode<synchronous>, transform_indices = @transform_5, window_bounds = array<i64: 512, 1024>}, {pipeline_mode = #tpu.pipeline_mode<synchronous>, transform_indices = @transform_6, window_bounds = array<i64: 1, 1024>}, {pipeline_mode = #tpu.pipeline_mode<synchronous>, transform_indices = @transform_7, window_bounds = array<i64: 1024, 256>}, {pipeline_mode = #tpu.pipeline_mode<synchronous>, transform_indices = @transform_8, window_bounds = array<i64: 1, 256>}, {transform_indices = @transform_9, window_bounds = array<i64: 16, 256>}]} {
    %c0 = arith.constant 0 : index
    %c0_0 = arith.constant 0 : index
    %0 = vector.load %arg1[%c0, %c0_0] : memref<16x256xbf16, #tpu.memory_space<vmem>>, vector<16x256xbf16>
    %c0_1 = arith.constant 0 : index
    %c0_2 = arith.constant 0 : index
    %1 = vector.load %arg3[%c0_1, %c0_2] : memref<256x1024xbf16, #tpu.memory_space<vmem>>, vector<256x1024xbf16>
    %cst = arith.constant dense<0.000000e+00> : vector<16x1024xf32>
    %2 = tpu.matmul %0, %1, %cst {dimension_numbers = #tpu.dot_dimension_numbers<[1], [0], [0], [1], [0, 0, 1, 1], [], []>} : vector<16x256xbf16>, vector<256x1024xbf16>, vector<16x1024xf32> -> vector<16x1024xf32>
    %c0_3 = arith.constant 0 : index
    %c0_4 = arith.constant 0 : index
    %3 = vector.load %arg2[%c0_3, %c0_4] : memref<16x1024xbf16, #tpu.memory_space<vmem>>, vector<16x1024xbf16>
    %4 = arith.extf %3 : vector<16x1024xbf16> to vector<16x1024xf32>
    %5 = arith.addf %2, %4 : vector<16x1024xf32>
    %cst_5 = arith.constant 0.000000e+00 : f32
    %6 = vector.broadcast %cst_5 : f32 to vector<16x1024xf32>
    %7 = arith.subf %6, %5 : vector<16x1024xf32>
    %8 = math.exp %7 : vector<16x1024xf32>
    %cst_6 = arith.constant 1.000000e+00 : f32
    %9 = vector.broadcast %cst_6 : f32 to vector<16x1024xf32>
    %10 = arith.addf %9, %8 : vector<16x1024xf32>
    %cst_7 = arith.constant 1.000000e+00 : f32
    %11 = vector.broadcast %cst_7 : f32 to vector<16x1024xf32>
    %12 = arith.divf %11, %10 : vector<16x1024xf32>
    %13 = arith.mulf %5, %12 : vector<16x1024xf32>
    %14 = arith.truncf %13 : vector<16x1024xf32> to vector<16x1024xbf16>
    %c0_8 = arith.constant 0 : index
    %c0_9 = arith.constant 0 : index
    %15 = vector.load %arg4[%c0_8, %c0_9] : memref<1024x512xbf16, #tpu.memory_space<vmem>>, vector<1024x512xbf16>
    %cst_10 = arith.constant dense<0.000000e+00> : vector<16x512xf32>
    %16 = tpu.matmul %14, %15, %cst_10 {dimension_numbers = #tpu.dot_dimension_numbers<[1], [0], [0], [1], [0, 0, 1, 1], [], []>} : vector<16x1024xbf16>, vector<1024x512xbf16>, vector<16x512xf32> -> vector<16x512xf32>
    %c0_11 = arith.constant 0 : index
    %c0_12 = arith.constant 0 : index
    %17 = vector.load %arg5[%c0_11, %c0_12] : memref<1x512xf32, #tpu.memory_space<vmem>>, vector<1x512xf32>
    %18 = vector.broadcast %17 : vector<1x512xf32> to vector<16x512xf32>
    %19 = arith.addf %16, %18 : vector<16x512xf32>
    %cst_13 = arith.constant 0.000000e+00 : f32
    %20 = vector.broadcast %cst_13 : f32 to vector<16x512xf32>
    %21 = arith.subf %20, %19 : vector<16x512xf32>
    %22 = math.exp %21 : vector<16x512xf32>
    %cst_14 = arith.constant 1.000000e+00 : f32
    %23 = vector.broadcast %cst_14 : f32 to vector<16x512xf32>
    %24 = arith.addf %23, %22 : vector<16x512xf32>
    %cst_15 = arith.constant 1.000000e+00 : f32
    %25 = vector.broadcast %cst_15 : f32 to vector<16x512xf32>
    %26 = arith.divf %25, %24 : vector<16x512xf32>
    %27 = arith.mulf %19, %26 : vector<16x512xf32>
    %28 = arith.truncf %27 : vector<16x512xf32> to vector<16x512xbf16>
    %c0_16 = arith.constant 0 : index
    %c0_17 = arith.constant 0 : index
    %29 = vector.load %arg6[%c0_16, %c0_17] : memref<512x1024xbf16, #tpu.memory_space<vmem>>, vector<512x1024xbf16>
    %cst_18 = arith.constant dense<0.000000e+00> : vector<16x1024xf32>
    %30 = tpu.matmul %28, %29, %cst_18 {dimension_numbers = #tpu.dot_dimension_numbers<[1], [0], [0], [1], [0, 0, 1, 1], [], []>} : vector<16x512xbf16>, vector<512x1024xbf16>, vector<16x1024xf32> -> vector<16x1024xf32>
    %c0_19 = arith.constant 0 : index
    %c0_20 = arith.constant 0 : index
    %31 = vector.load %arg7[%c0_19, %c0_20] : memref<1x1024xf32, #tpu.memory_space<vmem>>, vector<1x1024xf32>
    %32 = vector.broadcast %31 : vector<1x1024xf32> to vector<16x1024xf32>
    %33 = arith.addf %30, %32 : vector<16x1024xf32>
    %cst_21 = arith.constant 0.000000e+00 : f32
    %34 = vector.broadcast %cst_21 : f32 to vector<16x1024xf32>
    %35 = arith.subf %34, %33 : vector<16x1024xf32>
    %36 = math.exp %35 : vector<16x1024xf32>
    %cst_22 = arith.constant 1.000000e+00 : f32
    %37 = vector.broadcast %cst_22 : f32 to vector<16x1024xf32>
    %38 = arith.addf %37, %36 : vector<16x1024xf32>
    %cst_23 = arith.constant 1.000000e+00 : f32
    %39 = vector.broadcast %cst_23 : f32 to vector<16x1024xf32>
    %40 = arith.divf %39, %38 : vector<16x1024xf32>
    %41 = arith.mulf %33, %40 : vector<16x1024xf32>
    %42 = arith.truncf %41 : vector<16x1024xf32> to vector<16x1024xbf16>
    %c0_24 = arith.constant 0 : index
    %c0_25 = arith.constant 0 : index
    %43 = vector.load %arg8[%c0_24, %c0_25] : memref<1024x256xbf16, #tpu.memory_space<vmem>>, vector<1024x256xbf16>
    %cst_26 = arith.constant dense<0.000000e+00> : vector<16x256xf32>
    %44 = tpu.matmul %42, %43, %cst_26 {dimension_numbers = #tpu.dot_dimension_numbers<[1], [0], [0], [1], [0, 0, 1, 1], [], []>} : vector<16x1024xbf16>, vector<1024x256xbf16>, vector<16x256xf32> -> vector<16x256xf32>
    %c0_27 = arith.constant 0 : index
    %c0_28 = arith.constant 0 : index
    %45 = vector.load %arg9[%c0_27, %c0_28] : memref<1x256xf32, #tpu.memory_space<vmem>>, vector<1x256xf32>
    %46 = vector.broadcast %45 : vector<1x256xf32> to vector<16x256xf32>
    %47 = arith.addf %44, %46 : vector<16x256xf32>
    %48 = math.tanh %47 : vector<16x256xf32>
    %c0_29 = arith.constant 0 : index
    %c0_30 = arith.constant 0 : index
    %49 = vector.load %arg10[%c0_29, %c0_30] : memref<16x256xf32, #tpu.memory_space<vmem>>, vector<16x256xf32>
    tpu.vector_store %arg10[%c0_29, %c0_30], %48 {strides = array<i32>} : memref<16x256xf32, #tpu.memory_space<vmem>>, vector<16x256xf32>,
    return
  }
  func.func @transform_0(%arg0: i32) -> (i32, i32) {
    %c0_i32 = arith.constant 0 : i32
    %c0_i32_0 = arith.constant 0 : i32
    return %arg0, %c0_i32 : i32, i32
  }
  func.func @transform_1(%arg0: i32) -> (i32, i32) {
    %c0_i32 = arith.constant 0 : i32
    %c0_i32_0 = arith.constant 0 : i32
    return %arg0, %c0_i32 : i32, i32
  }
  func.func @transform_2(%arg0: i32) -> (i32, i32) {
    %c0_i32 = arith.constant 0 : i32
    %c0_i32_0 = arith.constant 0 : i32
    %c0_i32_1 = arith.constant 0 : i32
    return %c0_i32, %c0_i32_0 : i32, i32
  }
  func.func @transform_3(%arg0: i32) -> (i32, i32) {
    %c0_i32 = arith.constant 0 : i32
    %c0_i32_0 = arith.constant 0 : i32
    %c0_i32_1 = arith.constant 0 : i32
    return %c0_i32, %c0_i32_0 : i32, i32
  }
  func.func @transform_4(%arg0: i32) -> (i32, i32) {
    %c0_i32 = arith.constant 0 : i32
    %c0_i32_0 = arith.constant 0 : i32
    %c0_i32_1 = arith.constant 0 : i32
    return %c0_i32, %c0_i32_0 : i32, i32
  }
  func.func @transform_5(%arg0: i32) -> (i32, i32) {
    %c0_i32 = arith.constant 0 : i32
    %c0_i32_0 = arith.constant 0 : i32
    %c0_i32_1 = arith.constant 0 : i32
    return %c0_i32, %c0_i32_0 : i32, i32
  }
  func.func @transform_6(%arg0: i32) -> (i32, i32) {
    %c0_i32 = arith.constant 0 : i32
    %c0_i32_0 = arith.constant 0 : i32
    %c0_i32_1 = arith.constant 0 : i32
    return %c0_i32, %c0_i32_0 : i32, i32
  }
  func.func @transform_7(%arg0: i32) -> (i32, i32) {
    %c0_i32 = arith.constant 0 : i32
    %c0_i32_0 = arith.constant 0 : i32
    %c0_i32_1 = arith.constant 0 : i32
    return %c0_i32, %c0_i32_0 : i32, i32
  }
  func.func @transform_8(%arg0: i32) -> (i32, i32) {
    %c0_i32 = arith.constant 0 : i32
    %c0_i32_0 = arith.constant 0 : i32
    %c0_i32_1 = arith.constant 0 : i32
    return %c0_i32, %c0_i32_0 : i32, i32
  }
  func.func @transform_9(%arg0: i32) -> (i32, i32) {
    %c0_i32 = arith.constant 0 : i32
    %c0_i32_0 = arith.constant 0 : i32
    return %arg0, %c0_i32 : i32, i32
  }
}

</mosaic_0001>

<llo_original>
// kernel: tpu_custom_call.1
$region0: #{tpu_custom_call.1}
  #allocation0 [shape = 'u32[]', space=smem, size = 0x4, offset = 0x4, fixed_abs, tag = 'smem constant byte address 0x4 - core index']
  #allocation1 [shape = 'u32[144,128]{1,0:T(1,128)}', space=vmem, size = 0x12000, scoped, tag = 'internal scratch']
  %s0 = inlined_call_operand.hbm [shape: bf16[16,256], index: 0, kind: input, shape index: {}]
  %s1 = inlined_call_operand.hbm [shape: bf16[16,1024], index: 1, kind: input, shape index: {}]
  %s2 = inlined_call_operand.hbm [shape: bf16[256,1024], index: 2, kind: input, shape index: {}]
  %s3 = inlined_call_operand.hbm [shape: bf16[1024,512], index: 3, kind: input, shape index: {}]
  %s4 = inlined_call_operand.vmem [shape: f32[1,512], index: 4, kind: input, shape index: {}]
  %s5 = inlined_call_operand.hbm [shape: bf16[512,1024], index: 5, kind: input, shape index: {}]
  %s6 = inlined_call_operand.vmem [shape: f32[1,1024], index: 6, kind: input, shape index: {}]
  %s7 = inlined_call_operand.hbm [shape: bf16[1024,256], index: 7, kind: input, shape index: {}]
  %s8 = inlined_call_operand.vmem [shape: f32[1,256], index: 8, kind: input, shape index: {}]
  %s9 = inlined_call_operand.hbm [shape: f32[16,256], index: 9, kind: output, shape index: {}]
  %s10 = sld [smem:[#allocation0]]
  $region70: #{tpu_custom_call.1} parent=0
    _
  %s12 = ssub.s32 1, %s10
  %s13 = scalar_select 0, %s12, %s10
  $region1: #{tpu_custom_call.1} parent=0
    #allocation2 [shape = 'u8[8192]{0}', space=vmem, size = 0x2000, scoped, tag = 'input window, operand 0, single buffered']
    #allocation3 [shape = 's32[1]{0}', space=sflag, size = 0x4, scoped, tag = 'scoped memory for tpu_custom_call.1']
    #allocation4 [shape = 's32[1]{0}', space=sflag, size = 0x4, scoped, tag = 'scoped memory for tpu_custom_call.1']
    #allocation5 [shape = 'u8[32768]{0}', space=vmem, size = 0x8000, scoped, tag = 'input window, operand 1, single buffered']
    #allocation6 [shape = 's32[1]{0}', space=sflag, size = 0x4, scoped, tag = 'scoped memory for tpu_custom_call.1']
    #allocation7 [shape = 'u8[524288]{0}', space=vmem, size = 0x80000, scoped, tag = 'input window, operand 2, single buffered']
    #allocation8 [shape = 'u8[1048576]{0}', space=vmem, size = 0x100000, scoped, tag = 'input window, operand 3, single buffered']
    #allocation9 [shape = 's32[1]{0}', space=sflag, size = 0x4, scoped, tag = 'scoped memory for tpu_custom_call.1']
    #allocation10 [shape = 'u8[1048576]{0}', space=vmem, size = 0x100000, scoped, tag = 'input window, operand 5, single buffered']
    #allocation11 [shape = 'u8[524288]{0}', space=vmem, size = 0x80000, scoped, tag = 'input window, operand 7, single buffered']
    #allocation12 [shape = 's32[1]{0}', space=sflag, size = 0x4, scoped, tag = 'scoped memory for tpu_custom_call.1']
    #allocation13 [shape = 'u8[16384]{0}', space=vmem, size = 0x4000, scoped, tag = 'output window, operand 0, single buffered']
    %14 = vsyncpa [#allocation3], 0
    %15 = vsyncpa [#allocation6], 0
    %16 = vsyncpa [#allocation9], 0
    %17 = vsyncpa [#allocation12], 0
    %18 = vsyncpa [#allocation4], 0
    // Predicated region
    $region2: #{tpu_custom_call.1} parent=1 // pred_check
      _
    $region3: #{tpu_custom_call.1} parent=1 // pred_check_branch
      %20 = sbr.rel (0) target = $region5
    $region4: #{tpu_custom_call.1} parent=1 // pred_region
      %s22 = ssub.s32 256, 256
      %23 = vsyncadd [#allocation3], %s22
      %s24 = sshll.u32 [#allocation2], 4
      %s25 = int_to_ptr.vmem [resolvable:$true] %s24
      %30 = dma.hbm_to_vmem [thread:$0]  %s0, 256, %s25, [#allocation3], 128, 128, 8
    $region5: #{tpu_custom_call.1} parent=1 // pred_fallthru
      _
    // Predicated region
    $region6: #{tpu_custom_call.1} parent=1 // pred_check
      _
    $region7: #{tpu_custom_call.1} parent=1 // pred_check_branch
      %32 = sbr.rel (0) target = $region9
    $region8: #{tpu_custom_call.1} parent=1 // pred_region
      %s34 = ssub.s32 1024, 1024
      %35 = vsyncadd [#allocation6], %s34
      %s36 = sshll.u32 [#allocation5], 4
      %s37 = int_to_ptr.vmem [resolvable:$true] %s36
      %42 = dma.hbm_to_vmem [thread:$0]  %s1, 1024, %s37, [#allocation6], 512, 512, 32
    $region9: #{tpu_custom_call.1} parent=1 // pred_fallthru
      _
    // Predicated region
    $region10: #{tpu_custom_call.1} parent=1 // pred_check
      _
    $region11: #{tpu_custom_call.1} parent=1 // pred_check_branch
      %44 = sbr.rel (0) target = $region13
    $region12: #{tpu_custom_call.1} parent=1 // pred_region
      %s46 = ssub.s32 16384, 16384
      %47 = vsyncadd [#allocation6], %s46
      %s48 = sshll.u32 [#allocation7], 4
      %s49 = int_to_ptr.vmem [resolvable:$true] %s48
      %54 = dma.hbm_to_vmem [thread:$0]  %s2, 16384, %s49, [#allocation6], 512, 512, 32
    $region13: #{tpu_custom_call.1} parent=1 // pred_fallthru
      _
    // Predicated region
    $region14: #{tpu_custom_call.1} parent=1 // pred_check
      _
    $region15: #{tpu_custom_call.1} parent=1 // pred_check_branch
      %56 = sbr.rel (0) target = $region17
    $region16: #{tpu_custom_call.1} parent=1 // pred_region
      %s58 = ssub.s32 32768, 32768
      %59 = vsyncadd [#allocation9], %s58
      %s60 = sshll.u32 [#allocation8], 4
      %s61 = int_to_ptr.vmem [resolvable:$true] %s60
      %66 = dma.hbm_to_vmem [thread:$0]  %s3, 32768, %s61, [#allocation9], 256, 256, 16
    $region17: #{tpu_custom_call.1} parent=1 // pred_fallthru
      _
    // Predicated region
    $region18: #{tpu_custom_call.1} parent=1 // pred_check
      _
    $region19: #{tpu_custom_call.1} parent=1 // pred_check_branch
      %68 = sbr.rel (0) target = $region21
    $region20: #{tpu_custom_call.1} parent=1 // pred_region
      _
    $region21: #{tpu_custom_call.1} parent=1 // pred_fallthru
      _
    // Predicated region
    $region22: #{tpu_custom_call.1} parent=1 // pred_check
      _
    $region23: #{tpu_custom_call.1} parent=1 // pred_check_branch
      %70 = sbr.rel (0) target = $region25
    $region24: #{tpu_custom_call.1} parent=1 // pred_region
      %s72 = ssub.s32 32768, 32768
      %73 = vsyncadd [#allocation9], %s72
      %s74 = sshll.u32 [#allocation10], 4
      %s75 = int_to_ptr.vmem [resolvable:$true] %s74
      %80 = dma.hbm_to_vmem [thread:$0]  %s5, 32768, %s75, [#allocation9], 512, 512, 32
    $region25: #{tpu_custom_call.1} parent=1 // pred_fallthru
      _
    // Predicated region
    $region26: #{tpu_custom_call.1} parent=1 // pred_check
      _
    $region27: #{tpu_custom_call.1} parent=1 // pred_check_branch
      %82 = sbr.rel (0) target = $region29
    $region28: #{tpu_custom_call.1} parent=1 // pred_region
      _
    $region29: #{tpu_custom_call.1} parent=1 // pred_fallthru
      _
    // Predicated region
    $region30: #{tpu_custom_call.1} parent=1 // pred_check
      _
    $region31: #{tpu_custom_call.1} parent=1 // pred_check_branch
      %84 = sbr.rel (0) target = $region33
    $region32: #{tpu_custom_call.1} parent=1 // pred_region
      %s86 = ssub.s32 16384, 16384
      %87 = vsyncadd [#allocation12], %s86
      %s88 = sshll.u32 [#allocation11], 4
      %s89 = int_to_ptr.vmem [resolvable:$true] %s88
      %94 = dma.hbm_to_vmem [thread:$0]  %s7, 16384, %s89, [#allocation12], 128, 128, 8
    $region33: #{tpu_custom_call.1} parent=1 // pred_fallthru
      _
    // Predicated region
    $region34: #{tpu_custom_call.1} parent=1 // pred_check
      _
    $region35: #{tpu_custom_call.1} parent=1 // pred_check_branch
      %96 = sbr.rel (0) target = $region37
    $region36: #{tpu_custom_call.1} parent=1 // pred_region
      _
    $region37: #{tpu_custom_call.1} parent=1 // pred_fallthru
      _
    // Predicated region
    $region38: #{tpu_custom_call.1} parent=1 // pred_check
      _
    $region39: #{tpu_custom_call.1} parent=1 // pred_check_branch
      %98 = sbr.rel (0) target = $region41
    $region40: #{tpu_custom_call.1} parent=1 // pred_region
      %99 = dma.done [#allocation3], 256
    $region41: #{tpu_custom_call.1} parent=1 // pred_fallthru
      _
    // Predicated region
    $region42: #{tpu_custom_call.1} parent=1 // pred_check
      _
    $region43: #{tpu_custom_call.1} parent=1 // pred_check_branch
      %101 = sbr.rel (0) target = $region45
    $region44: #{tpu_custom_call.1} parent=1 // pred_region
      %102 = dma.done [#allocation6], 1024
    $region45: #{tpu_custom_call.1} parent=1 // pred_fallthru
      _
    // Predicated region
    $region46: #{tpu_custom_call.1} parent=1 // pred_check
      _
    $region47: #{tpu_custom_call.1} parent=1 // pred_check_branch
      %104 = sbr.rel (0) target = $region49
    $region48: #{tpu_custom_call.1} parent=1 // pred_region
      %105 = dma.done [#allocation6], 16384
    $region49: #{tpu_custom_call.1} parent=1 // pred_fallthru
      _
    // Predicated region
    $region50: #{tpu_custom_call.1} parent=1 // pred_check
      _
    $region51: #{tpu_custom_call.1} parent=1 // pred_check_branch
      %107 = sbr.rel (0) target = $region53
    $region52: #{tpu_custom_call.1} parent=1 // pred_region
      %108 = dma.done [#allocation9], 32768
    $region53: #{tpu_custom_call.1} parent=1 // pred_fallthru
      _
    // Predicated region
    $region54: #{tpu_custom_call.1} parent=1 // pred_check
      _
    $region55: #{tpu_custom_call.1} parent=1 // pred_check_branch
      %110 = sbr.rel (0) target = $region57
    $region56: #{tpu_custom_call.1} parent=1 // pred_region
      %111 = dma.done [#allocation9], 32768
    $region57: #{tpu_custom_call.1} parent=1 // pred_fallthru
      _
    // Predicated region
    $region58: #{tpu_custom_call.1} parent=1 // pred_check
      _
    $region59: #{tpu_custom_call.1} parent=1 // pred_check_branch
      %113 = sbr.rel (0) target = $region61
    $region60: #{tpu_custom_call.1} parent=1 // pred_region
      %114 = dma.done [#allocation12], 16384
    $region61: #{tpu_custom_call.1} parent=1 // pred_fallthru
      _
    %v115 = vld [vmem:[#allocation2] sm:$0xff]
    %v116 = vld [vmem:[#allocation2 + $0x8] sm:$0xff]
    %v117 = vld [vmem:[#allocation7] sm:$0xff]
    %v118 = vld [vmem:[#allocation7 + $0x8] sm:$0xff]
    %v119 = vld [vmem:[#allocation7 + $0x10] sm:$0xff]
    %v120 = vld [vmem:[#allocation7 + $0x18] sm:$0xff]
    %v121 = vld [vmem:[#allocation7 + $0x20] sm:$0xff]
    %v122 = vld [vmem:[#allocation7 + $0x28] sm:$0xff]
    %v123 = vld [vmem:[#allocation7 + $0x30] sm:$0xff]
    %v124 = vld [vmem:[#allocation7 + $0x38] sm:$0xff]
    %v125 = vld [vmem:[#allocation7 + $0x40] sm:$0xff]
    %v126 = vld [vmem:[#allocation7 + $0x48] sm:$0xff]
    %v127 = vld [vmem:[#allocation7 + $0x50] sm:$0xff]
    %v128 = vld [vmem:[#allocation7 + $0x58] sm:$0xff]
    %v129 = vld [vmem:[#allocation7 + $0x60] sm:$0xff]
    %v130 = vld [vmem:[#allocation7 + $0x68] sm:$0xff]
    %v131 = vld [vmem:[#allocation7 + $0x70] sm:$0xff]
    %v132 = vld [vmem:[#allocation7 + $0x78] sm:$0xff]
    %v133 = vld [vmem:[#allocation7 + $0x80] sm:$0xff]
    %v134 = vld [vmem:[#allocation7 + $0x88] sm:$0xff]
    %v135 = vld [vmem:[#allocation7 + $0x90] sm:$0xff]
    %v136 = vld [vmem:[#allocation7 + $0x98] sm:$0xff]
    %v137 = vld [vmem:[#allocation7 + $0xa0] sm:$0xff]
    %v138 = vld [vmem:[#allocation7 + $0xa8] sm:$0xff]
    %v139 = vld [vmem:[#allocation7 + $0xb0] sm:$0xff]
    %v140 = vld [vmem:[#allocation7 + $0xb8] sm:$0xff]
    %v141 = vld [vmem:[#allocation7 + $0xc0] sm:$0xff]
    %v142 = vld [vmem:[#allocation7 + $0xc8] sm:$0xff]
    %v143 = vld [vmem:[#allocation7 + $0xd0] sm:$0xff]
    %v144 = vld [vmem:[#allocation7 + $0xd8] sm:$0xff]
    %v145 = vld [vmem:[#allocation7 + $0xe0] sm:$0xff]
    %v146 = vld [vmem:[#allocation7 + $0xe8] sm:$0xff]
    %v147 = vld [vmem:[#allocation7 + $0xf0] sm:$0xff]
    %v148 = vld [vmem:[#allocation7 + $0xf8] sm:$0xff]
    %v149 = vld [vmem:[#allocation7 + $0x100] sm:$0xff]
    %v150 = vld [vmem:[#allocation7 + $0x108] sm:$0xff]
    %v151 = vld [vmem:[#allocation7 + $0x110] sm:$0xff]
    %v152 = vld [vmem:[#allocation7 + $0x118] sm:$0xff]
    %v153 = vld [vmem:[#allocation7 + $0x120] sm:$0xff]
    %v154 = vld [vmem:[#allocation7 + $0x128] sm:$0xff]
    %v155 = vld [vmem:[#allocation7 + $0x130] sm:$0xff]
    %v156 = vld [vmem:[#allocation7 + $0x138] sm:$0xff]
    %v157 = vld [vmem:[#allocation7 + $0x140] sm:$0xff]
    %v158 = vld [vmem:[#allocation7 + $0x148] sm:$0xff]
    %v159 = vld [vmem:[#allocation7 + $0x150] sm:$0xff]
    %v160 = vld [vmem:[#allocation7 + $0x158] sm:$0xff]
    %v161 = vld [vmem:[#allocation7 + $0x160] sm:$0xff]
    %v162 = vld [vmem:[#allocation7 + $0x168] sm:$0xff]
    %v163 = vld [vmem:[#allocation7 + $0x170] sm:$0xff]
    %v164 = vld [vmem:[#allocation7 + $0x178] sm:$0xff]
    %v165 = vld [vmem:[#allocation7 + $0x180] sm:$0xff]
    %v166 = vld [vmem:[#allocation7 + $0x188] sm:$0xff]
    %v167 = vld [vmem:[#allocation7 + $0x190] sm:$0xff]
    %v168 = vld [vmem:[#allocation7 + $0x198] sm:$0xff]
    %v169 = vld [vmem:[#allocation7 + $0x1a0] sm:$0xff]
    %v170 = vld [vmem:[#allocation7 + $0x1a8] sm:$0xff]
    %v171 = vld [vmem:[#allocation7 + $0x1b0] sm:$0xff]
    %v172 = vld [vmem:[#allocation7 + $0x1b8] sm:$0xff]
    %v173 = vld [vmem:[#allocation7 + $0x1c0] sm:$0xff]
    %v174 = vld [vmem:[#allocation7 + $0x1c8] sm:$0xff]
    %v175 = vld [vmem:[#allocation7 + $0x1d0] sm:$0xff]
    %v176 = vld [vmem:[#allocation7 + $0x1d8] sm:$0xff]
    %v177 = vld [vmem:[#allocation7 + $0x1e0] sm:$0xff]
    %v178 = vld [vmem:[#allocation7 + $0x1e8] sm:$0xff]
    %v179 = vld [vmem:[#allocation7 + $0x1f0] sm:$0xff]
    %v180 = vld [vmem:[#allocation7 + $0x1f8] sm:$0xff]
    %v181 = vld [vmem:[#allocation7 + $0x200] sm:$0xff]
    %v182 = vld [vmem:[#allocation7 + $0x208] sm:$0xff]
    %v183 = vld [vmem:[#allocation7 + $0x210] sm:$0xff]
    %v184 = vld [vmem:[#allocation7 + $0x218] sm:$0xff]
    %v185 = vld [vmem:[#allocation7 + $0x220] sm:$0xff]
    %v186 = vld [vmem:[#allocation7 + $0x228] sm:$0xff]
    %v187 = vld [vmem:[#allocation7 + $0x230] sm:$0xff]
    %v188 = vld [vmem:[#allocation7 + $0x238] sm:$0xff]
    %v189 = vld [vmem:[#allocation7 + $0x240] sm:$0xff]
    %v190 = vld [vmem:[#allocation7 + $0x248] sm:$0xff]
    %v191 = vld [vmem:[#allocation7 + $0x250] sm:$0xff]
    %v192 = vld [vmem:[#allocation7 + $0x258] sm:$0xff]
    %v193 = vld [vmem:[#allocation7 + $0x260] sm:$0xff]
    %v194 = vld [vmem:[#allocation7 + $0x268] sm:$0xff]
    %v195 = vld [vmem:[#allocation7 + $0x270] sm:$0xff]
    %v196 = vld [vmem:[#allocation7 + $0x278] sm:$0xff]
    %v197 = vld [vmem:[#allocation7 + $0x280] sm:$0xff]
    %v198 = vld [vmem:[#allocation7 + $0x288] sm:$0xff]
    %v199 = vld [vmem:[#allocation7 + $0x290] sm:$0xff]
    %v200 = vld [vmem:[#allocation7 + $0x298] sm:$0xff]
    %v201 = vld [vmem:[#allocation7 + $0x2a0] sm:$0xff]
    %v202 = vld [vmem:[#allocation7 + $0x2a8] sm:$0xff]
    %v203 = vld [vmem:[#allocation7 + $0x2b0] sm:$0xff]
    %v204 = vld [vmem:[#allocation7 + $0x2b8] sm:$0xff]
    %v205 = vld [vmem:[#allocation7 + $0x2c0] sm:$0xff]
    %v206 = vld [vmem:[#allocation7 + $0x2c8] sm:$0xff]
    %v207 = vld [vmem:[#allocation7 + $0x2d0] sm:$0xff]
    %v208 = vld [vmem:[#allocation7 + $0x2d8] sm:$0xff]
    %v209 = vld [vmem:[#allocation7 + $0x2e0] sm:$0xff]
    %v210 = vld [vmem:[#allocation7 + $0x2e8] sm:$0xff]
    %v211 = vld [vmem:[#allocation7 + $0x2f0] sm:$0xff]
    %v212 = vld [vmem:[#allocation7 + $0x2f8] sm:$0xff]
    %v213 = vld [vmem:[#allocation7 + $0x300] sm:$0xff]
    %v214 = vld [vmem:[#allocation7 + $0x308] sm:$0xff]
    %v215 = vld [vmem:[#allocation7 + $0x310] sm:$0xff]
    %v216 = vld [vmem:[#allocation7 + $0x318] sm:$0xff]
    %v217 = vld [vmem:[#allocation7 + $0x320] sm:$0xff]
    %v218 = vld [vmem:[#allocation7 + $0x328] sm:$0xff]
    %v219 = vld [vmem:[#allocation7 + $0x330] sm:$0xff]
    %v220 = vld [vmem:[#allocation7 + $0x338] sm:$0xff]
    %v221 = vld [vmem:[#allocation7 + $0x340] sm:$0xff]
    %v222 = vld [vmem:[#allocation7 + $0x348] sm:$0xff]
    %v223 = vld [vmem:[#allocation7 + $0x350] sm:$0xff]
    %v224 = vld [vmem:[#allocation7 + $0x358] sm:$0xff]
    %v225 = vld [vmem:[#allocation7 + $0x360] sm:$0xff]
    %v226 = vld [vmem:[#allocation7 + $0x368] sm:$0xff]
    %v227 = vld [vmem:[#allocation7 + $0x370] sm:$0xff]
    %v228 = vld [vmem:[#allocation7 + $0x378] sm:$0xff]
    %v229 = vld [vmem:[#allocation7 + $0x380] sm:$0xff]
    %v230 = vld [vmem:[#allocation7 + $0x388] sm:$0xff]
    %v231 = vld [vmem:[#allocation7 + $0x390] sm:$0xff]
    %v232 = vld [vmem:[#allocation7 + $0x398] sm:$0xff]
    %v233 = vld [vmem:[#allocation7 + $0x3a0] sm:$0xff]
    %v234 = vld [vmem:[#allocation7 + $0x3a8] sm:$0xff]
    %v235 = vld [vmem:[#allocation7 + $0x3b0] sm:$0xff]
    %v236 = vld [vmem:[#allocation7 + $0x3b8] sm:$0xff]
    %v237 = vld [vmem:[#allocation7 + $0x3c0] sm:$0xff]
    %v238 = vld [vmem:[#allocation7 + $0x3c8] sm:$0xff]
    %v239 = vld [vmem:[#allocation7 + $0x3d0] sm:$0xff]
    %v240 = vld [vmem:[#allocation7 + $0x3d8] sm:$0xff]
    %v241 = vld [vmem:[#allocation7 + $0x3e0] sm:$0xff]
    %v242 = vld [vmem:[#allocation7 + $0x3e8] sm:$0xff]
    %v243 = vld [vmem:[#allocation7 + $0x3f0] sm:$0xff]
    %v244 = vld [vmem:[#allocation7 + $0x3f8] sm:$0xff]
    %v245 = vld [vmem:[#allocation5] sm:$0xff]
    %v246 = vld [vmem:[#allocation5 + $0x8] sm:$0xff]
    %v247 = vld [vmem:[#allocation5 + $0x10] sm:$0xff]
    %v248 = vld [vmem:[#allocation5 + $0x18] sm:$0xff]
    %v249 = vld [vmem:[#allocation5 + $0x20] sm:$0xff]
    %v250 = vld [vmem:[#allocation5 + $0x28] sm:$0xff]
    %v251 = vld [vmem:[#allocation5 + $0x30] sm:$0xff]
    %v252 = vld [vmem:[#allocation5 + $0x38] sm:$0xff]
    %v253 = vunpack.c.l.bf16 %v245
    %v254 = vunpack.c.h.bf16 %v245
    %v255 = vunpack.c.l.bf16 %v246
    %v256 = vunpack.c.h.bf16 %v246
    %v257 = vunpack.c.l.bf16 %v247
    %v258 = vunpack.c.h.bf16 %v247
    %v259 = vunpack.c.l.bf16 %v248
    %v260 = vunpack.c.h.bf16 %v248
    %v261 = vunpack.c.l.bf16 %v249
    %v262 = vunpack.c.h.bf16 %v249
    %v263 = vunpack.c.l.bf16 %v250
    %v264 = vunpack.c.h.bf16 %v250
    %v265 = vunpack.c.l.bf16 %v251
    %v266 = vunpack.c.h.bf16 %v251
    %v267 = vunpack.c.l.bf16 %v252
    %v268 = vunpack.c.h.bf16 %v252
    %v271 = vunpack.c.l.b16 %v115
    %v272 = vunpack.c.h.b16 %v115
    %v273 = vunpack.c.l.b16 %v116
    %v274 = vunpack.c.h.b16 %v116
    %v275 = vpack.c.b16 %v273, %v271
    %v276 = vpack.c.b16 %v274, %v272
    %v407 = vunpack.c.l.b16 %v117
    %v408 = vunpack.c.h.b16 %v117
    %v409 = vunpack.c.l.b16 %v118
    %v410 = vunpack.c.h.b16 %v118
    %v411 = vunpack.c.l.b16 %v119
    %v412 = vunpack.c.h.b16 %v119
    %v413 = vunpack.c.l.b16 %v120
    %v414 = vunpack.c.h.b16 %v120
    %v415 = vunpack.c.l.b16 %v121
    %v416 = vunpack.c.h.b16 %v121
    %v417 = vunpack.c.l.b16 %v122
    %v418 = vunpack.c.h.b16 %v122
    %v419 = vunpack.c.l.b16 %v123
    %v420 = vunpack.c.h.b16 %v123
    %v421 = vunpack.c.l.b16 %v124
    %v422 = vunpack.c.h.b16 %v124
    %v423 = vunpack.c.l.b16 %v125
    %v424 = vunpack.c.h.b16 %v125
    %v425 = vunpack.c.l.b16 %v126
    %v426 = vunpack.c.h.b16 %v126
    %v427 = vunpack.c.l.b16 %v127
    %v428 = vunpack.c.h.b16 %v127
    %v429 = vunpack.c.l.b16 %v128
    %v430 = vunpack.c.h.b16 %v128
    %v431 = vunpack.c.l.b16 %v129
    %v432 = vunpack.c.h.b16 %v129
    %v433 = vunpack.c.l.b16 %v130
    %v434 = vunpack.c.h.b16 %v130
    %v435 = vunpack.c.l.b16 %v131
    %v436 = vunpack.c.h.b16 %v131
    %v437 = vunpack.c.l.b16 %v132
    %v438 = vunpack.c.h.b16 %v132
    %v439 = vunpack.c.l.b16 %v133
    %v440 = vunpack.c.h.b16 %v133
    %v441 = vunpack.c.l.b16 %v134
    %v442 = vunpack.c.h.b16 %v134
    %v443 = vunpack.c.l.b16 %v135
    %v444 = vunpack.c.h.b16 %v135
    %v445 = vunpack.c.l.b16 %v136
    %v446 = vunpack.c.h.b16 %v136
    %v447 = vunpack.c.l.b16 %v137
    %v448 = vunpack.c.h.b16 %v137
    %v449 = vunpack.c.l.b16 %v138
    %v450 = vunpack.c.h.b16 %v138
    %v451 = vunpack.c.l.b16 %v139
    %v452 = vunpack.c.h.b16 %v139
    %v453 = vunpack.c.l.b16 %v140
    %v454 = vunpack.c.h.b16 %v140
    %v455 = vunpack.c.l.b16 %v141
    %v456 = vunpack.c.h.b16 %v141
    %v457 = vunpack.c.l.b16 %v142
    %v458 = vunpack.c.h.b16 %v142
    %v459 = vunpack.c.l.b16 %v143
    %v460 = vunpack.c.h.b16 %v143
    %v461 = vunpack.c.l.b16 %v144
    %v462 = vunpack.c.h.b16 %v144
    %v463 = vunpack.c.l.b16 %v145
    %v464 = vunpack.c.h.b16 %v145
    %v465 = vunpack.c.l.b16 %v146
    %v466 = vunpack.c.h.b16 %v146
    %v467 = vunpack.c.l.b16 %v147
    %v468 = vunpack.c.h.b16 %v147
    %v469 = vunpack.c.l.b16 %v148
    %v470 = vunpack.c.h.b16 %v148
    %v471 = vunpack.c.l.b16 %v149
    %v472 = vunpack.c.h.b16 %v149
    %v473 = vunpack.c.l.b16 %v150
    %v474 = vunpack.c.h.b16 %v150
    %v475 = vunpack.c.l.b16 %v151
    %v476 = vunpack.c.h.b16 %v151
    %v477 = vunpack.c.l.b16 %v152
    %v478 = vunpack.c.h.b16 %v152
    %v479 = vunpack.c.l.b16 %v153
    %v480 = vunpack.c.h.b16 %v153
    %v481 = vunpack.c.l.b16 %v154
    %v482 = vunpack.c.h.b16 %v154
    %v483 = vunpack.c.l.b16 %v155
    %v484 = vunpack.c.h.b16 %v155
    %v485 = vunpack.c.l.b16 %v156
    %v486 = vunpack.c.h.b16 %v156
    %v487 = vunpack.c.l.b16 %v157
    %v488 = vunpack.c.h.b16 %v157
    %v489 = vunpack.c.l.b16 %v158
    %v490 = vunpack.c.h.b16 %v158
    %v491 = vunpack.c.l.b16 %v159
    %v492 = vunpack.c.h.b16 %v159
    %v493 = vunpack.c.l.b16 %v160
    %v494 = vunpack.c.h.b16 %v160
    %v495 = vunpack.c.l.b16 %v161
    %v496 = vunpack.c.h.b16 %v161
    %v497 = vunpack.c.l.b16 %v162
    %v498 = vunpack.c.h.b16 %v162
    %v499 = vunpack.c.l.b16 %v163
    %v500 = vunpack.c.h.b16 %v163
    %v501 = vunpack.c.l.b16 %v164
    %v502 = vunpack.c.h.b16 %v164
    %v503 = vunpack.c.l.b16 %v165
    %v504 = vunpack.c.h.b16 %v165
    %v505 = vunpack.c.l.b16 %v166
    %v506 = vunpack.c.h.b16 %v166
    %v507 = vunpack.c.l.b16 %v167
    %v508 = vunpack.c.h.b16 %v167
    %v509 = vunpack.c.l.b16 %v168
    %v510 = vunpack.c.h.b16 %v168
    %v511 = vunpack.c.l.b16 %v169
    %v512 = vunpack.c.h.b16 %v169
    %v513 = vunpack.c.l.b16 %v170
    %v514 = vunpack.c.h.b16 %v170
    %v515 = vunpack.c.l.b16 %v171
    %v516 = vunpack.c.h.b16 %v171
    %v517 = vunpack.c.l.b16 %v172
    %v518 = vunpack.c.h.b16 %v172
    %v519 = vunpack.c.l.b16 %v173
    %v520 = vunpack.c.h.b16 %v173
    %v521 = vunpack.c.l.b16 %v174
    %v522 = vunpack.c.h.b16 %v174
    %v523 = vunpack.c.l.b16 %v175
    %v524 = vunpack.c.h.b16 %v175
    %v525 = vunpack.c.l.b16 %v176
    %v526 = vunpack.c.h.b16 %v176
    %v527 = vunpack.c.l.b16 %v177
    %v528 = vunpack.c.h.b16 %v177
    %v529 = vunpack.c.l.b16 %v178
    %v530 = vunpack.c.h.b16 %v178
    %v531 = vunpack.c.l.b16 %v179
    %v532 = vunpack.c.h.b16 %v179
    %v533 = vunpack.c.l.b16 %v180
    %v534 = vunpack.c.h.b16 %v180
    %v535 = vunpack.c.l.b16 %v181
    %v536 = vunpack.c.h.b16 %v181
    %v537 = vunpack.c.l.b16 %v182
    %v538 = vunpack.c.h.b16 %v182
    %v539 = vunpack.c.l.b16 %v183
    %v540 = vunpack.c.h.b16 %v183
    %v541 = vunpack.c.l.b16 %v184
    %v542 = vunpack.c.h.b16 %v184
    %v543 = vunpack.c.l.b16 %v185
    %v544 = vunpack.c.h.b16 %v185
    %v545 = vunpack.c.l.b16 %v186
    %v546 = vunpack.c.h.b16 %v186
    %v547 = vunpack.c.l.b16 %v187
    %v548 = vunpack.c.h.b16 %v187
    %v549 = vunpack.c.l.b16 %v188
    %v550 = vunpack.c.h.b16 %v188
    %v551 = vunpack.c.l.b16 %v189
    %v552 = vunpack.c.h.b16 %v189
    %v553 = vunpack.c.l.b16 %v190
    %v554 = vunpack.c.h.b16 %v190
    %v555 = vunpack.c.l.b16 %v191
    %v556 = vunpack.c.h.b16 %v191
    %v557 = vunpack.c.l.b16 %v192
    %v558 = vunpack.c.h.b16 %v192
    %v559 = vunpack.c.l.b16 %v193
    %v560 = vunpack.c.h.b16 %v193
    %v561 = vunpack.c.l.b16 %v194
    %v562 = vunpack.c.h.b16 %v194
    %v563 = vunpack.c.l.b16 %v195
    %v564 = vunpack.c.h.b16 %v195
    %v565 = vunpack.c.l.b16 %v196
    %v566 = vunpack.c.h.b16 %v196
    %v567 = vunpack.c.l.b16 %v197
    %v568 = vunpack.c.h.b16 %v197
    %v569 = vunpack.c.l.b16 %v198
    %v570 = vunpack.c.h.b16 %v198
    %v571 = vunpack.c.l.b16 %v199
    %v572 = vunpack.c.h.b16 %v199
    %v573 = vunpack.c.l.b16 %v200
    %v574 = vunpack.c.h.b16 %v200
    %v575 = vunpack.c.l.b16 %v201
    %v576 = vunpack.c.h.b16 %v201
    %v577 = vunpack.c.l.b16 %v202
    %v578 = vunpack.c.h.b16 %v202
    %v579 = vunpack.c.l.b16 %v203
    %v580 = vunpack.c.h.b16 %v203
    %v581 = vunpack.c.l.b16 %v204
    %v582 = vunpack.c.h.b16 %v204
    %v583 = vunpack.c.l.b16 %v205
    %v584 = vunpack.c.h.b16 %v205
    %v585 = vunpack.c.l.b16 %v206
    %v586 = vunpack.c.h.b16 %v206
    %v587 = vunpack.c.l.b16 %v207
    %v588 = vunpack.c.h.b16 %v207
    %v589 = vunpack.c.l.b16 %v208
    %v590 = vunpack.c.h.b16 %v208
    %v591 = vunpack.c.l.b16 %v209
    %v592 = vunpack.c.h.b16 %v209
    %v593 = vunpack.c.l.b16 %v210
    %v594 = vunpack.c.h.b16 %v210
    %v595 = vunpack.c.l.b16 %v211
    %v596 = vunpack.c.h.b16 %v211
    %v597 = vunpack.c.l.b16 %v212
    %v598 = vunpack.c.h.b16 %v212
    %v599 = vunpack.c.l.b16 %v213
    %v600 = vunpack.c.h.b16 %v213
    %v601 = vunpack.c.l.b16 %v214
    %v602 = vunpack.c.h.b16 %v214
    %v603 = vunpack.c.l.b16 %v215
    %v604 = vunpack.c.h.b16 %v215
    %v605 = vunpack.c.l.b16 %v216
    %v606 = vunpack.c.h.b16 %v216
    %v607 = vunpack.c.l.b16 %v217
    %v608 = vunpack.c.h.b16 %v217
    %v609 = vunpack.c.l.b16 %v218
    %v610 = vunpack.c.h.b16 %v218
    %v611 = vunpack.c.l.b16 %v219
    %v612 = vunpack.c.h.b16 %v219
    %v613 = vunpack.c.l.b16 %v220
    %v614 = vunpack.c.h.b16 %v220
    %v615 = vunpack.c.l.b16 %v221
    %v616 = vunpack.c.h.b16 %v221
    %v617 = vunpack.c.l.b16 %v222
    %v618 = vunpack.c.h.b16 %v222
    %v619 = vunpack.c.l.b16 %v223
    %v620 = vunpack.c.h.b16 %v223
    %v621 = vunpack.c.l.b16 %v224
    %v622 = vunpack.c.h.b16 %v224
    %v623 = vunpack.c.l.b16 %v225
    %v624 = vunpack.c.h.b16 %v225
    %v625 = vunpack.c.l.b16 %v226
    %v626 = vunpack.c.h.b16 %v226
    %v627 = vunpack.c.l.b16 %v227
    %v628 = vunpack.c.h.b16 %v227
    %v629 = vunpack.c.l.b16 %v228
    %v630 = vunpack.c.h.b16 %v228
    %v631 = vunpack.c.l.b16 %v229
    %v632 = vunpack.c.h.b16 %v229
    %v633 = vunpack.c.l.b16 %v230
    %v634 = vunpack.c.h.b16 %v230
    %v635 = vunpack.c.l.b16 %v231
    %v636 = vunpack.c.h.b16 %v231
    %v637 = vunpack.c.l.b16 %v232
    %v638 = vunpack.c.h.b16 %v232
    %v639 = vunpack.c.l.b16 %v233
    %v640 = vunpack.c.h.b16 %v233
    %v641 = vunpack.c.l.b16 %v234
    %v642 = vunpack.c.h.b16 %v234
    %v643 = vunpack.c.l.b16 %v235
    %v644 = vunpack.c.h.b16 %v235
    %v645 = vunpack.c.l.b16 %v236
    %v646 = vunpack.c.h.b16 %v236
    %v647 = vunpack.c.l.b16 %v237
    %v648 = vunpack.c.h.b16 %v237
    %v649 = vunpack.c.l.b16 %v238
    %v650 = vunpack.c.h.b16 %v238
    %v651 = vunpack.c.l.b16 %v239
    %v652 = vunpack.c.h.b16 %v239
    %v653 = vunpack.c.l.b16 %v240
    %v654 = vunpack.c.h.b16 %v240
    %v655 = vunpack.c.l.b16 %v241
    %v656 = vunpack.c.h.b16 %v241
    %v657 = vunpack.c.l.b16 %v242
    %v658 = vunpack.c.h.b16 %v242
    %v659 = vunpack.c.l.b16 %v243
    %v660 = vunpack.c.h.b16 %v243
    %v661 = vunpack.c.l.b16 %v244
    %v662 = vunpack.c.h.b16 %v244
    %v663 = vpack.c.b16 %v415, %v407
    %v664 = vpack.c.b16 %v416, %v408
    %v665 = vpack.c.b16 %v417, %v409
    %v666 = vpack.c.b16 %v418, %v410
    %v667 = vpack.c.b16 %v419, %v411
    %v668 = vpack.c.b16 %v420, %v412
    %v669 = vpack.c.b16 %v421, %v413
    %v670 = vpack.c.b16 %v422, %v414
    %v671 = vpack.c.b16 %v431, %v423
    %v672 = vpack.c.b16 %v432, %v424
    %v673 = vpack.c.b16 %v433, %v425
    %v674 = vpack.c.b16 %v434, %v426
    %v675 = vpack.c.b16 %v435, %v427
    %v676 = vpack.c.b16 %v436, %v428
    %v677 = vpack.c.b16 %v437, %v429
    %v678 = vpack.c.b16 %v438, %v430
    %v679 = vpack.c.b16 %v447, %v439
    %v680 = vpack.c.b16 %v448, %v440
    %v681 = vpack.c.b16 %v449, %v441
    %v682 = vpack.c.b16 %v450, %v442
    %v683 = vpack.c.b16 %v451, %v443
    %v684 = vpack.c.b16 %v452, %v444
    %v685 = vpack.c.b16 %v453, %v445
    %v686 = vpack.c.b16 %v454, %v446
    %v687 = vpack.c.b16 %v463, %v455
    %v688 = vpack.c.b16 %v464, %v456
    %v689 = vpack.c.b16 %v465, %v457
    %v690 = vpack.c.b16 %v466, %v458
    %v691 = vpack.c.b16 %v467, %v459
    %v692 = vpack.c.b16 %v468, %v460
    %v693 = vpack.c.b16 %v469, %v461
    %v694 = vpack.c.b16 %v470, %v462
    %v695 = vpack.c.b16 %v479, %v471
    %v696 = vpack.c.b16 %v480, %v472
    %v697 = vpack.c.b16 %v481, %v473
    %v698 = vpack.c.b16 %v482, %v474
    %v699 = vpack.c.b16 %v483, %v475
    %v700 = vpack.c.b16 %v484, %v476
    %v701 = vpack.c.b16 %v485, %v477
    %v702 = vpack.c.b16 %v486, %v478
    %v703 = vpack.c.b16 %v495, %v487
    %v704 = vpack.c.b16 %v496, %v488
    %v705 = vpack.c.b16 %v497, %v489
    %v706 = vpack.c.b16 %v498, %v490
    %v707 = vpack.c.b16 %v499, %v491
    %v708 = vpack.c.b16 %v500, %v492
    %v709 = vpack.c.b16 %v501, %v493
    %v710 = vpack.c.b16 %v502, %v494
    %v711 = vpack.c.b16 %v511, %v503
    %v712 = vpack.c.b16 %v512, %v504
    %v713 = vpack.c.b16 %v513, %v505
    %v714 = vpack.c.b16 %v514, %v506
    %v715 = vpack.c.b16 %v515, %v507
    %v716 = vpack.c.b16 %v516, %v508
    %v717 = vpack.c.b16 %v517, %v509
    %v718 = vpack.c.b16 %v518, %v510
    %v719 = vpack.c.b16 %v527, %v519
    %v720 = vpack.c.b16 %v528, %v520
    %v721 = vpack.c.b16 %v529, %v521
    %v722 = vpack.c.b16 %v530, %v522
    %v723 = vpack.c.b16 %v531, %v523
    %v724 = vpack.c.b16 %v532, %v524
    %v725 = vpack.c.b16 %v533, %v525
    %v726 = vpack.c.b16 %v534, %v526
    %v727 = vpack.c.b16 %v543, %v535
    %v728 = vpack.c.b16 %v544, %v536
    %v729 = vpack.c.b16 %v545, %v537
    %v730 = vpack.c.b16 %v546, %v538
    %v731 = vpack.c.b16 %v547, %v539
    %v732 = vpack.c.b16 %v548, %v540
    %v733 = vpack.c.b16 %v549, %v541
    %v734 = vpack.c.b16 %v550, %v542
    %v735 = vpack.c.b16 %v559, %v551
    %v736 = vpack.c.b16 %v560, %v552
    %v737 = vpack.c.b16 %v561, %v553
    %v738 = vpack.c.b16 %v562, %v554
    %v739 = vpack.c.b16 %v563, %v555
    %v740 = vpack.c.b16 %v564, %v556
    %v741 = vpack.c.b16 %v565, %v557
    %v742 = vpack.c.b16 %v566, %v558
    %v743 = vpack.c.b16 %v575, %v567
    %v744 = vpack.c.b16 %v576, %v568
    %v745 = vpack.c.b16 %v577, %v569
    %v746 = vpack.c.b16 %v578, %v570
    %v747 = vpack.c.b16 %v579, %v571
    %v748 = vpack.c.b16 %v580, %v572
    %v749 = vpack.c.b16 %v581, %v573
    %v750 = vpack.c.b16 %v582, %v574
    %v751 = vpack.c.b16 %v591, %v583
    %v752 = vpack.c.b16 %v592, %v584
    %v753 = vpack.c.b16 %v593, %v585
    %v754 = vpack.c.b16 %v594, %v586
    %v755 = vpack.c.b16 %v595, %v587
    %v756 = vpack.c.b16 %v596, %v588
    %v757 = vpack.c.b16 %v597, %v589
    %v758 = vpack.c.b16 %v598, %v590
    %v759 = vpack.c.b16 %v607, %v599
    %v760 = vpack.c.b16 %v608, %v600
    %v761 = vpack.c.b16 %v609, %v601
    %v762 = vpack.c.b16 %v610, %v602
    %v763 = vpack.c.b16 %v611, %v603
    %v764 = vpack.c.b16 %v612, %v604
    %v765 = vpack.c.b16 %v613, %v605
    %v766 = vpack.c.b16 %v614, %v606
    %v767 = vpack.c.b16 %v623, %v615
    %v768 = vpack.c.b16 %v624, %v616
    %v769 = vpack.c.b16 %v625, %v617
    %v770 = vpack.c.b16 %v626, %v618
    %v771 = vpack.c.b16 %v627, %v619
    %v772 = vpack.c.b16 %v628, %v620
    %v773 = vpack.c.b16 %v629, %v621
    %v774 = vpack.c.b16 %v630, %v622
    %v775 = vpack.c.b16 %v639, %v631
    %v776 = vpack.c.b16 %v640, %v632
    %v777 = vpack.c.b16 %v641, %v633
    %v778 = vpack.c.b16 %v642, %v634
    %v779 = vpack.c.b16 %v643, %v635
    %v780 = vpack.c.b16 %v644, %v636
    %v781 = vpack.c.b16 %v645, %v637
    %v782 = vpack.c.b16 %v646, %v638
    %v783 = vpack.c.b16 %v655, %v647
    %v784 = vpack.c.b16 %v656, %v648
    %v785 = vpack.c.b16 %v657, %v649
    %v786 = vpack.c.b16 %v658, %v650
    %v787 = vpack.c.b16 %v659, %v651
    %v788 = vpack.c.b16 %v660, %v652
    %v789 = vpack.c.b16 %v661, %v653
    %v790 = vpack.c.b16 %v662, %v654
    %919 = vmatprep.subr.bf16.mxu0 %v664
    %920 = vmatpush1.bf16.msra.mxu0 %v663
    %921 = vmatprep.subr.bf16.mxu0 %v672
    %922 = vmatpush1.bf16.msra.mxu0 %v671
    %923 = vmatprep.subr.bf16.mxu0 %v680
    %924 = vmatpush1.bf16.msra.mxu0 %v679
    %925 = vmatprep.subr.bf16.mxu0 %v688
    %926 = vmatpush1.bf16.msra.mxu0 %v687
    %927 = vmatprep.subr.bf16.mxu0 %v696
    %928 = vmatpush1.bf16.msra.mxu0 %v695
    %929 = vmatprep.subr.bf16.mxu0 %v704
    %930 = vmatpush1.bf16.msra.mxu0 %v703
    %931 = vmatprep.subr.bf16.mxu0 %v712
    %932 = vmatpush1.bf16.msra.mxu0 %v711
    %933 = vmatprep.subr.bf16.mxu0 %v720
    %934 = vmatpush1.bf16.msra.mxu0 %v719
    %935 = vmatprep.subr.bf16.mxu0 %v728
    %936 = vmatpush1.bf16.msra.mxu0 %v727
    %937 = vmatprep.subr.bf16.mxu0 %v736
    %938 = vmatpush1.bf16.msra.mxu0 %v735
    %939 = vmatprep.subr.bf16.mxu0 %v744
    %940 = vmatpush1.bf16.msra.mxu0 %v743
    %941 = vmatprep.subr.bf16.mxu0 %v752
    %942 = vmatpush1.bf16.msra.mxu0 %v751
    %943 = vmatprep.subr.bf16.mxu0 %v760
    %944 = vmatpush1.bf16.msra.mxu0 %v759
    %945 = vmatprep.subr.bf16.mxu0 %v768
    %946 = vmatpush1.bf16.msra.mxu0 %v767
    %947 = vmatprep.subr.bf16.mxu0 %v776
    %948 = vmatpush1.bf16.msra.mxu0 %v775
    %949 = vmatprep.subr.bf16.mxu0 %v784
    %950 = vmatpush1.bf16.msra.mxu0 %v783
    %951 = vmatprep.mubr.bf16.mxu0 %v276
    %952 = vmatmul.mubr.bf16.gmra.mrb[0].mxu0 %v275
    %v953 = vpop.f32.mrb[0].mxu0
    %v954 = vadd.f32 %v253, %v953
    %v955 = vpop.f32.mrb[0].mxu0
    %v956 = vadd.f32 %v254, %v955
    %v957 = vpop.f32.mrb[0].mxu0
    %v958 = vadd.f32 %v261, %v957
    %v959 = vpop.f32.mrb[0].mxu0
    %v960 = vadd.f32 %v262, %v959
    %961 = vdwg.mxu0
    %962 = vmatprep.subr.bf16.mxu0 %v666
    %963 = vmatpush1.bf16.msra.mxu0 %v665
    %964 = vmatprep.subr.bf16.mxu0 %v674
    %965 = vmatpush1.bf16.msra.mxu0 %v673
    %966 = vmatprep.subr.bf16.mxu0 %v682
    %967 = vmatpush1.bf16.msra.mxu0 %v681
    %968 = vmatprep.subr.bf16.mxu0 %v690
    %969 = vmatpush1.bf16.msra.mxu0 %v689
    %970 = vmatprep.subr.bf16.mxu0 %v698
    %971 = vmatpush1.bf16.msra.mxu0 %v697
    %972 = vmatprep.subr.bf16.mxu0 %v706
    %973 = vmatpush1.bf16.msra.mxu0 %v705
    %974 = vmatprep.subr.bf16.mxu0 %v714
    %975 = vmatpush1.bf16.msra.mxu0 %v713
    %976 = vmatprep.subr.bf16.mxu0 %v722
    %977 = vmatpush1.bf16.msra.mxu0 %v721
    %978 = vmatprep.subr.bf16.mxu0 %v730
    %979 = vmatpush1.bf16.msra.mxu0 %v729
    %980 = vmatprep.subr.bf16.mxu0 %v738
    %981 = vmatpush1.bf16.msra.mxu0 %v737
    %982 = vmatprep.subr.bf16.mxu0 %v746
    %983 = vmatpush1.bf16.msra.mxu0 %v745
    %984 = vmatprep.subr.bf16.mxu0 %v754
    %985 = vmatpush1.bf16.msra.mxu0 %v753
    %986 = vmatprep.subr.bf16.mxu0 %v762
    %987 = vmatpush1.bf16.msra.mxu0 %v761
    %988 = vmatprep.subr.bf16.mxu0 %v770
    %989 = vmatpush1.bf16.msra.mxu0 %v769
    %990 = vmatprep.subr.bf16.mxu0 %v778
    %991 = vmatpush1.bf16.msra.mxu0 %v777
    %992 = vmatprep.subr.bf16.mxu0 %v786
    %993 = vmatpush1.bf16.msra.mxu0 %v785
    %994 = vmatprep.mubr.bf16.mxu0 %v276
    %995 = vmatmul.mubr.bf16.gmra.mrb[0].mxu0 %v275
    %v996 = vpop.f32.mrb[0].mxu0
    %v997 = vadd.f32 %v255, %v996
    %v998 = vpop.f32.mrb[0].mxu0
    %v999 = vadd.f32 %v256, %v998
    %v1000 = vpop.f32.mrb[0].mxu0
    %v1001 = vadd.f32 %v263, %v1000
    %v1002 = vpop.f32.mrb[0].mxu0
    %v1003 = vadd.f32 %v264, %v1002
    %1004 = vdwg.mxu0
    %1005 = vmatprep.subr.bf16.mxu0 %v668
    %1006 = vmatpush1.bf16.msra.mxu0 %v667
    %1007 = vmatprep.subr.bf16.mxu0 %v676
    %1008 = vmatpush1.bf16.msra.mxu0 %v675
    %1009 = vmatprep.subr.bf16.mxu0 %v684
    %1010 = vmatpush1.bf16.msra.mxu0 %v683
    %1011 = vmatprep.subr.bf16.mxu0 %v692
    %1012 = vmatpush1.bf16.msra.mxu0 %v691
    %1013 = vmatprep.subr.bf16.mxu0 %v700
    %1014 = vmatpush1.bf16.msra.mxu0 %v699
    %1015 = vmatprep.subr.bf16.mxu0 %v708
    %1016 = vmatpush1.bf16.msra.mxu0 %v707
    %1017 = vmatprep.subr.bf16.mxu0 %v716
    %1018 = vmatpush1.bf16.msra.mxu0 %v715
    %1019 = vmatprep.subr.bf16.mxu0 %v724
    %1020 = vmatpush1.bf16.msra.mxu0 %v723
    %1021 = vmatprep.subr.bf16.mxu0 %v732
    %1022 = vmatpush1.bf16.msra.mxu0 %v731
    %1023 = vmatprep.subr.bf16.mxu0 %v740
    %1024 = vmatpush1.bf16.msra.mxu0 %v739
    %1025 = vmatprep.subr.bf16.mxu0 %v748
    %1026 = vmatpush1.bf16.msra.mxu0 %v747
    %1027 = vmatprep.subr.bf16.mxu0 %v756
    %1028 = vmatpush1.bf16.msra.mxu0 %v755
    %1029 = vmatprep.subr.bf16.mxu0 %v764
    %1030 = vmatpush1.bf16.msra.mxu0 %v763
    %1031 = vmatprep.subr.bf16.mxu0 %v772
    %1032 = vmatpush1.bf16.msra.mxu0 %v771
    %1033 = vmatprep.subr.bf16.mxu0 %v780
    %1034 = vmatpush1.bf16.msra.mxu0 %v779
    %1035 = vmatprep.subr.bf16.mxu0 %v788
    %1036 = vmatpush1.bf16.msra.mxu0 %v787
    %1037 = vmatprep.mubr.bf16.mxu0 %v276
    %1038 = vmatmul.mubr.bf16.gmra.mrb[0].mxu0 %v275
    %v1039 = vpop.f32.mrb[0].mxu0
    %v1040 = vadd.f32 %v257, %v1039
    %v1041 = vpop.f32.mrb[0].mxu0
    %v1042 = vadd.f32 %v258, %v1041
    %v1043 = vpop.f32.mrb[0].mxu0
    %v1044 = vadd.f32 %v265, %v1043
    %v1045 = vpop.f32.mrb[0].mxu0
    %v1046 = vadd.f32 %v266, %v1045
    %1047 = vdwg.mxu0
    %1048 = vmatprep.subr.bf16.mxu0 %v670
    %1049 = vmatpush1.bf16.msra.mxu0 %v669
    %1050 = vmatprep.subr.bf16.mxu0 %v678
    %1051 = vmatpush1.bf16.msra.mxu0 %v677
    %1052 = vmatprep.subr.bf16.mxu0 %v686
    %1053 = vmatpush1.bf16.msra.mxu0 %v685
    %1054 = vmatprep.subr.bf16.mxu0 %v694
    %1055 = vmatpush1.bf16.msra.mxu0 %v693
    %1056 = vmatprep.subr.bf16.mxu0 %v702
    %1057 = vmatpush1.bf16.msra.mxu0 %v701
    %1058 = vmatprep.subr.bf16.mxu0 %v710
    %1059 = vmatpush1.bf16.msra.mxu0 %v709
    %1060 = vmatprep.subr.bf16.mxu0 %v718
    %1061 = vmatpush1.bf16.msra.mxu0 %v717
    %1062 = vmatprep.subr.bf16.mxu0 %v726
    %1063 = vmatpush1.bf16.msra.mxu0 %v725
    %1064 = vmatprep.subr.bf16.mxu0 %v734
    %1065 = vmatpush1.bf16.msra.mxu0 %v733
    %1066 = vmatprep.subr.bf16.mxu0 %v742
    %1067 = vmatpush1.bf16.msra.mxu0 %v741
    %1068 = vmatprep.subr.bf16.mxu0 %v750
    %1069 = vmatpush1.bf16.msra.mxu0 %v749
    %1070 = vmatprep.subr.bf16.mxu0 %v758
    %1071 = vmatpush1.bf16.msra.mxu0 %v757
    %1072 = vmatprep.subr.bf16.mxu0 %v766
    %1073 = vmatpush1.bf16.msra.mxu0 %v765
    %1074 = vmatprep.subr.bf16.mxu0 %v774
    %1075 = vmatpush1.bf16.msra.mxu0 %v773
    %1076 = vmatprep.subr.bf16.mxu0 %v782
    %1077 = vmatpush1.bf16.msra.mxu0 %v781
    %1078 = vmatprep.subr.bf16.mxu0 %v790
    %1079 = vmatpush1.bf16.msra.mxu0 %v789
    %1080 = vmatprep.mubr.bf16.mxu0 %v276
    %1081 = vmatmul.mubr.bf16.gmra.mrb[0].mxu0 %v275
    %v1082 = vpop.f32.mrb[0].mxu0
    %v1083 = vadd.f32 %v259, %v1082
    %v1084 = vpop.f32.mrb[0].mxu0
    %v1085 = vadd.f32 %v260, %v1084
    %v1086 = vpop.f32.mrb[0].mxu0
    %v1087 = vadd.f32 %v267, %v1086
    %v1088 = vpop.f32.mrb[0].mxu0
    %v1089 = vadd.f32 %v268, %v1088
    %1090 = vdwg.mxu0
    %v1091 = vsub.f32 0.0, %v954
    %v1092 = vsub.f32 0.0, %v956
    %v1093 = vsub.f32 0.0, %v997
    %v1094 = vsub.f32 0.0, %v999
    %v1095 = vsub.f32 0.0, %v1040
    %v1096 = vsub.f32 0.0, %v1042
    %v1097 = vsub.f32 0.0, %v1083
    %v1098 = vsub.f32 0.0, %v1085
    %v1099 = vsub.f32 0.0, %v958
    %v1100 = vsub.f32 0.0, %v960
    %v1101 = vsub.f32 0.0, %v1001
    %v1102 = vsub.f32 0.0, %v1003
    %v1103 = vsub.f32 0.0, %v1044
    %v1104 = vsub.f32 0.0, %v1046
    %v1105 = vsub.f32 0.0, %v1087
    %v1106 = vsub.f32 0.0, %v1089
    %v1107 = vmul.f32 %v1091, 1.442695
    %v1108 = vpow.pop %v1107
    %v1109 = vmul.f32 %v1092, 1.442695
    %v1110 = vpow.pop %v1109
    %v1111 = vmul.f32 %v1093, 1.442695
    %v1112 = vpow.pop %v1111
    %v1113 = vmul.f32 %v1094, 1.442695
    %v1114 = vpow.pop %v1113
    %v1115 = vmul.f32 %v1095, 1.442695
    %v1116 = vpow.pop %v1115
    %v1117 = vmul.f32 %v1096, 1.442695
    %v1118 = vpow.pop %v1117
    %v1119 = vmul.f32 %v1097, 1.442695
    %v1120 = vpow.pop %v1119
    %v1121 = vmul.f32 %v1098, 1.442695
    %v1122 = vpow.pop %v1121
    %v1123 = vmul.f32 %v1099, 1.442695
    %v1124 = vpow.pop %v1123
    %v1125 = vmul.f32 %v1100, 1.442695
    %v1126 = vpow.pop %v1125
    %v1127 = vmul.f32 %v1101, 1.442695
    %v1128 = vpow.pop %v1127
    %v1129 = vmul.f32 %v1102, 1.442695
    %v1130 = vpow.pop %v1129
    %v1131 = vmul.f32 %v1103, 1.442695
    %v1132 = vpow.pop %v1131
    %v1133 = vmul.f32 %v1104, 1.442695
    %v1134 = vpow.pop %v1133
    %v1135 = vmul.f32 %v1105, 1.442695
    %v1136 = vpow.pop %v1135
    %v1137 = vmul.f32 %v1106, 1.442695
    %v1138 = vpow.pop %v1137
    %v1139 = vadd.f32 %v1108, 1.0
    %v1140 = vadd.f32 %v1110, 1.0
    %v1141 = vadd.f32 %v1112, 1.0
    %v1142 = vadd.f32 %v1114, 1.0
    %v1143 = vadd.f32 %v1116, 1.0
    %v1144 = vadd.f32 %v1118, 1.0
    %v1145 = vadd.f32 %v1120, 1.0
    %v1146 = vadd.f32 %v1122, 1.0
    %v1147 = vadd.f32 %v1124, 1.0
    %v1148 = vadd.f32 %v1126, 1.0
    %v1149 = vadd.f32 %v1128, 1.0
    %v1150 = vadd.f32 %v1130, 1.0
    %v1151 = vadd.f32 %v1132, 1.0
    %v1152 = vadd.f32 %v1134, 1.0
    %v1153 = vadd.f32 %v1136, 1.0
    %v1154 = vadd.f32 %v1138, 1.0
    %v1155 = vrcp.pop %v1139
    %v1156 = vmul.f32 1.0, %v1155
    %v1157 = vrcp.pop %v1140
    %v1158 = vmul.f32 1.0, %v1157
    %v1159 = vrcp.pop %v1141
    %v1160 = vmul.f32 1.0, %v1159
    %v1161 = vrcp.pop %v1142
    %v1162 = vmul.f32 1.0, %v1161
    %v1163 = vrcp.pop %v1143
    %v1164 = vmul.f32 1.0, %v1163
    %v1165 = vrcp.pop %v1144
    %v1166 = vmul.f32 1.0, %v1165
    %v1167 = vrcp.pop %v1145
    %v1168 = vmul.f32 1.0, %v1167
    %v1169 = vrcp.pop %v1146
    %v1170 = vmul.f32 1.0, %v1169
    %v1171 = vrcp.pop %v1147
    %v1172 = vmul.f32 1.0, %v1171
    %v1173 = vrcp.pop %v1148
    %v1174 = vmul.f32 1.0, %v1173
    %v1175 = vrcp.pop %v1149
    %v1176 = vmul.f32 1.0, %v1175
    %v1177 = vrcp.pop %v1150
    %v1178 = vmul.f32 1.0, %v1177
    %v1179 = vrcp.pop %v1151
    %v1180 = vmul.f32 1.0, %v1179
    %v1181 = vrcp.pop %v1152
    %v1182 = vmul.f32 1.0, %v1181
    %v1183 = vrcp.pop %v1153
    %v1184 = vmul.f32 1.0, %v1183
    %v1185 = vrcp.pop %v1154
    %v1186 = vmul.f32 1.0, %v1185
    %v1187 = vmul.f32 %v954, %v1156
    %v1188 = vmul.f32 %v956, %v1158
    %v1189 = vmul.f32 %v997, %v1160
    %v1190 = vmul.f32 %v999, %v1162
    %v1191 = vmul.f32 %v1040, %v1164
    %v1192 = vmul.f32 %v1042, %v1166
    %v1193 = vmul.f32 %v1083, %v1168
    %v1194 = vmul.f32 %v1085, %v1170
    %v1195 = vmul.f32 %v958, %v1172
    %v1196 = vmul.f32 %v960, %v1174
    %v1197 = vmul.f32 %v1001, %v1176
    %v1198 = vmul.f32 %v1003, %v1178
    %v1199 = vmul.f32 %v1044, %v1180
    %v1200 = vmul.f32 %v1046, %v1182
    %v1201 = vmul.f32 %v1087, %v1184
    %v1202 = vmul.f32 %v1089, %v1186
    %v1203 = vpack.c.bf16 %v1195, %v1187
    %v1204 = vpack.c.bf16 %v1196, %v1188
    %v1205 = vpack.c.bf16 %v1197, %v1189
    %v1206 = vpack.c.bf16 %v1198, %v1190
    %v1207 = vpack.c.bf16 %v1199, %v1191
    %v1208 = vpack.c.bf16 %v1200, %v1192
    %v1209 = vpack.c.bf16 %v1201, %v1193
    %v1210 = vpack.c.bf16 %v1202, %v1194
    %v1211 = vld [vmem:[#allocation8] sm:$0xff]
    %v1212 = vld [vmem:[#allocation8 + $0x8] sm:$0xff]
    %v1213 = vld [vmem:[#allocation8 + $0x10] sm:$0xff]
    %v1214 = vld [vmem:[#allocation8 + $0x18] sm:$0xff]
    %v1215 = vld [vmem:[#allocation8 + $0x20] sm:$0xff]
    %v1216 = vld [vmem:[#allocation8 + $0x28] sm:$0xff]
    %v1217 = vld [vmem:[#allocation8 + $0x30] sm:$0xff]
    %v1218 = vld [vmem:[#allocation8 + $0x38] sm:$0xff]
    %v1219 = vld [vmem:[#allocation8 + $0x40] sm:$0xff]
    %v1220 = vld [vmem:[#allocation8 + $0x48] sm:$0xff]
    %v1221 = vld [vmem:[#allocation8 + $0x50] sm:$0xff]
    %v1222 = vld [vmem:[#allocation8 + $0x58] sm:$0xff]
    %v1223 = vld [vmem:[#allocation8 + $0x60] sm:$0xff]
    %v1224 = vld [vmem:[#allocation8 + $0x68] sm:$0xff]
    %v1225 = vld [vmem:[#allocation8 + $0x70] sm:$0xff]
    %v1226 = vld [vmem:[#allocation8 + $0x78] sm:$0xff]
    %v1227 = vld [vmem:[#allocation8 + $0x80] sm:$0xff]
    %v1228 = vld [vmem:[#allocation8 + $0x88] sm:$0xff]
    %v1229 = vld [vmem:[#allocation8 + $0x90] sm:$0xff]
    %v1230 = vld [vmem:[#allocation8 + $0x98] sm:$0xff]
    %v1231 = vld [vmem:[#allocation8 + $0xa0] sm:$0xff]
    %v1232 = vld [vmem:[#allocation8 + $0xa8] sm:$0xff]
    %v1233 = vld [vmem:[#allocation8 + $0xb0] sm:$0xff]
    %v1234 = vld [vmem:[#allocation8 + $0xb8] sm:$0xff]
    %v1235 = vld [vmem:[#allocation8 + $0xc0] sm:$0xff]
    %v1236 = vld [vmem:[#allocation8 + $0xc8] sm:$0xff]
    %v1237 = vld [vmem:[#allocation8 + $0xd0] sm:$0xff]
    %v1238 = vld [vmem:[#allocation8 + $0xd8] sm:$0xff]
    %v1239 = vld [vmem:[#allocation8 + $0xe0] sm:$0xff]
    %v1240 = vld [vmem:[#allocation8 + $0xe8] sm:$0xff]
    %v1241 = vld [vmem:[#allocation8 + $0xf0] sm:$0xff]
    %v1242 = vld [vmem:[#allocation8 + $0xf8] sm:$0xff]
    %v1243 = vld [vmem:[#allocation8 + $0x100] sm:$0xff]
    %v1244 = vld [vmem:[#allocation8 + $0x108] sm:$0xff]
    %v1245 = vld [vmem:[#allocation8 + $0x110] sm:$0xff]
    %v1246 = vld [vmem:[#allocation8 + $0x118] sm:$0xff]
    %v1247 = vld [vmem:[#allocation8 + $0x120] sm:$0xff]
    %v1248 = vld [vmem:[#allocation8 + $0x128] sm:$0xff]
    %v1249 = vld [vmem:[#allocation8 + $0x130] sm:$0xff]
    %v1250 = vld [vmem:[#allocation8 + $0x138] sm:$0xff]
    %v1251 = vld [vmem:[#allocation8 + $0x140] sm:$0xff]
    %v1252 = vld [vmem:[#allocation8 + $0x148] sm:$0xff]
    %v1253 = vld [vmem:[#allocation8 + $0x150] sm:$0xff]
    %v1254 = vld [vmem:[#allocation8 + $0x158] sm:$0xff]
    %v1255 = vld [vmem:[#allocation8 + $0x160] sm:$0xff]
    %v1256 = vld [vmem:[#allocation8 + $0x168] sm:$0xff]
    %v1257 = vld [vmem:[#allocation8 + $0x170] sm:$0xff]
    %v1258 = vld [vmem:[#allocation8 + $0x178] sm:$0xff]
    %v1259 = vld [vmem:[#allocation8 + $0x180] sm:$0xff]
    %v1260 = vld [vmem:[#allocation8 + $0x188] sm:$0xff]
    %v1261 = vld [vmem:[#allocation8 + $0x190] sm:$0xff]
    %v1262 = vld [vmem:[#allocation8 + $0x198] sm:$0xff]
    %v1263 = vld [vmem:[#allocation8 + $0x1a0] sm:$0xff]
    %v1264 = vld [vmem:[#allocation8 + $0x1a8] sm:$0xff]
    %v1265 = vld [vmem:[#allocation8 + $0x1b0] sm:$0xff]
    %v1266 = vld [vmem:[#allocation8 + $0x1b8] sm:$0xff]
    %v1267 = vld [vmem:[#allocation8 + $0x1c0] sm:$0xff]
    %v1268 = vld [vmem:[#allocation8 + $0x1c8] sm:$0xff]
    %v1269 = vld [vmem:[#allocation8 + $0x1d0] sm:$0xff]
    %v1270 = vld [vmem:[#allocation8 + $0x1d8] sm:$0xff]
    %v1271 = vld [vmem:[#allocation8 + $0x1e0] sm:$0xff]
    %v1272 = vld [vmem:[#allocation8 + $0x1e8] sm:$0xff]
    %v1273 = vld [vmem:[#allocation8 + $0x1f0] sm:$0xff]
    %v1274 = vld [vmem:[#allocation8 + $0x1f8] sm:$0xff]
    %v1275 = vld [vmem:[#allocation8 + $0x200] sm:$0xff]
    %v1276 = vld [vmem:[#allocation8 + $0x208] sm:$0xff]
    %v1277 = vld [vmem:[#allocation8 + $0x210] sm:$0xff]
    %v1278 = vld [vmem:[#allocation8 + $0x218] sm:$0xff]
    %v1279 = vld [vmem:[#allocation8 + $0x220] sm:$0xff]
    %v1280 = vld [vmem:[#allocation8 + $0x228] sm:$0xff]
    %v1281 = vld [vmem:[#allocation8 + $0x230] sm:$0xff]
    %v1282 = vld [vmem:[#allocation8 + $0x238] sm:$0xff]
    %v1283 = vld [vmem:[#allocation8 + $0x240] sm:$0xff]
    %v1284 = vld [vmem:[#allocation8 + $0x248] sm:$0xff]
    %v1285 = vld [vmem:[#allocation8 + $0x250] sm:$0xff]
    %v1286 = vld [vmem:[#allocation8 + $0x258] sm:$0xff]
    %v1287 = vld [vmem:[#allocation8 + $0x260] sm:$0xff]
    %v1288 = vld [vmem:[#allocation8 + $0x268] sm:$0xff]
    %v1289 = vld [vmem:[#allocation8 + $0x270] sm:$0xff]
    %v1290 = vld [vmem:[#allocation8 + $0x278] sm:$0xff]
    %v1291 = vld [vmem:[#allocation8 + $0x280] sm:$0xff]
    %v1292 = vld [vmem:[#allocation8 + $0x288] sm:$0xff]
    %v1293 = vld [vmem:[#allocation8 + $0x290] sm:$0xff]
    %v1294 = vld [vmem:[#allocation8 + $0x298] sm:$0xff]
    %v1295 = vld [vmem:[#allocation8 + $0x2a0] sm:$0xff]
    %v1296 = vld [vmem:[#allocation8 + $0x2a8] sm:$0xff]
    %v1297 = vld [vmem:[#allocation8 + $0x2b0] sm:$0xff]
    %v1298 = vld [vmem:[#allocation8 + $0x2b8] sm:$0xff]
    %v1299 = vld [vmem:[#allocation8 + $0x2c0] sm:$0xff]
    %v1300 = vld [vmem:[#allocation8 + $0x2c8] sm:$0xff]
    %v1301 = vld [vmem:[#allocation8 + $0x2d0] sm:$0xff]
    %v1302 = vld [vmem:[#allocation8 + $0x2d8] sm:$0xff]
    %v1303 = vld [vmem:[#allocation8 + $0x2e0] sm:$0xff]
    %v1304 = vld [vmem:[#allocation8 + $0x2e8] sm:$0xff]
    %v1305 = vld [vmem:[#allocation8 + $0x2f0] sm:$0xff]
    %v1306 = vld [vmem:[#allocation8 + $0x2f8] sm:$0xff]
    %v1307 = vld [vmem:[#allocation8 + $0x300] sm:$0xff]
    %v1308 = vld [vmem:[#allocation8 + $0x308] sm:$0xff]
    %v1309 = vld [vmem:[#allocation8 + $0x310] sm:$0xff]
    %v1310 = vld [vmem:[#allocation8 + $0x318] sm:$0xff]
    %v1311 = vld [vmem:[#allocation8 + $0x320] sm:$0xff]
    %v1312 = vld [vmem:[#allocation8 + $0x328] sm:$0xff]
    %v1313 = vld [vmem:[#allocation8 + $0x330] sm:$0xff]
    %v1314 = vld [vmem:[#allocation8 + $0x338] sm:$0xff]
    %v1315 = vld [vmem:[#allocation8 + $0x340] sm:$0xff]
    %v1316 = vld [vmem:[#allocation8 + $0x348] sm:$0xff]
    %v1317 = vld [vmem:[#allocation8 + $0x350] sm:$0xff]
    %v1318 = vld [vmem:[#allocation8 + $0x358] sm:$0xff]
    %v1319 = vld [vmem:[#allocation8 + $0x360] sm:$0xff]
    %v1320 = vld [vmem:[#allocation8 + $0x368] sm:$0xff]
    %v1321 = vld [vmem:[#allocation8 + $0x370] sm:$0xff]
    %v1322 = vld [vmem:[#allocation8 + $0x378] sm:$0xff]
    %v1323 = vld [vmem:[#allocation8 + $0x380] sm:$0xff]
    %v1324 = vld [vmem:[#allocation8 + $0x388] sm:$0xff]
    %v1325 = vld [vmem:[#allocation8 + $0x390] sm:$0xff]
    %v1326 = vld [vmem:[#allocation8 + $0x398] sm:$0xff]
    %v1327 = vld [vmem:[#allocation8 + $0x3a0] sm:$0xff]
    %v1328 = vld [vmem:[#allocation8 + $0x3a8] sm:$0xff]
    %v1329 = vld [vmem:[#allocation8 + $0x3b0] sm:$0xff]
    %v1330 = vld [vmem:[#allocation8 + $0x3b8] sm:$0xff]
    %v1331 = vld [vmem:[#allocation8 + $0x3c0] sm:$0xff]
    %v1332 = vld [vmem:[#allocation8 + $0x3c8] sm:$0xff]
    %v1333 = vld [vmem:[#allocation8 + $0x3d0] sm:$0xff]
    %v1334 = vld [vmem:[#allocation8 + $0x3d8] sm:$0xff]
    %v1335 = vld [vmem:[#allocation8 + $0x3e0] sm:$0xff]
    %v1336 = vld [vmem:[#allocation8 + $0x3e8] sm:$0xff]
    %v1337 = vld [vmem:[#allocation8 + $0x3f0] sm:$0xff]
    %v1338 = vld [vmem:[#allocation8 + $0x3f8] sm:$0xff]
    %v1339 = vld [vmem:[#allocation8 + $0x400] sm:$0xff]
    %v1340 = vld [vmem:[#allocation8 + $0x408] sm:$0xff]
    %v1341 = vld [vmem:[#allocation8 + $0x410] sm:$0xff]
    %v1342 = vld [vmem:[#allocation8 + $0x418] sm:$0xff]
    %v1343 = vld [vmem:[#allocation8 + $0x420] sm:$0xff]
    %v1344 = vld [vmem:[#allocation8 + $0x428] sm:$0xff]
    %v1345 = vld [vmem:[#allocation8 + $0x430] sm:$0xff]
    %v1346 = vld [vmem:[#allocation8 + $0x438] sm:$0xff]
    %v1347 = vld [vmem:[#allocation8 + $0x440] sm:$0xff]
    %v1348 = vld [vmem:[#allocation8 + $0x448] sm:$0xff]
    %v1349 = vld [vmem:[#allocation8 + $0x450] sm:$0xff]
    %v1350 = vld [vmem:[#allocation8 + $0x458] sm:$0xff]
    %v1351 = vld [vmem:[#allocation8 + $0x460] sm:$0xff]
    %v1352 = vld [vmem:[#allocation8 + $0x468] sm:$0xff]
    %v1353 = vld [vmem:[#allocation8 + $0x470] sm:$0xff]
    %v1354 = vld [vmem:[#allocation8 + $0x478] sm:$0xff]
    %v1355 = vld [vmem:[#allocation8 + $0x480] sm:$0xff]
    %v1356 = vld [vmem:[#allocation8 + $0x488] sm:$0xff]
    %v1357 = vld [vmem:[#allocation8 + $0x490] sm:$0xff]
    %v1358 = vld [vmem:[#allocation8 + $0x498] sm:$0xff]
    %v1359 = vld [vmem:[#allocation8 + $0x4a0] sm:$0xff]
    %v1360 = vld [vmem:[#allocation8 + $0x4a8] sm:$0xff]
    %v1361 = vld [vmem:[#allocation8 + $0x4b0] sm:$0xff]
    %v1362 = vld [vmem:[#allocation8 + $0x4b8] sm:$0xff]
    %v1363 = vld [vmem:[#allocation8 + $0x4c0] sm:$0xff]
    %v1364 = vld [vmem:[#allocation8 + $0x4c8] sm:$0xff]
    %v1365 = vld [vmem:[#allocation8 + $0x4d0] sm:$0xff]
    %v1366 = vld [vmem:[#allocation8 + $0x4d8] sm:$0xff]
    %v1367 = vld [vmem:[#allocation8 + $0x4e0] sm:$0xff]
    %v1368 = vld [vmem:[#allocation8 + $0x4e8] sm:$0xff]
    %v1369 = vld [vmem:[#allocation8 + $0x4f0] sm:$0xff]
    %v1370 = vld [vmem:[#allocation8 + $0x4f8] sm:$0xff]
    %v1371 = vld [vmem:[#allocation8 + $0x500] sm:$0xff]
    %v1372 = vld [vmem:[#allocation8 + $0x508] sm:$0xff]
    %v1373 = vld [vmem:[#allocation8 + $0x510] sm:$0xff]
    %v1374 = vld [vmem:[#allocation8 + $0x518] sm:$0xff]
    %v1375 = vld [vmem:[#allocation8 + $0x520] sm:$0xff]
    %v1376 = vld [vmem:[#allocation8 + $0x528] sm:$0xff]
    %v1377 = vld [vmem:[#allocation8 + $0x530] sm:$0xff]
    %v1378 = vld [vmem:[#allocation8 + $0x538] sm:$0xff]
    %v1379 = vld [vmem:[#allocation8 + $0x540] sm:$0xff]
    %v1380 = vld [vmem:[#allocation8 + $0x548] sm:$0xff]
    %v1381 = vld [vmem:[#allocation8 + $0x550] sm:$0xff]
    %v1382 = vld [vmem:[#allocation8 + $0x558] sm:$0xff]
    %v1383 = vld [vmem:[#allocation8 + $0x560] sm:$0xff]
    %v1384 = vld [vmem:[#allocation8 + $0x568] sm:$0xff]
    %v1385 = vld [vmem:[#allocation8 + $0x570] sm:$0xff]
    %v1386 = vld [vmem:[#allocation8 + $0x578] sm:$0xff]
    %v1387 = vld [vmem:[#allocation8 + $0x580] sm:$0xff]
    %v1388 = vld [vmem:[#allocation8 + $0x588] sm:$0xff]
    %v1389 = vld [vmem:[#allocation8 + $0x590] sm:$0xff]
    %v1390 = vld [vmem:[#allocation8 + $0x598] sm:$0xff]
    %v1391 = vld [vmem:[#allocation8 + $0x5a0] sm:$0xff]
    %v1392 = vld [vmem:[#allocation8 + $0x5a8] sm:$0xff]
    %v1393 = vld [vmem:[#allocation8 + $0x5b0] sm:$0xff]
    %v1394 = vld [vmem:[#allocation8 + $0x5b8] sm:$0xff]
    %v1395 = vld [vmem:[#allocation8 + $0x5c0] sm:$0xff]
    %v1396 = vld [vmem:[#allocation8 + $0x5c8] sm:$0xff]
    %v1397 = vld [vmem:[#allocation8 + $0x5d0] sm:$0xff]
    %v1398 = vld [vmem:[#allocation8 + $0x5d8] sm:$0xff]
    %v1399 = vld [vmem:[#allocation8 + $0x5e0] sm:$0xff]
    %v1400 = vld [vmem:[#allocation8 + $0x5e8] sm:$0xff]
    %v1401 = vld [vmem:[#allocation8 + $0x5f0] sm:$0xff]
    %v1402 = vld [vmem:[#allocation8 + $0x5f8] sm:$0xff]
    %v1403 = vld [vmem:[#allocation8 + $0x600] sm:$0xff]
    %v1404 = vld [vmem:[#allocation8 + $0x608] sm:$0xff]
    %v1405 = vld [vmem:[#allocation8 + $0x610] sm:$0xff]
    %v1406 = vld [vmem:[#allocation8 + $0x618] sm:$0xff]
    %v1407 = vld [vmem:[#allocation8 + $0x620] sm:$0xff]
    %v1408 = vld [vmem:[#allocation8 + $0x628] sm:$0xff]
    %v1409 = vld [vmem:[#allocation8 + $0x630] sm:$0xff]
    %v1410 = vld [vmem:[#allocation8 + $0x638] sm:$0xff]
    %v1411 = vld [vmem:[#allocation8 + $0x640] sm:$0xff]
    %v1412 = vld [vmem:[#allocation8 + $0x648] sm:$0xff]
    %v1413 = vld [vmem:[#allocation8 + $0x650] sm:$0xff]
    %v1414 = vld [vmem:[#allocation8 + $0x658] sm:$0xff]
    %v1415 = vld [vmem:[#allocation8 + $0x660] sm:$0xff]
    %v1416 = vld [vmem:[#allocation8 + $0x668] sm:$0xff]
    %v1417 = vld [vmem:[#allocation8 + $0x670] sm:$0xff]
    %v1418 = vld [vmem:[#allocation8 + $0x678] sm:$0xff]
    %v1419 = vld [vmem:[#allocation8 + $0x680] sm:$0xff]
    %v1420 = vld [vmem:[#allocation8 + $0x688] sm:$0xff]
    %v1421 = vld [vmem:[#allocation8 + $0x690] sm:$0xff]
    %v1422 = vld [vmem:[#allocation8 + $0x698] sm:$0xff]
    %v1423 = vld [vmem:[#allocation8 + $0x6a0] sm:$0xff]
    %v1424 = vld [vmem:[#allocation8 + $0x6a8] sm:$0xff]
    %v1425 = vld [vmem:[#allocation8 + $0x6b0] sm:$0xff]
    %v1426 = vld [vmem:[#allocation8 + $0x6b8] sm:$0xff]
    %v1427 = vld [vmem:[#allocation8 + $0x6c0] sm:$0xff]
    %v1428 = vld [vmem:[#allocation8 + $0x6c8] sm:$0xff]
    %v1429 = vld [vmem:[#allocation8 + $0x6d0] sm:$0xff]
    %v1430 = vld [vmem:[#allocation8 + $0x6d8] sm:$0xff]
    %v1431 = vld [vmem:[#allocation8 + $0x6e0] sm:$0xff]
    %v1432 = vld [vmem:[#allocation8 + $0x6e8] sm:$0xff]
    %v1433 = vld [vmem:[#allocation8 + $0x6f0] sm:$0xff]
    %v1434 = vld [vmem:[#allocation8 + $0x6f8] sm:$0xff]
    %v1435 = vld [vmem:[#allocation8 + $0x700] sm:$0xff]
    %v1436 = vld [vmem:[#allocation8 + $0x708] sm:$0xff]
    %v1437 = vld [vmem:[#allocation8 + $0x710] sm:$0xff]
    %v1438 = vld [vmem:[#allocation8 + $0x718] sm:$0xff]
    %v1439 = vld [vmem:[#allocation8 + $0x720] sm:$0xff]
    %v1440 = vld [vmem:[#allocation8 + $0x728] sm:$0xff]
    %v1441 = vld [vmem:[#allocation8 + $0x730] sm:$0xff]
    %v1442 = vld [vmem:[#allocation8 + $0x738] sm:$0xff]
    %v1443 = vld [vmem:[#allocation8 + $0x740] sm:$0xff]
    %v1444 = vld [vmem:[#allocation8 + $0x748] sm:$0xff]
    %v1445 = vld [vmem:[#allocation8 + $0x750] sm:$0xff]
    %v1446 = vld [vmem:[#allocation8 + $0x758] sm:$0xff]
    %v1447 = vld [vmem:[#allocation8 + $0x760] sm:$0xff]
    %v1448 = vld [vmem:[#allocation8 + $0x768] sm:$0xff]
    %v1449 = vld [vmem:[#allocation8 + $0x770] sm:$0xff]
    %v1450 = vld [vmem:[#allocation8 + $0x778] sm:$0xff]
    %v1451 = vld [vmem:[#allocation8 + $0x780] sm:$0xff]
    %v1452 = vld [vmem:[#allocation8 + $0x788] sm:$0xff]
    %v1453 = vld [vmem:[#allocation8 + $0x790] sm:$0xff]
    %v1454 = vld [vmem:[#allocation8 + $0x798] sm:$0xff]
    %v1455 = vld [vmem:[#allocation8 + $0x7a0] sm:$0xff]
    %v1456 = vld [vmem:[#allocation8 + $0x7a8] sm:$0xff]
    %v1457 = vld [vmem:[#allocation8 + $0x7b0] sm:$0xff]
    %v1458 = vld [vmem:[#allocation8 + $0x7b8] sm:$0xff]
    %v1459 = vld [vmem:[#allocation8 + $0x7c0] sm:$0xff]
    %v1460 = vld [vmem:[#allocation8 + $0x7c8] sm:$0xff]
    %v1461 = vld [vmem:[#allocation8 + $0x7d0] sm:$0xff]
    %v1462 = vld [vmem:[#allocation8 + $0x7d8] sm:$0xff]
    %v1463 = vld [vmem:[#allocation8 + $0x7e0] sm:$0xff]
    %v1464 = vld [vmem:[#allocation8 + $0x7e8] sm:$0xff]
    %v1465 = vld [vmem:[#allocation8 + $0x7f0] sm:$0xff]
    %v1466 = vld [vmem:[#allocation8 + $0x7f8] sm:$0xff]
    %v1467 = vld [vmem:[%s4] sm:$0xf]
    %v1469 = vlaneseq
    %v1470 = vshrl.u32 %v1469, 7
    %v1471 = vsub.s32 0, %v1470
    %v1472 = vrot.slane %v1467, %v1471
    %v1473 = vlaneseq
    %v1474 = vshrl.u32 %v1473, 7
    %v1475 = vsub.s32 1, %v1474
    %v1476 = vrot.slane %v1467, %v1475
    %v1477 = vlaneseq
    %v1478 = vshrl.u32 %v1477, 7
    %v1479 = vsub.s32 2, %v1478
    %v1480 = vrot.slane %v1467, %v1479
    %v1481 = vlaneseq
    %v1482 = vshrl.u32 %v1481, 7
    %v1483 = vsub.s32 3, %v1482
    %v1484 = vrot.slane %v1467, %v1483
    %v1745 = vunpack.c.l.b16 %v1211
    %v1746 = vunpack.c.h.b16 %v1211
    %v1747 = vunpack.c.l.b16 %v1212
    %v1748 = vunpack.c.h.b16 %v1212
    %v1749 = vunpack.c.l.b16 %v1213
    %v1750 = vunpack.c.h.b16 %v1213
    %v1751 = vunpack.c.l.b16 %v1214
    %v1752 = vunpack.c.h.b16 %v1214
    %v1753 = vunpack.c.l.b16 %v1215
    %v1754 = vunpack.c.h.b16 %v1215
    %v1755 = vunpack.c.l.b16 %v1216
    %v1756 = vunpack.c.h.b16 %v1216
    %v1757 = vunpack.c.l.b16 %v1217
    %v1758 = vunpack.c.h.b16 %v1217
    %v1759 = vunpack.c.l.b16 %v1218
    %v1760 = vunpack.c.h.b16 %v1218
    %v1761 = vunpack.c.l.b16 %v1219
    %v1762 = vunpack.c.h.b16 %v1219
    %v1763 = vunpack.c.l.b16 %v1220
    %v1764 = vunpack.c.h.b16 %v1220
    %v1765 = vunpack.c.l.b16 %v1221
    %v1766 = vunpack.c.h.b16 %v1221
    %v1767 = vunpack.c.l.b16 %v1222
    %v1768 = vunpack.c.h.b16 %v1222
    %v1769 = vunpack.c.l.b16 %v1223
    %v1770 = vunpack.c.h.b16 %v1223
    %v1771 = vunpack.c.l.b16 %v1224
    %v1772 = vunpack.c.h.b16 %v1224
    %v1773 = vunpack.c.l.b16 %v1225
    %v1774 = vunpack.c.h.b16 %v1225
    %v1775 = vunpack.c.l.b16 %v1226
    %v1776 = vunpack.c.h.b16 %v1226
    %v1777 = vunpack.c.l.b16 %v1227
    %v1778 = vunpack.c.h.b16 %v1227
    %v1779 = vunpack.c.l.b16 %v1228
    %v1780 = vunpack.c.h.b16 %v1228
    %v1781 = vunpack.c.l.b16 %v1229
    %v1782 = vunpack.c.h.b16 %v1229
    %v1783 = vunpack.c.l.b16 %v1230
    %v1784 = vunpack.c.h.b16 %v1230
    %v1785 = vunpack.c.l.b16 %v1231
    %v1786 = vunpack.c.h.b16 %v1231
    %v1787 = vunpack.c.l.b16 %v1232
    %v1788 = vunpack.c.h.b16 %v1232
    %v1789 = vunpack.c.l.b16 %v1233
    %v1790 = vunpack.c.h.b16 %v1233
    %v1791 = vunpack.c.l.b16 %v1234
    %v1792 = vunpack.c.h.b16 %v1234
    %v1793 = vunpack.c.l.b16 %v1235
    %v1794 = vunpack.c.h.b16 %v1235
    %v1795 = vunpack.c.l.b16 %v1236
    %v1796 = vunpack.c.h.b16 %v1236
    %v1797 = vunpack.c.l.b16 %v1237
    %v1798 = vunpack.c.h.b16 %v1237
    %v1799 = vunpack.c.l.b16 %v1238
    %v1800 = vunpack.c.h.b16 %v1238
    %v1801 = vunpack.c.l.b16 %v1239
    %v1802 = vunpack.c.h.b16 %v1239
    %v1803 = vunpack.c.l.b16 %v1240
    %v1804 = vunpack.c.h.b16 %v1240
    %v1805 = vunpack.c.l.b16 %v1241
    %v1806 = vunpack.c.h.b16 %v1241
    %v1807 = vunpack.c.l.b16 %v1242
    %v1808 = vunpack.c.h.b16 %v1242
    %v1809 = vunpack.c.l.b16 %v1243
    %v1810 = vunpack.c.h.b16 %v1243
    %v1811 = vunpack.c.l.b16 %v1244
    %v1812 = vunpack.c.h.b16 %v1244
    %v1813 = vunpack.c.l.b16 %v1245
    %v1814 = vunpack.c.h.b16 %v1245
    %v1815 = vunpack.c.l.b16 %v1246
    %v1816 = vunpack.c.h.b16 %v1246
    %v1817 = vunpack.c.l.b16 %v1247
    %v1818 = vunpack.c.h.b16 %v1247
    %v1819 = vunpack.c.l.b16 %v1248
    %v1820 = vunpack.c.h.b16 %v1248
    %v1821 = vunpack.c.l.b16 %v1249
    %v1822 = vunpack.c.h.b16 %v1249
    %v1823 = vunpack.c.l.b16 %v1250
    %v1824 = vunpack.c.h.b16 %v1250
    %v1825 = vunpack.c.l.b16 %v1251
    %v1826 = vunpack.c.h.b16 %v1251
    %v1827 = vunpack.c.l.b16 %v1252
    %v1828 = vunpack.c.h.b16 %v1252
    %v1829 = vunpack.c.l.b16 %v1253
    %v1830 = vunpack.c.h.b16 %v1253
    %v1831 = vunpack.c.l.b16 %v1254
    %v1832 = vunpack.c.h.b16 %v1254
    %v1833 = vunpack.c.l.b16 %v1255
    %v1834 = vunpack.c.h.b16 %v1255
    %v1835 = vunpack.c.l.b16 %v1256
    %v1836 = vunpack.c.h.b16 %v1256
    %v1837 = vunpack.c.l.b16 %v1257
    %v1838 = vunpack.c.h.b16 %v1257
    %v1839 = vunpack.c.l.b16 %v1258
    %v1840 = vunpack.c.h.b16 %v1258
    %v1841 = vunpack.c.l.b16 %v1259
    %v1842 = vunpack.c.h.b16 %v1259
    %v1843 = vunpack.c.l.b16 %v1260
    %v1844 = vunpack.c.h.b16 %v1260
    %v1845 = vunpack.c.l.b16 %v1261
    %v1846 = vunpack.c.h.b16 %v1261
    %v1847 = vunpack.c.l.b16 %v1262
    %v1848 = vunpack.c.h.b16 %v1262
    %v1849 = vunpack.c.l.b16 %v1263
    %v1850 = vunpack.c.h.b16 %v1263
    %v1851 = vunpack.c.l.b16 %v1264
    %v1852 = vunpack.c.h.b16 %v1264
    %v1853 = vunpack.c.l.b16 %v1265
    %v1854 = vunpack.c.h.b16 %v1265
    %v1855 = vunpack.c.l.b16 %v1266
    %v1856 = vunpack.c.h.b16 %v1266
    %v1857 = vunpack.c.l.b16 %v1267
    %v1858 = vunpack.c.h.b16 %v1267
    %v1859 = vunpack.c.l.b16 %v1268
    %v1860 = vunpack.c.h.b16 %v1268
    %v1861 = vunpack.c.l.b16 %v1269
    %v1862 = vunpack.c.h.b16 %v1269
    %v1863 = vunpack.c.l.b16 %v1270
    %v1864 = vunpack.c.h.b16 %v1270
    %v1865 = vunpack.c.l.b16 %v1271
    %v1866 = vunpack.c.h.b16 %v1271
    %v1867 = vunpack.c.l.b16 %v1272
    %v1868 = vunpack.c.h.b16 %v1272
    %v1869 = vunpack.c.l.b16 %v1273
    %v1870 = vunpack.c.h.b16 %v1273
    %v1871 = vunpack.c.l.b16 %v1274
    %v1872 = vunpack.c.h.b16 %v1274
    %v1873 = vunpack.c.l.b16 %v1275
    %v1874 = vunpack.c.h.b16 %v1275
    %v1875 = vunpack.c.l.b16 %v1276
    %v1876 = vunpack.c.h.b16 %v1276
    %v1877 = vunpack.c.l.b16 %v1277
    %v1878 = vunpack.c.h.b16 %v1277
    %v1879 = vunpack.c.l.b16 %v1278
    %v1880 = vunpack.c.h.b16 %v1278
    %v1881 = vunpack.c.l.b16 %v1279
    %v1882 = vunpack.c.h.b16 %v1279
    %v1883 = vunpack.c.l.b16 %v1280
    %v1884 = vunpack.c.h.b16 %v1280
    %v1885 = vunpack.c.l.b16 %v1281
    %v1886 = vunpack.c.h.b16 %v1281
    %v1887 = vunpack.c.l.b16 %v1282
    %v1888 = vunpack.c.h.b16 %v1282
    %v1889 = vunpack.c.l.b16 %v1283
    %v1890 = vunpack.c.h.b16 %v1283
    %v1891 = vunpack.c.l.b16 %v1284
    %v1892 = vunpack.c.h.b16 %v1284
    %v1893 = vunpack.c.l.b16 %v1285
    %v1894 = vunpack.c.h.b16 %v1285
    %v1895 = vunpack.c.l.b16 %v1286
    %v1896 = vunpack.c.h.b16 %v1286
    %v1897 = vunpack.c.l.b16 %v1287
    %v1898 = vunpack.c.h.b16 %v1287
    %v1899 = vunpack.c.l.b16 %v1288
    %v1900 = vunpack.c.h.b16 %v1288
    %v1901 = vunpack.c.l.b16 %v1289
    %v1902 = vunpack.c.h.b16 %v1289
    %v1903 = vunpack.c.l.b16 %v1290
    %v1904 = vunpack.c.h.b16 %v1290
    %v1905 = vunpack.c.l.b16 %v1291
    %v1906 = vunpack.c.h.b16 %v1291
    %v1907 = vunpack.c.l.b16 %v1292
    %v1908 = vunpack.c.h.b16 %v1292
    %v1909 = vunpack.c.l.b16 %v1293
    %v1910 = vunpack.c.h.b16 %v1293
    %v1911 = vunpack.c.l.b16 %v1294
    %v1912 = vunpack.c.h.b16 %v1294
    %v1913 = vunpack.c.l.b16 %v1295
    %v1914 = vunpack.c.h.b16 %v1295
    %v1915 = vunpack.c.l.b16 %v1296
    %v1916 = vunpack.c.h.b16 %v1296
    %v1917 = vunpack.c.l.b16 %v1297
    %v1918 = vunpack.c.h.b16 %v1297
    %v1919 = vunpack.c.l.b16 %v1298
    %v1920 = vunpack.c.h.b16 %v1298
    %v1921 = vunpack.c.l.b16 %v1299
    %v1922 = vunpack.c.h.b16 %v1299
    %v1923 = vunpack.c.l.b16 %v1300
    %v1924 = vunpack.c.h.b16 %v1300
    %v1925 = vunpack.c.l.b16 %v1301
    %v1926 = vunpack.c.h.b16 %v1301
    %v1927 = vunpack.c.l.b16 %v1302
    %v1928 = vunpack.c.h.b16 %v1302
    %v1929 = vunpack.c.l.b16 %v1303
    %v1930 = vunpack.c.h.b16 %v1303
    %v1931 = vunpack.c.l.b16 %v1304
    %v1932 = vunpack.c.h.b16 %v1304
    %v1933 = vunpack.c.l.b16 %v1305
    %v1934 = vunpack.c.h.b16 %v1305
    %v1935 = vunpack.c.l.b16 %v1306
    %v1936 = vunpack.c.h.b16 %v1306
    %v1937 = vunpack.c.l.b16 %v1307
    %v1938 = vunpack.c.h.b16 %v1307
    %v1939 = vunpack.c.l.b16 %v1308
    %v1940 = vunpack.c.h.b16 %v1308
    %v1941 = vunpack.c.l.b16 %v1309
    %v1942 = vunpack.c.h.b16 %v1309
    %v1943 = vunpack.c.l.b16 %v1310
    %v1944 = vunpack.c.h.b16 %v1310
    %v1945 = vunpack.c.l.b16 %v1311
    %v1946 = vunpack.c.h.b16 %v1311
    %v1947 = vunpack.c.l.b16 %v1312
    %v1948 = vunpack.c.h.b16 %v1312
    %v1949 = vunpack.c.l.b16 %v1313
    %v1950 = vunpack.c.h.b16 %v1313
    %v1951 = vunpack.c.l.b16 %v1314
    %v1952 = vunpack.c.h.b16 %v1314
    %v1953 = vunpack.c.l.b16 %v1315
    %v1954 = vunpack.c.h.b16 %v1315
    %v1955 = vunpack.c.l.b16 %v1316
    %v1956 = vunpack.c.h.b16 %v1316
    %v1957 = vunpack.c.l.b16 %v1317
    %v1958 = vunpack.c.h.b16 %v1317
    %v1959 = vunpack.c.l.b16 %v1318
    %v1960 = vunpack.c.h.b16 %v1318
    %v1961 = vunpack.c.l.b16 %v1319
    %v1962 = vunpack.c.h.b16 %v1319
    %v1963 = vunpack.c.l.b16 %v1320
    %v1964 = vunpack.c.h.b16 %v1320
    %v1965 = vunpack.c.l.b16 %v1321
    %v1966 = vunpack.c.h.b16 %v1321
    %v1967 = vunpack.c.l.b16 %v1322
    %v1968 = vunpack.c.h.b16 %v1322
    %v1969 = vunpack.c.l.b16 %v1323
    %v1970 = vunpack.c.h.b16 %v1323
    %v1971 = vunpack.c.l.b16 %v1324
    %v1972 = vunpack.c.h.b16 %v1324
    %v1973 = vunpack.c.l.b16 %v1325
    %v1974 = vunpack.c.h.b16 %v1325
    %v1975 = vunpack.c.l.b16 %v1326
    %v1976 = vunpack.c.h.b16 %v1326
    %v1977 = vunpack.c.l.b16 %v1327
    %v1978 = vunpack.c.h.b16 %v1327
    %v1979 = vunpack.c.l.b16 %v1328
    %v1980 = vunpack.c.h.b16 %v1328
    %v1981 = vunpack.c.l.b16 %v1329
    %v1982 = vunpack.c.h.b16 %v1329
    %v1983 = vunpack.c.l.b16 %v1330
    %v1984 = vunpack.c.h.b16 %v1330
    %v1985 = vunpack.c.l.b16 %v1331
    %v1986 = vunpack.c.h.b16 %v1331
    %v1987 = vunpack.c.l.b16 %v1332
    %v1988 = vunpack.c.h.b16 %v1332
    %v1989 = vunpack.c.l.b16 %v1333
    %v1990 = vunpack.c.h.b16 %v1333
    %v1991 = vunpack.c.l.b16 %v1334
    %v1992 = vunpack.c.h.b16 %v1334
    %v1993 = vunpack.c.l.b16 %v1335
    %v1994 = vunpack.c.h.b16 %v1335
    %v1995 = vunpack.c.l.b16 %v1336
    %v1996 = vunpack.c.h.b16 %v1336
    %v1997 = vunpack.c.l.b16 %v1337
    %v1998 = vunpack.c.h.b16 %v1337
    %v1999 = vunpack.c.l.b16 %v1338
    %v2000 = vunpack.c.h.b16 %v1338
    %v2001 = vunpack.c.l.b16 %v1339
    %v2002 = vunpack.c.h.b16 %v1339
    %v2003 = vunpack.c.l.b16 %v1340
    %v2004 = vunpack.c.h.b16 %v1340
    %v2005 = vunpack.c.l.b16 %v1341
    %v2006 = vunpack.c.h.b16 %v1341
    %v2007 = vunpack.c.l.b16 %v1342
    %v2008 = vunpack.c.h.b16 %v1342
    %v2009 = vunpack.c.l.b16 %v1343
    %v2010 = vunpack.c.h.b16 %v1343
    %v2011 = vunpack.c.l.b16 %v1344
    %v2012 = vunpack.c.h.b16 %v1344
    %v2013 = vunpack.c.l.b16 %v1345
    %v2014 = vunpack.c.h.b16 %v1345
    %v2015 = vunpack.c.l.b16 %v1346
    %v2016 = vunpack.c.h.b16 %v1346
    %v2017 = vunpack.c.l.b16 %v1347
    %v2018 = vunpack.c.h.b16 %v1347
    %v2019 = vunpack.c.l.b16 %v1348
    %v2020 = vunpack.c.h.b16 %v1348
    %v2021 = vunpack.c.l.b16 %v1349
    %v2022 = vunpack.c.h.b16 %v1349
    %v2023 = vunpack.c.l.b16 %v1350
    %v2024 = vunpack.c.h.b16 %v1350
    %v2025 = vunpack.c.l.b16 %v1351
    %v2026 = vunpack.c.h.b16 %v1351
    %v2027 = vunpack.c.l.b16 %v1352
    %v2028 = vunpack.c.h.b16 %v1352
    %v2029 = vunpack.c.l.b16 %v1353
    %v2030 = vunpack.c.h.b16 %v1353
    %v2031 = vunpack.c.l.b16 %v1354
    %v2032 = vunpack.c.h.b16 %v1354
    %v2033 = vunpack.c.l.b16 %v1355
    %v2034 = vunpack.c.h.b16 %v1355
    %v2035 = vunpack.c.l.b16 %v1356
    %v2036 = vunpack.c.h.b16 %v1356
    %v2037 = vunpack.c.l.b16 %v1357
    %v2038 = vunpack.c.h.b16 %v1357
    %v2039 = vunpack.c.l.b16 %v1358
    %v2040 = vunpack.c.h.b16 %v1358
    %v2041 = vunpack.c.l.b16 %v1359
    %v2042 = vunpack.c.h.b16 %v1359
    %v2043 = vunpack.c.l.b16 %v1360
    %v2044 = vunpack.c.h.b16 %v1360
    %v2045 = vunpack.c.l.b16 %v1361
    %v2046 = vunpack.c.h.b16 %v1361
    %v2047 = vunpack.c.l.b16 %v1362
    %v2048 = vunpack.c.h.b16 %v1362
    %v2049 = vunpack.c.l.b16 %v1363
    %v2050 = vunpack.c.h.b16 %v1363
    %v2051 = vunpack.c.l.b16 %v1364
    %v2052 = vunpack.c.h.b16 %v1364
    %v2053 = vunpack.c.l.b16 %v1365
    %v2054 = vunpack.c.h.b16 %v1365
    %v2055 = vunpack.c.l.b16 %v1366
    %v2056 = vunpack.c.h.b16 %v1366
    %v2057 = vunpack.c.l.b16 %v1367
    %v2058 = vunpack.c.h.b16 %v1367
    %v2059 = vunpack.c.l.b16 %v1368
    %v2060 = vunpack.c.h.b16 %v1368
    %v2061 = vunpack.c.l.b16 %v1369
    %v2062 = vunpack.c.h.b16 %v1369
    %v2063 = vunpack.c.l.b16 %v1370
    %v2064 = vunpack.c.h.b16 %v1370
    %v2065 = vunpack.c.l.b16 %v1371
    %v2066 = vunpack.c.h.b16 %v1371
    %v2067 = vunpack.c.l.b16 %v1372
    %v2068 = vunpack.c.h.b16 %v1372
    %v2069 = vunpack.c.l.b16 %v1373
    %v2070 = vunpack.c.h.b16 %v1373
    %v2071 = vunpack.c.l.b16 %v1374
    %v2072 = vunpack.c.h.b16 %v1374
    %v2073 = vunpack.c.l.b16 %v1375
    %v2074 = vunpack.c.h.b16 %v1375
    %v2075 = vunpack.c.l.b16 %v1376
    %v2076 = vunpack.c.h.b16 %v1376
    %v2077 = vunpack.c.l.b16 %v1377
    %v2078 = vunpack.c.h.b16 %v1377
    %v2079 = vunpack.c.l.b16 %v1378
    %v2080 = vunpack.c.h.b16 %v1378
    %v2081 = vunpack.c.l.b16 %v1379
    %v2082 = vunpack.c.h.b16 %v1379
    %v2083 = vunpack.c.l.b16 %v1380
    %v2084 = vunpack.c.h.b16 %v1380
    %v2085 = vunpack.c.l.b16 %v1381
    %v2086 = vunpack.c.h.b16 %v1381
    %v2087 = vunpack.c.l.b16 %v1382
    %v2088 = vunpack.c.h.b16 %v1382
    %v2089 = vunpack.c.l.b16 %v1383
    %v2090 = vunpack.c.h.b16 %v1383
    %v2091 = vunpack.c.l.b16 %v1384
    %v2092 = vunpack.c.h.b16 %v1384
    %v2093 = vunpack.c.l.b16 %v1385
    %v2094 = vunpack.c.h.b16 %v1385
    %v2095 = vunpack.c.l.b16 %v1386
    %v2096 = vunpack.c.h.b16 %v1386
    %v2097 = vunpack.c.l.b16 %v1387
    %v2098 = vunpack.c.h.b16 %v1387
    %v2099 = vunpack.c.l.b16 %v1388
    %v2100 = vunpack.c.h.b16 %v1388
    %v2101 = vunpack.c.l.b16 %v1389
    %v2102 = vunpack.c.h.b16 %v1389
    %v2103 = vunpack.c.l.b16 %v1390
    %v2104 = vunpack.c.h.b16 %v1390
    %v2105 = vunpack.c.l.b16 %v1391
    %v2106 = vunpack.c.h.b16 %v1391
    %v2107 = vunpack.c.l.b16 %v1392
    %v2108 = vunpack.c.h.b16 %v1392
    %v2109 = vunpack.c.l.b16 %v1393
    %v2110 = vunpack.c.h.b16 %v1393
    %v2111 = vunpack.c.l.b16 %v1394
    %v2112 = vunpack.c.h.b16 %v1394
    %v2113 = vunpack.c.l.b16 %v1395
    %v2114 = vunpack.c.h.b16 %v1395
    %v2115 = vunpack.c.l.b16 %v1396
    %v2116 = vunpack.c.h.b16 %v1396
    %v2117 = vunpack.c.l.b16 %v1397
    %v2118 = vunpack.c.h.b16 %v1397
    %v2119 = vunpack.c.l.b16 %v1398
    %v2120 = vunpack.c.h.b16 %v1398
    %v2121 = vunpack.c.l.b16 %v1399
    %v2122 = vunpack.c.h.b16 %v1399
    %v2123 = vunpack.c.l.b16 %v1400
    %v2124 = vunpack.c.h.b16 %v1400
    %v2125 = vunpack.c.l.b16 %v1401
    %v2126 = vunpack.c.h.b16 %v1401
    %v2127 = vunpack.c.l.b16 %v1402
    %v2128 = vunpack.c.h.b16 %v1402
    %v2129 = vunpack.c.l.b16 %v1403
    %v2130 = vunpack.c.h.b16 %v1403
    %v2131 = vunpack.c.l.b16 %v1404
    %v2132 = vunpack.c.h.b16 %v1404
    %v2133 = vunpack.c.l.b16 %v1405
    %v2134 = vunpack.c.h.b16 %v1405
    %v2135 = vunpack.c.l.b16 %v1406
    %v2136 = vunpack.c.h.b16 %v1406
    %v2137 = vunpack.c.l.b16 %v1407
    %v2138 = vunpack.c.h.b16 %v1407
    %v2139 = vunpack.c.l.b16 %v1408
    %v2140 = vunpack.c.h.b16 %v1408
    %v2141 = vunpack.c.l.b16 %v1409
    %v2142 = vunpack.c.h.b16 %v1409
    %v2143 = vunpack.c.l.b16 %v1410
    %v2144 = vunpack.c.h.b16 %v1410
    %v2145 = vunpack.c.l.b16 %v1411
    %v2146 = vunpack.c.h.b16 %v1411
    %v2147 = vunpack.c.l.b16 %v1412
    %v2148 = vunpack.c.h.b16 %v1412
    %v2149 = vunpack.c.l.b16 %v1413
    %v2150 = vunpack.c.h.b16 %v1413
    %v2151 = vunpack.c.l.b16 %v1414
    %v2152 = vunpack.c.h.b16 %v1414
    %v2153 = vunpack.c.l.b16 %v1415
    %v2154 = vunpack.c.h.b16 %v1415
    %v2155 = vunpack.c.l.b16 %v1416
    %v2156 = vunpack.c.h.b16 %v1416
    %v2157 = vunpack.c.l.b16 %v1417
    %v2158 = vunpack.c.h.b16 %v1417
    %v2159 = vunpack.c.l.b16 %v1418
    %v2160 = vunpack.c.h.b16 %v1418
    %v2161 = vunpack.c.l.b16 %v1419
    %v2162 = vunpack.c.h.b16 %v1419
    %v2163 = vunpack.c.l.b16 %v1420
    %v2164 = vunpack.c.h.b16 %v1420
    %v2165 = vunpack.c.l.b16 %v1421
    %v2166 = vunpack.c.h.b16 %v1421
    %v2167 = vunpack.c.l.b16 %v1422
    %v2168 = vunpack.c.h.b16 %v1422
    %v2169 = vunpack.c.l.b16 %v1423
    %v2170 = vunpack.c.h.b16 %v1423
    %v2171 = vunpack.c.l.b16 %v1424
    %v2172 = vunpack.c.h.b16 %v1424
    %v2173 = vunpack.c.l.b16 %v1425
    %v2174 = vunpack.c.h.b16 %v1425
    %v2175 = vunpack.c.l.b16 %v1426
    %v2176 = vunpack.c.h.b16 %v1426
    %v2177 = vunpack.c.l.b16 %v1427
    %v2178 = vunpack.c.h.b16 %v1427
    %v2179 = vunpack.c.l.b16 %v1428
    %v2180 = vunpack.c.h.b16 %v1428
    %v2181 = vunpack.c.l.b16 %v1429
    %v2182 = vunpack.c.h.b16 %v1429
    %v2183 = vunpack.c.l.b16 %v1430
    %v2184 = vunpack.c.h.b16 %v1430
    %v2185 = vunpack.c.l.b16 %v1431
    %v2186 = vunpack.c.h.b16 %v1431
    %v2187 = vunpack.c.l.b16 %v1432
    %v2188 = vunpack.c.h.b16 %v1432
    %v2189 = vunpack.c.l.b16 %v1433
    %v2190 = vunpack.c.h.b16 %v1433
    %v2191 = vunpack.c.l.b16 %v1434
    %v2192 = vunpack.c.h.b16 %v1434
    %v2193 = vunpack.c.l.b16 %v1435
    %v2194 = vunpack.c.h.b16 %v1435
    %v2195 = vunpack.c.l.b16 %v1436
    %v2196 = vunpack.c.h.b16 %v1436
    %v2197 = vunpack.c.l.b16 %v1437
    %v2198 = vunpack.c.h.b16 %v1437
    %v2199 = vunpack.c.l.b16 %v1438
    %v2200 = vunpack.c.h.b16 %v1438
    %v2201 = vunpack.c.l.b16 %v1439
    %v2202 = vunpack.c.h.b16 %v1439
    %v2203 = vunpack.c.l.b16 %v1440
    %v2204 = vunpack.c.h.b16 %v1440
    %v2205 = vunpack.c.l.b16 %v1441
    %v2206 = vunpack.c.h.b16 %v1441
    %v2207 = vunpack.c.l.b16 %v1442
    %v2208 = vunpack.c.h.b16 %v1442
    %v2209 = vunpack.c.l.b16 %v1443
    %v2210 = vunpack.c.h.b16 %v1443
    %v2211 = vunpack.c.l.b16 %v1444
    %v2212 = vunpack.c.h.b16 %v1444
    %v2213 = vunpack.c.l.b16 %v1445
    %v2214 = vunpack.c.h.b16 %v1445
    %v2215 = vunpack.c.l.b16 %v1446
    %v2216 = vunpack.c.h.b16 %v1446
    %v2217 = vunpack.c.l.b16 %v1447
    %v2218 = vunpack.c.h.b16 %v1447
    %v2219 = vunpack.c.l.b16 %v1448
    %v2220 = vunpack.c.h.b16 %v1448
    %v2221 = vunpack.c.l.b16 %v1449
    %v2222 = vunpack.c.h.b16 %v1449
    %v2223 = vunpack.c.l.b16 %v1450
    %v2224 = vunpack.c.h.b16 %v1450
    %v2225 = vunpack.c.l.b16 %v1451
    %v2226 = vunpack.c.h.b16 %v1451
    %v2227 = vunpack.c.l.b16 %v1452
    %v2228 = vunpack.c.h.b16 %v1452
    %v2229 = vunpack.c.l.b16 %v1453
    %v2230 = vunpack.c.h.b16 %v1453
    %v2231 = vunpack.c.l.b16 %v1454
    %v2232 = vunpack.c.h.b16 %v1454
    %v2233 = vunpack.c.l.b16 %v1455
    %v2234 = vunpack.c.h.b16 %v1455
    %v2235 = vunpack.c.l.b16 %v1456
    %v2236 = vunpack.c.h.b16 %v1456
    %v2237 = vunpack.c.l.b16 %v1457
    %v2238 = vunpack.c.h.b16 %v1457
    %v2239 = vunpack.c.l.b16 %v1458
    %v2240 = vunpack.c.h.b16 %v1458
    %v2241 = vunpack.c.l.b16 %v1459
    %v2242 = vunpack.c.h.b16 %v1459
    %v2243 = vunpack.c.l.b16 %v1460
    %v2244 = vunpack.c.h.b16 %v1460
    %v2245 = vunpack.c.l.b16 %v1461
    %v2246 = vunpack.c.h.b16 %v1461
    %v2247 = vunpack.c.l.b16 %v1462
    %v2248 = vunpack.c.h.b16 %v1462
    %v2249 = vunpack.c.l.b16 %v1463
    %v2250 = vunpack.c.h.b16 %v1463
    %v2251 = vunpack.c.l.b16 %v1464
    %v2252 = vunpack.c.h.b16 %v1464
    %v2253 = vunpack.c.l.b16 %v1465
    %v2254 = vunpack.c.h.b16 %v1465
    %v2255 = vunpack.c.l.b16 %v1466
    %v2256 = vunpack.c.h.b16 %v1466
    %v2257 = vpack.c.b16 %v1749, %v1745
    %v2258 = vpack.c.b16 %v1750, %v1746
    %v2259 = vpack.c.b16 %v1751, %v1747
    %v2260 = vpack.c.b16 %v1752, %v1748
    %v2261 = vpack.c.b16 %v1757, %v1753
    %v2262 = vpack.c.b16 %v1758, %v1754
    %v2263 = vpack.c.b16 %v1759, %v1755
    %v2264 = vpack.c.b16 %v1760, %v1756
    %v2265 = vpack.c.b16 %v1765, %v1761
    %v2266 = vpack.c.b16 %v1766, %v1762
    %v2267 = vpack.c.b16 %v1767, %v1763
    %v2268 = vpack.c.b16 %v1768, %v1764
    %v2269 = vpack.c.b16 %v1773, %v1769
    %v2270 = vpack.c.b16 %v1774, %v1770
    %v2271 = vpack.c.b16 %v1775, %v1771
    %v2272 = vpack.c.b16 %v1776, %v1772
    %v2273 = vpack.c.b16 %v1781, %v1777
    %v2274 = vpack.c.b16 %v1782, %v1778
    %v2275 = vpack.c.b16 %v1783, %v1779
    %v2276 = vpack.c.b16 %v1784, %v1780
    %v2277 = vpack.c.b16 %v1789, %v1785
    %v2278 = vpack.c.b16 %v1790, %v1786
    %v2279 = vpack.c.b16 %v1791, %v1787
    %v2280 = vpack.c.b16 %v1792, %v1788
    %v2281 = vpack.c.b16 %v1797, %v1793
    %v2282 = vpack.c.b16 %v1798, %v1794
    %v2283 = vpack.c.b16 %v1799, %v1795
    %v2284 = vpack.c.b16 %v1800, %v1796
    %v2285 = vpack.c.b16 %v1805, %v1801
    %v2286 = vpack.c.b16 %v1806, %v1802
    %v2287 = vpack.c.b16 %v1807, %v1803
    %v2288 = vpack.c.b16 %v1808, %v1804
    %v2289 = vpack.c.b16 %v1813, %v1809
    %v2290 = vpack.c.b16 %v1814, %v1810
    %v2291 = vpack.c.b16 %v1815, %v1811
    %v2292 = vpack.c.b16 %v1816, %v1812
    %v2293 = vpack.c.b16 %v1821, %v1817
    %v2294 = vpack.c.b16 %v1822, %v1818
    %v2295 = vpack.c.b16 %v1823, %v1819
    %v2296 = vpack.c.b16 %v1824, %v1820
    %v2297 = vpack.c.b16 %v1829, %v1825
    %v2298 = vpack.c.b16 %v1830, %v1826
    %v2299 = vpack.c.b16 %v1831, %v1827
    %v2300 = vpack.c.b16 %v1832, %v1828
    %v2301 = vpack.c.b16 %v1837, %v1833
    %v2302 = vpack.c.b16 %v1838, %v1834
    %v2303 = vpack.c.b16 %v1839, %v1835
    %v2304 = vpack.c.b16 %v1840, %v1836
    %v2305 = vpack.c.b16 %v1845, %v1841
    %v2306 = vpack.c.b16 %v1846, %v1842
    %v2307 = vpack.c.b16 %v1847, %v1843
    %v2308 = vpack.c.b16 %v1848, %v1844
    %v2309 = vpack.c.b16 %v1853, %v1849
    %v2310 = vpack.c.b16 %v1854, %v1850
    %v2311 = vpack.c.b16 %v1855, %v1851
    %v2312 = vpack.c.b16 %v1856, %v1852
    %v2313 = vpack.c.b16 %v1861, %v1857
    %v2314 = vpack.c.b16 %v1862, %v1858
    %v2315 = vpack.c.b16 %v1863, %v1859
    %v2316 = vpack.c.b16 %v1864, %v1860
    %v2317 = vpack.c.b16 %v1869, %v1865
    %v2318 = vpack.c.b16 %v1870, %v1866
    %v2319 = vpack.c.b16 %v1871, %v1867
    %v2320 = vpack.c.b16 %v1872, %v1868
    %v2321 = vpack.c.b16 %v1877, %v1873
    %v2322 = vpack.c.b16 %v1878, %v1874
    %v2323 = vpack.c.b16 %v1879, %v1875
    %v2324 = vpack.c.b16 %v1880, %v1876
    %v2325 = vpack.c.b16 %v1885, %v1881
    %v2326 = vpack.c.b16 %v1886, %v1882
    %v2327 = vpack.c.b16 %v1887, %v1883
    %v2328 = vpack.c.b16 %v1888, %v1884
    %v2329 = vpack.c.b16 %v1893, %v1889
    %v2330 = vpack.c.b16 %v1894, %v1890
    %v2331 = vpack.c.b16 %v1895, %v1891
    %v2332 = vpack.c.b16 %v1896, %v1892
    %v2333 = vpack.c.b16 %v1901, %v1897
    %v2334 = vpack.c.b16 %v1902, %v1898
    %v2335 = vpack.c.b16 %v1903, %v1899
    %v2336 = vpack.c.b16 %v1904, %v1900
    %v2337 = vpack.c.b16 %v1909, %v1905
    %v2338 = vpack.c.b16 %v1910, %v1906
    %v2339 = vpack.c.b16 %v1911, %v1907
    %v2340 = vpack.c.b16 %v1912, %v1908
    %v2341 = vpack.c.b16 %v1917, %v1913
    %v2342 = vpack.c.b16 %v1918, %v1914
    %v2343 = vpack.c.b16 %v1919, %v1915
    %v2344 = vpack.c.b16 %v1920, %v1916
    %v2345 = vpack.c.b16 %v1925, %v1921
    %v2346 = vpack.c.b16 %v1926, %v1922
    %v2347 = vpack.c.b16 %v1927, %v1923
    %v2348 = vpack.c.b16 %v1928, %v1924
    %v2349 = vpack.c.b16 %v1933, %v1929
    %v2350 = vpack.c.b16 %v1934, %v1930
    %v2351 = vpack.c.b16 %v1935, %v1931
    %v2352 = vpack.c.b16 %v1936, %v1932
    %v2353 = vpack.c.b16 %v1941, %v1937
    %v2354 = vpack.c.b16 %v1942, %v1938
    %v2355 = vpack.c.b16 %v1943, %v1939
    %v2356 = vpack.c.b16 %v1944, %v1940
    %v2357 = vpack.c.b16 %v1949, %v1945
    %v2358 = vpack.c.b16 %v1950, %v1946
    %v2359 = vpack.c.b16 %v1951, %v1947
    %v2360 = vpack.c.b16 %v1952, %v1948
    %v2361 = vpack.c.b16 %v1957, %v1953
    %v2362 = vpack.c.b16 %v1958, %v1954
    %v2363 = vpack.c.b16 %v1959, %v1955
    %v2364 = vpack.c.b16 %v1960, %v1956
    %v2365 = vpack.c.b16 %v1965, %v1961
    %v2366 = vpack.c.b16 %v1966, %v1962
    %v2367 = vpack.c.b16 %v1967, %v1963
    %v2368 = vpack.c.b16 %v1968, %v1964
    %v2369 = vpack.c.b16 %v1973, %v1969
    %v2370 = vpack.c.b16 %v1974, %v1970
    %v2371 = vpack.c.b16 %v1975, %v1971
    %v2372 = vpack.c.b16 %v1976, %v1972
    %v2373 = vpack.c.b16 %v1981, %v1977
    %v2374 = vpack.c.b16 %v1982, %v1978
    %v2375 = vpack.c.b16 %v1983, %v1979
    %v2376 = vpack.c.b16 %v1984, %v1980
    %v2377 = vpack.c.b16 %v1989, %v1985
    %v2378 = vpack.c.b16 %v1990, %v1986
    %v2379 = vpack.c.b16 %v1991, %v1987
    %v2380 = vpack.c.b16 %v1992, %v1988
    %v2381 = vpack.c.b16 %v1997, %v1993
    %v2382 = vpack.c.b16 %v1998, %v1994
    %v2383 = vpack.c.b16 %v1999, %v1995
    %v2384 = vpack.c.b16 %v2000, %v1996
    %v2385 = vpack.c.b16 %v2005, %v2001
    %v2386 = vpack.c.b16 %v2006, %v2002
    %v2387 = vpack.c.b16 %v2007, %v2003
    %v2388 = vpack.c.b16 %v2008, %v2004
    %v2389 = vpack.c.b16 %v2013, %v2009
    %v2390 = vpack.c.b16 %v2014, %v2010
    %v2391 = vpack.c.b16 %v2015, %v2011
    %v2392 = vpack.c.b16 %v2016, %v2012
    %v2393 = vpack.c.b16 %v2021, %v2017
    %v2394 = vpack.c.b16 %v2022, %v2018
    %v2395 = vpack.c.b16 %v2023, %v2019
    %v2396 = vpack.c.b16 %v2024, %v2020
    %v2397 = vpack.c.b16 %v2029, %v2025
    %v2398 = vpack.c.b16 %v2030, %v2026
    %v2399 = vpack.c.b16 %v2031, %v2027
    %v2400 = vpack.c.b16 %v2032, %v2028
    %v2401 = vpack.c.b16 %v2037, %v2033
    %v2402 = vpack.c.b16 %v2038, %v2034
    %v2403 = vpack.c.b16 %v2039, %v2035
    %v2404 = vpack.c.b16 %v2040, %v2036
    %v2405 = vpack.c.b16 %v2045, %v2041
    %v2406 = vpack.c.b16 %v2046, %v2042
    %v2407 = vpack.c.b16 %v2047, %v2043
    %v2408 = vpack.c.b16 %v2048, %v2044
    %v2409 = vpack.c.b16 %v2053, %v2049
    %v2410 = vpack.c.b16 %v2054, %v2050
    %v2411 = vpack.c.b16 %v2055, %v2051
    %v2412 = vpack.c.b16 %v2056, %v2052
    %v2413 = vpack.c.b16 %v2061, %v2057
    %v2414 = vpack.c.b16 %v2062, %v2058
    %v2415 = vpack.c.b16 %v2063, %v2059
    %v2416 = vpack.c.b16 %v2064, %v2060
    %v2417 = vpack.c.b16 %v2069, %v2065
    %v2418 = vpack.c.b16 %v2070, %v2066
    %v2419 = vpack.c.b16 %v2071, %v2067
    %v2420 = vpack.c.b16 %v2072, %v2068
    %v2421 = vpack.c.b16 %v2077, %v2073
    %v2422 = vpack.c.b16 %v2078, %v2074
    %v2423 = vpack.c.b16 %v2079, %v2075
    %v2424 = vpack.c.b16 %v2080, %v2076
    %v2425 = vpack.c.b16 %v2085, %v2081
    %v2426 = vpack.c.b16 %v2086, %v2082
    %v2427 = vpack.c.b16 %v2087, %v2083
    %v2428 = vpack.c.b16 %v2088, %v2084
    %v2429 = vpack.c.b16 %v2093, %v2089
    %v2430 = vpack.c.b16 %v2094, %v2090
    %v2431 = vpack.c.b16 %v2095, %v2091
    %v2432 = vpack.c.b16 %v2096, %v2092
    %v2433 = vpack.c.b16 %v2101, %v2097
    %v2434 = vpack.c.b16 %v2102, %v2098
    %v2435 = vpack.c.b16 %v2103, %v2099
    %v2436 = vpack.c.b16 %v2104, %v2100
    %v2437 = vpack.c.b16 %v2109, %v2105
    %v2438 = vpack.c.b16 %v2110, %v2106
    %v2439 = vpack.c.b16 %v2111, %v2107
    %v2440 = vpack.c.b16 %v2112, %v2108
    %v2441 = vpack.c.b16 %v2117, %v2113
    %v2442 = vpack.c.b16 %v2118, %v2114
    %v2443 = vpack.c.b16 %v2119, %v2115
    %v2444 = vpack.c.b16 %v2120, %v2116
    %v2445 = vpack.c.b16 %v2125, %v2121
    %v2446 = vpack.c.b16 %v2126, %v2122
    %v2447 = vpack.c.b16 %v2127, %v2123
    %v2448 = vpack.c.b16 %v2128, %v2124
    %v2449 = vpack.c.b16 %v2133, %v2129
    %v2450 = vpack.c.b16 %v2134, %v2130
    %v2451 = vpack.c.b16 %v2135, %v2131
    %v2452 = vpack.c.b16 %v2136, %v2132
    %v2453 = vpack.c.b16 %v2141, %v2137
    %v2454 = vpack.c.b16 %v2142, %v2138
    %v2455 = vpack.c.b16 %v2143, %v2139
    %v2456 = vpack.c.b16 %v2144, %v2140
    %v2457 = vpack.c.b16 %v2149, %v2145
    %v2458 = vpack.c.b16 %v2150, %v2146
    %v2459 = vpack.c.b16 %v2151, %v2147
    %v2460 = vpack.c.b16 %v2152, %v2148
    %v2461 = vpack.c.b16 %v2157, %v2153
    %v2462 = vpack.c.b16 %v2158, %v2154
    %v2463 = vpack.c.b16 %v2159, %v2155
    %v2464 = vpack.c.b16 %v2160, %v2156
    %v2465 = vpack.c.b16 %v2165, %v2161
    %v2466 = vpack.c.b16 %v2166, %v2162
    %v2467 = vpack.c.b16 %v2167, %v2163
    %v2468 = vpack.c.b16 %v2168, %v2164
    %v2469 = vpack.c.b16 %v2173, %v2169
    %v2470 = vpack.c.b16 %v2174, %v2170
    %v2471 = vpack.c.b16 %v2175, %v2171
    %v2472 = vpack.c.b16 %v2176, %v2172
    %v2473 = vpack.c.b16 %v2181, %v2177
    %v2474 = vpack.c.b16 %v2182, %v2178
    %v2475 = vpack.c.b16 %v2183, %v2179
    %v2476 = vpack.c.b16 %v2184, %v2180
    %v2477 = vpack.c.b16 %v2189, %v2185
    %v2478 = vpack.c.b16 %v2190, %v2186
    %v2479 = vpack.c.b16 %v2191, %v2187
    %v2480 = vpack.c.b16 %v2192, %v2188
    %v2481 = vpack.c.b16 %v2197, %v2193
    %v2482 = vpack.c.b16 %v2198, %v2194
    %v2483 = vpack.c.b16 %v2199, %v2195
    %v2484 = vpack.c.b16 %v2200, %v2196
    %v2485 = vpack.c.b16 %v2205, %v2201
    %v2486 = vpack.c.b16 %v2206, %v2202
    %v2487 = vpack.c.b16 %v2207, %v2203
    %v2488 = vpack.c.b16 %v2208, %v2204
    %v2489 = vpack.c.b16 %v2213, %v2209
    %v2490 = vpack.c.b16 %v2214, %v2210
    %v2491 = vpack.c.b16 %v2215, %v2211
    %v2492 = vpack.c.b16 %v2216, %v2212
    %v2493 = vpack.c.b16 %v2221, %v2217
    %v2494 = vpack.c.b16 %v2222, %v2218
    %v2495 = vpack.c.b16 %v2223, %v2219
    %v2496 = vpack.c.b16 %v2224, %v2220
    %v2497 = vpack.c.b16 %v2229, %v2225
    %v2498 = vpack.c.b16 %v2230, %v2226
    %v2499 = vpack.c.b16 %v2231, %v2227
    %v2500 = vpack.c.b16 %v2232, %v2228
    %v2501 = vpack.c.b16 %v2237, %v2233
    %v2502 = vpack.c.b16 %v2238, %v2234
    %v2503 = vpack.c.b16 %v2239, %v2235
    %v2504 = vpack.c.b16 %v2240, %v2236
    %v2505 = vpack.c.b16 %v2245, %v2241
    %v2506 = vpack.c.b16 %v2246, %v2242
    %v2507 = vpack.c.b16 %v2247, %v2243
    %v2508 = vpack.c.b16 %v2248, %v2244
    %v2509 = vpack.c.b16 %v2253, %v2249
    %v2510 = vpack.c.b16 %v2254, %v2250
    %v2511 = vpack.c.b16 %v2255, %v2251
    %v2512 = vpack.c.b16 %v2256, %v2252
    %2769 = vmatprep.subr.bf16.mxu0 %v2258
    %2770 = vmatpush1.bf16.msra.mxu0 %v2257
    %2771 = vmatprep.subr.bf16.mxu0 %v2262
    %2772 = vmatpush1.bf16.msra.mxu0 %v2261
    %2773 = vmatprep.subr.bf16.mxu0 %v2266
    %2774 = vmatpush1.bf16.msra.mxu0 %v2265
    %2775 = vmatprep.subr.bf16.mxu0 %v2270
    %2776 = vmatpush1.bf16.msra.mxu0 %v2269
    %2777 = vmatprep.subr.bf16.mxu0 %v2274
    %2778 = vmatpush1.bf16.msra.mxu0 %v2273
    %2779 = vmatprep.subr.bf16.mxu0 %v2278
    %2780 = vmatpush1.bf16.msra.mxu0 %v2277
    %2781 = vmatprep.subr.bf16.mxu0 %v2282
    %2782 = vmatpush1.bf16.msra.mxu0 %v2281
    %2783 = vmatprep.subr.bf16.mxu0 %v2286
    %2784 = vmatpush1.bf16.msra.mxu0 %v2285
    %2785 = vmatprep.subr.bf16.mxu0 %v2290
    %2786 = vmatpush1.bf16.msra.mxu0 %v2289
    %2787 = vmatprep.subr.bf16.mxu0 %v2294
    %2788 = vmatpush1.bf16.msra.mxu0 %v2293
    %2789 = vmatprep.subr.bf16.mxu0 %v2298
    %2790 = vmatpush1.bf16.msra.mxu0 %v2297
    %2791 = vmatprep.subr.bf16.mxu0 %v2302
    %2792 = vmatpush1.bf16.msra.mxu0 %v2301
    %2793 = vmatprep.subr.bf16.mxu0 %v2306
    %2794 = vmatpush1.bf16.msra.mxu0 %v2305
    %2795 = vmatprep.subr.bf16.mxu0 %v2310
    %2796 = vmatpush1.bf16.msra.mxu0 %v2309
    %2797 = vmatprep.subr.bf16.mxu0 %v2314
    %2798 = vmatpush1.bf16.msra.mxu0 %v2313
    %2799 = vmatprep.subr.bf16.mxu0 %v2318
    %2800 = vmatpush1.bf16.msra.mxu0 %v2317
    %2801 = vmatprep.mubr.bf16.mxu0 %v1204
    %2802 = vmatmul.mubr.bf16.gmra.mrb[0].mxu0 %v1203
    %v2803 = vpop.f32.mrb[0].mxu0
    %v2804 = vadd.f32 %v1472, %v2803
    %v2805 = vpop.f32.mrb[0].mxu0
    %v2806 = vadd.f32 %v1476, %v2805
    %v2807 = vpop.f32.mrb[0].mxu0
    %v2808 = vadd.f32 %v1472, %v2807
    %v2809 = vpop.f32.mrb[0].mxu0
    %v2810 = vadd.f32 %v1476, %v2809
    %2811 = vdwg.mxu0
    %2812 = vmatprep.subr.bf16.mxu0 %v2322
    %2813 = vmatpush1.bf16.msra.mxu0 %v2321
    %2814 = vmatprep.subr.bf16.mxu0 %v2326
    %2815 = vmatpush1.bf16.msra.mxu0 %v2325
    %2816 = vmatprep.subr.bf16.mxu0 %v2330
    %2817 = vmatpush1.bf16.msra.mxu0 %v2329
    %2818 = vmatprep.subr.bf16.mxu0 %v2334
    %2819 = vmatpush1.bf16.msra.mxu0 %v2333
    %2820 = vmatprep.subr.bf16.mxu0 %v2338
    %2821 = vmatpush1.bf16.msra.mxu0 %v2337
    %2822 = vmatprep.subr.bf16.mxu0 %v2342
    %2823 = vmatpush1.bf16.msra.mxu0 %v2341
    %2824 = vmatprep.subr.bf16.mxu0 %v2346
    %2825 = vmatpush1.bf16.msra.mxu0 %v2345
    %2826 = vmatprep.subr.bf16.mxu0 %v2350
    %2827 = vmatpush1.bf16.msra.mxu0 %v2349
    %2828 = vmatprep.subr.bf16.mxu0 %v2354
    %2829 = vmatpush1.bf16.msra.mxu0 %v2353
    %2830 = vmatprep.subr.bf16.mxu0 %v2358
    %2831 = vmatpush1.bf16.msra.mxu0 %v2357
    %2832 = vmatprep.subr.bf16.mxu0 %v2362
    %2833 = vmatpush1.bf16.msra.mxu0 %v2361
    %2834 = vmatprep.subr.bf16.mxu0 %v2366
    %2835 = vmatpush1.bf16.msra.mxu0 %v2365
    %2836 = vmatprep.subr.bf16.mxu0 %v2370
    %2837 = vmatpush1.bf16.msra.mxu0 %v2369
    %2838 = vmatprep.subr.bf16.mxu0 %v2374
    %2839 = vmatpush1.bf16.msra.mxu0 %v2373
    %2840 = vmatprep.subr.bf16.mxu0 %v2378
    %2841 = vmatpush1.bf16.msra.mxu0 %v2377
    %2842 = vmatprep.subr.bf16.mxu0 %v2382
    %2843 = vmatpush1.bf16.msra.mxu0 %v2381
    %2844 = vmatprep.mubr.bf16.mxu0 %v1206
    %2845 = vmatmul.mubr.bf16.gmra.mrb[0].mxu0 %v1205
    %v2846 = vpop.f32.mrb[0].mxu0
    %v2847 = vadd.f32 %v2804, %v2846
    %v2848 = vpop.f32.mrb[0].mxu0
    %v2849 = vadd.f32 %v2806, %v2848
    %v2850 = vpop.f32.mrb[0].mxu0
    %v2851 = vadd.f32 %v2808, %v2850
    %v2852 = vpop.f32.mrb[0].mxu0
    %v2853 = vadd.f32 %v2810, %v2852
    %2854 = vdwg.mxu0
    %2855 = vmatprep.subr.bf16.mxu0 %v2386
    %2856 = vmatpush1.bf16.msra.mxu0 %v2385
    %2857 = vmatprep.subr.bf16.mxu0 %v2390
    %2858 = vmatpush1.bf16.msra.mxu0 %v2389
    %2859 = vmatprep.subr.bf16.mxu0 %v2394
    %2860 = vmatpush1.bf16.msra.mxu0 %v2393
    %2861 = vmatprep.subr.bf16.mxu0 %v2398
    %2862 = vmatpush1.bf16.msra.mxu0 %v2397
    %2863 = vmatprep.subr.bf16.mxu0 %v2402
    %2864 = vmatpush1.bf16.msra.mxu0 %v2401
    %2865 = vmatprep.subr.bf16.mxu0 %v2406
    %2866 = vmatpush1.bf16.msra.mxu0 %v2405
    %2867 = vmatprep.subr.bf16.mxu0 %v2410
    %2868 = vmatpush1.bf16.msra.mxu0 %v2409
    %2869 = vmatprep.subr.bf16.mxu0 %v2414
    %2870 = vmatpush1.bf16.msra.mxu0 %v2413
    %2871 = vmatprep.subr.bf16.mxu0 %v2418
    %2872 = vmatpush1.bf16.msra.mxu0 %v2417
    %2873 = vmatprep.subr.bf16.mxu0 %v2422
    %2874 = vmatpush1.bf16.msra.mxu0 %v2421
    %2875 = vmatprep.subr.bf16.mxu0 %v2426
    %2876 = vmatpush1.bf16.msra.mxu0 %v2425
    %2877 = vmatprep.subr.bf16.mxu0 %v2430
    %2878 = vmatpush1.bf16.msra.mxu0 %v2429
    %2879 = vmatprep.subr.bf16.mxu0 %v2434
    %2880 = vmatpush1.bf16.msra.mxu0 %v2433
    %2881 = vmatprep.subr.bf16.mxu0 %v2438
    %2882 = vmatpush1.bf16.msra.mxu0 %v2437
    %2883 = vmatprep.subr.bf16.mxu0 %v2442
    %2884 = vmatpush1.bf16.msra.mxu0 %v2441
    %2885 = vmatprep.subr.bf16.mxu0 %v2446
    %2886 = vmatpush1.bf16.msra.mxu0 %v2445
    %2887 = vmatprep.mubr.bf16.mxu0 %v1208
    %2888 = vmatmul.mubr.bf16.gmra.mrb[0].mxu0 %v1207
    %v2889 = vpop.f32.mrb[0].mxu0
    %v2890 = vadd.f32 %v2847, %v2889
    %v2891 = vpop.f32.mrb[0].mxu0
    %v2892 = vadd.f32 %v2849, %v2891
    %v2893 = vpop.f32.mrb[0].mxu0
    %v2894 = vadd.f32 %v2851, %v2893
    %v2895 = vpop.f32.mrb[0].mxu0
    %v2896 = vadd.f32 %v2853, %v2895
    %2897 = vdwg.mxu0
    %2898 = vmatprep.subr.bf16.mxu0 %v2450
    %2899 = vmatpush1.bf16.msra.mxu0 %v2449
    %2900 = vmatprep.subr.bf16.mxu0 %v2454
    %2901 = vmatpush1.bf16.msra.mxu0 %v2453
    %2902 = vmatprep.subr.bf16.mxu0 %v2458
    %2903 = vmatpush1.bf16.msra.mxu0 %v2457
    %2904 = vmatprep.subr.bf16.mxu0 %v2462
    %2905 = vmatpush1.bf16.msra.mxu0 %v2461
    %2906 = vmatprep.subr.bf16.mxu0 %v2466
    %2907 = vmatpush1.bf16.msra.mxu0 %v2465
    %2908 = vmatprep.subr.bf16.mxu0 %v2470
    %2909 = vmatpush1.bf16.msra.mxu0 %v2469
    %2910 = vmatprep.subr.bf16.mxu0 %v2474
    %2911 = vmatpush1.bf16.msra.mxu0 %v2473
    %2912 = vmatprep.subr.bf16.mxu0 %v2478
    %2913 = vmatpush1.bf16.msra.mxu0 %v2477
    %2914 = vmatprep.subr.bf16.mxu0 %v2482
    %2915 = vmatpush1.bf16.msra.mxu0 %v2481
    %2916 = vmatprep.subr.bf16.mxu0 %v2486
    %2917 = vmatpush1.bf16.msra.mxu0 %v2485
    %2918 = vmatprep.subr.bf16.mxu0 %v2490
    %2919 = vmatpush1.bf16.msra.mxu0 %v2489
    %2920 = vmatprep.subr.bf16.mxu0 %v2494
    %2921 = vmatpush1.bf16.msra.mxu0 %v2493
    %2922 = vmatprep.subr.bf16.mxu0 %v2498
    %2923 = vmatpush1.bf16.msra.mxu0 %v2497
    %2924 = vmatprep.subr.bf16.mxu0 %v2502
    %2925 = vmatpush1.bf16.msra.mxu0 %v2501
    %2926 = vmatprep.subr.bf16.mxu0 %v2506
    %2927 = vmatpush1.bf16.msra.mxu0 %v2505
    %2928 = vmatprep.subr.bf16.mxu0 %v2510
    %2929 = vmatpush1.bf16.msra.mxu0 %v2509
    %2930 = vmatprep.mubr.bf16.mxu0 %v1210
    %2931 = vmatmul.mubr.bf16.gmra.mrb[0].mxu0 %v1209
    %v2932 = vpop.f32.mrb[0].mxu0
    %v2933 = vadd.f32 %v2890, %v2932
    %v2934 = vpop.f32.mrb[0].mxu0
    %v2935 = vadd.f32 %v2892, %v2934
    %v2936 = vpop.f32.mrb[0].mxu0
    %v2937 = vadd.f32 %v2894, %v2936
    %v2938 = vpop.f32.mrb[0].mxu0
    %v2939 = vadd.f32 %v2896, %v2938
    %2940 = vdwg.mxu0
    %2941 = vmatprep.subr.bf16.mxu0 %v2260
    %2942 = vmatpush1.bf16.msra.mxu0 %v2259
    %2943 = vmatprep.subr.bf16.mxu0 %v2264
    %2944 = vmatpush1.bf16.msra.mxu0 %v2263
    %2945 = vmatprep.subr.bf16.mxu0 %v2268
    %2946 = vmatpush1.bf16.msra.mxu0 %v2267
    %2947 = vmatprep.subr.bf16.mxu0 %v2272
    %2948 = vmatpush1.bf16.msra.mxu0 %v2271
    %2949 = vmatprep.subr.bf16.mxu0 %v2276
    %2950 = vmatpush1.bf16.msra.mxu0 %v2275
    %2951 = vmatprep.subr.bf16.mxu0 %v2280
    %2952 = vmatpush1.bf16.msra.mxu0 %v2279
    %2953 = vmatprep.subr.bf16.mxu0 %v2284
    %2954 = vmatpush1.bf16.msra.mxu0 %v2283
    %2955 = vmatprep.subr.bf16.mxu0 %v2288
    %2956 = vmatpush1.bf16.msra.mxu0 %v2287
    %2957 = vmatprep.subr.bf16.mxu0 %v2292
    %2958 = vmatpush1.bf16.msra.mxu0 %v2291
    %2959 = vmatprep.subr.bf16.mxu0 %v2296
    %2960 = vmatpush1.bf16.msra.mxu0 %v2295
    %2961 = vmatprep.subr.bf16.mxu0 %v2300
    %2962 = vmatpush1.bf16.msra.mxu0 %v2299
    %2963 = vmatprep.subr.bf16.mxu0 %v2304
    %2964 = vmatpush1.bf16.msra.mxu0 %v2303
    %2965 = vmatprep.subr.bf16.mxu0 %v2308
    %2966 = vmatpush1.bf16.msra.mxu0 %v2307
    %2967 = vmatprep.subr.bf16.mxu0 %v2312
    %2968 = vmatpush1.bf16.msra.mxu0 %v2311
    %2969 = vmatprep.subr.bf16.mxu0 %v2316
    %2970 = vmatpush1.bf16.msra.mxu0 %v2315
    %2971 = vmatprep.subr.bf16.mxu0 %v2320
    %2972 = vmatpush1.bf16.msra.mxu0 %v2319
    %2973 = vmatprep.mubr.bf16.mxu0 %v1204
    %2974 = vmatmul.mubr.bf16.gmra.mrb[0].mxu0 %v1203
    %v2975 = vpop.f32.mrb[0].mxu0
    %v2976 = vadd.f32 %v1480, %v2975
    %v2977 = vpop.f32.mrb[0].mxu0
    %v2978 = vadd.f32 %v1484, %v2977
    %v2979 = vpop.f32.mrb[0].mxu0
    %v2980 = vadd.f32 %v1480, %v2979
    %v2981 = vpop.f32.mrb[0].mxu0
    %v2982 = vadd.f32 %v1484, %v2981
    %2983 = vdwg.mxu0
    %2984 = vmatprep.subr.bf16.mxu0 %v2324
    %2985 = vmatpush1.bf16.msra.mxu0 %v2323
    %2986 = vmatprep.subr.bf16.mxu0 %v2328
    %2987 = vmatpush1.bf16.msra.mxu0 %v2327
    %2988 = vmatprep.subr.bf16.mxu0 %v2332
    %2989 = vmatpush1.bf16.msra.mxu0 %v2331
    %2990 = vmatprep.subr.bf16.mxu0 %v2336
    %2991 = vmatpush1.bf16.msra.mxu0 %v2335
    %2992 = vmatprep.subr.bf16.mxu0 %v2340
    %2993 = vmatpush1.bf16.msra.mxu0 %v2339
    %2994 = vmatprep.subr.bf16.mxu0 %v2344
    %2995 = vmatpush1.bf16.msra.mxu0 %v2343
    %2996 = vmatprep.subr.bf16.mxu0 %v2348
    %2997 = vmatpush1.bf16.msra.mxu0 %v2347
    %2998 = vmatprep.subr.bf16.mxu0 %v2352
    %2999 = vmatpush1.bf16.msra.mxu0 %v2351
    %3000 = vmatprep.subr.bf16.mxu0 %v2356
    %3001 = vmatpush1.bf16.msra.mxu0 %v2355
    %3002 = vmatprep.subr.bf16.mxu0 %v2360
    %3003 = vmatpush1.bf16.msra.mxu0 %v2359
    %3004 = vmatprep.subr.bf16.mxu0 %v2364
    %3005 = vmatpush1.bf16.msra.mxu0 %v2363
    %3006 = vmatprep.subr.bf16.mxu0 %v2368
    %3007 = vmatpush1.bf16.msra.mxu0 %v2367
    %3008 = vmatprep.subr.bf16.mxu0 %v2372
    %3009 = vmatpush1.bf16.msra.mxu0 %v2371
    %3010 = vmatprep.subr.bf16.mxu0 %v2376
    %3011 = vmatpush1.bf16.msra.mxu0 %v2375
    %3012 = vmatprep.subr.bf16.mxu0 %v2380
    %3013 = vmatpush1.bf16.msra.mxu0 %v2379
    %3014 = vmatprep.subr.bf16.mxu0 %v2384
    %3015 = vmatpush1.bf16.msra.mxu0 %v2383
    %3016 = vmatprep.mubr.bf16.mxu0 %v1206
    %3017 = vmatmul.mubr.bf16.gmra.mrb[0].mxu0 %v1205
    %v3018 = vpop.f32.mrb[0].mxu0
    %v3019 = vadd.f32 %v2976, %v3018
    %v3020 = vpop.f32.mrb[0].mxu0
    %v3021 = vadd.f32 %v2978, %v3020
    %v3022 = vpop.f32.mrb[0].mxu0
    %v3023 = vadd.f32 %v2980, %v3022
    %v3024 = vpop.f32.mrb[0].mxu0
    %v3025 = vadd.f32 %v2982, %v3024
    %3026 = vdwg.mxu0
    %3027 = vmatprep.subr.bf16.mxu0 %v2388
    %3028 = vmatpush1.bf16.msra.mxu0 %v2387
    %3029 = vmatprep.subr.bf16.mxu0 %v2392
    %3030 = vmatpush1.bf16.msra.mxu0 %v2391
    %3031 = vmatprep.subr.bf16.mxu0 %v2396
    %3032 = vmatpush1.bf16.msra.mxu0 %v2395
    %3033 = vmatprep.subr.bf16.mxu0 %v2400
    %3034 = vmatpush1.bf16.msra.mxu0 %v2399
    %3035 = vmatprep.subr.bf16.mxu0 %v2404
    %3036 = vmatpush1.bf16.msra.mxu0 %v2403
    %3037 = vmatprep.subr.bf16.mxu0 %v2408
    %3038 = vmatpush1.bf16.msra.mxu0 %v2407
    %3039 = vmatprep.subr.bf16.mxu0 %v2412
    %3040 = vmatpush1.bf16.msra.mxu0 %v2411
    %3041 = vmatprep.subr.bf16.mxu0 %v2416
    %3042 = vmatpush1.bf16.msra.mxu0 %v2415
    %3043 = vmatprep.subr.bf16.mxu0 %v2420
    %3044 = vmatpush1.bf16.msra.mxu0 %v2419
    %3045 = vmatprep.subr.bf16.mxu0 %v2424
    %3046 = vmatpush1.bf16.msra.mxu0 %v2423
    %3047 = vmatprep.subr.bf16.mxu0 %v2428
    %3048 = vmatpush1.bf16.msra.mxu0 %v2427
    %3049 = vmatprep.subr.bf16.mxu0 %v2432
    %3050 = vmatpush1.bf16.msra.mxu0 %v2431
    %3051 = vmatprep.subr.bf16.mxu0 %v2436
    %3052 = vmatpush1.bf16.msra.mxu0 %v2435
    %3053 = vmatprep.subr.bf16.mxu0 %v2440
    %3054 = vmatpush1.bf16.msra.mxu0 %v2439
    %3055 = vmatprep.subr.bf16.mxu0 %v2444
    %3056 = vmatpush1.bf16.msra.mxu0 %v2443
    %3057 = vmatprep.subr.bf16.mxu0 %v2448
    %3058 = vmatpush1.bf16.msra.mxu0 %v2447
    %3059 = vmatprep.mubr.bf16.mxu0 %v1208
    %3060 = vmatmul.mubr.bf16.gmra.mrb[0].mxu0 %v1207
    %v3061 = vpop.f32.mrb[0].mxu0
    %v3062 = vadd.f32 %v3019, %v3061
    %v3063 = vpop.f32.mrb[0].mxu0
    %v3064 = vadd.f32 %v3021, %v3063
    %v3065 = vpop.f32.mrb[0].mxu0
    %v3066 = vadd.f32 %v3023, %v3065
    %v3067 = vpop.f32.mrb[0].mxu0
    %v3068 = vadd.f32 %v3025, %v3067
    %3069 = vdwg.mxu0
    %3070 = vmatprep.subr.bf16.mxu0 %v2452
    %3071 = vmatpush1.bf16.msra.mxu0 %v2451
    %3072 = vmatprep.subr.bf16.mxu0 %v2456
    %3073 = vmatpush1.bf16.msra.mxu0 %v2455
    %3074 = vmatprep.subr.bf16.mxu0 %v2460
    %3075 = vmatpush1.bf16.msra.mxu0 %v2459
    %3076 = vmatprep.subr.bf16.mxu0 %v2464
    %3077 = vmatpush1.bf16.msra.mxu0 %v2463
    %3078 = vmatprep.subr.bf16.mxu0 %v2468
    %3079 = vmatpush1.bf16.msra.mxu0 %v2467
    %3080 = vmatprep.subr.bf16.mxu0 %v2472
    %3081 = vmatpush1.bf16.msra.mxu0 %v2471
    %3082 = vmatprep.subr.bf16.mxu0 %v2476
    %3083 = vmatpush1.bf16.msra.mxu0 %v2475
    %3084 = vmatprep.subr.bf16.mxu0 %v2480
    %3085 = vmatpush1.bf16.msra.mxu0 %v2479
    %3086 = vmatprep.subr.bf16.mxu0 %v2484
    %3087 = vmatpush1.bf16.msra.mxu0 %v2483
    %3088 = vmatprep.subr.bf16.mxu0 %v2488
    %3089 = vmatpush1.bf16.msra.mxu0 %v2487
    %3090 = vmatprep.subr.bf16.mxu0 %v2492
    %3091 = vmatpush1.bf16.msra.mxu0 %v2491
    %3092 = vmatprep.subr.bf16.mxu0 %v2496
    %3093 = vmatpush1.bf16.msra.mxu0 %v2495
    %3094 = vmatprep.subr.bf16.mxu0 %v2500
    %3095 = vmatpush1.bf16.msra.mxu0 %v2499
    %3096 = vmatprep.subr.bf16.mxu0 %v2504
    %3097 = vmatpush1.bf16.msra.mxu0 %v2503
    %3098 = vmatprep.subr.bf16.mxu0 %v2508
    %3099 = vmatpush1.bf16.msra.mxu0 %v2507
    %3100 = vmatprep.subr.bf16.mxu0 %v2512
    %3101 = vmatpush1.bf16.msra.mxu0 %v2511
    %3102 = vmatprep.mubr.bf16.mxu0 %v1210
    %3103 = vmatmul.mubr.bf16.gmra.mrb[0].mxu0 %v1209
    %v3104 = vpop.f32.mrb[0].mxu0
    %v3105 = vadd.f32 %v3062, %v3104
    %v3106 = vpop.f32.mrb[0].mxu0
    %v3107 = vadd.f32 %v3064, %v3106
    %v3108 = vpop.f32.mrb[0].mxu0
    %v3109 = vadd.f32 %v3066, %v3108
    %v3110 = vpop.f32.mrb[0].mxu0
    %v3111 = vadd.f32 %v3068, %v3110
    %3112 = vdwg.mxu0
    %v3113 = vsub.f32 0.0, %v2933
    %v3114 = vsub.f32 0.0, %v2935
    %v3115 = vsub.f32 0.0, %v3105
    %v3116 = vsub.f32 0.0, %v3107
    %v3117 = vsub.f32 0.0, %v2937
    %v3118 = vsub.f32 0.0, %v2939
    %v3119 = vsub.f32 0.0, %v3109
    %v3120 = vsub.f32 0.0, %v3111
    %v3121 = vmul.f32 %v3113, 1.442695
    %v3122 = vpow.pop %v3121
    %v3123 = vmul.f32 %v3114, 1.442695
    %v3124 = vpow.pop %v3123
    %v3125 = vmul.f32 %v3115, 1.442695
    %v3126 = vpow.pop %v3125
    %v3127 = vmul.f32 %v3116, 1.442695
    %v3128 = vpow.pop %v3127
    %v3129 = vmul.f32 %v3117, 1.442695
    %v3130 = vpow.pop %v3129
    %v3131 = vmul.f32 %v3118, 1.442695
    %v3132 = vpow.pop %v3131
    %v3133 = vmul.f32 %v3119, 1.442695
    %v3134 = vpow.pop %v3133
    %v3135 = vmul.f32 %v3120, 1.442695
    %v3136 = vpow.pop %v3135
    %v3137 = vadd.f32 %v3122, 1.0
    %v3138 = vadd.f32 %v3124, 1.0
    %v3139 = vadd.f32 %v3126, 1.0
    %v3140 = vadd.f32 %v3128, 1.0
    %v3141 = vadd.f32 %v3130, 1.0
    %v3142 = vadd.f32 %v3132, 1.0
    %v3143 = vadd.f32 %v3134, 1.0
    %v3144 = vadd.f32 %v3136, 1.0
    %v3145 = vrcp.pop %v3137
    %v3146 = vmul.f32 1.0, %v3145
    %v3147 = vrcp.pop %v3138
    %v3148 = vmul.f32 1.0, %v3147
    %v3149 = vrcp.pop %v3139
    %v3150 = vmul.f32 1.0, %v3149
    %v3151 = vrcp.pop %v3140
    %v3152 = vmul.f32 1.0, %v3151
    %v3153 = vrcp.pop %v3141
    %v3154 = vmul.f32 1.0, %v3153
    %v3155 = vrcp.pop %v3142
    %v3156 = vmul.f32 1.0, %v3155
    %v3157 = vrcp.pop %v3143
    %v3158 = vmul.f32 1.0, %v3157
    %v3159 = vrcp.pop %v3144
    %v3160 = vmul.f32 1.0, %v3159
    %v3161 = vmul.f32 %v2933, %v3146
    %v3162 = vmul.f32 %v2935, %v3148
    %v3163 = vmul.f32 %v3105, %v3150
    %v3164 = vmul.f32 %v3107, %v3152
    %v3165 = vmul.f32 %v2937, %v3154
    %v3166 = vmul.f32 %v2939, %v3156
    %v3167 = vmul.f32 %v3109, %v3158
    %v3168 = vmul.f32 %v3111, %v3160
    %v3169 = vpack.c.bf16 %v3165, %v3161
    %v3170 = vpack.c.bf16 %v3166, %v3162
    %v3171 = vpack.c.bf16 %v3167, %v3163
    %v3172 = vpack.c.bf16 %v3168, %v3164
    %v3173 = vld [vmem:[#allocation10] sm:$0xff]
    %v3174 = vld [vmem:[#allocation10 + $0x8] sm:$0xff]
    %v3175 = vld [vmem:[#allocation10 + $0x10] sm:$0xff]
    %v3176 = vld [vmem:[#allocation10 + $0x18] sm:$0xff]
    %v3177 = vld [vmem:[#allocation10 + $0x20] sm:$0xff]
    %v3178 = vld [vmem:[#allocation10 + $0x28] sm:$0xff]
    %v3179 = vld [vmem:[#allocation10 + $0x30] sm:$0xff]
    %v3180 = vld [vmem:[#allocation10 + $0x38] sm:$0xff]
    %v3181 = vld [vmem:[#allocation10 + $0x40] sm:$0xff]
    %v3182 = vld [vmem:[#allocation10 + $0x48] sm:$0xff]
    %v3183 = vld [vmem:[#allocation10 + $0x50] sm:$0xff]
    %v3184 = vld [vmem:[#allocation10 + $0x58] sm:$0xff]
    %v3185 = vld [vmem:[#allocation10 + $0x60] sm:$0xff]
    %v3186 = vld [vmem:[#allocation10 + $0x68] sm:$0xff]
    %v3187 = vld [vmem:[#allocation10 + $0x70] sm:$0xff]
    %v3188 = vld [vmem:[#allocation10 + $0x78] sm:$0xff]
    %v3189 = vld [vmem:[#allocation10 + $0x80] sm:$0xff]
    %v3190 = vld [vmem:[#allocation10 + $0x88] sm:$0xff]
    %v3191 = vld [vmem:[#allocation10 + $0x90] sm:$0xff]
    %v3192 = vld [vmem:[#allocation10 + $0x98] sm:$0xff]
    %v3193 = vld [vmem:[#allocation10 + $0xa0] sm:$0xff]
    %v3194 = vld [vmem:[#allocation10 + $0xa8] sm:$0xff]
    %v3195 = vld [vmem:[#allocation10 + $0xb0] sm:$0xff]
    %v3196 = vld [vmem:[#allocation10 + $0xb8] sm:$0xff]
    %v3197 = vld [vmem:[#allocation10 + $0xc0] sm:$0xff]
    %v3198 = vld [vmem:[#allocation10 + $0xc8] sm:$0xff]
    %v3199 = vld [vmem:[#allocation10 + $0xd0] sm:$0xff]
    %v3200 = vld [vmem:[#allocation10 + $0xd8] sm:$0xff]
    %v3201 = vld [vmem:[#allocation10 + $0xe0] sm:$0xff]
    %v3202 = vld [vmem:[#allocation10 + $0xe8] sm:$0xff]
    %v3203 = vld [vmem:[#allocation10 + $0xf0] sm:$0xff]
    %v3204 = vld [vmem:[#allocation10 + $0xf8] sm:$0xff]
    %v3205 = vld [vmem:[#allocation10 + $0x100] sm:$0xff]
    %v3206 = vld [vmem:[#allocation10 + $0x108] sm:$0xff]
    %v3207 = vld [vmem:[#allocation10 + $0x110] sm:$0xff]
    %v3208 = vld [vmem:[#allocation10 + $0x118] sm:$0xff]
    %v3209 = vld [vmem:[#allocation10 + $0x120] sm:$0xff]
    %v3210 = vld [vmem:[#allocation10 + $0x128] sm:$0xff]
    %v3211 = vld [vmem:[#allocation10 + $0x130] sm:$0xff]
    %v3212 = vld [vmem:[#allocation10 + $0x138] sm:$0xff]
    %v3213 = vld [vmem:[#allocation10 + $0x140] sm:$0xff]
    %v3214 = vld [vmem:[#allocation10 + $0x148] sm:$0xff]
    %v3215 = vld [vmem:[#allocation10 + $0x150] sm:$0xff]
    %v3216 = vld [vmem:[#allocation10 + $0x158] sm:$0xff]
    %v3217 = vld [vmem:[#allocation10 + $0x160] sm:$0xff]
    %v3218 = vld [vmem:[#allocation10 + $0x168] sm:$0xff]
    %v3219 = vld [vmem:[#allocation10 + $0x170] sm:$0xff]
    %v3220 = vld [vmem:[#allocation10 + $0x178] sm:$0xff]
    %v3221 = vld [vmem:[#allocation10 + $0x180] sm:$0xff]
    %v3222 = vld [vmem:[#allocation10 + $0x188] sm:$0xff]
    %v3223 = vld [vmem:[#allocation10 + $0x190] sm:$0xff]
    %v3224 = vld [vmem:[#allocation10 + $0x198] sm:$0xff]
    %v3225 = vld [vmem:[#allocation10 + $0x1a0] sm:$0xff]
    %v3226 = vld [vmem:[#allocation10 + $0x1a8] sm:$0xff]
    %v3227 = vld [vmem:[#allocation10 + $0x1b0] sm:$0xff]
    %v3228 = vld [vmem:[#allocation10 + $0x1b8] sm:$0xff]
    %v3229 = vld [vmem:[#allocation10 + $0x1c0] sm:$0xff]
    %v3230 = vld [vmem:[#allocation10 + $0x1c8] sm:$0xff]
    %v3231 = vld [vmem:[#allocation10 + $0x1d0] sm:$0xff]
    %v3232 = vld [vmem:[#allocation10 + $0x1d8] sm:$0xff]
    %v3233 = vld [vmem:[#allocation10 + $0x1e0] sm:$0xff]
    %v3234 = vld [vmem:[#allocation10 + $0x1e8] sm:$0xff]
    %v3235 = vld [vmem:[#allocation10 + $0x1f0] sm:$0xff]
    %v3236 = vld [vmem:[#allocation10 + $0x1f8] sm:$0xff]
    %v3237 = vld [vmem:[#allocation10 + $0x200] sm:$0xff]
    %v3238 = vld [vmem:[#allocation10 + $0x208] sm:$0xff]
    %v3239 = vld [vmem:[#allocation10 + $0x210] sm:$0xff]
    %v3240 = vld [vmem:[#allocation10 + $0x218] sm:$0xff]
    %v3241 = vld [vmem:[#allocation10 + $0x220] sm:$0xff]
    %v3242 = vld [vmem:[#allocation10 + $0x228] sm:$0xff]
    %v3243 = vld [vmem:[#allocation10 + $0x230] sm:$0xff]
    %v3244 = vld [vmem:[#allocation10 + $0x238] sm:$0xff]
    %v3245 = vld [vmem:[#allocation10 + $0x240] sm:$0xff]
    %v3246 = vld [vmem:[#allocation10 + $0x248] sm:$0xff]
    %v3247 = vld [vmem:[#allocation10 + $0x250] sm:$0xff]
    %v3248 = vld [vmem:[#allocation10 + $0x258] sm:$0xff]
    %v3249 = vld [vmem:[#allocation10 + $0x260] sm:$0xff]
    %v3250 = vld [vmem:[#allocation10 + $0x268] sm:$0xff]
    %v3251 = vld [vmem:[#allocation10 + $0x270] sm:$0xff]
    %v3252 = vld [vmem:[#allocation10 + $0x278] sm:$0xff]
    %v3253 = vld [vmem:[#allocation10 + $0x280] sm:$0xff]
    %v3254 = vld [vmem:[#allocation10 + $0x288] sm:$0xff]
    %v3255 = vld [vmem:[#allocation10 + $0x290] sm:$0xff]
    %v3256 = vld [vmem:[#allocation10 + $0x298] sm:$0xff]
    %v3257 = vld [vmem:[#allocation10 + $0x2a0] sm:$0xff]
    %v3258 = vld [vmem:[#allocation10 + $0x2a8] sm:$0xff]
    %v3259 = vld [vmem:[#allocation10 + $0x2b0] sm:$0xff]
    %v3260 = vld [vmem:[#allocation10 + $0x2b8] sm:$0xff]
    %v3261 = vld [vmem:[#allocation10 + $0x2c0] sm:$0xff]
    %v3262 = vld [vmem:[#allocation10 + $0x2c8] sm:$0xff]
    %v3263 = vld [vmem:[#allocation10 + $0x2d0] sm:$0xff]
    %v3264 = vld [vmem:[#allocation10 + $0x2d8] sm:$0xff]
    %v3265 = vld [vmem:[#allocation10 + $0x2e0] sm:$0xff]
    %v3266 = vld [vmem:[#allocation10 + $0x2e8] sm:$0xff]
    %v3267 = vld [vmem:[#allocation10 + $0x2f0] sm:$0xff]
    %v3268 = vld [vmem:[#allocation10 + $0x2f8] sm:$0xff]
    %v3269 = vld [vmem:[#allocation10 + $0x300] sm:$0xff]
    %v3270 = vld [vmem:[#allocation10 + $0x308] sm:$0xff]
    %v3271 = vld [vmem:[#allocation10 + $0x310] sm:$0xff]
    %v3272 = vld [vmem:[#allocation10 + $0x318] sm:$0xff]
    %v3273 = vld [vmem:[#allocation10 + $0x320] sm:$0xff]
    %v3274 = vld [vmem:[#allocation10 + $0x328] sm:$0xff]
    %v3275 = vld [vmem:[#allocation10 + $0x330] sm:$0xff]
    %v3276 = vld [vmem:[#allocation10 + $0x338] sm:$0xff]
    %v3277 = vld [vmem:[#allocation10 + $0x340] sm:$0xff]
    %v3278 = vld [vmem:[#allocation10 + $0x348] sm:$0xff]
    %v3279 = vld [vmem:[#allocation10 + $0x350] sm:$0xff]
    %v3280 = vld [vmem:[#allocation10 + $0x358] sm:$0xff]
    %v3281 = vld [vmem:[#allocation10 + $0x360] sm:$0xff]
    %v3282 = vld [vmem:[#allocation10 + $0x368] sm:$0xff]
    %v3283 = vld [vmem:[#allocation10 + $0x370] sm:$0xff]
    %v3284 = vld [vmem:[#allocation10 + $0x378] sm:$0xff]
    %v3285 = vld [vmem:[#allocation10 + $0x380] sm:$0xff]
    %v3286 = vld [vmem:[#allocation10 + $0x388] sm:$0xff]
    %v3287 = vld [vmem:[#allocation10 + $0x390] sm:$0xff]
    %v3288 = vld [vmem:[#allocation10 + $0x398] sm:$0xff]
    %v3289 = vld [vmem:[#allocation10 + $0x3a0] sm:$0xff]
    %v3290 = vld [vmem:[#allocation10 + $0x3a8] sm:$0xff]
    %v3291 = vld [vmem:[#allocation10 + $0x3b0] sm:$0xff]
    %v3292 = vld [vmem:[#allocation10 + $0x3b8] sm:$0xff]
    %v3293 = vld [vmem:[#allocation10 + $0x3c0] sm:$0xff]
    %v3294 = vld [vmem:[#allocation10 + $0x3c8] sm:$0xff]
    %v3295 = vld [vmem:[#allocation10 + $0x3d0] sm:$0xff]
    %v3296 = vld [vmem:[#allocation10 + $0x3d8] sm:$0xff]
    %v3297 = vld [vmem:[#allocation10 + $0x3e0] sm:$0xff]
    %v3298 = vld [vmem:[#allocation10 + $0x3e8] sm:$0xff]
    %v3299 = vld [vmem:[#allocation10 + $0x3f0] sm:$0xff]
    %v3300 = vld [vmem:[#allocation10 + $0x3f8] sm:$0xff]
    %v3301 = vld [vmem:[#allocation10 + $0x400] sm:$0xff]
    %v3302 = vld [vmem:[#allocation10 + $0x408] sm:$0xff]
    %v3303 = vld [vmem:[#allocation10 + $0x410] sm:$0xff]
    %v3304 = vld [vmem:[#allocation10 + $0x418] sm:$0xff]
    %v3305 = vld [vmem:[#allocation10 + $0x420] sm:$0xff]
    %v3306 = vld [vmem:[#allocation10 + $0x428] sm:$0xff]
    %v3307 = vld [vmem:[#allocation10 + $0x430] sm:$0xff]
    %v3308 = vld [vmem:[#allocation10 + $0x438] sm:$0xff]
    %v3309 = vld [vmem:[#allocation10 + $0x440] sm:$0xff]
    %v3310 = vld [vmem:[#allocation10 + $0x448] sm:$0xff]
    %v3311 = vld [vmem:[#allocation10 + $0x450] sm:$0xff]
    %v3312 = vld [vmem:[#allocation10 + $0x458] sm:$0xff]
    %v3313 = vld [vmem:[#allocation10 + $0x460] sm:$0xff]
    %v3314 = vld [vmem:[#allocation10 + $0x468] sm:$0xff]
    %v3315 = vld [vmem:[#allocation10 + $0x470] sm:$0xff]
    %v3316 = vld [vmem:[#allocation10 + $0x478] sm:$0xff]
    %v3317 = vld [vmem:[#allocation10 + $0x480] sm:$0xff]
    %v3318 = vld [vmem:[#allocation10 + $0x488] sm:$0xff]
    %v3319 = vld [vmem:[#allocation10 + $0x490] sm:$0xff]
    %v3320 = vld [vmem:[#allocation10 + $0x498] sm:$0xff]
    %v3321 = vld [vmem:[#allocation10 + $0x4a0] sm:$0xff]
    %v3322 = vld [vmem:[#allocation10 + $0x4a8] sm:$0xff]
    %v3323 = vld [vmem:[#allocation10 + $0x4b0] sm:$0xff]
    %v3324 = vld [vmem:[#allocation10 + $0x4b8] sm:$0xff]
    %v3325 = vld [vmem:[#allocation10 + $0x4c0] sm:$0xff]
    %v3326 = vld [vmem:[#allocation10 + $0x4c8] sm:$0xff]
    %v3327 = vld [vmem:[#allocation10 + $0x4d0] sm:$0xff]
    %v3328 = vld [vmem:[#allocation10 + $0x4d8] sm:$0xff]
    %v3329 = vld [vmem:[#allocation10 + $0x4e0] sm:$0xff]
    %v3330 = vld [vmem:[#allocation10 + $0x4e8] sm:$0xff]
    %v3331 = vld [vmem:[#allocation10 + $0x4f0] sm:$0xff]
    %v3332 = vld [vmem:[#allocation10 + $0x4f8] sm:$0xff]
    %v3333 = vld [vmem:[#allocation10 + $0x500] sm:$0xff]
    %v3334 = vld [vmem:[#allocation10 + $0x508] sm:$0xff]
    %v3335 = vld [vmem:[#allocation10 + $0x510] sm:$0xff]
    %v3336 = vld [vmem:[#allocation10 + $0x518] sm:$0xff]
    %v3337 = vld [vmem:[#allocation10 + $0x520] sm:$0xff]
    %v3338 = vld [vmem:[#allocation10 + $0x528] sm:$0xff]
    %v3339 = vld [vmem:[#allocation10 + $0x530] sm:$0xff]
    %v3340 = vld [vmem:[#allocation10 + $0x538] sm:$0xff]
    %v3341 = vld [vmem:[#allocation10 + $0x540] sm:$0xff]
    %v3342 = vld [vmem:[#allocation10 + $0x548] sm:$0xff]
    %v3343 = vld [vmem:[#allocation10 + $0x550] sm:$0xff]
    %v3344 = vld [vmem:[#allocation10 + $0x558] sm:$0xff]
    %v3345 = vld [vmem:[#allocation10 + $0x560] sm:$0xff]
    %v3346 = vld [vmem:[#allocation10 + $0x568] sm:$0xff]
    %v3347 = vld [vmem:[#allocation10 + $0x570] sm:$0xff]
    %v3348 = vld [vmem:[#allocation10 + $0x578] sm:$0xff]
    %v3349 = vld [vmem:[#allocation10 + $0x580] sm:$0xff]
    %v3350 = vld [vmem:[#allocation10 + $0x588] sm:$0xff]
    %v3351 = vld [vmem:[#allocation10 + $0x590] sm:$0xff]
    %v3352 = vld [vmem:[#allocation10 + $0x598] sm:$0xff]
    %v3353 = vld [vmem:[#allocation10 + $0x5a0] sm:$0xff]
    %v3354 = vld [vmem:[#allocation10 + $0x5a8] sm:$0xff]
    %v3355 = vld [vmem:[#allocation10 + $0x5b0] sm:$0xff]
    %v3356 = vld [vmem:[#allocation10 + $0x5b8] sm:$0xff]
    %v3357 = vld [vmem:[#allocation10 + $0x5c0] sm:$0xff]
    %v3358 = vld [vmem:[#allocation10 + $0x5c8] sm:$0xff]
    %v3359 = vld [vmem:[#allocation10 + $0x5d0] sm:$0xff]
    %v3360 = vld [vmem:[#allocation10 + $0x5d8] sm:$0xff]
    %v3361 = vld [vmem:[#allocation10 + $0x5e0] sm:$0xff]
    %v3362 = vld [vmem:[#allocation10 + $0x5e8] sm:$0xff]
    %v3363 = vld [vmem:[#allocation10 + $0x5f0] sm:$0xff]
    %v3364 = vld [vmem:[#allocation10 + $0x5f8] sm:$0xff]
    %v3365 = vld [vmem:[#allocation10 + $0x600] sm:$0xff]
    %v3366 = vld [vmem:[#allocation10 + $0x608] sm:$0xff]
    %v3367 = vld [vmem:[#allocation10 + $0x610] sm:$0xff]
    %v3368 = vld [vmem:[#allocation10 + $0x618] sm:$0xff]
    %v3369 = vld [vmem:[#allocation10 + $0x620] sm:$0xff]
    %v3370 = vld [vmem:[#allocation10 + $0x628] sm:$0xff]
    %v3371 = vld [vmem:[#allocation10 + $0x630] sm:$0xff]
    %v3372 = vld [vmem:[#allocation10 + $0x638] sm:$0xff]
    %v3373 = vld [vmem:[#allocation10 + $0x640] sm:$0xff]
    %v3374 = vld [vmem:[#allocation10 + $0x648] sm:$0xff]
    %v3375 = vld [vmem:[#allocation10 + $0x650] sm:$0xff]
    %v3376 = vld [vmem:[#allocation10 + $0x658] sm:$0xff]
    %v3377 = vld [vmem:[#allocation10 + $0x660] sm:$0xff]
    %v3378 = vld [vmem:[#allocation10 + $0x668] sm:$0xff]
    %v3379 = vld [vmem:[#allocation10 + $0x670] sm:$0xff]
    %v3380 = vld [vmem:[#allocation10 + $0x678] sm:$0xff]
    %v3381 = vld [vmem:[#allocation10 + $0x680] sm:$0xff]
    %v3382 = vld [vmem:[#allocation10 + $0x688] sm:$0xff]
    %v3383 = vld [vmem:[#allocation10 + $0x690] sm:$0xff]
    %v3384 = vld [vmem:[#allocation10 + $0x698] sm:$0xff]
    %v3385 = vld [vmem:[#allocation10 + $0x6a0] sm:$0xff]
    %v3386 = vld [vmem:[#allocation10 + $0x6a8] sm:$0xff]
    %v3387 = vld [vmem:[#allocation10 + $0x6b0] sm:$0xff]
    %v3388 = vld [vmem:[#allocation10 + $0x6b8] sm:$0xff]
    %v3389 = vld [vmem:[#allocation10 + $0x6c0] sm:$0xff]
    %v3390 = vld [vmem:[#allocation10 + $0x6c8] sm:$0xff]
    %v3391 = vld [vmem:[#allocation10 + $0x6d0] sm:$0xff]
    %v3392 = vld [vmem:[#allocation10 + $0x6d8] sm:$0xff]
    %v3393 = vld [vmem:[#allocation10 + $0x6e0] sm:$0xff]
    %v3394 = vld [vmem:[#allocation10 + $0x6e8] sm:$0xff]
    %v3395 = vld [vmem:[#allocation10 + $0x6f0] sm:$0xff]
    %v3396 = vld [vmem:[#allocation10 + $0x6f8] sm:$0xff]
    %v3397 = vld [vmem:[#allocation10 + $0x700] sm:$0xff]
    %v3398 = vld [vmem:[#allocation10 + $0x708] sm:$0xff]
    %v3399 = vld [vmem:[#allocation10 + $0x710] sm:$0xff]
    %v3400 = vld [vmem:[#allocation10 + $0x718] sm:$0xff]
    %v3401 = vld [vmem:[#allocation10 + $0x720] sm:$0xff]
    %v3402 = vld [vmem:[#allocation10 + $0x728] sm:$0xff]
    %v3403 = vld [vmem:[#allocation10 + $0x730] sm:$0xff]
    %v3404 = vld [vmem:[#allocation10 + $0x738] sm:$0xff]
    %v3405 = vld [vmem:[#allocation10 + $0x740] sm:$0xff]
    %v3406 = vld [vmem:[#allocation10 + $0x748] sm:$0xff]
    %v3407 = vld [vmem:[#allocation10 + $0x750] sm:$0xff]
    %v3408 = vld [vmem:[#allocation10 + $0x758] sm:$0xff]
    %v3409 = vld [vmem:[#allocation10 + $0x760] sm:$0xff]
    %v3410 = vld [vmem:[#allocation10 + $0x768] sm:$0xff]
    %v3411 = vld [vmem:[#allocation10 + $0x770] sm:$0xff]
    %v3412 = vld [vmem:[#allocation10 + $0x778] sm:$0xff]
    %v3413 = vld [vmem:[#allocation10 + $0x780] sm:$0xff]
    %v3414 = vld [vmem:[#allocation10 + $0x788] sm:$0xff]
    %v3415 = vld [vmem:[#allocation10 + $0x790] sm:$0xff]
    %v3416 = vld [vmem:[#allocation10 + $0x798] sm:$0xff]
    %v3417 = vld [vmem:[#allocation10 + $0x7a0] sm:$0xff]
    %v3418 = vld [vmem:[#allocation10 + $0x7a8] sm:$0xff]
    %v3419 = vld [vmem:[#allocation10 + $0x7b0] sm:$0xff]
    %v3420 = vld [vmem:[#allocation10 + $0x7b8] sm:$0xff]
    %v3421 = vld [vmem:[#allocation10 + $0x7c0] sm:$0xff]
    %v3422 = vld [vmem:[#allocation10 + $0x7c8] sm:$0xff]
    %v3423 = vld [vmem:[#allocation10 + $0x7d0] sm:$0xff]
    %v3424 = vld [vmem:[#allocation10 + $0x7d8] sm:$0xff]
    %v3425 = vld [vmem:[#allocation10 + $0x7e0] sm:$0xff]
    %v3426 = vld [vmem:[#allocation10 + $0x7e8] sm:$0xff]
    %v3427 = vld [vmem:[#allocation10 + $0x7f0] sm:$0xff]
    %v3428 = vld [vmem:[#allocation10 + $0x7f8] sm:$0xff]
    %v3429 = vld [vmem:[%s6] sm:$0xff]
    %v3431 = vlaneseq
    %v3432 = vshrl.u32 %v3431, 7
    %v3433 = vsub.s32 0, %v3432
    %v3434 = vrot.slane %v3429, %v3433
    %v3435 = vlaneseq
    %v3436 = vshrl.u32 %v3435, 7
    %v3437 = vsub.s32 1, %v3436
    %v3438 = vrot.slane %v3429, %v3437
    %v3439 = vlaneseq
    %v3440 = vshrl.u32 %v3439, 7
    %v3441 = vsub.s32 2, %v3440
    %v3442 = vrot.slane %v3429, %v3441
    %v3443 = vlaneseq
    %v3444 = vshrl.u32 %v3443, 7
    %v3445 = vsub.s32 3, %v3444
    %v3446 = vrot.slane %v3429, %v3445
    %v3447 = vlaneseq
    %v3448 = vshrl.u32 %v3447, 7
    %v3449 = vsub.s32 4, %v3448
    %v3450 = vrot.slane %v3429, %v3449
    %v3451 = vlaneseq
    %v3452 = vshrl.u32 %v3451, 7
    %v3453 = vsub.s32 5, %v3452
    %v3454 = vrot.slane %v3429, %v3453
    %v3455 = vlaneseq
    %v3456 = vshrl.u32 %v3455, 7
    %v3457 = vsub.s32 6, %v3456
    %v3458 = vrot.slane %v3429, %v3457
    %v3459 = vlaneseq
    %v3460 = vshrl.u32 %v3459, 7
    %v3461 = vsub.s32 7, %v3460
    %v3462 = vrot.slane %v3429, %v3461
    %v3727 = vunpack.c.l.b16 %v3173
    %v3728 = vunpack.c.h.b16 %v3173
    %v3729 = vunpack.c.l.b16 %v3174
    %v3730 = vunpack.c.h.b16 %v3174
    %v3731 = vunpack.c.l.b16 %v3175
    %v3732 = vunpack.c.h.b16 %v3175
    %v3733 = vunpack.c.l.b16 %v3176
    %v3734 = vunpack.c.h.b16 %v3176
    %v3735 = vunpack.c.l.b16 %v3177
    %v3736 = vunpack.c.h.b16 %v3177
    %v3737 = vunpack.c.l.b16 %v3178
    %v3738 = vunpack.c.h.b16 %v3178
    %v3739 = vunpack.c.l.b16 %v3179
    %v3740 = vunpack.c.h.b16 %v3179
    %v3741 = vunpack.c.l.b16 %v3180
    %v3742 = vunpack.c.h.b16 %v3180
    %v3743 = vunpack.c.l.b16 %v3181
    %v3744 = vunpack.c.h.b16 %v3181
    %v3745 = vunpack.c.l.b16 %v3182
    %v3746 = vunpack.c.h.b16 %v3182
    %v3747 = vunpack.c.l.b16 %v3183
    %v3748 = vunpack.c.h.b16 %v3183
    %v3749 = vunpack.c.l.b16 %v3184
    %v3750 = vunpack.c.h.b16 %v3184
    %v3751 = vunpack.c.l.b16 %v3185
    %v3752 = vunpack.c.h.b16 %v3185
    %v3753 = vunpack.c.l.b16 %v3186
    %v3754 = vunpack.c.h.b16 %v3186
    %v3755 = vunpack.c.l.b16 %v3187
    %v3756 = vunpack.c.h.b16 %v3187
    %v3757 = vunpack.c.l.b16 %v3188
    %v3758 = vunpack.c.h.b16 %v3188
    %v3759 = vunpack.c.l.b16 %v3189
    %v3760 = vunpack.c.h.b16 %v3189
    %v3761 = vunpack.c.l.b16 %v3190
    %v3762 = vunpack.c.h.b16 %v3190
    %v3763 = vunpack.c.l.b16 %v3191
    %v3764 = vunpack.c.h.b16 %v3191
    %v3765 = vunpack.c.l.b16 %v3192
    %v3766 = vunpack.c.h.b16 %v3192
    %v3767 = vunpack.c.l.b16 %v3193
    %v3768 = vunpack.c.h.b16 %v3193
    %v3769 = vunpack.c.l.b16 %v3194
    %v3770 = vunpack.c.h.b16 %v3194
    %v3771 = vunpack.c.l.b16 %v3195
    %v3772 = vunpack.c.h.b16 %v3195
    %v3773 = vunpack.c.l.b16 %v3196
    %v3774 = vunpack.c.h.b16 %v3196
    %v3775 = vunpack.c.l.b16 %v3197
    %v3776 = vunpack.c.h.b16 %v3197
    %v3777 = vunpack.c.l.b16 %v3198
    %v3778 = vunpack.c.h.b16 %v3198
    %v3779 = vunpack.c.l.b16 %v3199
    %v3780 = vunpack.c.h.b16 %v3199
    %v3781 = vunpack.c.l.b16 %v3200
    %v3782 = vunpack.c.h.b16 %v3200
    %v3783 = vunpack.c.l.b16 %v3201
    %v3784 = vunpack.c.h.b16 %v3201
    %v3785 = vunpack.c.l.b16 %v3202
    %v3786 = vunpack.c.h.b16 %v3202
    %v3787 = vunpack.c.l.b16 %v3203
    %v3788 = vunpack.c.h.b16 %v3203
    %v3789 = vunpack.c.l.b16 %v3204
    %v3790 = vunpack.c.h.b16 %v3204
    %v3791 = vunpack.c.l.b16 %v3205
    %v3792 = vunpack.c.h.b16 %v3205
    %v3793 = vunpack.c.l.b16 %v3206
    %v3794 = vunpack.c.h.b16 %v3206
    %v3795 = vunpack.c.l.b16 %v3207
    %v3796 = vunpack.c.h.b16 %v3207
    %v3797 = vunpack.c.l.b16 %v3208
    %v3798 = vunpack.c.h.b16 %v3208
    %v3799 = vunpack.c.l.b16 %v3209
    %v3800 = vunpack.c.h.b16 %v3209
    %v3801 = vunpack.c.l.b16 %v3210
    %v3802 = vunpack.c.h.b16 %v3210
    %v3803 = vunpack.c.l.b16 %v3211
    %v3804 = vunpack.c.h.b16 %v3211
    %v3805 = vunpack.c.l.b16 %v3212
    %v3806 = vunpack.c.h.b16 %v3212
    %v3807 = vunpack.c.l.b16 %v3213
    %v3808 = vunpack.c.h.b16 %v3213
    %v3809 = vunpack.c.l.b16 %v3214
    %v3810 = vunpack.c.h.b16 %v3214
    %v3811 = vunpack.c.l.b16 %v3215
    %v3812 = vunpack.c.h.b16 %v3215
    %v3813 = vunpack.c.l.b16 %v3216
    %v3814 = vunpack.c.h.b16 %v3216
    %v3815 = vunpack.c.l.b16 %v3217
    %v3816 = vunpack.c.h.b16 %v3217
    %v3817 = vunpack.c.l.b16 %v3218
    %v3818 = vunpack.c.h.b16 %v3218
    %v3819 = vunpack.c.l.b16 %v3219
    %v3820 = vunpack.c.h.b16 %v3219
    %v3821 = vunpack.c.l.b16 %v3220
    %v3822 = vunpack.c.h.b16 %v3220
    %v3823 = vunpack.c.l.b16 %v3221
    %v3824 = vunpack.c.h.b16 %v3221
    %v3825 = vunpack.c.l.b16 %v3222
    %v3826 = vunpack.c.h.b16 %v3222
    %v3827 = vunpack.c.l.b16 %v3223
    %v3828 = vunpack.c.h.b16 %v3223
    %v3829 = vunpack.c.l.b16 %v3224
    %v3830 = vunpack.c.h.b16 %v3224
    %v3831 = vunpack.c.l.b16 %v3225
    %v3832 = vunpack.c.h.b16 %v3225
    %v3833 = vunpack.c.l.b16 %v3226
    %v3834 = vunpack.c.h.b16 %v3226
    %v3835 = vunpack.c.l.b16 %v3227
    %v3836 = vunpack.c.h.b16 %v3227
    %v3837 = vunpack.c.l.b16 %v3228
    %v3838 = vunpack.c.h.b16 %v3228
    %v3839 = vunpack.c.l.b16 %v3229
    %v3840 = vunpack.c.h.b16 %v3229
    %v3841 = vunpack.c.l.b16 %v3230
    %v3842 = vunpack.c.h.b16 %v3230
    %v3843 = vunpack.c.l.b16 %v3231
    %v3844 = vunpack.c.h.b16 %v3231
    %v3845 = vunpack.c.l.b16 %v3232
    %v3846 = vunpack.c.h.b16 %v3232
    %v3847 = vunpack.c.l.b16 %v3233
    %v3848 = vunpack.c.h.b16 %v3233
    %v3849 = vunpack.c.l.b16 %v3234
    %v3850 = vunpack.c.h.b16 %v3234
    %v3851 = vunpack.c.l.b16 %v3235
    %v3852 = vunpack.c.h.b16 %v3235
    %v3853 = vunpack.c.l.b16 %v3236
    %v3854 = vunpack.c.h.b16 %v3236
    %v3855 = vunpack.c.l.b16 %v3237
    %v3856 = vunpack.c.h.b16 %v3237
    %v3857 = vunpack.c.l.b16 %v3238
    %v3858 = vunpack.c.h.b16 %v3238
    %v3859 = vunpack.c.l.b16 %v3239
    %v3860 = vunpack.c.h.b16 %v3239
    %v3861 = vunpack.c.l.b16 %v3240
    %v3862 = vunpack.c.h.b16 %v3240
    %v3863 = vunpack.c.l.b16 %v3241
    %v3864 = vunpack.c.h.b16 %v3241
    %v3865 = vunpack.c.l.b16 %v3242
    %v3866 = vunpack.c.h.b16 %v3242
    %v3867 = vunpack.c.l.b16 %v3243
    %v3868 = vunpack.c.h.b16 %v3243
    %v3869 = vunpack.c.l.b16 %v3244
    %v3870 = vunpack.c.h.b16 %v3244
    %v3871 = vunpack.c.l.b16 %v3245
    %v3872 = vunpack.c.h.b16 %v3245
    %v3873 = vunpack.c.l.b16 %v3246
    %v3874 = vunpack.c.h.b16 %v3246
    %v3875 = vunpack.c.l.b16 %v3247
    %v3876 = vunpack.c.h.b16 %v3247
    %v3877 = vunpack.c.l.b16 %v3248
    %v3878 = vunpack.c.h.b16 %v3248
    %v3879 = vunpack.c.l.b16 %v3249
    %v3880 = vunpack.c.h.b16 %v3249
    %v3881 = vunpack.c.l.b16 %v3250
    %v3882 = vunpack.c.h.b16 %v3250
    %v3883 = vunpack.c.l.b16 %v3251
    %v3884 = vunpack.c.h.b16 %v3251
    %v3885 = vunpack.c.l.b16 %v3252
    %v3886 = vunpack.c.h.b16 %v3252
    %v3887 = vunpack.c.l.b16 %v3253
    %v3888 = vunpack.c.h.b16 %v3253
    %v3889 = vunpack.c.l.b16 %v3254
    %v3890 = vunpack.c.h.b16 %v3254
    %v3891 = vunpack.c.l.b16 %v3255
    %v3892 = vunpack.c.h.b16 %v3255
    %v3893 = vunpack.c.l.b16 %v3256
    %v3894 = vunpack.c.h.b16 %v3256
    %v3895 = vunpack.c.l.b16 %v3257
    %v3896 = vunpack.c.h.b16 %v3257
    %v3897 = vunpack.c.l.b16 %v3258
    %v3898 = vunpack.c.h.b16 %v3258
    %v3899 = vunpack.c.l.b16 %v3259
    %v3900 = vunpack.c.h.b16 %v3259
    %v3901 = vunpack.c.l.b16 %v3260
    %v3902 = vunpack.c.h.b16 %v3260
    %v3903 = vunpack.c.l.b16 %v3261
    %v3904 = vunpack.c.h.b16 %v3261
    %v3905 = vunpack.c.l.b16 %v3262
    %v3906 = vunpack.c.h.b16 %v3262
    %v3907 = vunpack.c.l.b16 %v3263
    %v3908 = vunpack.c.h.b16 %v3263
    %v3909 = vunpack.c.l.b16 %v3264
    %v3910 = vunpack.c.h.b16 %v3264
    %v3911 = vunpack.c.l.b16 %v3265
    %v3912 = vunpack.c.h.b16 %v3265
    %v3913 = vunpack.c.l.b16 %v3266
    %v3914 = vunpack.c.h.b16 %v3266
    %v3915 = vunpack.c.l.b16 %v3267
    %v3916 = vunpack.c.h.b16 %v3267
    %v3917 = vunpack.c.l.b16 %v3268
    %v3918 = vunpack.c.h.b16 %v3268
    %v3919 = vunpack.c.l.b16 %v3269
    %v3920 = vunpack.c.h.b16 %v3269
    %v3921 = vunpack.c.l.b16 %v3270
    %v3922 = vunpack.c.h.b16 %v3270
    %v3923 = vunpack.c.l.b16 %v3271
    %v3924 = vunpack.c.h.b16 %v3271
    %v3925 = vunpack.c.l.b16 %v3272
    %v3926 = vunpack.c.h.b16 %v3272
    %v3927 = vunpack.c.l.b16 %v3273
    %v3928 = vunpack.c.h.b16 %v3273
    %v3929 = vunpack.c.l.b16 %v3274
    %v3930 = vunpack.c.h.b16 %v3274
    %v3931 = vunpack.c.l.b16 %v3275
    %v3932 = vunpack.c.h.b16 %v3275
    %v3933 = vunpack.c.l.b16 %v3276
    %v3934 = vunpack.c.h.b16 %v3276
    %v3935 = vunpack.c.l.b16 %v3277
    %v3936 = vunpack.c.h.b16 %v3277
    %v3937 = vunpack.c.l.b16 %v3278
    %v3938 = vunpack.c.h.b16 %v3278
    %v3939 = vunpack.c.l.b16 %v3279
    %v3940 = vunpack.c.h.b16 %v3279
    %v3941 = vunpack.c.l.b16 %v3280
    %v3942 = vunpack.c.h.b16 %v3280
    %v3943 = vunpack.c.l.b16 %v3281
    %v3944 = vunpack.c.h.b16 %v3281
    %v3945 = vunpack.c.l.b16 %v3282
    %v3946 = vunpack.c.h.b16 %v3282
    %v3947 = vunpack.c.l.b16 %v3283
    %v3948 = vunpack.c.h.b16 %v3283
    %v3949 = vunpack.c.l.b16 %v3284
    %v3950 = vunpack.c.h.b16 %v3284
    %v3951 = vunpack.c.l.b16 %v3285
    %v3952 = vunpack.c.h.b16 %v3285
    %v3953 = vunpack.c.l.b16 %v3286
    %v3954 = vunpack.c.h.b16 %v3286
    %v3955 = vunpack.c.l.b16 %v3287
    %v3956 = vunpack.c.h.b16 %v3287
    %v3957 = vunpack.c.l.b16 %v3288
    %v3958 = vunpack.c.h.b16 %v3288
    %v3959 = vunpack.c.l.b16 %v3289
    %v3960 = vunpack.c.h.b16 %v3289
    %v3961 = vunpack.c.l.b16 %v3290
    %v3962 = vunpack.c.h.b16 %v3290
    %v3963 = vunpack.c.l.b16 %v3291
    %v3964 = vunpack.c.h.b16 %v3291
    %v3965 = vunpack.c.l.b16 %v3292
    %v3966 = vunpack.c.h.b16 %v3292
    %v3967 = vunpack.c.l.b16 %v3293
    %v3968 = vunpack.c.h.b16 %v3293
    %v3969 = vunpack.c.l.b16 %v3294
    %v3970 = vunpack.c.h.b16 %v3294
    %v3971 = vunpack.c.l.b16 %v3295
    %v3972 = vunpack.c.h.b16 %v3295
    %v3973 = vunpack.c.l.b16 %v3296
    %v3974 = vunpack.c.h.b16 %v3296
    %v3975 = vunpack.c.l.b16 %v3297
    %v3976 = vunpack.c.h.b16 %v3297
    %v3977 = vunpack.c.l.b16 %v3298
    %v3978 = vunpack.c.h.b16 %v3298
    %v3979 = vunpack.c.l.b16 %v3299
    %v3980 = vunpack.c.h.b16 %v3299
    %v3981 = vunpack.c.l.b16 %v3300
    %v3982 = vunpack.c.h.b16 %v3300
    %v3983 = vunpack.c.l.b16 %v3301
    %v3984 = vunpack.c.h.b16 %v3301
    %v3985 = vunpack.c.l.b16 %v3302
    %v3986 = vunpack.c.h.b16 %v3302
    %v3987 = vunpack.c.l.b16 %v3303
    %v3988 = vunpack.c.h.b16 %v3303
    %v3989 = vunpack.c.l.b16 %v3304
    %v3990 = vunpack.c.h.b16 %v3304
    %v3991 = vunpack.c.l.b16 %v3305
    %v3992 = vunpack.c.h.b16 %v3305
    %v3993 = vunpack.c.l.b16 %v3306
    %v3994 = vunpack.c.h.b16 %v3306
    %v3995 = vunpack.c.l.b16 %v3307
    %v3996 = vunpack.c.h.b16 %v3307
    %v3997 = vunpack.c.l.b16 %v3308
    %v3998 = vunpack.c.h.b16 %v3308
    %v3999 = vunpack.c.l.b16 %v3309
    %v4000 = vunpack.c.h.b16 %v3309
    %v4001 = vunpack.c.l.b16 %v3310
    %v4002 = vunpack.c.h.b16 %v3310
    %v4003 = vunpack.c.l.b16 %v3311
    %v4004 = vunpack.c.h.b16 %v3311
    %v4005 = vunpack.c.l.b16 %v3312
    %v4006 = vunpack.c.h.b16 %v3312
    %v4007 = vunpack.c.l.b16 %v3313
    %v4008 = vunpack.c.h.b16 %v3313
    %v4009 = vunpack.c.l.b16 %v3314
    %v4010 = vunpack.c.h.b16 %v3314
    %v4011 = vunpack.c.l.b16 %v3315
    %v4012 = vunpack.c.h.b16 %v3315
    %v4013 = vunpack.c.l.b16 %v3316
    %v4014 = vunpack.c.h.b16 %v3316
    %v4015 = vunpack.c.l.b16 %v3317
    %v4016 = vunpack.c.h.b16 %v3317
    %v4017 = vunpack.c.l.b16 %v3318
    %v4018 = vunpack.c.h.b16 %v3318
    %v4019 = vunpack.c.l.b16 %v3319
    %v4020 = vunpack.c.h.b16 %v3319
    %v4021 = vunpack.c.l.b16 %v3320
    %v4022 = vunpack.c.h.b16 %v3320
    %v4023 = vunpack.c.l.b16 %v3321
    %v4024 = vunpack.c.h.b16 %v3321
    %v4025 = vunpack.c.l.b16 %v3322
    %v4026 = vunpack.c.h.b16 %v3322
    %v4027 = vunpack.c.l.b16 %v3323
    %v4028 = vunpack.c.h.b16 %v3323
    %v4029 = vunpack.c.l.b16 %v3324
    %v4030 = vunpack.c.h.b16 %v3324
    %v4031 = vunpack.c.l.b16 %v3325
    %v4032 = vunpack.c.h.b16 %v3325
    %v4033 = vunpack.c.l.b16 %v3326
    %v4034 = vunpack.c.h.b16 %v3326
    %v4035 = vunpack.c.l.b16 %v3327
    %v4036 = vunpack.c.h.b16 %v3327
    %v4037 = vunpack.c.l.b16 %v3328
    %v4038 = vunpack.c.h.b16 %v3328
    %v4039 = vunpack.c.l.b16 %v3329
    %v4040 = vunpack.c.h.b16 %v3329
    %v4041 = vunpack.c.l.b16 %v3330
    %v4042 = vunpack.c.h.b16 %v3330
    %v4043 = vunpack.c.l.b16 %v3331
    %v4044 = vunpack.c.h.b16 %v3331
    %v4045 = vunpack.c.l.b16 %v3332
    %v4046 = vunpack.c.h.b16 %v3332
    %v4047 = vunpack.c.l.b16 %v3333
    %v4048 = vunpack.c.h.b16 %v3333
    %v4049 = vunpack.c.l.b16 %v3334
    %v4050 = vunpack.c.h.b16 %v3334
    %v4051 = vunpack.c.l.b16 %v3335
    %v4052 = vunpack.c.h.b16 %v3335
    %v4053 = vunpack.c.l.b16 %v3336
    %v4054 = vunpack.c.h.b16 %v3336
    %v4055 = vunpack.c.l.b16 %v3337
    %v4056 = vunpack.c.h.b16 %v3337
    %v4057 = vunpack.c.l.b16 %v3338
    %v4058 = vunpack.c.h.b16 %v3338
    %v4059 = vunpack.c.l.b16 %v3339
    %v4060 = vunpack.c.h.b16 %v3339
    %v4061 = vunpack.c.l.b16 %v3340
    %v4062 = vunpack.c.h.b16 %v3340
    %v4063 = vunpack.c.l.b16 %v3341
    %v4064 = vunpack.c.h.b16 %v3341
    %v4065 = vunpack.c.l.b16 %v3342
    %v4066 = vunpack.c.h.b16 %v3342
    %v4067 = vunpack.c.l.b16 %v3343
    %v4068 = vunpack.c.h.b16 %v3343
    %v4069 = vunpack.c.l.b16 %v3344
    %v4070 = vunpack.c.h.b16 %v3344
    %v4071 = vunpack.c.l.b16 %v3345
    %v4072 = vunpack.c.h.b16 %v3345
    %v4073 = vunpack.c.l.b16 %v3346
    %v4074 = vunpack.c.h.b16 %v3346
    %v4075 = vunpack.c.l.b16 %v3347
    %v4076 = vunpack.c.h.b16 %v3347
    %v4077 = vunpack.c.l.b16 %v3348
    %v4078 = vunpack.c.h.b16 %v3348
    %v4079 = vunpack.c.l.b16 %v3349
    %v4080 = vunpack.c.h.b16 %v3349
    %v4081 = vunpack.c.l.b16 %v3350
    %v4082 = vunpack.c.h.b16 %v3350
    %v4083 = vunpack.c.l.b16 %v3351
    %v4084 = vunpack.c.h.b16 %v3351
    %v4085 = vunpack.c.l.b16 %v3352
    %v4086 = vunpack.c.h.b16 %v3352
    %v4087 = vunpack.c.l.b16 %v3353
    %v4088 = vunpack.c.h.b16 %v3353
    %v4089 = vunpack.c.l.b16 %v3354
    %v4090 = vunpack.c.h.b16 %v3354
    %v4091 = vunpack.c.l.b16 %v3355
    %v4092 = vunpack.c.h.b16 %v3355
    %v4093 = vunpack.c.l.b16 %v3356
    %v4094 = vunpack.c.h.b16 %v3356
    %v4095 = vunpack.c.l.b16 %v3357
    %v4096 = vunpack.c.h.b16 %v3357
    %v4097 = vunpack.c.l.b16 %v3358
    %v4098 = vunpack.c.h.b16 %v3358
    %v4099 = vunpack.c.l.b16 %v3359
    %v4100 = vunpack.c.h.b16 %v3359
    %v4101 = vunpack.c.l.b16 %v3360
    %v4102 = vunpack.c.h.b16 %v3360
    %v4103 = vunpack.c.l.b16 %v3361
    %v4104 = vunpack.c.h.b16 %v3361
    %v4105 = vunpack.c.l.b16 %v3362
    %v4106 = vunpack.c.h.b16 %v3362
    %v4107 = vunpack.c.l.b16 %v3363
    %v4108 = vunpack.c.h.b16 %v3363
    %v4109 = vunpack.c.l.b16 %v3364
    %v4110 = vunpack.c.h.b16 %v3364
    %v4111 = vunpack.c.l.b16 %v3365
    %v4112 = vunpack.c.h.b16 %v3365
    %v4113 = vunpack.c.l.b16 %v3366
    %v4114 = vunpack.c.h.b16 %v3366
    %v4115 = vunpack.c.l.b16 %v3367
    %v4116 = vunpack.c.h.b16 %v3367
    %v4117 = vunpack.c.l.b16 %v3368
    %v4118 = vunpack.c.h.b16 %v3368
    %v4119 = vunpack.c.l.b16 %v3369
    %v4120 = vunpack.c.h.b16 %v3369
    %v4121 = vunpack.c.l.b16 %v3370
    %v4122 = vunpack.c.h.b16 %v3370
    %v4123 = vunpack.c.l.b16 %v3371
    %v4124 = vunpack.c.h.b16 %v3371
    %v4125 = vunpack.c.l.b16 %v3372
    %v4126 = vunpack.c.h.b16 %v3372
    %v4127 = vunpack.c.l.b16 %v3373
    %v4128 = vunpack.c.h.b16 %v3373
    %v4129 = vunpack.c.l.b16 %v3374
    %v4130 = vunpack.c.h.b16 %v3374
    %v4131 = vunpack.c.l.b16 %v3375
    %v4132 = vunpack.c.h.b16 %v3375
    %v4133 = vunpack.c.l.b16 %v3376
    %v4134 = vunpack.c.h.b16 %v3376
    %v4135 = vunpack.c.l.b16 %v3377
    %v4136 = vunpack.c.h.b16 %v3377
    %v4137 = vunpack.c.l.b16 %v3378
    %v4138 = vunpack.c.h.b16 %v3378
    %v4139 = vunpack.c.l.b16 %v3379
    %v4140 = vunpack.c.h.b16 %v3379
    %v4141 = vunpack.c.l.b16 %v3380
    %v4142 = vunpack.c.h.b16 %v3380
    %v4143 = vunpack.c.l.b16 %v3381
    %v4144 = vunpack.c.h.b16 %v3381
    %v4145 = vunpack.c.l.b16 %v3382
    %v4146 = vunpack.c.h.b16 %v3382
    %v4147 = vunpack.c.l.b16 %v3383
    %v4148 = vunpack.c.h.b16 %v3383
    %v4149 = vunpack.c.l.b16 %v3384
    %v4150 = vunpack.c.h.b16 %v3384
    %v4151 = vunpack.c.l.b16 %v3385
    %v4152 = vunpack.c.h.b16 %v3385
    %v4153 = vunpack.c.l.b16 %v3386
    %v4154 = vunpack.c.h.b16 %v3386
    %v4155 = vunpack.c.l.b16 %v3387
    %v4156 = vunpack.c.h.b16 %v3387
    %v4157 = vunpack.c.l.b16 %v3388
    %v4158 = vunpack.c.h.b16 %v3388
    %v4159 = vunpack.c.l.b16 %v3389
    %v4160 = vunpack.c.h.b16 %v3389
    %v4161 = vunpack.c.l.b16 %v3390
    %v4162 = vunpack.c.h.b16 %v3390
    %v4163 = vunpack.c.l.b16 %v3391
    %v4164 = vunpack.c.h.b16 %v3391
    %v4165 = vunpack.c.l.b16 %v3392
    %v4166 = vunpack.c.h.b16 %v3392
    %v4167 = vunpack.c.l.b16 %v3393
    %v4168 = vunpack.c.h.b16 %v3393
    %v4169 = vunpack.c.l.b16 %v3394
    %v4170 = vunpack.c.h.b16 %v3394
    %v4171 = vunpack.c.l.b16 %v3395
    %v4172 = vunpack.c.h.b16 %v3395
    %v4173 = vunpack.c.l.b16 %v3396
    %v4174 = vunpack.c.h.b16 %v3396
    %v4175 = vunpack.c.l.b16 %v3397
    %v4176 = vunpack.c.h.b16 %v3397
    %v4177 = vunpack.c.l.b16 %v3398
    %v4178 = vunpack.c.h.b16 %v3398
    %v4179 = vunpack.c.l.b16 %v3399
    %v4180 = vunpack.c.h.b16 %v3399
    %v4181 = vunpack.c.l.b16 %v3400
    %v4182 = vunpack.c.h.b16 %v3400
    %v4183 = vunpack.c.l.b16 %v3401
    %v4184 = vunpack.c.h.b16 %v3401
    %v4185 = vunpack.c.l.b16 %v3402
    %v4186 = vunpack.c.h.b16 %v3402
    %v4187 = vunpack.c.l.b16 %v3403
    %v4188 = vunpack.c.h.b16 %v3403
    %v4189 = vunpack.c.l.b16 %v3404
    %v4190 = vunpack.c.h.b16 %v3404
    %v4191 = vunpack.c.l.b16 %v3405
    %v4192 = vunpack.c.h.b16 %v3405
    %v4193 = vunpack.c.l.b16 %v3406
    %v4194 = vunpack.c.h.b16 %v3406
    %v4195 = vunpack.c.l.b16 %v3407
    %v4196 = vunpack.c.h.b16 %v3407
    %v4197 = vunpack.c.l.b16 %v3408
    %v4198 = vunpack.c.h.b16 %v3408
    %v4199 = vunpack.c.l.b16 %v3409
    %v4200 = vunpack.c.h.b16 %v3409
    %v4201 = vunpack.c.l.b16 %v3410
    %v4202 = vunpack.c.h.b16 %v3410
    %v4203 = vunpack.c.l.b16 %v3411
    %v4204 = vunpack.c.h.b16 %v3411
    %v4205 = vunpack.c.l.b16 %v3412
    %v4206 = vunpack.c.h.b16 %v3412
    %v4207 = vunpack.c.l.b16 %v3413
    %v4208 = vunpack.c.h.b16 %v3413
    %v4209 = vunpack.c.l.b16 %v3414
    %v4210 = vunpack.c.h.b16 %v3414
    %v4211 = vunpack.c.l.b16 %v3415
    %v4212 = vunpack.c.h.b16 %v3415
    %v4213 = vunpack.c.l.b16 %v3416
    %v4214 = vunpack.c.h.b16 %v3416
    %v4215 = vunpack.c.l.b16 %v3417
    %v4216 = vunpack.c.h.b16 %v3417
    %v4217 = vunpack.c.l.b16 %v3418
    %v4218 = vunpack.c.h.b16 %v3418
    %v4219 = vunpack.c.l.b16 %v3419
    %v4220 = vunpack.c.h.b16 %v3419
    %v4221 = vunpack.c.l.b16 %v3420
    %v4222 = vunpack.c.h.b16 %v3420
    %v4223 = vunpack.c.l.b16 %v3421
    %v4224 = vunpack.c.h.b16 %v3421
    %v4225 = vunpack.c.l.b16 %v3422
    %v4226 = vunpack.c.h.b16 %v3422
    %v4227 = vunpack.c.l.b16 %v3423
    %v4228 = vunpack.c.h.b16 %v3423
    %v4229 = vunpack.c.l.b16 %v3424
    %v4230 = vunpack.c.h.b16 %v3424
    %v4231 = vunpack.c.l.b16 %v3425
    %v4232 = vunpack.c.h.b16 %v3425
    %v4233 = vunpack.c.l.b16 %v3426
    %v4234 = vunpack.c.h.b16 %v3426
    %v4235 = vunpack.c.l.b16 %v3427
    %v4236 = vunpack.c.h.b16 %v3427
    %v4237 = vunpack.c.l.b16 %v3428
    %v4238 = vunpack.c.h.b16 %v3428
    %v4239 = vpack.c.b16 %v3735, %v3727
    %v4240 = vpack.c.b16 %v3736, %v3728
    %v4241 = vpack.c.b16 %v3737, %v3729
    %v4242 = vpack.c.b16 %v3738, %v3730
    %v4243 = vpack.c.b16 %v3739, %v3731
    %v4244 = vpack.c.b16 %v3740, %v3732
    %v4245 = vpack.c.b16 %v3741, %v3733
    %v4246 = vpack.c.b16 %v3742, %v3734
    %v4247 = vpack.c.b16 %v3751, %v3743
    %v4248 = vpack.c.b16 %v3752, %v3744
    %v4249 = vpack.c.b16 %v3753, %v3745
    %v4250 = vpack.c.b16 %v3754, %v3746
    %v4251 = vpack.c.b16 %v3755, %v3747
    %v4252 = vpack.c.b16 %v3756, %v3748
    %v4253 = vpack.c.b16 %v3757, %v3749
    %v4254 = vpack.c.b16 %v3758, %v3750
    %v4255 = vpack.c.b16 %v3767, %v3759
    %v4256 = vpack.c.b16 %v3768, %v3760
    %v4257 = vpack.c.b16 %v3769, %v3761
    %v4258 = vpack.c.b16 %v3770, %v3762
    %v4259 = vpack.c.b16 %v3771, %v3763
    %v4260 = vpack.c.b16 %v3772, %v3764
    %v4261 = vpack.c.b16 %v3773, %v3765
    %v4262 = vpack.c.b16 %v3774, %v3766
    %v4263 = vpack.c.b16 %v3783, %v3775
    %v4264 = vpack.c.b16 %v3784, %v3776
    %v4265 = vpack.c.b16 %v3785, %v3777
    %v4266 = vpack.c.b16 %v3786, %v3778
    %v4267 = vpack.c.b16 %v3787, %v3779
    %v4268 = vpack.c.b16 %v3788, %v3780
    %v4269 = vpack.c.b16 %v3789, %v3781
    %v4270 = vpack.c.b16 %v3790, %v3782
    %v4271 = vpack.c.b16 %v3799, %v3791
    %v4272 = vpack.c.b16 %v3800, %v3792
    %v4273 = vpack.c.b16 %v3801, %v3793
    %v4274 = vpack.c.b16 %v3802, %v3794
    %v4275 = vpack.c.b16 %v3803, %v3795
    %v4276 = vpack.c.b16 %v3804, %v3796
    %v4277 = vpack.c.b16 %v3805, %v3797
    %v4278 = vpack.c.b16 %v3806, %v3798
    %v4279 = vpack.c.b16 %v3815, %v3807
    %v4280 = vpack.c.b16 %v3816, %v3808
    %v4281 = vpack.c.b16 %v3817, %v3809
    %v4282 = vpack.c.b16 %v3818, %v3810
    %v4283 = vpack.c.b16 %v3819, %v3811
    %v4284 = vpack.c.b16 %v3820, %v3812
    %v4285 = vpack.c.b16 %v3821, %v3813
    %v4286 = vpack.c.b16 %v3822, %v3814
    %v4287 = vpack.c.b16 %v3831, %v3823
    %v4288 = vpack.c.b16 %v3832, %v3824
    %v4289 = vpack.c.b16 %v3833, %v3825
    %v4290 = vpack.c.b16 %v3834, %v3826
    %v4291 = vpack.c.b16 %v3835, %v3827
    %v4292 = vpack.c.b16 %v3836, %v3828
    %v4293 = vpack.c.b16 %v3837, %v3829
    %v4294 = vpack.c.b16 %v3838, %v3830
    %v4295 = vpack.c.b16 %v3847, %v3839
    %v4296 = vpack.c.b16 %v3848, %v3840
    %v4297 = vpack.c.b16 %v3849, %v3841
    %v4298 = vpack.c.b16 %v3850, %v3842
    %v4299 = vpack.c.b16 %v3851, %v3843
    %v4300 = vpack.c.b16 %v3852, %v3844
    %v4301 = vpack.c.b16 %v3853, %v3845
    %v4302 = vpack.c.b16 %v3854, %v3846
    %v4303 = vpack.c.b16 %v3863, %v3855
    %v4304 = vpack.c.b16 %v3864, %v3856
    %v4305 = vpack.c.b16 %v3865, %v3857
    %v4306 = vpack.c.b16 %v3866, %v3858
    %v4307 = vpack.c.b16 %v3867, %v3859
    %v4308 = vpack.c.b16 %v3868, %v3860
    %v4309 = vpack.c.b16 %v3869, %v3861
    %v4310 = vpack.c.b16 %v3870, %v3862
    %v4311 = vpack.c.b16 %v3879, %v3871
    %v4312 = vpack.c.b16 %v3880, %v3872
    %v4313 = vpack.c.b16 %v3881, %v3873
    %v4314 = vpack.c.b16 %v3882, %v3874
    %v4315 = vpack.c.b16 %v3883, %v3875
    %v4316 = vpack.c.b16 %v3884, %v3876
    %v4317 = vpack.c.b16 %v3885, %v3877
    %v4318 = vpack.c.b16 %v3886, %v3878
    %v4319 = vpack.c.b16 %v3895, %v3887
    %v4320 = vpack.c.b16 %v3896, %v3888
    %v4321 = vpack.c.b16 %v3897, %v3889
    %v4322 = vpack.c.b16 %v3898, %v3890
    %v4323 = vpack.c.b16 %v3899, %v3891
    %v4324 = vpack.c.b16 %v3900, %v3892
    %v4325 = vpack.c.b16 %v3901, %v3893
    %v4326 = vpack.c.b16 %v3902, %v3894
    %v4327 = vpack.c.b16 %v3911, %v3903
    %v4328 = vpack.c.b16 %v3912, %v3904
    %v4329 = vpack.c.b16 %v3913, %v3905
    %v4330 = vpack.c.b16 %v3914, %v3906
    %v4331 = vpack.c.b16 %v3915, %v3907
    %v4332 = vpack.c.b16 %v3916, %v3908
    %v4333 = vpack.c.b16 %v3917, %v3909
    %v4334 = vpack.c.b16 %v3918, %v3910
    %v4335 = vpack.c.b16 %v3927, %v3919
    %v4336 = vpack.c.b16 %v3928, %v3920
    %v4337 = vpack.c.b16 %v3929, %v3921
    %v4338 = vpack.c.b16 %v3930, %v3922
    %v4339 = vpack.c.b16 %v3931, %v3923
    %v4340 = vpack.c.b16 %v3932, %v3924
    %v4341 = vpack.c.b16 %v3933, %v3925
    %v4342 = vpack.c.b16 %v3934, %v3926
    %v4343 = vpack.c.b16 %v3943, %v3935
    %v4344 = vpack.c.b16 %v3944, %v3936
    %v4345 = vpack.c.b16 %v3945, %v3937
    %v4346 = vpack.c.b16 %v3946, %v3938
    %v4347 = vpack.c.b16 %v3947, %v3939
    %v4348 = vpack.c.b16 %v3948, %v3940
    %v4349 = vpack.c.b16 %v3949, %v3941
    %v4350 = vpack.c.b16 %v3950, %v3942
    %v4351 = vpack.c.b16 %v3959, %v3951
    %v4352 = vpack.c.b16 %v3960, %v3952
    %v4353 = vpack.c.b16 %v3961, %v3953
    %v4354 = vpack.c.b16 %v3962, %v3954
    %v4355 = vpack.c.b16 %v3963, %v3955
    %v4356 = vpack.c.b16 %v3964, %v3956
    %v4357 = vpack.c.b16 %v3965, %v3957
    %v4358 = vpack.c.b16 %v3966, %v3958
    %v4359 = vpack.c.b16 %v3975, %v3967
    %v4360 = vpack.c.b16 %v3976, %v3968
    %v4361 = vpack.c.b16 %v3977, %v3969
    %v4362 = vpack.c.b16 %v3978, %v3970
    %v4363 = vpack.c.b16 %v3979, %v3971
    %v4364 = vpack.c.b16 %v3980, %v3972
    %v4365 = vpack.c.b16 %v3981, %v3973
    %v4366 = vpack.c.b16 %v3982, %v3974
    %v4367 = vpack.c.b16 %v3991, %v3983
    %v4368 = vpack.c.b16 %v3992, %v3984
    %v4369 = vpack.c.b16 %v3993, %v3985
    %v4370 = vpack.c.b16 %v3994, %v3986
    %v4371 = vpack.c.b16 %v3995, %v3987
    %v4372 = vpack.c.b16 %v3996, %v3988
    %v4373 = vpack.c.b16 %v3997, %v3989
    %v4374 = vpack.c.b16 %v3998, %v3990
    %v4375 = vpack.c.b16 %v4007, %v3999
    %v4376 = vpack.c.b16 %v4008, %v4000
    %v4377 = vpack.c.b16 %v4009, %v4001
    %v4378 = vpack.c.b16 %v4010, %v4002
    %v4379 = vpack.c.b16 %v4011, %v4003
    %v4380 = vpack.c.b16 %v4012, %v4004
    %v4381 = vpack.c.b16 %v4013, %v4005
    %v4382 = vpack.c.b16 %v4014, %v4006
    %v4383 = vpack.c.b16 %v4023, %v4015
    %v4384 = vpack.c.b16 %v4024, %v4016
    %v4385 = vpack.c.b16 %v4025, %v4017
    %v4386 = vpack.c.b16 %v4026, %v4018
    %v4387 = vpack.c.b16 %v4027, %v4019
    %v4388 = vpack.c.b16 %v4028, %v4020
    %v4389 = vpack.c.b16 %v4029, %v4021
    %v4390 = vpack.c.b16 %v4030, %v4022
    %v4391 = vpack.c.b16 %v4039, %v4031
    %v4392 = vpack.c.b16 %v4040, %v4032
    %v4393 = vpack.c.b16 %v4041, %v4033
    %v4394 = vpack.c.b16 %v4042, %v4034
    %v4395 = vpack.c.b16 %v4043, %v4035
    %v4396 = vpack.c.b16 %v4044, %v4036
    %v4397 = vpack.c.b16 %v4045, %v4037
    %v4398 = vpack.c.b16 %v4046, %v4038
    %v4399 = vpack.c.b16 %v4055, %v4047
    %v4400 = vpack.c.b16 %v4056, %v4048
    %v4401 = vpack.c.b16 %v4057, %v4049
    %v4402 = vpack.c.b16 %v4058, %v4050
    %v4403 = vpack.c.b16 %v4059, %v4051
    %v4404 = vpack.c.b16 %v4060, %v4052
    %v4405 = vpack.c.b16 %v4061, %v4053
    %v4406 = vpack.c.b16 %v4062, %v4054
    %v4407 = vpack.c.b16 %v4071, %v4063
    %v4408 = vpack.c.b16 %v4072, %v4064
    %v4409 = vpack.c.b16 %v4073, %v4065
    %v4410 = vpack.c.b16 %v4074, %v4066
    %v4411 = vpack.c.b16 %v4075, %v4067
    %v4412 = vpack.c.b16 %v4076, %v4068
    %v4413 = vpack.c.b16 %v4077, %v4069
    %v4414 = vpack.c.b16 %v4078, %v4070
    %v4415 = vpack.c.b16 %v4087, %v4079
    %v4416 = vpack.c.b16 %v4088, %v4080
    %v4417 = vpack.c.b16 %v4089, %v4081
    %v4418 = vpack.c.b16 %v4090, %v4082
    %v4419 = vpack.c.b16 %v4091, %v4083
    %v4420 = vpack.c.b16 %v4092, %v4084
    %v4421 = vpack.c.b16 %v4093, %v4085
    %v4422 = vpack.c.b16 %v4094, %v4086
    %v4423 = vpack.c.b16 %v4103, %v4095
    %v4424 = vpack.c.b16 %v4104, %v4096
    %v4425 = vpack.c.b16 %v4105, %v4097
    %v4426 = vpack.c.b16 %v4106, %v4098
    %v4427 = vpack.c.b16 %v4107, %v4099
    %v4428 = vpack.c.b16 %v4108, %v4100
    %v4429 = vpack.c.b16 %v4109, %v4101
    %v4430 = vpack.c.b16 %v4110, %v4102
    %v4431 = vpack.c.b16 %v4119, %v4111
    %v4432 = vpack.c.b16 %v4120, %v4112
    %v4433 = vpack.c.b16 %v4121, %v4113
    %v4434 = vpack.c.b16 %v4122, %v4114
    %v4435 = vpack.c.b16 %v4123, %v4115
    %v4436 = vpack.c.b16 %v4124, %v4116
    %v4437 = vpack.c.b16 %v4125, %v4117
    %v4438 = vpack.c.b16 %v4126, %v4118
    %v4439 = vpack.c.b16 %v4135, %v4127
    %v4440 = vpack.c.b16 %v4136, %v4128
    %v4441 = vpack.c.b16 %v4137, %v4129
    %v4442 = vpack.c.b16 %v4138, %v4130
    %v4443 = vpack.c.b16 %v4139, %v4131
    %v4444 = vpack.c.b16 %v4140, %v4132
    %v4445 = vpack.c.b16 %v4141, %v4133
    %v4446 = vpack.c.b16 %v4142, %v4134
    %v4447 = vpack.c.b16 %v4151, %v4143
    %v4448 = vpack.c.b16 %v4152, %v4144
    %v4449 = vpack.c.b16 %v4153, %v4145
    %v4450 = vpack.c.b16 %v4154, %v4146
    %v4451 = vpack.c.b16 %v4155, %v4147
    %v4452 = vpack.c.b16 %v4156, %v4148
    %v4453 = vpack.c.b16 %v4157, %v4149
    %v4454 = vpack.c.b16 %v4158, %v4150
    %v4455 = vpack.c.b16 %v4167, %v4159
    %v4456 = vpack.c.b16 %v4168, %v4160
    %v4457 = vpack.c.b16 %v4169, %v4161
    %v4458 = vpack.c.b16 %v4170, %v4162
    %v4459 = vpack.c.b16 %v4171, %v4163
    %v4460 = vpack.c.b16 %v4172, %v4164
    %v4461 = vpack.c.b16 %v4173, %v4165
    %v4462 = vpack.c.b16 %v4174, %v4166
    %v4463 = vpack.c.b16 %v4183, %v4175
    %v4464 = vpack.c.b16 %v4184, %v4176
    %v4465 = vpack.c.b16 %v4185, %v4177
    %v4466 = vpack.c.b16 %v4186, %v4178
    %v4467 = vpack.c.b16 %v4187, %v4179
    %v4468 = vpack.c.b16 %v4188, %v4180
    %v4469 = vpack.c.b16 %v4189, %v4181
    %v4470 = vpack.c.b16 %v4190, %v4182
    %v4471 = vpack.c.b16 %v4199, %v4191
    %v4472 = vpack.c.b16 %v4200, %v4192
    %v4473 = vpack.c.b16 %v4201, %v4193
    %v4474 = vpack.c.b16 %v4202, %v4194
    %v4475 = vpack.c.b16 %v4203, %v4195
    %v4476 = vpack.c.b16 %v4204, %v4196
    %v4477 = vpack.c.b16 %v4205, %v4197
    %v4478 = vpack.c.b16 %v4206, %v4198
    %v4479 = vpack.c.b16 %v4215, %v4207
    %v4480 = vpack.c.b16 %v4216, %v4208
    %v4481 = vpack.c.b16 %v4217, %v4209
    %v4482 = vpack.c.b16 %v4218, %v4210
    %v4483 = vpack.c.b16 %v4219, %v4211
    %v4484 = vpack.c.b16 %v4220, %v4212
    %v4485 = vpack.c.b16 %v4221, %v4213
    %v4486 = vpack.c.b16 %v4222, %v4214
    %v4487 = vpack.c.b16 %v4231, %v4223
    %v4488 = vpack.c.b16 %v4232, %v4224
    %v4489 = vpack.c.b16 %v4233, %v4225
    %v4490 = vpack.c.b16 %v4234, %v4226
    %v4491 = vpack.c.b16 %v4235, %v4227
    %v4492 = vpack.c.b16 %v4236, %v4228
    %v4493 = vpack.c.b16 %v4237, %v4229
    %v4494 = vpack.c.b16 %v4238, %v4230
    %4751 = vmatprep.subr.bf16.mxu0 %v4240
    %4752 = vmatpush1.bf16.msra.mxu0 %v4239
    %4753 = vmatprep.subr.bf16.mxu0 %v4248
    %4754 = vmatpush1.bf16.msra.mxu0 %v4247
    %4755 = vmatprep.subr.bf16.mxu0 %v4256
    %4756 = vmatpush1.bf16.msra.mxu0 %v4255
    %4757 = vmatprep.subr.bf16.mxu0 %v4264
    %4758 = vmatpush1.bf16.msra.mxu0 %v4263
    %4759 = vmatprep.subr.bf16.mxu0 %v4272
    %4760 = vmatpush1.bf16.msra.mxu0 %v4271
    %4761 = vmatprep.subr.bf16.mxu0 %v4280
    %4762 = vmatpush1.bf16.msra.mxu0 %v4279
    %4763 = vmatprep.subr.bf16.mxu0 %v4288
    %4764 = vmatpush1.bf16.msra.mxu0 %v4287
    %4765 = vmatprep.subr.bf16.mxu0 %v4296
    %4766 = vmatpush1.bf16.msra.mxu0 %v4295
    %4767 = vmatprep.subr.bf16.mxu0 %v4304
    %4768 = vmatpush1.bf16.msra.mxu0 %v4303
    %4769 = vmatprep.subr.bf16.mxu0 %v4312
    %4770 = vmatpush1.bf16.msra.mxu0 %v4311
    %4771 = vmatprep.subr.bf16.mxu0 %v4320
    %4772 = vmatpush1.bf16.msra.mxu0 %v4319
    %4773 = vmatprep.subr.bf16.mxu0 %v4328
    %4774 = vmatpush1.bf16.msra.mxu0 %v4327
    %4775 = vmatprep.subr.bf16.mxu0 %v4336
    %4776 = vmatpush1.bf16.msra.mxu0 %v4335
    %4777 = vmatprep.subr.bf16.mxu0 %v4344
    %4778 = vmatpush1.bf16.msra.mxu0 %v4343
    %4779 = vmatprep.subr.bf16.mxu0 %v4352
    %4780 = vmatpush1.bf16.msra.mxu0 %v4351
    %4781 = vmatprep.subr.bf16.mxu0 %v4360
    %4782 = vmatpush1.bf16.msra.mxu0 %v4359
    %4783 = vmatprep.mubr.bf16.mxu0 %v3170
    %4784 = vmatmul.mubr.bf16.gmra.mrb[0].mxu0 %v3169
    %v4785 = vpop.f32.mrb[0].mxu0
    %v4786 = vadd.f32 %v3434, %v4785
    %v4787 = vpop.f32.mrb[0].mxu0
    %v4788 = vadd.f32 %v3438, %v4787
    %v4789 = vpop.f32.mrb[0].mxu0
    %v4790 = vadd.f32 %v3434, %v4789
    %v4791 = vpop.f32.mrb[0].mxu0
    %v4792 = vadd.f32 %v3438, %v4791
    %4793 = vdwg.mxu0
    %4794 = vmatprep.subr.bf16.mxu0 %v4368
    %4795 = vmatpush1.bf16.msra.mxu0 %v4367
    %4796 = vmatprep.subr.bf16.mxu0 %v4376
    %4797 = vmatpush1.bf16.msra.mxu0 %v4375
    %4798 = vmatprep.subr.bf16.mxu0 %v4384
    %4799 = vmatpush1.bf16.msra.mxu0 %v4383
    %4800 = vmatprep.subr.bf16.mxu0 %v4392
    %4801 = vmatpush1.bf16.msra.mxu0 %v4391
    %4802 = vmatprep.subr.bf16.mxu0 %v4400
    %4803 = vmatpush1.bf16.msra.mxu0 %v4399
    %4804 = vmatprep.subr.bf16.mxu0 %v4408
    %4805 = vmatpush1.bf16.msra.mxu0 %v4407
    %4806 = vmatprep.subr.bf16.mxu0 %v4416
    %4807 = vmatpush1.bf16.msra.mxu0 %v4415
    %4808 = vmatprep.subr.bf16.mxu0 %v4424
    %4809 = vmatpush1.bf16.msra.mxu0 %v4423
    %4810 = vmatprep.subr.bf16.mxu0 %v4432
    %4811 = vmatpush1.bf16.msra.mxu0 %v4431
    %4812 = vmatprep.subr.bf16.mxu0 %v4440
    %4813 = vmatpush1.bf16.msra.mxu0 %v4439
    %4814 = vmatprep.subr.bf16.mxu0 %v4448
    %4815 = vmatpush1.bf16.msra.mxu0 %v4447
    %4816 = vmatprep.subr.bf16.mxu0 %v4456
    %4817 = vmatpush1.bf16.msra.mxu0 %v4455
    %4818 = vmatprep.subr.bf16.mxu0 %v4464
    %4819 = vmatpush1.bf16.msra.mxu0 %v4463
    %4820 = vmatprep.subr.bf16.mxu0 %v4472
    %4821 = vmatpush1.bf16.msra.mxu0 %v4471
    %4822 = vmatprep.subr.bf16.mxu0 %v4480
    %4823 = vmatpush1.bf16.msra.mxu0 %v4479
    %4824 = vmatprep.subr.bf16.mxu0 %v4488
    %4825 = vmatpush1.bf16.msra.mxu0 %v4487
    %4826 = vmatprep.mubr.bf16.mxu0 %v3172
    %4827 = vmatmul.mubr.bf16.gmra.mrb[0].mxu0 %v3171
    %v4828 = vpop.f32.mrb[0].mxu0
    %v4829 = vadd.f32 %v4786, %v4828
    %v4830 = vpop.f32.mrb[0].mxu0
    %v4831 = vadd.f32 %v4788, %v4830
    %v4832 = vpop.f32.mrb[0].mxu0
    %v4833 = vadd.f32 %v4790, %v4832
    %v4834 = vpop.f32.mrb[0].mxu0
    %v4835 = vadd.f32 %v4792, %v4834
    %4836 = vdwg.mxu0
    %4837 = vmatprep.subr.bf16.mxu0 %v4242
    %4838 = vmatpush1.bf16.msra.mxu0 %v4241
    %4839 = vmatprep.subr.bf16.mxu0 %v4250
    %4840 = vmatpush1.bf16.msra.mxu0 %v4249
    %4841 = vmatprep.subr.bf16.mxu0 %v4258
    %4842 = vmatpush1.bf16.msra.mxu0 %v4257
    %4843 = vmatprep.subr.bf16.mxu0 %v4266
    %4844 = vmatpush1.bf16.msra.mxu0 %v4265
    %4845 = vmatprep.subr.bf16.mxu0 %v4274
    %4846 = vmatpush1.bf16.msra.mxu0 %v4273
    %4847 = vmatprep.subr.bf16.mxu0 %v4282
    %4848 = vmatpush1.bf16.msra.mxu0 %v4281
    %4849 = vmatprep.subr.bf16.mxu0 %v4290
    %4850 = vmatpush1.bf16.msra.mxu0 %v4289
    %4851 = vmatprep.subr.bf16.mxu0 %v4298
    %4852 = vmatpush1.bf16.msra.mxu0 %v4297
    %4853 = vmatprep.subr.bf16.mxu0 %v4306
    %4854 = vmatpush1.bf16.msra.mxu0 %v4305
    %4855 = vmatprep.subr.bf16.mxu0 %v4314
    %4856 = vmatpush1.bf16.msra.mxu0 %v4313
    %4857 = vmatprep.subr.bf16.mxu0 %v4322
    %4858 = vmatpush1.bf16.msra.mxu0 %v4321
    %4859 = vmatprep.subr.bf16.mxu0 %v4330
    %4860 = vmatpush1.bf16.msra.mxu0 %v4329
    %4861 = vmatprep.subr.bf16.mxu0 %v4338
    %4862 = vmatpush1.bf16.msra.mxu0 %v4337
    %4863 = vmatprep.subr.bf16.mxu0 %v4346
    %4864 = vmatpush1.bf16.msra.mxu0 %v4345
    %4865 = vmatprep.subr.bf16.mxu0 %v4354
    %4866 = vmatpush1.bf16.msra.mxu0 %v4353
    %4867 = vmatprep.subr.bf16.mxu0 %v4362
    %4868 = vmatpush1.bf16.msra.mxu0 %v4361
    %4869 = vmatprep.mubr.bf16.mxu0 %v3170
    %4870 = vmatmul.mubr.bf16.gmra.mrb[0].mxu0 %v3169
    %v4871 = vpop.f32.mrb[0].mxu0
    %v4872 = vadd.f32 %v3442, %v4871
    %v4873 = vpop.f32.mrb[0].mxu0
    %v4874 = vadd.f32 %v3446, %v4873
    %v4875 = vpop.f32.mrb[0].mxu0
    %v4876 = vadd.f32 %v3442, %v4875
    %v4877 = vpop.f32.mrb[0].mxu0
    %v4878 = vadd.f32 %v3446, %v4877
    %4879 = vdwg.mxu0
    %4880 = vmatprep.subr.bf16.mxu0 %v4370
    %4881 = vmatpush1.bf16.msra.mxu0 %v4369
    %4882 = vmatprep.subr.bf16.mxu0 %v4378
    %4883 = vmatpush1.bf16.msra.mxu0 %v4377
    %4884 = vmatprep.subr.bf16.mxu0 %v4386
    %4885 = vmatpush1.bf16.msra.mxu0 %v4385
    %4886 = vmatprep.subr.bf16.mxu0 %v4394
    %4887 = vmatpush1.bf16.msra.mxu0 %v4393
    %4888 = vmatprep.subr.bf16.mxu0 %v4402
    %4889 = vmatpush1.bf16.msra.mxu0 %v4401
    %4890 = vmatprep.subr.bf16.mxu0 %v4410
    %4891 = vmatpush1.bf16.msra.mxu0 %v4409
    %4892 = vmatprep.subr.bf16.mxu0 %v4418
    %4893 = vmatpush1.bf16.msra.mxu0 %v4417
    %4894 = vmatprep.subr.bf16.mxu0 %v4426
    %4895 = vmatpush1.bf16.msra.mxu0 %v4425
    %4896 = vmatprep.subr.bf16.mxu0 %v4434
    %4897 = vmatpush1.bf16.msra.mxu0 %v4433
    %4898 = vmatprep.subr.bf16.mxu0 %v4442
    %4899 = vmatpush1.bf16.msra.mxu0 %v4441
    %4900 = vmatprep.subr.bf16.mxu0 %v4450
    %4901 = vmatpush1.bf16.msra.mxu0 %v4449
    %4902 = vmatprep.subr.bf16.mxu0 %v4458
    %4903 = vmatpush1.bf16.msra.mxu0 %v4457
    %4904 = vmatprep.subr.bf16.mxu0 %v4466
    %4905 = vmatpush1.bf16.msra.mxu0 %v4465
    %4906 = vmatprep.subr.bf16.mxu0 %v4474
    %4907 = vmatpush1.bf16.msra.mxu0 %v4473
    %4908 = vmatprep.subr.bf16.mxu0 %v4482
    %4909 = vmatpush1.bf16.msra.mxu0 %v4481
    %4910 = vmatprep.subr.bf16.mxu0 %v4490
    %4911 = vmatpush1.bf16.msra.mxu0 %v4489
    %4912 = vmatprep.mubr.bf16.mxu0 %v3172
    %4913 = vmatmul.mubr.bf16.gmra.mrb[0].mxu0 %v3171
    %v4914 = vpop.f32.mrb[0].mxu0
    %v4915 = vadd.f32 %v4872, %v4914
    %v4916 = vpop.f32.mrb[0].mxu0
    %v4917 = vadd.f32 %v4874, %v4916
    %v4918 = vpop.f32.mrb[0].mxu0
    %v4919 = vadd.f32 %v4876, %v4918
    %v4920 = vpop.f32.mrb[0].mxu0
    %v4921 = vadd.f32 %v4878, %v4920
    %4922 = vdwg.mxu0
    %4923 = vmatprep.subr.bf16.mxu0 %v4244
    %4924 = vmatpush1.bf16.msra.mxu0 %v4243
    %4925 = vmatprep.subr.bf16.mxu0 %v4252
    %4926 = vmatpush1.bf16.msra.mxu0 %v4251
    %4927 = vmatprep.subr.bf16.mxu0 %v4260
    %4928 = vmatpush1.bf16.msra.mxu0 %v4259
    %4929 = vmatprep.subr.bf16.mxu0 %v4268
    %4930 = vmatpush1.bf16.msra.mxu0 %v4267
    %4931 = vmatprep.subr.bf16.mxu0 %v4276
    %4932 = vmatpush1.bf16.msra.mxu0 %v4275
    %4933 = vmatprep.subr.bf16.mxu0 %v4284
    %4934 = vmatpush1.bf16.msra.mxu0 %v4283
    %4935 = vmatprep.subr.bf16.mxu0 %v4292
    %4936 = vmatpush1.bf16.msra.mxu0 %v4291
    %4937 = vmatprep.subr.bf16.mxu0 %v4300
    %4938 = vmatpush1.bf16.msra.mxu0 %v4299
    %4939 = vmatprep.subr.bf16.mxu0 %v4308
    %4940 = vmatpush1.bf16.msra.mxu0 %v4307
    %4941 = vmatprep.subr.bf16.mxu0 %v4316
    %4942 = vmatpush1.bf16.msra.mxu0 %v4315
    %4943 = vmatprep.subr.bf16.mxu0 %v4324
    %4944 = vmatpush1.bf16.msra.mxu0 %v4323
    %4945 = vmatprep.subr.bf16.mxu0 %v4332
    %4946 = vmatpush1.bf16.msra.mxu0 %v4331
    %4947 = vmatprep.subr.bf16.mxu0 %v4340
    %4948 = vmatpush1.bf16.msra.mxu0 %v4339
    %4949 = vmatprep.subr.bf16.mxu0 %v4348
    %4950 = vmatpush1.bf16.msra.mxu0 %v4347
    %4951 = vmatprep.subr.bf16.mxu0 %v4356
    %4952 = vmatpush1.bf16.msra.mxu0 %v4355
    %4953 = vmatprep.subr.bf16.mxu0 %v4364
    %4954 = vmatpush1.bf16.msra.mxu0 %v4363
    %4955 = vmatprep.mubr.bf16.mxu0 %v3170
    %4956 = vmatmul.mubr.bf16.gmra.mrb[0].mxu0 %v3169
    %v4957 = vpop.f32.mrb[0].mxu0
    %v4958 = vadd.f32 %v3450, %v4957
    %v4959 = vpop.f32.mrb[0].mxu0
    %v4960 = vadd.f32 %v3454, %v4959
    %v4961 = vpop.f32.mrb[0].mxu0
    %v4962 = vadd.f32 %v3450, %v4961
    %v4963 = vpop.f32.mrb[0].mxu0
    %v4964 = vadd.f32 %v3454, %v4963
    %4965 = vdwg.mxu0
    %4966 = vmatprep.subr.bf16.mxu0 %v4372
    %4967 = vmatpush1.bf16.msra.mxu0 %v4371
    %4968 = vmatprep.subr.bf16.mxu0 %v4380
    %4969 = vmatpush1.bf16.msra.mxu0 %v4379
    %4970 = vmatprep.subr.bf16.mxu0 %v4388
    %4971 = vmatpush1.bf16.msra.mxu0 %v4387
    %4972 = vmatprep.subr.bf16.mxu0 %v4396
    %4973 = vmatpush1.bf16.msra.mxu0 %v4395
    %4974 = vmatprep.subr.bf16.mxu0 %v4404
    %4975 = vmatpush1.bf16.msra.mxu0 %v4403
    %4976 = vmatprep.subr.bf16.mxu0 %v4412
    %4977 = vmatpush1.bf16.msra.mxu0 %v4411
    %4978 = vmatprep.subr.bf16.mxu0 %v4420
    %4979 = vmatpush1.bf16.msra.mxu0 %v4419
    %4980 = vmatprep.subr.bf16.mxu0 %v4428
    %4981 = vmatpush1.bf16.msra.mxu0 %v4427
    %4982 = vmatprep.subr.bf16.mxu0 %v4436
    %4983 = vmatpush1.bf16.msra.mxu0 %v4435
    %4984 = vmatprep.subr.bf16.mxu0 %v4444
    %4985 = vmatpush1.bf16.msra.mxu0 %v4443
    %4986 = vmatprep.subr.bf16.mxu0 %v4452
    %4987 = vmatpush1.bf16.msra.mxu0 %v4451
    %4988 = vmatprep.subr.bf16.mxu0 %v4460
    %4989 = vmatpush1.bf16.msra.mxu0 %v4459
    %4990 = vmatprep.subr.bf16.mxu0 %v4468
    %4991 = vmatpush1.bf16.msra.mxu0 %v4467
    %4992 = vmatprep.subr.bf16.mxu0 %v4476
    %4993 = vmatpush1.bf16.msra.mxu0 %v4475
    %4994 = vmatprep.subr.bf16.mxu0 %v4484
    %4995 = vmatpush1.bf16.msra.mxu0 %v4483
    %4996 = vmatprep.subr.bf16.mxu0 %v4492
    %4997 = vmatpush1.bf16.msra.mxu0 %v4491
    %4998 = vmatprep.mubr.bf16.mxu0 %v3172
    %4999 = vmatmul.mubr.bf16.gmra.mrb[0].mxu0 %v3171
    %v5000 = vpop.f32.mrb[0].mxu0
    %v5001 = vadd.f32 %v4958, %v5000
    %v5002 = vpop.f32.mrb[0].mxu0
    %v5003 = vadd.f32 %v4960, %v5002
    %v5004 = vpop.f32.mrb[0].mxu0
    %v5005 = vadd.f32 %v4962, %v5004
    %v5006 = vpop.f32.mrb[0].mxu0
    %v5007 = vadd.f32 %v4964, %v5006
    %5008 = vdwg.mxu0
    %5009 = vmatprep.subr.bf16.mxu0 %v4246
    %5010 = vmatpush1.bf16.msra.mxu0 %v4245
    %5011 = vmatprep.subr.bf16.mxu0 %v4254
    %5012 = vmatpush1.bf16.msra.mxu0 %v4253
    %5013 = vmatprep.subr.bf16.mxu0 %v4262
    %5014 = vmatpush1.bf16.msra.mxu0 %v4261
    %5015 = vmatprep.subr.bf16.mxu0 %v4270
    %5016 = vmatpush1.bf16.msra.mxu0 %v4269
    %5017 = vmatprep.subr.bf16.mxu0 %v4278
    %5018 = vmatpush1.bf16.msra.mxu0 %v4277
    %5019 = vmatprep.subr.bf16.mxu0 %v4286
    %5020 = vmatpush1.bf16.msra.mxu0 %v4285
    %5021 = vmatprep.subr.bf16.mxu0 %v4294
    %5022 = vmatpush1.bf16.msra.mxu0 %v4293
    %5023 = vmatprep.subr.bf16.mxu0 %v4302
    %5024 = vmatpush1.bf16.msra.mxu0 %v4301
    %5025 = vmatprep.subr.bf16.mxu0 %v4310
    %5026 = vmatpush1.bf16.msra.mxu0 %v4309
    %5027 = vmatprep.subr.bf16.mxu0 %v4318
    %5028 = vmatpush1.bf16.msra.mxu0 %v4317
    %5029 = vmatprep.subr.bf16.mxu0 %v4326
    %5030 = vmatpush1.bf16.msra.mxu0 %v4325
    %5031 = vmatprep.subr.bf16.mxu0 %v4334
    %5032 = vmatpush1.bf16.msra.mxu0 %v4333
    %5033 = vmatprep.subr.bf16.mxu0 %v4342
    %5034 = vmatpush1.bf16.msra.mxu0 %v4341
    %5035 = vmatprep.subr.bf16.mxu0 %v4350
    %5036 = vmatpush1.bf16.msra.mxu0 %v4349
    %5037 = vmatprep.subr.bf16.mxu0 %v4358
    %5038 = vmatpush1.bf16.msra.mxu0 %v4357
    %5039 = vmatprep.subr.bf16.mxu0 %v4366
    %5040 = vmatpush1.bf16.msra.mxu0 %v4365
    %5041 = vmatprep.mubr.bf16.mxu0 %v3170
    %5042 = vmatmul.mubr.bf16.gmra.mrb[0].mxu0 %v3169
    %v5043 = vpop.f32.mrb[0].mxu0
    %v5044 = vadd.f32 %v3458, %v5043
    %v5045 = vpop.f32.mrb[0].mxu0
    %v5046 = vadd.f32 %v3462, %v5045
    %v5047 = vpop.f32.mrb[0].mxu0
    %v5048 = vadd.f32 %v3458, %v5047
    %v5049 = vpop.f32.mrb[0].mxu0
    %v5050 = vadd.f32 %v3462, %v5049
    %5051 = vdwg.mxu0
    %5052 = vmatprep.subr.bf16.mxu0 %v4374
    %5053 = vmatpush1.bf16.msra.mxu0 %v4373
    %5054 = vmatprep.subr.bf16.mxu0 %v4382
    %5055 = vmatpush1.bf16.msra.mxu0 %v4381
    %5056 = vmatprep.subr.bf16.mxu0 %v4390
    %5057 = vmatpush1.bf16.msra.mxu0 %v4389
    %5058 = vmatprep.subr.bf16.mxu0 %v4398
    %5059 = vmatpush1.bf16.msra.mxu0 %v4397
    %5060 = vmatprep.subr.bf16.mxu0 %v4406
    %5061 = vmatpush1.bf16.msra.mxu0 %v4405
    %5062 = vmatprep.subr.bf16.mxu0 %v4414
    %5063 = vmatpush1.bf16.msra.mxu0 %v4413
    %5064 = vmatprep.subr.bf16.mxu0 %v4422
    %5065 = vmatpush1.bf16.msra.mxu0 %v4421
    %5066 = vmatprep.subr.bf16.mxu0 %v4430
    %5067 = vmatpush1.bf16.msra.mxu0 %v4429
    %5068 = vmatprep.subr.bf16.mxu0 %v4438
    %5069 = vmatpush1.bf16.msra.mxu0 %v4437
    %5070 = vmatprep.subr.bf16.mxu0 %v4446
    %5071 = vmatpush1.bf16.msra.mxu0 %v4445
    %5072 = vmatprep.subr.bf16.mxu0 %v4454
    %5073 = vmatpush1.bf16.msra.mxu0 %v4453
    %5074 = vmatprep.subr.bf16.mxu0 %v4462
    %5075 = vmatpush1.bf16.msra.mxu0 %v4461
    %5076 = vmatprep.subr.bf16.mxu0 %v4470
    %5077 = vmatpush1.bf16.msra.mxu0 %v4469
    %5078 = vmatprep.subr.bf16.mxu0 %v4478
    %5079 = vmatpush1.bf16.msra.mxu0 %v4477
    %5080 = vmatprep.subr.bf16.mxu0 %v4486
    %5081 = vmatpush1.bf16.msra.mxu0 %v4485
    %5082 = vmatprep.subr.bf16.mxu0 %v4494
    %5083 = vmatpush1.bf16.msra.mxu0 %v4493
    %5084 = vmatprep.mubr.bf16.mxu0 %v3172
    %5085 = vmatmul.mubr.bf16.gmra.mrb[0].mxu0 %v3171
    %v5086 = vpop.f32.mrb[0].mxu0
    %v5087 = vadd.f32 %v5044, %v5086
    %v5088 = vpop.f32.mrb[0].mxu0
    %v5089 = vadd.f32 %v5046, %v5088
    %v5090 = vpop.f32.mrb[0].mxu0
    %v5091 = vadd.f32 %v5048, %v5090
    %v5092 = vpop.f32.mrb[0].mxu0
    %v5093 = vadd.f32 %v5050, %v5092
    %5094 = vdwg.mxu0
    %v5095 = vsub.f32 0.0, %v4829
    %v5096 = vsub.f32 0.0, %v4831
    %v5097 = vsub.f32 0.0, %v4915
    %v5098 = vsub.f32 0.0, %v4917
    %v5099 = vsub.f32 0.0, %v5001
    %v5100 = vsub.f32 0.0, %v5003
    %v5101 = vsub.f32 0.0, %v5087
    %v5102 = vsub.f32 0.0, %v5089
    %v5103 = vsub.f32 0.0, %v4833
    %v5104 = vsub.f32 0.0, %v4835
    %v5105 = vsub.f32 0.0, %v4919
    %v5106 = vsub.f32 0.0, %v4921
    %v5107 = vsub.f32 0.0, %v5005
    %v5108 = vsub.f32 0.0, %v5007
    %v5109 = vsub.f32 0.0, %v5091
    %v5110 = vsub.f32 0.0, %v5093
    %v5111 = vmul.f32 %v5095, 1.442695
    %v5112 = vpow.pop %v5111
    %v5113 = vmul.f32 %v5096, 1.442695
    %v5114 = vpow.pop %v5113
    %v5115 = vmul.f32 %v5097, 1.442695
    %v5116 = vpow.pop %v5115
    %v5117 = vmul.f32 %v5098, 1.442695
    %v5118 = vpow.pop %v5117
    %v5119 = vmul.f32 %v5099, 1.442695
    %v5120 = vpow.pop %v5119
    %v5121 = vmul.f32 %v5100, 1.442695
    %v5122 = vpow.pop %v5121
    %v5123 = vmul.f32 %v5101, 1.442695
    %v5124 = vpow.pop %v5123
    %v5125 = vmul.f32 %v5102, 1.442695
    %v5126 = vpow.pop %v5125
    %v5127 = vmul.f32 %v5103, 1.442695
    %v5128 = vpow.pop %v5127
    %v5129 = vmul.f32 %v5104, 1.442695
    %v5130 = vpow.pop %v5129
    %v5131 = vmul.f32 %v5105, 1.442695
    %v5132 = vpow.pop %v5131
    %v5133 = vmul.f32 %v5106, 1.442695
    %v5134 = vpow.pop %v5133
    %v5135 = vmul.f32 %v5107, 1.442695
    %v5136 = vpow.pop %v5135
    %v5137 = vmul.f32 %v5108, 1.442695
    %v5138 = vpow.pop %v5137
    %v5139 = vmul.f32 %v5109, 1.442695
    %v5140 = vpow.pop %v5139
    %v5141 = vmul.f32 %v5110, 1.442695
    %v5142 = vpow.pop %v5141
    %v5143 = vadd.f32 %v5112, 1.0
    %v5144 = vadd.f32 %v5114, 1.0
    %v5145 = vadd.f32 %v5116, 1.0
    %v5146 = vadd.f32 %v5118, 1.0
    %v5147 = vadd.f32 %v5120, 1.0
    %v5148 = vadd.f32 %v5122, 1.0
    %v5149 = vadd.f32 %v5124, 1.0
    %v5150 = vadd.f32 %v5126, 1.0
    %v5151 = vadd.f32 %v5128, 1.0
    %v5152 = vadd.f32 %v5130, 1.0
    %v5153 = vadd.f32 %v5132, 1.0
    %v5154 = vadd.f32 %v5134, 1.0
    %v5155 = vadd.f32 %v5136, 1.0
    %v5156 = vadd.f32 %v5138, 1.0
    %v5157 = vadd.f32 %v5140, 1.0
    %v5158 = vadd.f32 %v5142, 1.0
    %v5159 = vrcp.pop %v5143
    %v5160 = vmul.f32 1.0, %v5159
    %v5161 = vrcp.pop %v5144
    %v5162 = vmul.f32 1.0, %v5161
    %v5163 = vrcp.pop %v5145
    %v5164 = vmul.f32 1.0, %v5163
    %v5165 = vrcp.pop %v5146
    %v5166 = vmul.f32 1.0, %v5165
    %v5167 = vrcp.pop %v5147
    %v5168 = vmul.f32 1.0, %v5167
    %v5169 = vrcp.pop %v5148
    %v5170 = vmul.f32 1.0, %v5169
    %v5171 = vrcp.pop %v5149
    %v5172 = vmul.f32 1.0, %v5171
    %v5173 = vrcp.pop %v5150
    %v5174 = vmul.f32 1.0, %v5173
    %v5175 = vrcp.pop %v5151
    %v5176 = vmul.f32 1.0, %v5175
    %v5177 = vrcp.pop %v5152
    %v5178 = vmul.f32 1.0, %v5177
    %v5179 = vrcp.pop %v5153
    %v5180 = vmul.f32 1.0, %v5179
    %v5181 = vrcp.pop %v5154
    %v5182 = vmul.f32 1.0, %v5181
    %v5183 = vrcp.pop %v5155
    %v5184 = vmul.f32 1.0, %v5183
    %v5185 = vrcp.pop %v5156
    %v5186 = vmul.f32 1.0, %v5185
    %v5187 = vrcp.pop %v5157
    %v5188 = vmul.f32 1.0, %v5187
    %v5189 = vrcp.pop %v5158
    %v5190 = vmul.f32 1.0, %v5189
    %v5191 = vmul.f32 %v4829, %v5160
    %v5192 = vmul.f32 %v4831, %v5162
    %v5193 = vmul.f32 %v4915, %v5164
    %v5194 = vmul.f32 %v4917, %v5166
    %v5195 = vmul.f32 %v5001, %v5168
    %v5196 = vmul.f32 %v5003, %v5170
    %v5197 = vmul.f32 %v5087, %v5172
    %v5198 = vmul.f32 %v5089, %v5174
    %v5199 = vmul.f32 %v4833, %v5176
    %v5200 = vmul.f32 %v4835, %v5178
    %v5201 = vmul.f32 %v4919, %v5180
    %v5202 = vmul.f32 %v4921, %v5182
    %v5203 = vmul.f32 %v5005, %v5184
    %v5204 = vmul.f32 %v5007, %v5186
    %v5205 = vmul.f32 %v5091, %v5188
    %v5206 = vmul.f32 %v5093, %v5190
    %v5207 = vpack.c.bf16 %v5199, %v5191
    %v5208 = vpack.c.bf16 %v5200, %v5192
    %v5209 = vpack.c.bf16 %v5201, %v5193
    %v5210 = vpack.c.bf16 %v5202, %v5194
    %v5211 = vpack.c.bf16 %v5203, %v5195
    %v5212 = vpack.c.bf16 %v5204, %v5196
    %v5213 = vpack.c.bf16 %v5205, %v5197
    %v5214 = vpack.c.bf16 %v5206, %v5198
    %v5215 = vld [vmem:[#allocation11] sm:$0xff]
    %v5216 = vld [vmem:[#allocation11 + $0x8] sm:$0xff]
    %v5217 = vld [vmem:[#allocation11 + $0x10] sm:$0xff]
    %v5218 = vld [vmem:[#allocation11 + $0x18] sm:$0xff]
    %v5219 = vld [vmem:[#allocation11 + $0x20] sm:$0xff]
    %v5220 = vld [vmem:[#allocation11 + $0x28] sm:$0xff]
    %v5221 = vld [vmem:[#allocation11 + $0x30] sm:$0xff]
    %v5222 = vld [vmem:[#allocation11 + $0x38] sm:$0xff]
    %v5223 = vld [vmem:[#allocation11 + $0x40] sm:$0xff]
    %v5224 = vld [vmem:[#allocation11 + $0x48] sm:$0xff]
    %v5225 = vld [vmem:[#allocation11 + $0x50] sm:$0xff]
    %v5226 = vld [vmem:[#allocation11 + $0x58] sm:$0xff]
    %v5227 = vld [vmem:[#allocation11 + $0x60] sm:$0xff]
    %v5228 = vld [vmem:[#allocation11 + $0x68] sm:$0xff]
    %v5229 = vld [vmem:[#allocation11 + $0x70] sm:$0xff]
    %v5230 = vld [vmem:[#allocation11 + $0x78] sm:$0xff]
    %v5231 = vld [vmem:[#allocation11 + $0x80] sm:$0xff]
    %v5232 = vld [vmem:[#allocation11 + $0x88] sm:$0xff]
    %v5233 = vld [vmem:[#allocation11 + $0x90] sm:$0xff]
    %v5234 = vld [vmem:[#allocation11 + $0x98] sm:$0xff]
    %v5235 = vld [vmem:[#allocation11 + $0xa0] sm:$0xff]
    %v5236 = vld [vmem:[#allocation11 + $0xa8] sm:$0xff]
    %v5237 = vld [vmem:[#allocation11 + $0xb0] sm:$0xff]
    %v5238 = vld [vmem:[#allocation11 + $0xb8] sm:$0xff]
    %v5239 = vld [vmem:[#allocation11 + $0xc0] sm:$0xff]
    %v5240 = vld [vmem:[#allocation11 + $0xc8] sm:$0xff]
    %v5241 = vld [vmem:[#allocation11 + $0xd0] sm:$0xff]
    %v5242 = vld [vmem:[#allocation11 + $0xd8] sm:$0xff]
    %v5243 = vld [vmem:[#allocation11 + $0xe0] sm:$0xff]
    %v5244 = vld [vmem:[#allocation11 + $0xe8] sm:$0xff]
    %v5245 = vld [vmem:[#allocation11 + $0xf0] sm:$0xff]
    %v5246 = vld [vmem:[#allocation11 + $0xf8] sm:$0xff]
    %v5247 = vld [vmem:[#allocation11 + $0x100] sm:$0xff]
    %v5248 = vld [vmem:[#allocation11 + $0x108] sm:$0xff]
    %v5249 = vld [vmem:[#allocation11 + $0x110] sm:$0xff]
    %v5250 = vld [vmem:[#allocation11 + $0x118] sm:$0xff]
    %v5251 = vld [vmem:[#allocation11 + $0x120] sm:$0xff]
    %v5252 = vld [vmem:[#allocation11 + $0x128] sm:$0xff]
    %v5253 = vld [vmem:[#allocation11 + $0x130] sm:$0xff]
    %v5254 = vld [vmem:[#allocation11 + $0x138] sm:$0xff]
    %v5255 = vld [vmem:[#allocation11 + $0x140] sm:$0xff]
    %v5256 = vld [vmem:[#allocation11 + $0x148] sm:$0xff]
    %v5257 = vld [vmem:[#allocation11 + $0x150] sm:$0xff]
    %v5258 = vld [vmem:[#allocation11 + $0x158] sm:$0xff]
    %v5259 = vld [vmem:[#allocation11 + $0x160] sm:$0xff]
    %v5260 = vld [vmem:[#allocation11 + $0x168] sm:$0xff]
    %v5261 = vld [vmem:[#allocation11 + $0x170] sm:$0xff]
    %v5262 = vld [vmem:[#allocation11 + $0x178] sm:$0xff]
    %v5263 = vld [vmem:[#allocation11 + $0x180] sm:$0xff]
    %v5264 = vld [vmem:[#allocation11 + $0x188] sm:$0xff]
    %v5265 = vld [vmem:[#allocation11 + $0x190] sm:$0xff]
    %v5266 = vld [vmem:[#allocation11 + $0x198] sm:$0xff]
    %v5267 = vld [vmem:[#allocation11 + $0x1a0] sm:$0xff]
    %v5268 = vld [vmem:[#allocation11 + $0x1a8] sm:$0xff]
    %v5269 = vld [vmem:[#allocation11 + $0x1b0] sm:$0xff]
    %v5270 = vld [vmem:[#allocation11 + $0x1b8] sm:$0xff]
    %v5271 = vld [vmem:[#allocation11 + $0x1c0] sm:$0xff]
    %v5272 = vld [vmem:[#allocation11 + $0x1c8] sm:$0xff]
    %v5273 = vld [vmem:[#allocation11 + $0x1d0] sm:$0xff]
    %v5274 = vld [vmem:[#allocation11 + $0x1d8] sm:$0xff]
    %v5275 = vld [vmem:[#allocation11 + $0x1e0] sm:$0xff]
    %v5276 = vld [vmem:[#allocation11 + $0x1e8] sm:$0xff]
    %v5277 = vld [vmem:[#allocation11 + $0x1f0] sm:$0xff]
    %v5278 = vld [vmem:[#allocation11 + $0x1f8] sm:$0xff]
    %v5279 = vld [vmem:[#allocation11 + $0x200] sm:$0xff]
    %v5280 = vld [vmem:[#allocation11 + $0x208] sm:$0xff]
    %v5281 = vld [vmem:[#allocation11 + $0x210] sm:$0xff]
    %v5282 = vld [vmem:[#allocation11 + $0x218] sm:$0xff]
    %v5283 = vld [vmem:[#allocation11 + $0x220] sm:$0xff]
    %v5284 = vld [vmem:[#allocation11 + $0x228] sm:$0xff]
    %v5285 = vld [vmem:[#allocation11 + $0x230] sm:$0xff]
    %v5286 = vld [vmem:[#allocation11 + $0x238] sm:$0xff]
    %v5287 = vld [vmem:[#allocation11 + $0x240] sm:$0xff]
    %v5288 = vld [vmem:[#allocation11 + $0x248] sm:$0xff]
    %v5289 = vld [vmem:[#allocation11 + $0x250] sm:$0xff]
    %v5290 = vld [vmem:[#allocation11 + $0x258] sm:$0xff]
    %v5291 = vld [vmem:[#allocation11 + $0x260] sm:$0xff]
    %v5292 = vld [vmem:[#allocation11 + $0x268] sm:$0xff]
    %v5293 = vld [vmem:[#allocation11 + $0x270] sm:$0xff]
    %v5294 = vld [vmem:[#allocation11 + $0x278] sm:$0xff]
    %v5295 = vld [vmem:[#allocation11 + $0x280] sm:$0xff]
    %v5296 = vld [vmem:[#allocation11 + $0x288] sm:$0xff]
    %v5297 = vld [vmem:[#allocation11 + $0x290] sm:$0xff]
    %v5298 = vld [vmem:[#allocation11 + $0x298] sm:$0xff]
    %v5299 = vld [vmem:[#allocation11 + $0x2a0] sm:$0xff]
    %v5300 = vld [vmem:[#allocation11 + $0x2a8] sm:$0xff]
    %v5301 = vld [vmem:[#allocation11 + $0x2b0] sm:$0xff]
    %v5302 = vld [vmem:[#allocation11 + $0x2b8] sm:$0xff]
    %v5303 = vld [vmem:[#allocation11 + $0x2c0] sm:$0xff]
    %v5304 = vld [vmem:[#allocation11 + $0x2c8] sm:$0xff]
    %v5305 = vld [vmem:[#allocation11 + $0x2d0] sm:$0xff]
    %v5306 = vld [vmem:[#allocation11 + $0x2d8] sm:$0xff]
    %v5307 = vld [vmem:[#allocation11 + $0x2e0] sm:$0xff]
    %v5308 = vld [vmem:[#allocation11 + $0x2e8] sm:$0xff]
    %v5309 = vld [vmem:[#allocation11 + $0x2f0] sm:$0xff]
    %v5310 = vld [vmem:[#allocation11 + $0x2f8] sm:$0xff]
    %v5311 = vld [vmem:[#allocation11 + $0x300] sm:$0xff]
    %v5312 = vld [vmem:[#allocation11 + $0x308] sm:$0xff]
    %v5313 = vld [vmem:[#allocation11 + $0x310] sm:$0xff]
    %v5314 = vld [vmem:[#allocation11 + $0x318] sm:$0xff]
    %v5315 = vld [vmem:[#allocation11 + $0x320] sm:$0xff]
    %v5316 = vld [vmem:[#allocation11 + $0x328] sm:$0xff]
    %v5317 = vld [vmem:[#allocation11 + $0x330] sm:$0xff]
    %v5318 = vld [vmem:[#allocation11 + $0x338] sm:$0xff]
    %v5319 = vld [vmem:[#allocation11 + $0x340] sm:$0xff]
    %v5320 = vld [vmem:[#allocation11 + $0x348] sm:$0xff]
    %v5321 = vld [vmem:[#allocation11 + $0x350] sm:$0xff]
    %v5322 = vld [vmem:[#allocation11 + $0x358] sm:$0xff]
    %v5323 = vld [vmem:[#allocation11 + $0x360] sm:$0xff]
    %v5324 = vld [vmem:[#allocation11 + $0x368] sm:$0xff]
    %v5325 = vld [vmem:[#allocation11 + $0x370] sm:$0xff]
    %v5326 = vld [vmem:[#allocation11 + $0x378] sm:$0xff]
    %v5327 = vld [vmem:[#allocation11 + $0x380] sm:$0xff]
    %v5328 = vld [vmem:[#allocation11 + $0x388] sm:$0xff]
    %v5329 = vld [vmem:[#allocation11 + $0x390] sm:$0xff]
    %v5330 = vld [vmem:[#allocation11 + $0x398] sm:$0xff]
    %v5331 = vld [vmem:[#allocation11 + $0x3a0] sm:$0xff]
    %v5332 = vld [vmem:[#allocation11 + $0x3a8] sm:$0xff]
    %v5333 = vld [vmem:[#allocation11 + $0x3b0] sm:$0xff]
    %v5334 = vld [vmem:[#allocation11 + $0x3b8] sm:$0xff]
    %v5335 = vld [vmem:[#allocation11 + $0x3c0] sm:$0xff]
    %v5336 = vld [vmem:[#allocation11 + $0x3c8] sm:$0xff]
    %v5337 = vld [vmem:[#allocation11 + $0x3d0] sm:$0xff]
    %v5338 = vld [vmem:[#allocation11 + $0x3d8] sm:$0xff]
    %v5339 = vld [vmem:[#allocation11 + $0x3e0] sm:$0xff]
    %v5340 = vld [vmem:[#allocation11 + $0x3e8] sm:$0xff]
    %v5341 = vld [vmem:[#allocation11 + $0x3f0] sm:$0xff]
    %v5342 = vld [vmem:[#allocation11 + $0x3f8] sm:$0xff]
    %v5343 = vld [vmem:[%s8] sm:$0x3]
    %v5345 = vlaneseq
    %v5346 = vshrl.u32 %v5345, 7
    %v5347 = vsub.s32 0, %v5346
    %v5348 = vrot.slane %v5343, %v5347
    %v5349 = vlaneseq
    %v5350 = vshrl.u32 %v5349, 7
    %v5351 = vsub.s32 1, %v5350
    %v5352 = vrot.slane %v5343, %v5351
    %v5483 = vunpack.c.l.b16 %v5215
    %v5484 = vunpack.c.h.b16 %v5215
    %v5485 = vunpack.c.l.b16 %v5216
    %v5486 = vunpack.c.h.b16 %v5216
    %v5487 = vunpack.c.l.b16 %v5217
    %v5488 = vunpack.c.h.b16 %v5217
    %v5489 = vunpack.c.l.b16 %v5218
    %v5490 = vunpack.c.h.b16 %v5218
    %v5491 = vunpack.c.l.b16 %v5219
    %v5492 = vunpack.c.h.b16 %v5219
    %v5493 = vunpack.c.l.b16 %v5220
    %v5494 = vunpack.c.h.b16 %v5220
    %v5495 = vunpack.c.l.b16 %v5221
    %v5496 = vunpack.c.h.b16 %v5221
    %v5497 = vunpack.c.l.b16 %v5222
    %v5498 = vunpack.c.h.b16 %v5222
    %v5499 = vunpack.c.l.b16 %v5223
    %v5500 = vunpack.c.h.b16 %v5223
    %v5501 = vunpack.c.l.b16 %v5224
    %v5502 = vunpack.c.h.b16 %v5224
    %v5503 = vunpack.c.l.b16 %v5225
    %v5504 = vunpack.c.h.b16 %v5225
    %v5505 = vunpack.c.l.b16 %v5226
    %v5506 = vunpack.c.h.b16 %v5226
    %v5507 = vunpack.c.l.b16 %v5227
    %v5508 = vunpack.c.h.b16 %v5227
    %v5509 = vunpack.c.l.b16 %v5228
    %v5510 = vunpack.c.h.b16 %v5228
    %v5511 = vunpack.c.l.b16 %v5229
    %v5512 = vunpack.c.h.b16 %v5229
    %v5513 = vunpack.c.l.b16 %v5230
    %v5514 = vunpack.c.h.b16 %v5230
    %v5515 = vunpack.c.l.b16 %v5231
    %v5516 = vunpack.c.h.b16 %v5231
    %v5517 = vunpack.c.l.b16 %v5232
    %v5518 = vunpack.c.h.b16 %v5232
    %v5519 = vunpack.c.l.b16 %v5233
    %v5520 = vunpack.c.h.b16 %v5233
    %v5521 = vunpack.c.l.b16 %v5234
    %v5522 = vunpack.c.h.b16 %v5234
    %v5523 = vunpack.c.l.b16 %v5235
    %v5524 = vunpack.c.h.b16 %v5235
    %v5525 = vunpack.c.l.b16 %v5236
    %v5526 = vunpack.c.h.b16 %v5236
    %v5527 = vunpack.c.l.b16 %v5237
    %v5528 = vunpack.c.h.b16 %v5237
    %v5529 = vunpack.c.l.b16 %v5238
    %v5530 = vunpack.c.h.b16 %v5238
    %v5531 = vunpack.c.l.b16 %v5239
    %v5532 = vunpack.c.h.b16 %v5239
    %v5533 = vunpack.c.l.b16 %v5240
    %v5534 = vunpack.c.h.b16 %v5240
    %v5535 = vunpack.c.l.b16 %v5241
    %v5536 = vunpack.c.h.b16 %v5241
    %v5537 = vunpack.c.l.b16 %v5242
    %v5538 = vunpack.c.h.b16 %v5242
    %v5539 = vunpack.c.l.b16 %v5243
    %v5540 = vunpack.c.h.b16 %v5243
    %v5541 = vunpack.c.l.b16 %v5244
    %v5542 = vunpack.c.h.b16 %v5244
    %v5543 = vunpack.c.l.b16 %v5245
    %v5544 = vunpack.c.h.b16 %v5245
    %v5545 = vunpack.c.l.b16 %v5246
    %v5546 = vunpack.c.h.b16 %v5246
    %v5547 = vunpack.c.l.b16 %v5247
    %v5548 = vunpack.c.h.b16 %v5247
    %v5549 = vunpack.c.l.b16 %v5248
    %v5550 = vunpack.c.h.b16 %v5248
    %v5551 = vunpack.c.l.b16 %v5249
    %v5552 = vunpack.c.h.b16 %v5249
    %v5553 = vunpack.c.l.b16 %v5250
    %v5554 = vunpack.c.h.b16 %v5250
    %v5555 = vunpack.c.l.b16 %v5251
    %v5556 = vunpack.c.h.b16 %v5251
    %v5557 = vunpack.c.l.b16 %v5252
    %v5558 = vunpack.c.h.b16 %v5252
    %v5559 = vunpack.c.l.b16 %v5253
    %v5560 = vunpack.c.h.b16 %v5253
    %v5561 = vunpack.c.l.b16 %v5254
    %v5562 = vunpack.c.h.b16 %v5254
    %v5563 = vunpack.c.l.b16 %v5255
    %v5564 = vunpack.c.h.b16 %v5255
    %v5565 = vunpack.c.l.b16 %v5256
    %v5566 = vunpack.c.h.b16 %v5256
    %v5567 = vunpack.c.l.b16 %v5257
    %v5568 = vunpack.c.h.b16 %v5257
    %v5569 = vunpack.c.l.b16 %v5258
    %v5570 = vunpack.c.h.b16 %v5258
    %v5571 = vunpack.c.l.b16 %v5259
    %v5572 = vunpack.c.h.b16 %v5259
    %v5573 = vunpack.c.l.b16 %v5260
    %v5574 = vunpack.c.h.b16 %v5260
    %v5575 = vunpack.c.l.b16 %v5261
    %v5576 = vunpack.c.h.b16 %v5261
    %v5577 = vunpack.c.l.b16 %v5262
    %v5578 = vunpack.c.h.b16 %v5262
    %v5579 = vunpack.c.l.b16 %v5263
    %v5580 = vunpack.c.h.b16 %v5263
    %v5581 = vunpack.c.l.b16 %v5264
    %v5582 = vunpack.c.h.b16 %v5264
    %v5583 = vunpack.c.l.b16 %v5265
    %v5584 = vunpack.c.h.b16 %v5265
    %v5585 = vunpack.c.l.b16 %v5266
    %v5586 = vunpack.c.h.b16 %v5266
    %v5587 = vunpack.c.l.b16 %v5267
    %v5588 = vunpack.c.h.b16 %v5267
    %v5589 = vunpack.c.l.b16 %v5268
    %v5590 = vunpack.c.h.b16 %v5268
    %v5591 = vunpack.c.l.b16 %v5269
    %v5592 = vunpack.c.h.b16 %v5269
    %v5593 = vunpack.c.l.b16 %v5270
    %v5594 = vunpack.c.h.b16 %v5270
    %v5595 = vunpack.c.l.b16 %v5271
    %v5596 = vunpack.c.h.b16 %v5271
    %v5597 = vunpack.c.l.b16 %v5272
    %v5598 = vunpack.c.h.b16 %v5272
    %v5599 = vunpack.c.l.b16 %v5273
    %v5600 = vunpack.c.h.b16 %v5273
    %v5601 = vunpack.c.l.b16 %v5274
    %v5602 = vunpack.c.h.b16 %v5274
    %v5603 = vunpack.c.l.b16 %v5275
    %v5604 = vunpack.c.h.b16 %v5275
    %v5605 = vunpack.c.l.b16 %v5276
    %v5606 = vunpack.c.h.b16 %v5276
    %v5607 = vunpack.c.l.b16 %v5277
    %v5608 = vunpack.c.h.b16 %v5277
    %v5609 = vunpack.c.l.b16 %v5278
    %v5610 = vunpack.c.h.b16 %v5278
    %v5611 = vunpack.c.l.b16 %v5279
    %v5612 = vunpack.c.h.b16 %v5279
    %v5613 = vunpack.c.l.b16 %v5280
    %v5614 = vunpack.c.h.b16 %v5280
    %v5615 = vunpack.c.l.b16 %v5281
    %v5616 = vunpack.c.h.b16 %v5281
    %v5617 = vunpack.c.l.b16 %v5282
    %v5618 = vunpack.c.h.b16 %v5282
    %v5619 = vunpack.c.l.b16 %v5283
    %v5620 = vunpack.c.h.b16 %v5283
    %v5621 = vunpack.c.l.b16 %v5284
    %v5622 = vunpack.c.h.b16 %v5284
    %v5623 = vunpack.c.l.b16 %v5285
    %v5624 = vunpack.c.h.b16 %v5285
    %v5625 = vunpack.c.l.b16 %v5286
    %v5626 = vunpack.c.h.b16 %v5286
    %v5627 = vunpack.c.l.b16 %v5287
    %v5628 = vunpack.c.h.b16 %v5287
    %v5629 = vunpack.c.l.b16 %v5288
    %v5630 = vunpack.c.h.b16 %v5288
    %v5631 = vunpack.c.l.b16 %v5289
    %v5632 = vunpack.c.h.b16 %v5289
    %v5633 = vunpack.c.l.b16 %v5290
    %v5634 = vunpack.c.h.b16 %v5290
    %v5635 = vunpack.c.l.b16 %v5291
    %v5636 = vunpack.c.h.b16 %v5291
    %v5637 = vunpack.c.l.b16 %v5292
    %v5638 = vunpack.c.h.b16 %v5292
    %v5639 = vunpack.c.l.b16 %v5293
    %v5640 = vunpack.c.h.b16 %v5293
    %v5641 = vunpack.c.l.b16 %v5294
    %v5642 = vunpack.c.h.b16 %v5294
    %v5643 = vunpack.c.l.b16 %v5295
    %v5644 = vunpack.c.h.b16 %v5295
    %v5645 = vunpack.c.l.b16 %v5296
    %v5646 = vunpack.c.h.b16 %v5296
    %v5647 = vunpack.c.l.b16 %v5297
    %v5648 = vunpack.c.h.b16 %v5297
    %v5649 = vunpack.c.l.b16 %v5298
    %v5650 = vunpack.c.h.b16 %v5298
    %v5651 = vunpack.c.l.b16 %v5299
    %v5652 = vunpack.c.h.b16 %v5299
    %v5653 = vunpack.c.l.b16 %v5300
    %v5654 = vunpack.c.h.b16 %v5300
    %v5655 = vunpack.c.l.b16 %v5301
    %v5656 = vunpack.c.h.b16 %v5301
    %v5657 = vunpack.c.l.b16 %v5302
    %v5658 = vunpack.c.h.b16 %v5302
    %v5659 = vunpack.c.l.b16 %v5303
    %v5660 = vunpack.c.h.b16 %v5303
    %v5661 = vunpack.c.l.b16 %v5304
    %v5662 = vunpack.c.h.b16 %v5304
    %v5663 = vunpack.c.l.b16 %v5305
    %v5664 = vunpack.c.h.b16 %v5305
    %v5665 = vunpack.c.l.b16 %v5306
    %v5666 = vunpack.c.h.b16 %v5306
    %v5667 = vunpack.c.l.b16 %v5307
    %v5668 = vunpack.c.h.b16 %v5307
    %v5669 = vunpack.c.l.b16 %v5308
    %v5670 = vunpack.c.h.b16 %v5308
    %v5671 = vunpack.c.l.b16 %v5309
    %v5672 = vunpack.c.h.b16 %v5309
    %v5673 = vunpack.c.l.b16 %v5310
    %v5674 = vunpack.c.h.b16 %v5310
    %v5675 = vunpack.c.l.b16 %v5311
    %v5676 = vunpack.c.h.b16 %v5311
    %v5677 = vunpack.c.l.b16 %v5312
    %v5678 = vunpack.c.h.b16 %v5312
    %v5679 = vunpack.c.l.b16 %v5313
    %v5680 = vunpack.c.h.b16 %v5313
    %v5681 = vunpack.c.l.b16 %v5314
    %v5682 = vunpack.c.h.b16 %v5314
    %v5683 = vunpack.c.l.b16 %v5315
    %v5684 = vunpack.c.h.b16 %v5315
    %v5685 = vunpack.c.l.b16 %v5316
    %v5686 = vunpack.c.h.b16 %v5316
    %v5687 = vunpack.c.l.b16 %v5317
    %v5688 = vunpack.c.h.b16 %v5317
    %v5689 = vunpack.c.l.b16 %v5318
    %v5690 = vunpack.c.h.b16 %v5318
    %v5691 = vunpack.c.l.b16 %v5319
    %v5692 = vunpack.c.h.b16 %v5319
    %v5693 = vunpack.c.l.b16 %v5320
    %v5694 = vunpack.c.h.b16 %v5320
    %v5695 = vunpack.c.l.b16 %v5321
    %v5696 = vunpack.c.h.b16 %v5321
    %v5697 = vunpack.c.l.b16 %v5322
    %v5698 = vunpack.c.h.b16 %v5322
    %v5699 = vunpack.c.l.b16 %v5323
    %v5700 = vunpack.c.h.b16 %v5323
    %v5701 = vunpack.c.l.b16 %v5324
    %v5702 = vunpack.c.h.b16 %v5324
    %v5703 = vunpack.c.l.b16 %v5325
    %v5704 = vunpack.c.h.b16 %v5325
    %v5705 = vunpack.c.l.b16 %v5326
    %v5706 = vunpack.c.h.b16 %v5326
    %v5707 = vunpack.c.l.b16 %v5327
    %v5708 = vunpack.c.h.b16 %v5327
    %v5709 = vunpack.c.l.b16 %v5328
    %v5710 = vunpack.c.h.b16 %v5328
    %v5711 = vunpack.c.l.b16 %v5329
    %v5712 = vunpack.c.h.b16 %v5329
    %v5713 = vunpack.c.l.b16 %v5330
    %v5714 = vunpack.c.h.b16 %v5330
    %v5715 = vunpack.c.l.b16 %v5331
    %v5716 = vunpack.c.h.b16 %v5331
    %v5717 = vunpack.c.l.b16 %v5332
    %v5718 = vunpack.c.h.b16 %v5332
    %v5719 = vunpack.c.l.b16 %v5333
    %v5720 = vunpack.c.h.b16 %v5333
    %v5721 = vunpack.c.l.b16 %v5334
    %v5722 = vunpack.c.h.b16 %v5334
    %v5723 = vunpack.c.l.b16 %v5335
    %v5724 = vunpack.c.h.b16 %v5335
    %v5725 = vunpack.c.l.b16 %v5336
    %v5726 = vunpack.c.h.b16 %v5336
    %v5727 = vunpack.c.l.b16 %v5337
    %v5728 = vunpack.c.h.b16 %v5337
    %v5729 = vunpack.c.l.b16 %v5338
    %v5730 = vunpack.c.h.b16 %v5338
    %v5731 = vunpack.c.l.b16 %v5339
    %v5732 = vunpack.c.h.b16 %v5339
    %v5733 = vunpack.c.l.b16 %v5340
    %v5734 = vunpack.c.h.b16 %v5340
    %v5735 = vunpack.c.l.b16 %v5341
    %v5736 = vunpack.c.h.b16 %v5341
    %v5737 = vunpack.c.l.b16 %v5342
    %v5738 = vunpack.c.h.b16 %v5342
    %v5739 = vpack.c.b16 %v5485, %v5483
    %v5740 = vpack.c.b16 %v5486, %v5484
    %v5741 = vpack.c.b16 %v5489, %v5487
    %v5742 = vpack.c.b16 %v5490, %v5488
    %v5743 = vpack.c.b16 %v5493, %v5491
    %v5744 = vpack.c.b16 %v5494, %v5492
    %v5745 = vpack.c.b16 %v5497, %v5495
    %v5746 = vpack.c.b16 %v5498, %v5496
    %v5747 = vpack.c.b16 %v5501, %v5499
    %v5748 = vpack.c.b16 %v5502, %v5500
    %v5749 = vpack.c.b16 %v5505, %v5503
    %v5750 = vpack.c.b16 %v5506, %v5504
    %v5751 = vpack.c.b16 %v5509, %v5507
    %v5752 = vpack.c.b16 %v5510, %v5508
    %v5753 = vpack.c.b16 %v5513, %v5511
    %v5754 = vpack.c.b16 %v5514, %v5512
    %v5755 = vpack.c.b16 %v5517, %v5515
    %v5756 = vpack.c.b16 %v5518, %v5516
    %v5757 = vpack.c.b16 %v5521, %v5519
    %v5758 = vpack.c.b16 %v5522, %v5520
    %v5759 = vpack.c.b16 %v5525, %v5523
    %v5760 = vpack.c.b16 %v5526, %v5524
    %v5761 = vpack.c.b16 %v5529, %v5527
    %v5762 = vpack.c.b16 %v5530, %v5528
    %v5763 = vpack.c.b16 %v5533, %v5531
    %v5764 = vpack.c.b16 %v5534, %v5532
    %v5765 = vpack.c.b16 %v5537, %v5535
    %v5766 = vpack.c.b16 %v5538, %v5536
    %v5767 = vpack.c.b16 %v5541, %v5539
    %v5768 = vpack.c.b16 %v5542, %v5540
    %v5769 = vpack.c.b16 %v5545, %v5543
    %v5770 = vpack.c.b16 %v5546, %v5544
    %v5771 = vpack.c.b16 %v5549, %v5547
    %v5772 = vpack.c.b16 %v5550, %v5548
    %v5773 = vpack.c.b16 %v5553, %v5551
    %v5774 = vpack.c.b16 %v5554, %v5552
    %v5775 = vpack.c.b16 %v5557, %v5555
    %v5776 = vpack.c.b16 %v5558, %v5556
    %v5777 = vpack.c.b16 %v5561, %v5559
    %v5778 = vpack.c.b16 %v5562, %v5560
    %v5779 = vpack.c.b16 %v5565, %v5563
    %v5780 = vpack.c.b16 %v5566, %v5564
    %v5781 = vpack.c.b16 %v5569, %v5567
    %v5782 = vpack.c.b16 %v5570, %v5568
    %v5783 = vpack.c.b16 %v5573, %v5571
    %v5784 = vpack.c.b16 %v5574, %v5572
    %v5785 = vpack.c.b16 %v5577, %v5575
    %v5786 = vpack.c.b16 %v5578, %v5576
    %v5787 = vpack.c.b16 %v5581, %v5579
    %v5788 = vpack.c.b16 %v5582, %v5580
    %v5789 = vpack.c.b16 %v5585, %v5583
    %v5790 = vpack.c.b16 %v5586, %v5584
    %v5791 = vpack.c.b16 %v5589, %v5587
    %v5792 = vpack.c.b16 %v5590, %v5588
    %v5793 = vpack.c.b16 %v5593, %v5591
    %v5794 = vpack.c.b16 %v5594, %v5592
    %v5795 = vpack.c.b16 %v5597, %v5595
    %v5796 = vpack.c.b16 %v5598, %v5596
    %v5797 = vpack.c.b16 %v5601, %v5599
    %v5798 = vpack.c.b16 %v5602, %v5600
    %v5799 = vpack.c.b16 %v5605, %v5603
    %v5800 = vpack.c.b16 %v5606, %v5604
    %v5801 = vpack.c.b16 %v5609, %v5607
    %v5802 = vpack.c.b16 %v5610, %v5608
    %v5803 = vpack.c.b16 %v5613, %v5611
    %v5804 = vpack.c.b16 %v5614, %v5612
    %v5805 = vpack.c.b16 %v5617, %v5615
    %v5806 = vpack.c.b16 %v5618, %v5616
    %v5807 = vpack.c.b16 %v5621, %v5619
    %v5808 = vpack.c.b16 %v5622, %v5620
    %v5809 = vpack.c.b16 %v5625, %v5623
    %v5810 = vpack.c.b16 %v5626, %v5624
    %v5811 = vpack.c.b16 %v5629, %v5627
    %v5812 = vpack.c.b16 %v5630, %v5628
    %v5813 = vpack.c.b16 %v5633, %v5631
    %v5814 = vpack.c.b16 %v5634, %v5632
    %v5815 = vpack.c.b16 %v5637, %v5635
    %v5816 = vpack.c.b16 %v5638, %v5636
    %v5817 = vpack.c.b16 %v5641, %v5639
    %v5818 = vpack.c.b16 %v5642, %v5640
    %v5819 = vpack.c.b16 %v5645, %v5643
    %v5820 = vpack.c.b16 %v5646, %v5644
    %v5821 = vpack.c.b16 %v5649, %v5647
    %v5822 = vpack.c.b16 %v5650, %v5648
    %v5823 = vpack.c.b16 %v5653, %v5651
    %v5824 = vpack.c.b16 %v5654, %v5652
    %v5825 = vpack.c.b16 %v5657, %v5655
    %v5826 = vpack.c.b16 %v5658, %v5656
    %v5827 = vpack.c.b16 %v5661, %v5659
    %v5828 = vpack.c.b16 %v5662, %v5660
    %v5829 = vpack.c.b16 %v5665, %v5663
    %v5830 = vpack.c.b16 %v5666, %v5664
    %v5831 = vpack.c.b16 %v5669, %v5667
    %v5832 = vpack.c.b16 %v5670, %v5668
    %v5833 = vpack.c.b16 %v5673, %v5671
    %v5834 = vpack.c.b16 %v5674, %v5672
    %v5835 = vpack.c.b16 %v5677, %v5675
    %v5836 = vpack.c.b16 %v5678, %v5676
    %v5837 = vpack.c.b16 %v5681, %v5679
    %v5838 = vpack.c.b16 %v5682, %v5680
    %v5839 = vpack.c.b16 %v5685, %v5683
    %v5840 = vpack.c.b16 %v5686, %v5684
    %v5841 = vpack.c.b16 %v5689, %v5687
    %v5842 = vpack.c.b16 %v5690, %v5688
    %v5843 = vpack.c.b16 %v5693, %v5691
    %v5844 = vpack.c.b16 %v5694, %v5692
    %v5845 = vpack.c.b16 %v5697, %v5695
    %v5846 = vpack.c.b16 %v5698, %v5696
    %v5847 = vpack.c.b16 %v5701, %v5699
    %v5848 = vpack.c.b16 %v5702, %v5700
    %v5849 = vpack.c.b16 %v5705, %v5703
    %v5850 = vpack.c.b16 %v5706, %v5704
    %v5851 = vpack.c.b16 %v5709, %v5707
    %v5852 = vpack.c.b16 %v5710, %v5708
    %v5853 = vpack.c.b16 %v5713, %v5711
    %v5854 = vpack.c.b16 %v5714, %v5712
    %v5855 = vpack.c.b16 %v5717, %v5715
    %v5856 = vpack.c.b16 %v5718, %v5716
    %v5857 = vpack.c.b16 %v5721, %v5719
    %v5858 = vpack.c.b16 %v5722, %v5720
    %v5859 = vpack.c.b16 %v5725, %v5723
    %v5860 = vpack.c.b16 %v5726, %v5724
    %v5861 = vpack.c.b16 %v5729, %v5727
    %v5862 = vpack.c.b16 %v5730, %v5728
    %v5863 = vpack.c.b16 %v5733, %v5731
    %v5864 = vpack.c.b16 %v5734, %v5732
    %v5865 = vpack.c.b16 %v5737, %v5735
    %v5866 = vpack.c.b16 %v5738, %v5736
    %5995 = vmatprep.subr.bf16.mxu0 %v5740
    %5996 = vmatpush1.bf16.msra.mxu0 %v5739
    %5997 = vmatprep.subr.bf16.mxu0 %v5742
    %5998 = vmatpush1.bf16.msra.mxu0 %v5741
    %5999 = vmatprep.subr.bf16.mxu0 %v5744
    %6000 = vmatpush1.bf16.msra.mxu0 %v5743
    %6001 = vmatprep.subr.bf16.mxu0 %v5746
    %6002 = vmatpush1.bf16.msra.mxu0 %v5745
    %6003 = vmatprep.subr.bf16.mxu0 %v5748
    %6004 = vmatpush1.bf16.msra.mxu0 %v5747
    %6005 = vmatprep.subr.bf16.mxu0 %v5750
    %6006 = vmatpush1.bf16.msra.mxu0 %v5749
    %6007 = vmatprep.subr.bf16.mxu0 %v5752
    %6008 = vmatpush1.bf16.msra.mxu0 %v5751
    %6009 = vmatprep.subr.bf16.mxu0 %v5754
    %6010 = vmatpush1.bf16.msra.mxu0 %v5753
    %6011 = vmatprep.subr.bf16.mxu0 %v5756
    %6012 = vmatpush1.bf16.msra.mxu0 %v5755
    %6013 = vmatprep.subr.bf16.mxu0 %v5758
    %6014 = vmatpush1.bf16.msra.mxu0 %v5757
    %6015 = vmatprep.subr.bf16.mxu0 %v5760
    %6016 = vmatpush1.bf16.msra.mxu0 %v5759
    %6017 = vmatprep.subr.bf16.mxu0 %v5762
    %6018 = vmatpush1.bf16.msra.mxu0 %v5761
    %6019 = vmatprep.subr.bf16.mxu0 %v5764
    %6020 = vmatpush1.bf16.msra.mxu0 %v5763
    %6021 = vmatprep.subr.bf16.mxu0 %v5766
    %6022 = vmatpush1.bf16.msra.mxu0 %v5765
    %6023 = vmatprep.subr.bf16.mxu0 %v5768
    %6024 = vmatpush1.bf16.msra.mxu0 %v5767
    %6025 = vmatprep.subr.bf16.mxu0 %v5770
    %6026 = vmatpush1.bf16.msra.mxu0 %v5769
    %6027 = vmatprep.mubr.bf16.mxu0 %v5208
    %6028 = vmatmul.mubr.bf16.gmra.mrb[0].mxu0 %v5207
    %v6029 = vpop.f32.mrb[0].mxu0
    %v6030 = vadd.f32 %v5348, %v6029
    %v6031 = vpop.f32.mrb[0].mxu0
    %v6032 = vadd.f32 %v5352, %v6031
    %v6033 = vpop.f32.mrb[0].mxu0
    %v6034 = vadd.f32 %v5348, %v6033
    %v6035 = vpop.f32.mrb[0].mxu0
    %v6036 = vadd.f32 %v5352, %v6035
    %6037 = vdwg.mxu0
    %6038 = vmatprep.subr.bf16.mxu0 %v5772
    %6039 = vmatpush1.bf16.msra.mxu0 %v5771
    %6040 = vmatprep.subr.bf16.mxu0 %v5774
    %6041 = vmatpush1.bf16.msra.mxu0 %v5773
    %6042 = vmatprep.subr.bf16.mxu0 %v5776
    %6043 = vmatpush1.bf16.msra.mxu0 %v5775
    %6044 = vmatprep.subr.bf16.mxu0 %v5778
    %6045 = vmatpush1.bf16.msra.mxu0 %v5777
    %6046 = vmatprep.subr.bf16.mxu0 %v5780
    %6047 = vmatpush1.bf16.msra.mxu0 %v5779
    %6048 = vmatprep.subr.bf16.mxu0 %v5782
    %6049 = vmatpush1.bf16.msra.mxu0 %v5781
    %6050 = vmatprep.subr.bf16.mxu0 %v5784
    %6051 = vmatpush1.bf16.msra.mxu0 %v5783
    %6052 = vmatprep.subr.bf16.mxu0 %v5786
    %6053 = vmatpush1.bf16.msra.mxu0 %v5785
    %6054 = vmatprep.subr.bf16.mxu0 %v5788
    %6055 = vmatpush1.bf16.msra.mxu0 %v5787
    %6056 = vmatprep.subr.bf16.mxu0 %v5790
    %6057 = vmatpush1.bf16.msra.mxu0 %v5789
    %6058 = vmatprep.subr.bf16.mxu0 %v5792
    %6059 = vmatpush1.bf16.msra.mxu0 %v5791
    %6060 = vmatprep.subr.bf16.mxu0 %v5794
    %6061 = vmatpush1.bf16.msra.mxu0 %v5793
    %6062 = vmatprep.subr.bf16.mxu0 %v5796
    %6063 = vmatpush1.bf16.msra.mxu0 %v5795
    %6064 = vmatprep.subr.bf16.mxu0 %v5798
    %6065 = vmatpush1.bf16.msra.mxu0 %v5797
    %6066 = vmatprep.subr.bf16.mxu0 %v5800
    %6067 = vmatpush1.bf16.msra.mxu0 %v5799
    %6068 = vmatprep.subr.bf16.mxu0 %v5802
    %6069 = vmatpush1.bf16.msra.mxu0 %v5801
    %6070 = vmatprep.mubr.bf16.mxu0 %v5210
    %6071 = vmatmul.mubr.bf16.gmra.mrb[0].mxu0 %v5209
    %v6072 = vpop.f32.mrb[0].mxu0
    %v6073 = vadd.f32 %v6030, %v6072
    %v6074 = vpop.f32.mrb[0].mxu0
    %v6075 = vadd.f32 %v6032, %v6074
    %v6076 = vpop.f32.mrb[0].mxu0
    %v6077 = vadd.f32 %v6034, %v6076
    %v6078 = vpop.f32.mrb[0].mxu0
    %v6079 = vadd.f32 %v6036, %v6078
    %6080 = vdwg.mxu0
    %6081 = vmatprep.subr.bf16.mxu0 %v5804
    %6082 = vmatpush1.bf16.msra.mxu0 %v5803
    %6083 = vmatprep.subr.bf16.mxu0 %v5806
    %6084 = vmatpush1.bf16.msra.mxu0 %v5805
    %6085 = vmatprep.subr.bf16.mxu0 %v5808
    %6086 = vmatpush1.bf16.msra.mxu0 %v5807
    %6087 = vmatprep.subr.bf16.mxu0 %v5810
    %6088 = vmatpush1.bf16.msra.mxu0 %v5809
    %6089 = vmatprep.subr.bf16.mxu0 %v5812
    %6090 = vmatpush1.bf16.msra.mxu0 %v5811
    %6091 = vmatprep.subr.bf16.mxu0 %v5814
    %6092 = vmatpush1.bf16.msra.mxu0 %v5813
    %6093 = vmatprep.subr.bf16.mxu0 %v5816
    %6094 = vmatpush1.bf16.msra.mxu0 %v5815
    %6095 = vmatprep.subr.bf16.mxu0 %v5818
    %6096 = vmatpush1.bf16.msra.mxu0 %v5817
    %6097 = vmatprep.subr.bf16.mxu0 %v5820
    %6098 = vmatpush1.bf16.msra.mxu0 %v5819
    %6099 = vmatprep.subr.bf16.mxu0 %v5822
    %6100 = vmatpush1.bf16.msra.mxu0 %v5821
    %6101 = vmatprep.subr.bf16.mxu0 %v5824
    %6102 = vmatpush1.bf16.msra.mxu0 %v5823
    %6103 = vmatprep.subr.bf16.mxu0 %v5826
    %6104 = vmatpush1.bf16.msra.mxu0 %v5825
    %6105 = vmatprep.subr.bf16.mxu0 %v5828
    %6106 = vmatpush1.bf16.msra.mxu0 %v5827
    %6107 = vmatprep.subr.bf16.mxu0 %v5830
    %6108 = vmatpush1.bf16.msra.mxu0 %v5829
    %6109 = vmatprep.subr.bf16.mxu0 %v5832
    %6110 = vmatpush1.bf16.msra.mxu0 %v5831
    %6111 = vmatprep.subr.bf16.mxu0 %v5834
    %6112 = vmatpush1.bf16.msra.mxu0 %v5833
    %6113 = vmatprep.mubr.bf16.mxu0 %v5212
    %6114 = vmatmul.mubr.bf16.gmra.mrb[0].mxu0 %v5211
    %v6115 = vpop.f32.mrb[0].mxu0
    %v6116 = vadd.f32 %v6073, %v6115
    %v6117 = vpop.f32.mrb[0].mxu0
    %v6118 = vadd.f32 %v6075, %v6117
    %v6119 = vpop.f32.mrb[0].mxu0
    %v6120 = vadd.f32 %v6077, %v6119
    %v6121 = vpop.f32.mrb[0].mxu0
    %v6122 = vadd.f32 %v6079, %v6121
    %6123 = vdwg.mxu0
    %6124 = vmatprep.subr.bf16.mxu0 %v5836
    %6125 = vmatpush1.bf16.msra.mxu0 %v5835
    %6126 = vmatprep.subr.bf16.mxu0 %v5838
    %6127 = vmatpush1.bf16.msra.mxu0 %v5837
    %6128 = vmatprep.subr.bf16.mxu0 %v5840
    %6129 = vmatpush1.bf16.msra.mxu0 %v5839
    %6130 = vmatprep.subr.bf16.mxu0 %v5842
    %6131 = vmatpush1.bf16.msra.mxu0 %v5841
    %6132 = vmatprep.subr.bf16.mxu0 %v5844
    %6133 = vmatpush1.bf16.msra.mxu0 %v5843
    %6134 = vmatprep.subr.bf16.mxu0 %v5846
    %6135 = vmatpush1.bf16.msra.mxu0 %v5845
    %6136 = vmatprep.subr.bf16.mxu0 %v5848
    %6137 = vmatpush1.bf16.msra.mxu0 %v5847
    %6138 = vmatprep.subr.bf16.mxu0 %v5850
    %6139 = vmatpush1.bf16.msra.mxu0 %v5849
    %6140 = vmatprep.subr.bf16.mxu0 %v5852
    %6141 = vmatpush1.bf16.msra.mxu0 %v5851
    %6142 = vmatprep.subr.bf16.mxu0 %v5854
    %6143 = vmatpush1.bf16.msra.mxu0 %v5853
    %6144 = vmatprep.subr.bf16.mxu0 %v5856
    %6145 = vmatpush1.bf16.msra.mxu0 %v5855
    %6146 = vmatprep.subr.bf16.mxu0 %v5858
    %6147 = vmatpush1.bf16.msra.mxu0 %v5857
    %6148 = vmatprep.subr.bf16.mxu0 %v5860
    %6149 = vmatpush1.bf16.msra.mxu0 %v5859
    %6150 = vmatprep.subr.bf16.mxu0 %v5862
    %6151 = vmatpush1.bf16.msra.mxu0 %v5861
    %6152 = vmatprep.subr.bf16.mxu0 %v5864
    %6153 = vmatpush1.bf16.msra.mxu0 %v5863
    %6154 = vmatprep.subr.bf16.mxu0 %v5866
    %6155 = vmatpush1.bf16.msra.mxu0 %v5865
    %6156 = vmatprep.mubr.bf16.mxu0 %v5214
    %6157 = vmatmul.mubr.bf16.gmra.mrb[0].mxu0 %v5213
    %v6158 = vpop.f32.mrb[0].mxu0
    %v6159 = vadd.f32 %v6116, %v6158
    %v6160 = vpop.f32.mrb[0].mxu0
    %v6161 = vadd.f32 %v6118, %v6160
    %v6162 = vpop.f32.mrb[0].mxu0
    %v6163 = vadd.f32 %v6120, %v6162
    %v6164 = vpop.f32.mrb[0].mxu0
    %v6165 = vadd.f32 %v6122, %v6164
    %6166 = vdwg.mxu0
    %v6167 = vtanh.pop %v6159
    %v6168 = vtanh.pop %v6161
    %v6169 = vtanh.pop %v6163
    %v6170 = vtanh.pop %v6165
    %6171 = vst [vmem:[#allocation13] sm:$0xff] %v6167
    %6172 = vst [vmem:[#allocation13 + $0x8] sm:$0xff] %v6168
    %6173 = vst [vmem:[#allocation13 + $0x10] sm:$0xff] %v6169
    %6174 = vst [vmem:[#allocation13 + $0x18] sm:$0xff] %v6170
    // Predicated region
    $region62: #{tpu_custom_call.1} parent=1 // pred_check
      _
    $region63: #{tpu_custom_call.1} parent=1 // pred_check_branch
      %6176 = sbr.rel (0) target = $region65
    $region64: #{tpu_custom_call.1} parent=1 // pred_region
      %s6178 = ssub.s32 512, 512
      %6179 = vsyncadd [#allocation4], %s6178
      %s6180 = sshll.u32 [#allocation13], 4
      %s6181 = int_to_ptr.vmem [resolvable:$true] %s6180
      %6186 = dma.vmem_to_hbm [thread:$0]  %s6181, 512, %s9, [#allocation4], 256, 256, 16
    $region65: #{tpu_custom_call.1} parent=1 // pred_fallthru
      _
    // Predicated region
    $region66: #{tpu_custom_call.1} parent=1 // pred_check
      _
    $region67: #{tpu_custom_call.1} parent=1 // pred_check_branch
      %6188 = sbr.rel (0) target = $region69
    $region68: #{tpu_custom_call.1} parent=1 // pred_region
      %6189 = dma.done [#allocation4], 512
    $region69: #{tpu_custom_call.1} parent=1 // pred_fallthru
      _
    %6190 = vsyncpa [#allocation3], 1
    %6191 = vsyncpa [#allocation6], 1
    %6192 = vsyncpa [#allocation9], 1
    %6193 = vsyncpa [#allocation12], 1
    %6194 = vsyncpa [#allocation4], 1

// kernel: tpu_custom_call.1
$region0: #{tpu_custom_call.1}
  #allocation0 [shape = 'u32[]', space=smem, size = 0x4, offset = 0x4, fixed_abs, tag = 'smem constant byte address 0x4 - core index']
  #allocation1 [shape = 'u32[144,128]{1,0:T(1,128)}', space=vmem, size = 0x12000, scoped, tag = 'internal scratch']
  %s0 = inlined_call_operand.hbm [shape: bf16[16,256], index: 0, kind: input, shape index: {}]
  %s1 = inlined_call_operand.hbm [shape: bf16[16,1024], index: 1, kind: input, shape index: {}]
  %s2 = inlined_call_operand.hbm [shape: bf16[256,1024], index: 2, kind: input, shape index: {}]
  %s3 = inlined_call_operand.hbm [shape: bf16[1024,512], index: 3, kind: input, shape index: {}]
  %s4 = inlined_call_operand.vmem [shape: f32[1,512], index: 4, kind: input, shape index: {}]
  %s5 = inlined_call_operand.hbm [shape: bf16[512,1024], index: 5, kind: input, shape index: {}]
  %s6 = inlined_call_operand.vmem [shape: f32[1,1024], index: 6, kind: input, shape index: {}]
  %s7 = inlined_call_operand.hbm [shape: bf16[1024,256], index: 7, kind: input, shape index: {}]
  %s8 = inlined_call_operand.vmem [shape: f32[1,256], index: 8, kind: input, shape index: {}]
  %s9 = inlined_call_operand.hbm [shape: f32[16,256], index: 9, kind: output, shape index: {}]
  %s10 = sld [smem:[#allocation0]]
  $region70: #{tpu_custom_call.1} parent=0
    _
  %s12 = ssub.s32 1, %s10
  %s13 = scalar_select 0, %s12, %s10
  $region1: #{tpu_custom_call.1} parent=0
    #allocation2 [shape = 'u8[8192]{0}', space=vmem, size = 0x2000, scoped, tag = 'input window, operand 0, single buffered']
    #allocation3 [shape = 's32[1]{0}', space=sflag, size = 0x4, scoped, tag = 'scoped memory for tpu_custom_call.1']
    #allocation4 [shape = 's32[1]{0}', space=sflag, size = 0x4, scoped, tag = 'scoped memory for tpu_custom_call.1']
    #allocation5 [shape = 'u8[32768]{0}', space=vmem, size = 0x8000, scoped, tag = 'input window, operand 1, single buffered']
    #allocation6 [shape = 's32[1]{0}', space=sflag, size = 0x4, scoped, tag = 'scoped memory for tpu_custom_call.1']
    #allocation7 [shape = 'u8[524288]{0}', space=vmem, size = 0x80000, scoped, tag = 'input window, operand 2, single buffered']
    #allocation8 [shape = 'u8[1048576]{0}', space=vmem, size = 0x100000, scoped, tag = 'input window, operand 3, single buffered']
    #allocation9 [shape = 's32[1]{0}', space=sflag, size = 0x4, scoped, tag = 'scoped memory for tpu_custom_call.1']
    #allocation10 [shape = 'u8[1048576]{0}', space=vmem, size = 0x100000, scoped, tag = 'input window, operand 5, single buffered']
    #allocation11 [shape = 'u8[524288]{0}', space=vmem, size = 0x80000, scoped, tag = 'input window, operand 7, single buffered']
    #allocation12 [shape = 's32[1]{0}', space=sflag, size = 0x4, scoped, tag = 'scoped memory for tpu_custom_call.1']
    #allocation13 [shape = 'u8[16384]{0}', space=vmem, size = 0x4000, scoped, tag = 'output window, operand 0, single buffered']
    %14 = vsyncpa [#allocation3], 0
    %15 = vsyncpa [#allocation6], 0
    %16 = vsyncpa [#allocation9], 0
    %17 = vsyncpa [#allocation12], 0
    %18 = vsyncpa [#allocation4], 0
    // Predicated region
    $region2: #{tpu_custom_call.1} parent=1 // pred_check
      _
    $region3: #{tpu_custom_call.1} parent=1 // pred_check_branch
      %20 = sbr.rel (0) target = $region5
    $region4: #{tpu_custom_call.1} parent=1 // pred_region
      %s22 = ssub.s32 256, 256
      %23 = vsyncadd [#allocation3], %s22
      %s24 = sshll.u32 [#allocation2], 4
      %s25 = int_to_ptr.vmem [resolvable:$true] %s24
      %30 = dma.hbm_to_vmem [thread:$0]  %s0, 256, %s25, [#allocation3], 128, 128, 8
    $region5: #{tpu_custom_call.1} parent=1 // pred_fallthru
      _
    // Predicated region
    $region6: #{tpu_custom_call.1} parent=1 // pred_check
      _
    $region7: #{tpu_custom_call.1} parent=1 // pred_check_branch
      %32 = sbr.rel (0) target = $region9
    $region8: #{tpu_custom_call.1} parent=1 // pred_region
      %s34 = ssub.s32 1024, 1024
      %35 = vsyncadd [#allocation6], %s34
      %s36 = sshll.u32 [#allocation5], 4
      %s37 = int_to_ptr.vmem [resolvable:$true] %s36
      %42 = dma.hbm_to_vmem [thread:$0]  %s1, 1024, %s37, [#allocation6], 512, 512, 32
    $region9: #{tpu_custom_call.1} parent=1 // pred_fallthru
      _
    // Predicated region
    $region10: #{tpu_custom_call.1} parent=1 // pred_check
      _
    $region11: #{tpu_custom_call.1} parent=1 // pred_check_branch
      %44 = sbr.rel (0) target = $region13
    $region12: #{tpu_custom_call.1} parent=1 // pred_region
      %s46 = ssub.s32 16384, 16384
      %47 = vsyncadd [#allocation6], %s46
      %s48 = sshll.u32 [#allocation7], 4
      %s49 = int_to_ptr.vmem [resolvable:$true] %s48
      %54 = dma.hbm_to_vmem [thread:$0]  %s2, 16384, %s49, [#allocation6], 512, 512, 32
    $region13: #{tpu_custom_call.1} parent=1 // pred_fallthru
      _
    // Predicated region
    $region14: #{tpu_custom_call.1} parent=1 // pred_check
      _
    $region15: #{tpu_custom_call.1} parent=1 // pred_check_branch
      %56 = sbr.rel (0) target = $region17
    $region16: #{tpu_custom_call.1} parent=1 // pred_region
      %s58 = ssub.s32 32768, 32768
      %59 = vsyncadd [#allocation9], %s58
      %s60 = sshll.u32 [#allocation8], 4
      %s61 = int_to_ptr.vmem [resolvable:$true] %s60
      %66 = dma.hbm_to_vmem [thread:$0]  %s3, 32768, %s61, [#allocation9], 256, 256, 16
    $region17: #{tpu_custom_call.1} parent=1 // pred_fallthru
      _
    // Predicated region
    $region18: #{tpu_custom_call.1} parent=1 // pred_check
      _
    $region19: #{tpu_custom_call.1} parent=1 // pred_check_branch
      %68 = sbr.rel (0) target = $region21
    $region20: #{tpu_custom_call.1} parent=1 // pred_region
      _
    $region21: #{tpu_custom_call.1} parent=1 // pred_fallthru
      _
    // Predicated region
    $region22: #{tpu_custom_call.1} parent=1 // pred_check
      _
    $region23: #{tpu_custom_call.1} parent=1 // pred_check_branch
      %70 = sbr.rel (0) target = $region25
    $region24: #{tpu_custom_call.1} parent=1 // pred_region
      %s72 = ssub.s32 32768, 32768
      %73 = vsyncadd [#allocation9], %s72
      %s74 = sshll.u32 [#allocation10], 4
      %s75 = int_to_ptr.vmem [resolvable:$true] %s74
      %80 = dma.hbm_to_vmem [thread:$0]  %s5, 32768, %s75, [#allocation9], 512, 512, 32
    $region25: #{tpu_custom_call.1} parent=1 // pred_fallthru
      _
    // Predicated region
    $region26: #{tpu_custom_call.1} parent=1 // pred_check
      _
    $region27: #{tpu_custom_call.1} parent=1 // pred_check_branch
      %82 = sbr.rel (0) target = $region29
    $region28: #{tpu_custom_call.1} parent=1 // pred_region
      _
    $region29: #{tpu_custom_call.1} parent=1 // pred_fallthru
      _
    // Predicated region
    $region30: #{tpu_custom_call.1} parent=1 // pred_check
      _
    $region31: #{tpu_custom_call.1} parent=1 // pred_check_branch
      %84 = sbr.rel (0) target = $region33
    $region32: #{tpu_custom_call.1} parent=1 // pred_region
      %s86 = ssub.s32 16384, 16384
      %87 = vsyncadd [#allocation12], %s86
      %s88 = sshll.u32 [#allocation11], 4
      %s89 = int_to_ptr.vmem [resolvable:$true] %s88
      %94 = dma.hbm_to_vmem [thread:$0]  %s7, 16384, %s89, [#allocation12], 128, 128, 8
    $region33: #{tpu_custom_call.1} parent=1 // pred_fallthru
      _
    // Predicated region
    $region34: #{tpu_custom_call.1} parent=1 // pred_check
      _
    $region35: #{tpu_custom_call.1} parent=1 // pred_check_branch
      %96 = sbr.rel (0) target = $region37
    $region36: #{tpu_custom_call.1} parent=1 // pred_region
      _
    $region37: #{tpu_custom_call.1} parent=1 // pred_fallthru
      _
    // Predicated region
    $region38: #{tpu_custom_call.1} parent=1 // pred_check
      _
    $region39: #{tpu_custom_call.1} parent=1 // pred_check_branch
      %98 = sbr.rel (0) target = $region41
    $region40: #{tpu_custom_call.1} parent=1 // pred_region
      %99 = dma.done [#allocation3], 256
    $region41: #{tpu_custom_call.1} parent=1 // pred_fallthru
      _
    // Predicated region
    $region42: #{tpu_custom_call.1} parent=1 // pred_check
      _
    $region43: #{tpu_custom_call.1} parent=1 // pred_check_branch
      %101 = sbr.rel (0) target = $region45
    $region44: #{tpu_custom_call.1} parent=1 // pred_region
      %102 = dma.done [#allocation6], 1024
    $region45: #{tpu_custom_call.1} parent=1 // pred_fallthru
      _
    // Predicated region
    $region46: #{tpu_custom_call.1} parent=1 // pred_check
      _
    $region47: #{tpu_custom_call.1} parent=1 // pred_check_branch
      %104 = sbr.rel (0) target = $region49
    $region48: #{tpu_custom_call.1} parent=1 // pred_region
      %105 = dma.done [#allocation6], 16384
    $region49: #{tpu_custom_call.1} parent=1 // pred_fallthru
      _
    // Predicated region
    $region50: #{tpu_custom_call.1} parent=1 // pred_check
      _
    $region51: #{tpu_custom_call.1} parent=1 // pred_check_branch
      %107 = sbr.rel (0) target = $region53
    $region52: #{tpu_custom_call.1} parent=1 // pred_region
      %108 = dma.done [#allocation9], 32768
    $region53: #{tpu_custom_call.1} parent=1 // pred_fallthru
      _
    // Predicated region
    $region54: #{tpu_custom_call.1} parent=1 // pred_check
      _
    $region55: #{tpu_custom_call.1} parent=1 // pred_check_branch
      %110 = sbr.rel (0) target = $region57
    $region56: #{tpu_custom_call.1} parent=1 // pred_region
      %111 = dma.done [#allocation9], 32768
    $region57: #{tpu_custom_call.1} parent=1 // pred_fallthru
      _
    // Predicated region
    $region58: #{tpu_custom_call.1} parent=1 // pred_check
      _
    $region59: #{tpu_custom_call.1} parent=1 // pred_check_branch
      %113 = sbr.rel (0) target = $region61
    $region60: #{tpu_custom_call.1} parent=1 // pred_region
      %114 = dma.done [#allocation12], 16384
    $region61: #{tpu_custom_call.1} parent=1 // pred_fallthru
      _
    %v115 = vld [vmem:[#allocation2] sm:$0xff]
    %v116 = vld [vmem:[#allocation2 + $0x8] sm:$0xff]
    %v117 = vld [vmem:[#allocation7] sm:$0xff]
    %v118 = vld [vmem:[#allocation7 + $0x8] sm:$0xff]
    %v119 = vld [vmem:[#allocation7 + $0x10] sm:$0xff]
    %v120 = vld [vmem:[#allocation7 + $0x18] sm:$0xff]
    %v121 = vld [vmem:[#allocation7 + $0x20] sm:$0xff]
    %v122 = vld [vmem:[#allocation7 + $0x28] sm:$0xff]
    %v123 = vld [vmem:[#allocation7 + $0x30] sm:$0xff]
    %v124 = vld [vmem:[#allocation7 + $0x38] sm:$0xff]
    %v125 = vld [vmem:[#allocation7 + $0x40] sm:$0xff]
    %v126 = vld [vmem:[#allocation7 + $0x48] sm:$0xff]
    %v127 = vld [vmem:[#allocation7 + $0x50] sm:$0xff]
    %v128 = vld [vmem:[#allocation7 + $0x58] sm:$0xff]
    %v129 = vld [vmem:[#allocation7 + $0x60] sm:$0xff]
    %v130 = vld [vmem:[#allocation7 + $0x68] sm:$0xff]
    %v131 = vld [vmem:[#allocation7 + $0x70] sm:$0xff]
    %v132 = vld [vmem:[#allocation7 + $0x78] sm:$0xff]
    %v133 = vld [vmem:[#allocation7 + $0x80] sm:$0xff]
    %v134 = vld [vmem:[#allocation7 + $0x88] sm:$0xff]
    %v135 = vld [vmem:[#allocation7 + $0x90] sm:$0xff]
    %v136 = vld [vmem:[#allocation7 + $0x98] sm:$0xff]
    %v137 = vld [vmem:[#allocation7 + $0xa0] sm:$0xff]
    %v138 = vld [vmem:[#allocation7 + $0xa8] sm:$0xff]
    %v139 = vld [vmem:[#allocation7 + $0xb0] sm:$0xff]
    %v140 = vld [vmem:[#allocation7 + $0xb8] sm:$0xff]
    %v141 = vld [vmem:[#allocation7 + $0xc0] sm:$0xff]
    %v142 = vld [vmem:[#allocation7 + $0xc8] sm:$0xff]
    %v143 = vld [vmem:[#allocation7 + $0xd0] sm:$0xff]
    %v144 = vld [vmem:[#allocation7 + $0xd8] sm:$0xff]
    %v145 = vld [vmem:[#allocation7 + $0xe0] sm:$0xff]
    %v146 = vld [vmem:[#allocation7 + $0xe8] sm:$0xff]
    %v147 = vld [vmem:[#allocation7 + $0xf0] sm:$0xff]
    %v148 = vld [vmem:[#allocation7 + $0xf8] sm:$0xff]
    %v149 = vld [vmem:[#allocation7 + $0x100] sm:$0xff]
    %v150 = vld [vmem:[#allocation7 + $0x108] sm:$0xff]
    %v151 = vld [vmem:[#allocation7 + $0x110] sm:$0xff]
    %v152 = vld [vmem:[#allocation7 + $0x118] sm:$0xff]
    %v153 = vld [vmem:[#allocation7 + $0x120] sm:$0xff]
    %v154 = vld [vmem:[#allocation7 + $0x128] sm:$0xff]
    %v155 = vld [vmem:[#allocation7 + $0x130] sm:$0xff]
    %v156 = vld [vmem:[#allocation7 + $0x138] sm:$0xff]
    %v157 = vld [vmem:[#allocation7 + $0x140] sm:$0xff]
    %v158 = vld [vmem:[#allocation7 + $0x148] sm:$0xff]
    %v159 = vld [vmem:[#allocation7 + $0x150] sm:$0xff]
    %v160 = vld [vmem:[#allocation7 + $0x158] sm:$0xff]
    %v161 = vld [vmem:[#allocation7 + $0x160] sm:$0xff]
    %v162 = vld [vmem:[#allocation7 + $0x168] sm:$0xff]
    %v163 = vld [vmem:[#allocation7 + $0x170] sm:$0xff]
    %v164 = vld [vmem:[#allocation7 + $0x178] sm:$0xff]
    %v165 = vld [vmem:[#allocation7 + $0x180] sm:$0xff]
    %v166 = vld [vmem:[#allocation7 + $0x188] sm:$0xff]
    %v167 = vld [vmem:[#allocation7 + $0x190] sm:$0xff]
    %v168 = vld [vmem:[#allocation7 + $0x198] sm:$0xff]
    %v169 = vld [vmem:[#allocation7 + $0x1a0] sm:$0xff]
    %v170 = vld [vmem:[#allocation7 + $0x1a8] sm:$0xff]
    %v171 = vld [vmem:[#allocation7 + $0x1b0] sm:$0xff]
    %v172 = vld [vmem:[#allocation7 + $0x1b8] sm:$0xff]
    %v173 = vld [vmem:[#allocation7 + $0x1c0] sm:$0xff]
    %v174 = vld [vmem:[#allocation7 + $0x1c8] sm:$0xff]
    %v175 = vld [vmem:[#allocation7 + $0x1d0] sm:$0xff]
    %v176 = vld [vmem:[#allocation7 + $0x1d8] sm:$0xff]
    %v177 = vld [vmem:[#allocation7 + $0x1e0] sm:$0xff]
    %v178 = vld [vmem:[#allocation7 + $0x1e8] sm:$0xff]
    %v179 = vld [vmem:[#allocation7 + $0x1f0] sm:$0xff]
    %v180 = vld [vmem:[#allocation7 + $0x1f8] sm:$0xff]
    %v181 = vld [vmem:[#allocation7 + $0x200] sm:$0xff]
    %v182 = vld [vmem:[#allocation7 + $0x208] sm:$0xff]
    %v183 = vld [vmem:[#allocation7 + $0x210] sm:$0xff]
    %v184 = vld [vmem:[#allocation7 + $0x218] sm:$0xff]
    %v185 = vld [vmem:[#allocation7 + $0x220] sm:$0xff]
    %v186 = vld [vmem:[#allocation7 + $0x228] sm:$0xff]
    %v187 = vld [vmem:[#allocation7 + $0x230] sm:$0xff]
    %v188 = vld [vmem:[#allocation7 + $0x238] sm:$0xff]
    %v189 = vld [vmem:[#allocation7 + $0x240] sm:$0xff]
    %v190 = vld [vmem:[#allocation7 + $0x248] sm:$0xff]
    %v191 = vld [vmem:[#allocation7 + $0x250] sm:$0xff]
    %v192 = vld [vmem:[#allocation7 + $0x258] sm:$0xff]
    %v193 = vld [vmem:[#allocation7 + $0x260] sm:$0xff]
    %v194 = vld [vmem:[#allocation7 + $0x268] sm:$0xff]
    %v195 = vld [vmem:[#allocation7 + $0x270] sm:$0xff]
    %v196 = vld [vmem:[#allocation7 + $0x278] sm:$0xff]
    %v197 = vld [vmem:[#allocation7 + $0x280] sm:$0xff]
    %v198 = vld [vmem:[#allocation7 + $0x288] sm:$0xff]
    %v199 = vld [vmem:[#allocation7 + $0x290] sm:$0xff]
    %v200 = vld [vmem:[#allocation7 + $0x298] sm:$0xff]
    %v201 = vld [vmem:[#allocation7 + $0x2a0] sm:$0xff]
    %v202 = vld [vmem:[#allocation7 + $0x2a8] sm:$0xff]
    %v203 = vld [vmem:[#allocation7 + $0x2b0] sm:$0xff]
    %v204 = vld [vmem:[#allocation7 + $0x2b8] sm:$0xff]
    %v205 = vld [vmem:[#allocation7 + $0x2c0] sm:$0xff]
    %v206 = vld [vmem:[#allocation7 + $0x2c8] sm:$0xff]
    %v207 = vld [vmem:[#allocation7 + $0x2d0] sm:$0xff]
    %v208 = vld [vmem:[#allocation7 + $0x2d8] sm:$0xff]
    %v209 = vld [vmem:[#allocation7 + $0x2e0] sm:$0xff]
    %v210 = vld [vmem:[#allocation7 + $0x2e8] sm:$0xff]
    %v211 = vld [vmem:[#allocation7 + $0x2f0] sm:$0xff]
    %v212 = vld [vmem:[#allocation7 + $0x2f8] sm:$0xff]
    %v213 = vld [vmem:[#allocation7 + $0x300] sm:$0xff]
    %v214 = vld [vmem:[#allocation7 + $0x308] sm:$0xff]
    %v215 = vld [vmem:[#allocation7 + $0x310] sm:$0xff]
    %v216 = vld [vmem:[#allocation7 + $0x318] sm:$0xff]
    %v217 = vld [vmem:[#allocation7 + $0x320] sm:$0xff]
    %v218 = vld [vmem:[#allocation7 + $0x328] sm:$0xff]
    %v219 = vld [vmem:[#allocation7 + $0x330] sm:$0xff]
    %v220 = vld [vmem:[#allocation7 + $0x338] sm:$0xff]
    %v221 = vld [vmem:[#allocation7 + $0x340] sm:$0xff]
    %v222 = vld [vmem:[#allocation7 + $0x348] sm:$0xff]
    %v223 = vld [vmem:[#allocation7 + $0x350] sm:$0xff]
    %v224 = vld [vmem:[#allocation7 + $0x358] sm:$0xff]
    %v225 = vld [vmem:[#allocation7 + $0x360] sm:$0xff]
    %v226 = vld [vmem:[#allocation7 + $0x368] sm:$0xff]
    %v227 = vld [vmem:[#allocation7 + $0x370] sm:$0xff]
    %v228 = vld [vmem:[#allocation7 + $0x378] sm:$0xff]
    %v229 = vld [vmem:[#allocation7 + $0x380] sm:$0xff]
    %v230 = vld [vmem:[#allocation7 + $0x388] sm:$0xff]
    %v231 = vld [vmem:[#allocation7 + $0x390] sm:$0xff]
    %v232 = vld [vmem:[#allocation7 + $0x398] sm:$0xff]
    %v233 = vld [vmem:[#allocation7 + $0x3a0] sm:$0xff]
    %v234 = vld [vmem:[#allocation7 + $0x3a8] sm:$0xff]
    %v235 = vld [vmem:[#allocation7 + $0x3b0] sm:$0xff]
    %v236 = vld [vmem:[#allocation7 + $0x3b8] sm:$0xff]
    %v237 = vld [vmem:[#allocation7 + $0x3c0] sm:$0xff]
    %v238 = vld [vmem:[#allocation7 + $0x3c8] sm:$0xff]
    %v239 = vld [vmem:[#allocation7 + $0x3d0] sm:$0xff]
    %v240 = vld [vmem:[#allocation7 + $0x3d8] sm:$0xff]
    %v241 = vld [vmem:[#allocation7 + $0x3e0] sm:$0xff]
    %v242 = vld [vmem:[#allocation7 + $0x3e8] sm:$0xff]
    %v243 = vld [vmem:[#allocation7 + $0x3f0] sm:$0xff]
    %v244 = vld [vmem:[#allocation7 + $0x3f8] sm:$0xff]
    %v245 = vld [vmem:[#allocation5] sm:$0xff]
    %v246 = vld [vmem:[#allocation5 + $0x8] sm:$0xff]
    %v247 = vld [vmem:[#allocation5 + $0x10] sm:$0xff]
    %v248 = vld [vmem:[#allocation5 + $0x18] sm:$0xff]
    %v249 = vld [vmem:[#allocation5 + $0x20] sm:$0xff]
    %v250 = vld [vmem:[#allocation5 + $0x28] sm:$0xff]
    %v251 = vld [vmem:[#allocation5 + $0x30] sm:$0xff]
    %v252 = vld [vmem:[#allocation5 + $0x38] sm:$0xff]
    %v253 = vunpack.c.l.bf16 %v245
    %v254 = vunpack.c.h.bf16 %v245
    %v255 = vunpack.c.l.bf16 %v246
    %v256 = vunpack.c.h.bf16 %v246
    %v257 = vunpack.c.l.bf16 %v247
    %v258 = vunpack.c.h.bf16 %v247
    %v259 = vunpack.c.l.bf16 %v248
    %v260 = vunpack.c.h.bf16 %v248
    %v261 = vunpack.c.l.bf16 %v249
    %v262 = vunpack.c.h.bf16 %v249
    %v263 = vunpack.c.l.bf16 %v250
    %v264 = vunpack.c.h.bf16 %v250
    %v265 = vunpack.c.l.bf16 %v251
    %v266 = vunpack.c.h.bf16 %v251
    %v267 = vunpack.c.l.bf16 %v252
    %v268 = vunpack.c.h.bf16 %v252
    %v271 = vunpack.c.l.b16 %v115
    %v272 = vunpack.c.h.b16 %v115
    %v273 = vunpack.c.l.b16 %v116
    %v274 = vunpack.c.h.b16 %v116
    %v275 = vpack.c.b16 %v273, %v271
    %v276 = vpack.c.b16 %v274, %v272
    %v407 = vunpack.c.l.b16 %v117
    %v408 = vunpack.c.h.b16 %v117
    %v409 = vunpack.c.l.b16 %v118
    %v410 = vunpack.c.h.b16 %v118
    %v411 = vunpack.c.l.b16 %v119
    %v412 = vunpack.c.h.b16 %v119
    %v413 = vunpack.c.l.b16 %v120
    %v414 = vunpack.c.h.b16 %v120
    %v415 = vunpack.c.l.b16 %v121
    %v416 = vunpack.c.h.b16 %v121
    %v417 = vunpack.c.l.b16 %v122
    %v418 = vunpack.c.h.b16 %v122
    %v419 = vunpack.c.l.b16 %v123
    %v420 = vunpack.c.h.b16 %v123
    %v421 = vunpack.c.l.b16 %v124
    %v422 = vunpack.c.h.b16 %v124
    %v423 = vunpack.c.l.b16 %v125
    %v424 = vunpack.c.h.b16 %v125
    %v425 = vunpack.c.l.b16 %v126
    %v426 = vunpack.c.h.b16 %v126
    %v427 = vunpack.c.l.b16 %v127
    %v428 = vunpack.c.h.b16 %v127
    %v429 = vunpack.c.l.b16 %v128
    %v430 = vunpack.c.h.b16 %v128
    %v431 = vunpack.c.l.b16 %v129
    %v432 = vunpack.c.h.b16 %v129
    %v433 = vunpack.c.l.b16 %v130
    %v434 = vunpack.c.h.b16 %v130
    %v435 = vunpack.c.l.b16 %v131
    %v436 = vunpack.c.h.b16 %v131
    %v437 = vunpack.c.l.b16 %v132
    %v438 = vunpack.c.h.b16 %v132
    %v439 = vunpack.c.l.b16 %v133
    %v440 = vunpack.c.h.b16 %v133
    %v441 = vunpack.c.l.b16 %v134
    %v442 = vunpack.c.h.b16 %v134
    %v443 = vunpack.c.l.b16 %v135
    %v444 = vunpack.c.h.b16 %v135
    %v445 = vunpack.c.l.b16 %v136
    %v446 = vunpack.c.h.b16 %v136
    %v447 = vunpack.c.l.b16 %v137
    %v448 = vunpack.c.h.b16 %v137
    %v449 = vunpack.c.l.b16 %v138
    %v450 = vunpack.c.h.b16 %v138
    %v451 = vunpack.c.l.b16 %v139
    %v452 = vunpack.c.h.b16 %v139
    %v453 = vunpack.c.l.b16 %v140
    %v454 = vunpack.c.h.b16 %v140
    %v455 = vunpack.c.l.b16 %v141
    %v456 = vunpack.c.h.b16 %v141
    %v457 = vunpack.c.l.b16 %v142
    %v458 = vunpack.c.h.b16 %v142
    %v459 = vunpack.c.l.b16 %v143
    %v460 = vunpack.c.h.b16 %v143
    %v461 = vunpack.c.l.b16 %v144
    %v462 = vunpack.c.h.b16 %v144
    %v463 = vunpack.c.l.b16 %v145
    %v464 = vunpack.c.h.b16 %v145
    %v465 = vunpack.c.l.b16 %v146
    %v466 = vunpack.c.h.b16 %v146
    %v467 = vunpack.c.l.b16 %v147
    %v468 = vunpack.c.h.b16 %v147
    %v469 = vunpack.c.l.b16 %v148
    %v470 = vunpack.c.h.b16 %v148
    %v471 = vunpack.c.l.b16 %v149
    %v472 = vunpack.c.h.b16 %v149
    %v473 = vunpack.c.l.b16 %v150
    %v474 = vunpack.c.h.b16 %v150
    %v475 = vunpack.c.l.b16 %v151
    %v476 = vunpack.c.h.b16 %v151
    %v477 = vunpack.c.l.b16 %v152
    %v478 = vunpack.c.h.b16 %v152
    %v479 = vunpack.c.l.b16 %v153
    %v480 = vunpack.c.h.b16 %v153
    %v481 = vunpack.c.l.b16 %v154
    %v482 = vunpack.c.h.b16 %v154
    %v483 = vunpack.c.l.b16 %v155
    %v484 = vunpack.c.h.b16 %v155
    %v485 = vunpack.c.l.b16 %v156
    %v486 = vunpack.c.h.b16 %v156
    %v487 = vunpack.c.l.b16 %v157
    %v488 = vunpack.c.h.b16 %v157
    %v489 = vunpack.c.l.b16 %v158
    %v490 = vunpack.c.h.b16 %v158
    %v491 = vunpack.c.l.b16 %v159
    %v492 = vunpack.c.h.b16 %v159
    %v493 = vunpack.c.l.b16 %v160
    %v494 = vunpack.c.h.b16 %v160
    %v495 = vunpack.c.l.b16 %v161
    %v496 = vunpack.c.h.b16 %v161
    %v497 = vunpack.c.l.b16 %v162
    %v498 = vunpack.c.h.b16 %v162
    %v499 = vunpack.c.l.b16 %v163
    %v500 = vunpack.c.h.b16 %v163
    %v501 = vunpack.c.l.b16 %v164
    %v502 = vunpack.c.h.b16 %v164
    %v503 = vunpack.c.l.b16 %v165
    %v504 = vunpack.c.h.b16 %v165
    %v505 = vunpack.c.l.b16 %v166
    %v506 = vunpack.c.h.b16 %v166
    %v507 = vunpack.c.l.b16 %v167
    %v508 = vunpack.c.h.b16 %v167
    %v509 = vunpack.c.l.b16 %v168
    %v510 = vunpack.c.h.b16 %v168
    %v511 = vunpack.c.l.b16 %v169
    %v512 = vunpack.c.h.b16 %v169
    %v513 = vunpack.c.l.b16 %v170
    %v514 = vunpack.c.h.b16 %v170
    %v515 = vunpack.c.l.b16 %v171
    %v516 = vunpack.c.h.b16 %v171
    %v517 = vunpack.c.l.b16 %v172
    %v518 = vunpack.c.h.b16 %v172
    %v519 = vunpack.c.l.b16 %v173
    %v520 = vunpack.c.h.b16 %v173
    %v521 = vunpack.c.l.b16 %v174
    %v522 = vunpack.c.h.b16 %v174
    %v523 = vunpack.c.l.b16 %v175
    %v524 = vunpack.c.h.b16 %v175
    %v525 = vunpack.c.l.b16 %v176
    %v526 = vunpack.c.h.b16 %v176
    %v527 = vunpack.c.l.b16 %v177
    %v528 = vunpack.c.h.b16 %v177
    %v529 = vunpack.c.l.b16 %v178
    %v530 = vunpack.c.h.b16 %v178
    %v531 = vunpack.c.l.b16 %v179
    %v532 = vunpack.c.h.b16 %v179
    %v533 = vunpack.c.l.b16 %v180
    %v534 = vunpack.c.h.b16 %v180
    %v535 = vunpack.c.l.b16 %v181
    %v536 = vunpack.c.h.b16 %v181
    %v537 = vunpack.c.l.b16 %v182
    %v538 = vunpack.c.h.b16 %v182
    %v539 = vunpack.c.l.b16 %v183
    %v540 = vunpack.c.h.b16 %v183
    %v541 = vunpack.c.l.b16 %v184
    %v542 = vunpack.c.h.b16 %v184
    %v543 = vunpack.c.l.b16 %v185
    %v544 = vunpack.c.h.b16 %v185
    %v545 = vunpack.c.l.b16 %v186
    %v546 = vunpack.c.h.b16 %v186
    %v547 = vunpack.c.l.b16 %v187
    %v548 = vunpack.c.h.b16 %v187
    %v549 = vunpack.c.l.b16 %v188
    %v550 = vunpack.c.h.b16 %v188
    %v551 = vunpack.c.l.b16 %v189
    %v552 = vunpack.c.h.b16 %v189
    %v553 = vunpack.c.l.b16 %v190
    %v554 = vunpack.c.h.b16 %v190
    %v555 = vunpack.c.l.b16 %v191
    %v556 = vunpack.c.h.b16 %v191
    %v557 = vunpack.c.l.b16 %v192
    %v558 = vunpack.c.h.b16 %v192
    %v559 = vunpack.c.l.b16 %v193
    %v560 = vunpack.c.h.b16 %v193
    %v561 = vunpack.c.l.b16 %v194
    %v562 = vunpack.c.h.b16 %v194
    %v563 = vunpack.c.l.b16 %v195
    %v564 = vunpack.c.h.b16 %v195
    %v565 = vunpack.c.l.b16 %v196
    %v566 = vunpack.c.h.b16 %v196
    %v567 = vunpack.c.l.b16 %v197
    %v568 = vunpack.c.h.b16 %v197
    %v569 = vunpack.c.l.b16 %v198
    %v570 = vunpack.c.h.b16 %v198
    %v571 = vunpack.c.l.b16 %v199
    %v572 = vunpack.c.h.b16 %v199
    %v573 = vunpack.c.l.b16 %v200
    %v574 = vunpack.c.h.b16 %v200
    %v575 = vunpack.c.l.b16 %v201
    %v576 = vunpack.c.h.b16 %v201
    %v577 = vunpack.c.l.b16 %v202
    %v578 = vunpack.c.h.b16 %v202
    %v579 = vunpack.c.l.b16 %v203
    %v580 = vunpack.c.h.b16 %v203
    %v581 = vunpack.c.l.b16 %v204
    %v582 = vunpack.c.h.b16 %v204
    %v583 = vunpack.c.l.b16 %v205
    %v584 = vunpack.c.h.b16 %v205
    %v585 = vunpack.c.l.b16 %v206
    %v586 = vunpack.c.h.b16 %v206
    %v587 = vunpack.c.l.b16 %v207
    %v588 = vunpack.c.h.b16 %v207
    %v589 = vunpack.c.l.b16 %v208
    %v590 = vunpack.c.h.b16 %v208
    %v591 = vunpack.c.l.b16 %v209
    %v592 = vunpack.c.h.b16 %v209
    %v593 = vunpack.c.l.b16 %v210
    %v594 = vunpack.c.h.b16 %v210
    %v595 = vunpack.c.l.b16 %v211
    %v596 = vunpack.c.h.b16 %v211
    %v597 = vunpack.c.l.b16 %v212
    %v598 = vunpack.c.h.b16 %v212
    %v599 = vunpack.c.l.b16 %v213
    %v600 = vunpack.c.h.b16 %v213
    %v601 = vunpack.c.l.b16 %v214
    %v602 = vunpack.c.h.b16 %v214
    %v603 = vunpack.c.l.b16 %v215
    %v604 = vunpack.c.h.b16 %v215
    %v605 = vunpack.c.l.b16 %v216
    %v606 = vunpack.c.h.b16 %v216
    %v607 = vunpack.c.l.b16 %v217
    %v608 = vunpack.c.h.b16 %v217
    %v609 = vunpack.c.l.b16 %v218
    %v610 = vunpack.c.h.b16 %v218
    %v611 = vunpack.c.l.b16 %v219
    %v612 = vunpack.c.h.b16 %v219
    %v613 = vunpack.c.l.b16 %v220
    %v614 = vunpack.c.h.b16 %v220
    %v615 = vunpack.c.l.b16 %v221
    %v616 = vunpack.c.h.b16 %v221
    %v617 = vunpack.c.l.b16 %v222
    %v618 = vunpack.c.h.b16 %v222
    %v619 = vunpack.c.l.b16 %v223
    %v620 = vunpack.c.h.b16 %v223
    %v621 = vunpack.c.l.b16 %v224
    %v622 = vunpack.c.h.b16 %v224
    %v623 = vunpack.c.l.b16 %v225
    %v624 = vunpack.c.h.b16 %v225
    %v625 = vunpack.c.l.b16 %v226
    %v626 = vunpack.c.h.b16 %v226
    %v627 = vunpack.c.l.b16 %v227
    %v628 = vunpack.c.h.b16 %v227
    %v629 = vunpack.c.l.b16 %v228
    %v630 = vunpack.c.h.b16 %v228
    %v631 = vunpack.c.l.b16 %v229
    %v632 = vunpack.c.h.b16 %v229
    %v633 = vunpack.c.l.b16 %v230
    %v634 = vunpack.c.h.b16 %v230
    %v635 = vunpack.c.l.b16 %v231
    %v636 = vunpack.c.h.b16 %v231
    %v637 = vunpack.c.l.b16 %v232
    %v638 = vunpack.c.h.b16 %v232
    %v639 = vunpack.c.l.b16 %v233
    %v640 = vunpack.c.h.b16 %v233
    %v641 = vunpack.c.l.b16 %v234
    %v642 = vunpack.c.h.b16 %v234
    %v643 = vunpack.c.l.b16 %v235
    %v644 = vunpack.c.h.b16 %v235
    %v645 = vunpack.c.l.b16 %v236
    %v646 = vunpack.c.h.b16 %v236
    %v647 = vunpack.c.l.b16 %v237
    %v648 = vunpack.c.h.b16 %v237
    %v649 = vunpack.c.l.b16 %v238
    %v650 = vunpack.c.h.b16 %v238
    %v651 = vunpack.c.l.b16 %v239
    %v652 = vunpack.c.h.b16 %v239
    %v653 = vunpack.c.l.b16 %v240
    %v654 = vunpack.c.h.b16 %v240
    %v655 = vunpack.c.l.b16 %v241
    %v656 = vunpack.c.h.b16 %v241
    %v657 = vunpack.c.l.b16 %v242
    %v658 = vunpack.c.h.b16 %v242
    %v659 = vunpack.c.l.b16 %v243
    %v660 = vunpack.c.h.b16 %v243
    %v661 = vunpack.c.l.b16 %v244
    %v662 = vunpack.c.h.b16 %v244
    %v663 = vpack.c.b16 %v415, %v407
    %v664 = vpack.c.b16 %v416, %v408
    %v665 = vpack.c.b16 %v417, %v409
    %v666 = vpack.c.b16 %v418, %v410
    %v667 = vpack.c.b16 %v419, %v411
    %v668 = vpack.c.b16 %v420, %v412
    %v669 = vpack.c.b16 %v421, %v413
    %v670 = vpack.c.b16 %v422, %v414
    %v671 = vpack.c.b16 %v431, %v423
    %v672 = vpack.c.b16 %v432, %v424
    %v673 = vpack.c.b16 %v433, %v425
    %v674 = vpack.c.b16 %v434, %v426
    %v675 = vpack.c.b16 %v435, %v427
    %v676 = vpack.c.b16 %v436, %v428
    %v677 = vpack.c.b16 %v437, %v429
    %v678 = vpack.c.b16 %v438, %v430
    %v679 = vpack.c.b16 %v447, %v439
    %v680 = vpack.c.b16 %v448, %v440
    %v681 = vpack.c.b16 %v449, %v441
    %v682 = vpack.c.b16 %v450, %v442
    %v683 = vpack.c.b16 %v451, %v443
    %v684 = vpack.c.b16 %v452, %v444
    %v685 = vpack.c.b16 %v453, %v445
    %v686 = vpack.c.b16 %v454, %v446
    %v687 = vpack.c.b16 %v463, %v455
    %v688 = vpack.c.b16 %v464, %v456
    %v689 = vpack.c.b16 %v465, %v457
    %v690 = vpack.c.b16 %v466, %v458
    %v691 = vpack.c.b16 %v467, %v459
    %v692 = vpack.c.b16 %v468, %v460
    %v693 = vpack.c.b16 %v469, %v461
    %v694 = vpack.c.b16 %v470, %v462
    %v695 = vpack.c.b16 %v479, %v471
    %v696 = vpack.c.b16 %v480, %v472
    %v697 = vpack.c.b16 %v481, %v473
    %v698 = vpack.c.b16 %v482, %v474
    %v699 = vpack.c.b16 %v483, %v475
    %v700 = vpack.c.b16 %v484, %v476
    %v701 = vpack.c.b16 %v485, %v477
    %v702 = vpack.c.b16 %v486, %v478
    %v703 = vpack.c.b16 %v495, %v487
    %v704 = vpack.c.b16 %v496, %v488
    %v705 = vpack.c.b16 %v497, %v489
    %v706 = vpack.c.b16 %v498, %v490
    %v707 = vpack.c.b16 %v499, %v491
    %v708 = vpack.c.b16 %v500, %v492
    %v709 = vpack.c.b16 %v501, %v493
    %v710 = vpack.c.b16 %v502, %v494
    %v711 = vpack.c.b16 %v511, %v503
    %v712 = vpack.c.b16 %v512, %v504
    %v713 = vpack.c.b16 %v513, %v505
    %v714 = vpack.c.b16 %v514, %v506
    %v715 = vpack.c.b16 %v515, %v507
    %v716 = vpack.c.b16 %v516, %v508
    %v717 = vpack.c.b16 %v517, %v509
    %v718 = vpack.c.b16 %v518, %v510
    %v719 = vpack.c.b16 %v527, %v519
    %v720 = vpack.c.b16 %v528, %v520
    %v721 = vpack.c.b16 %v529, %v521
    %v722 = vpack.c.b16 %v530, %v522
    %v723 = vpack.c.b16 %v531, %v523
    %v724 = vpack.c.b16 %v532, %v524
    %v725 = vpack.c.b16 %v533, %v525
    %v726 = vpack.c.b16 %v534, %v526
    %v727 = vpack.c.b16 %v543, %v535
    %v728 = vpack.c.b16 %v544, %v536
    %v729 = vpack.c.b16 %v545, %v537
    %v730 = vpack.c.b16 %v546, %v538
    %v731 = vpack.c.b16 %v547, %v539
    %v732 = vpack.c.b16 %v548, %v540
    %v733 = vpack.c.b16 %v549, %v541
    %v734 = vpack.c.b16 %v550, %v542
    %v735 = vpack.c.b16 %v559, %v551
    %v736 = vpack.c.b16 %v560, %v552
    %v737 = vpack.c.b16 %v561, %v553
    %v738 = vpack.c.b16 %v562, %v554
    %v739 = vpack.c.b16 %v563, %v555
    %v740 = vpack.c.b16 %v564, %v556
    %v741 = vpack.c.b16 %v565, %v557
    %v742 = vpack.c.b16 %v566, %v558
    %v743 = vpack.c.b16 %v575, %v567
    %v744 = vpack.c.b16 %v576, %v568
    %v745 = vpack.c.b16 %v577, %v569
    %v746 = vpack.c.b16 %v578, %v570
    %v747 = vpack.c.b16 %v579, %v571
    %v748 = vpack.c.b16 %v580, %v572
    %v749 = vpack.c.b16 %v581, %v573
    %v750 = vpack.c.b16 %v582, %v574
    %v751 = vpack.c.b16 %v591, %v583
    %v752 = vpack.c.b16 %v592, %v584
    %v753 = vpack.c.b16 %v593, %v585
    %v754 = vpack.c.b16 %v594, %v586
    %v755 = vpack.c.b16 %v595, %v587
    %v756 = vpack.c.b16 %v596, %v588
    %v757 = vpack.c.b16 %v597, %v589
    %v758 = vpack.c.b16 %v598, %v590
    %v759 = vpack.c.b16 %v607, %v599
    %v760 = vpack.c.b16 %v608, %v600
    %v761 = vpack.c.b16 %v609, %v601
    %v762 = vpack.c.b16 %v610, %v602
    %v763 = vpack.c.b16 %v611, %v603
    %v764 = vpack.c.b16 %v612, %v604
    %v765 = vpack.c.b16 %v613, %v605
    %v766 = vpack.c.b16 %v614, %v606
    %v767 = vpack.c.b16 %v623, %v615
    %v768 = vpack.c.b16 %v624, %v616
    %v769 = vpack.c.b16 %v625, %v617
    %v770 = vpack.c.b16 %v626, %v618
    %v771 = vpack.c.b16 %v627, %v619
    %v772 = vpack.c.b16 %v628, %v620
    %v773 = vpack.c.b16 %v629, %v621
    %v774 = vpack.c.b16 %v630, %v622
    %v775 = vpack.c.b16 %v639, %v631
    %v776 = vpack.c.b16 %v640, %v632
    %v777 = vpack.c.b16 %v641, %v633
    %v778 = vpack.c.b16 %v642, %v634
    %v779 = vpack.c.b16 %v643, %v635
    %v780 = vpack.c.b16 %v644, %v636
    %v781 = vpack.c.b16 %v645, %v637
    %v782 = vpack.c.b16 %v646, %v638
    %v783 = vpack.c.b16 %v655, %v647
    %v784 = vpack.c.b16 %v656, %v648
    %v785 = vpack.c.b16 %v657, %v649
    %v786 = vpack.c.b16 %v658, %v650
    %v787 = vpack.c.b16 %v659, %v651
    %v788 = vpack.c.b16 %v660, %v652
    %v789 = vpack.c.b16 %v661, %v653
    %v790 = vpack.c.b16 %v662, %v654
    %919 = vmatprep.subr.bf16.mxu0 %v664
    %920 = vmatpush1.bf16.msra.mxu0 %v663
    %921 = vmatprep.subr.bf16.mxu0 %v672
    %922 = vmatpush1.bf16.msra.mxu0 %v671
    %923 = vmatprep.subr.bf16.mxu0 %v680
    %924 = vmatpush1.bf16.msra.mxu0 %v679
    %925 = vmatprep.subr.bf16.mxu0 %v688
    %926 = vmatpush1.bf16.msra.mxu0 %v687
    %927 = vmatprep.subr.bf16.mxu0 %v696
    %928 = vmatpush1.bf16.msra.mxu0 %v695
    %929 = vmatprep.subr.bf16.mxu0 %v704
    %930 = vmatpush1.bf16.msra.mxu0 %v703
    %931 = vmatprep.subr.bf16.mxu0 %v712
    %932 = vmatpush1.bf16.msra.mxu0 %v711
    %933 = vmatprep.subr.bf16.mxu0 %v720
    %934 = vmatpush1.bf16.msra.mxu0 %v719
    %935 = vmatprep.subr.bf16.mxu0 %v728
    %936 = vmatpush1.bf16.msra.mxu0 %v727
    %937 = vmatprep.subr.bf16.mxu0 %v736
    %938 = vmatpush1.bf16.msra.mxu0 %v735
    %939 = vmatprep.subr.bf16.mxu0 %v744
    %940 = vmatpush1.bf16.msra.mxu0 %v743
    %941 = vmatprep.subr.bf16.mxu0 %v752
    %942 = vmatpush1.bf16.msra.mxu0 %v751
    %943 = vmatprep.subr.bf16.mxu0 %v760
    %944 = vmatpush1.bf16.msra.mxu0 %v759
    %945 = vmatprep.subr.bf16.mxu0 %v768
    %946 = vmatpush1.bf16.msra.mxu0 %v767
    %947 = vmatprep.subr.bf16.mxu0 %v776
    %948 = vmatpush1.bf16.msra.mxu0 %v775
    %949 = vmatprep.subr.bf16.mxu0 %v784
    %950 = vmatpush1.bf16.msra.mxu0 %v783
    %951 = vmatprep.mubr.bf16.mxu0 %v276
    %952 = vmatmul.mubr.bf16.gmra.mrb[0].mxu0 %v275
    %v953 = vpop.f32.mrb[0].mxu0
    %v954 = vadd.f32 %v253, %v953
    %v955 = vpop.f32.mrb[0].mxu0
    %v956 = vadd.f32 %v254, %v955
    %v957 = vpop.f32.mrb[0].mxu0
    %v958 = vadd.f32 %v261, %v957
    %v959 = vpop.f32.mrb[0].mxu0
    %v960 = vadd.f32 %v262, %v959
    %961 = vdwg.mxu0
    %962 = vmatprep.subr.bf16.mxu0 %v666
    %963 = vmatpush1.bf16.msra.mxu0 %v665
    %964 = vmatprep.subr.bf16.mxu0 %v674
    %965 = vmatpush1.bf16.msra.mxu0 %v673
    %966 = vmatprep.subr.bf16.mxu0 %v682
    %967 = vmatpush1.bf16.msra.mxu0 %v681
    %968 = vmatprep.subr.bf16.mxu0 %v690
    %969 = vmatpush1.bf16.msra.mxu0 %v689
    %970 = vmatprep.subr.bf16.mxu0 %v698
    %971 = vmatpush1.bf16.msra.mxu0 %v697
    %972 = vmatprep.subr.bf16.mxu0 %v706
    %973 = vmatpush1.bf16.msra.mxu0 %v705
    %974 = vmatprep.subr.bf16.mxu0 %v714
    %975 = vmatpush1.bf16.msra.mxu0 %v713
    %976 = vmatprep.subr.bf16.mxu0 %v722
    %977 = vmatpush1.bf16.msra.mxu0 %v721
    %978 = vmatprep.subr.bf16.mxu0 %v730
    %979 = vmatpush1.bf16.msra.mxu0 %v729
    %980 = vmatprep.subr.bf16.mxu0 %v738
    %981 = vmatpush1.bf16.msra.mxu0 %v737
    %982 = vmatprep.subr.bf16.mxu0 %v746
    %983 = vmatpush1.bf16.msra.mxu0 %v745
    %984 = vmatprep.subr.bf16.mxu0 %v754
    %985 = vmatpush1.bf16.msra.mxu0 %v753
    %986 = vmatprep.subr.bf16.mxu0 %v762
    %987 = vmatpush1.bf16.msra.mxu0 %v761
    %988 = vmatprep.subr.bf16.mxu0 %v770
    %989 = vmatpush1.bf16.msra.mxu0 %v769
    %990 = vmatprep.subr.bf16.mxu0 %v778
    %991 = vmatpush1.bf16.msra.mxu0 %v777
    %992 = vmatprep.subr.bf16.mxu0 %v786
    %993 = vmatpush1.bf16.msra.mxu0 %v785
    %994 = vmatprep.mubr.bf16.mxu0 %v276
    %995 = vmatmul.mubr.bf16.gmra.mrb[0].mxu0 %v275
    %v996 = vpop.f32.mrb[0].mxu0
    %v997 = vadd.f32 %v255, %v996
    %v998 = vpop.f32.mrb[0].mxu0
    %v999 = vadd.f32 %v256, %v998
    %v1000 = vpop.f32.mrb[0].mxu0
    %v1001 = vadd.f32 %v263, %v1000
    %v1002 = vpop.f32.mrb[0].mxu0
    %v1003 = vadd.f32 %v264, %v1002
    %1004 = vdwg.mxu0
    %1005 = vmatprep.subr.bf16.mxu0 %v668
    %1006 = vmatpush1.bf16.msra.mxu0 %v667
    %1007 = vmatprep.subr.bf16.mxu0 %v676
    %1008 = vmatpush1.bf16.msra.mxu0 %v675
    %1009 = vmatprep.subr.bf16.mxu0 %v684
    %1010 = vmatpush1.bf16.msra.mxu0 %v683
    %1011 = vmatprep.subr.bf16.mxu0 %v692
    %1012 = vmatpush1.bf16.msra.mxu0 %v691
    %1013 = vmatprep.subr.bf16.mxu0 %v700
    %1014 = vmatpush1.bf16.msra.mxu0 %v699
    %1015 = vmatprep.subr.bf16.mxu0 %v708
    %1016 = vmatpush1.bf16.msra.mxu0 %v707
    %1017 = vmatprep.subr.bf16.mxu0 %v716
    %1018 = vmatpush1.bf16.msra.mxu0 %v715
    %1019 = vmatprep.subr.bf16.mxu0 %v724
    %1020 = vmatpush1.bf16.msra.mxu0 %v723
    %1021 = vmatprep.subr.bf16.mxu0 %v732
    %1022 = vmatpush1.bf16.msra.mxu0 %v731
    %1023 = vmatprep.subr.bf16.mxu0 %v740
    %1024 = vmatpush1.bf16.msra.mxu0 %v739
    %1025 = vmatprep.subr.bf16.mxu0 %v748
    %1026 = vmatpush1.bf16.msra.mxu0 %v747
    %1027 = vmatprep.subr.bf16.mxu0 %v756
    %1028 = vmatpush1.bf16.msra.mxu0 %v755
    %1029 = vmatprep.subr.bf16.mxu0 %v764
    %1030 = vmatpush1.bf16.msra.mxu0 %v763
    %1031 = vmatprep.subr.bf16.mxu0 %v772
    %1032 = vmatpush1.bf16.msra.mxu0 %v771
    %1033 = vmatprep.subr.bf16.mxu0 %v780
    %1034 = vmatpush1.bf16.msra.mxu0 %v779
    %1035 = vmatprep.subr.bf16.mxu0 %v788
    %1036 = vmatpush1.bf16.msra.mxu0 %v787
    %1037 = vmatprep.mubr.bf16.mxu0 %v276
    %1038 = vmatmul.mubr.bf16.gmra.mrb[0].mxu0 %v275
    %v1039 = vpop.f32.mrb[0].mxu0
    %v1040 = vadd.f32 %v257, %v1039
    %v1041 = vpop.f32.mrb[0].mxu0
    %v1042 = vadd.f32 %v258, %v1041
    %v1043 = vpop.f32.mrb[0].mxu0
    %v1044 = vadd.f32 %v265, %v1043
    %v1045 = vpop.f32.mrb[0].mxu0
    %v1046 = vadd.f32 %v266, %v1045
    %1047 = vdwg.mxu0
    %1048 = vmatprep.subr.bf16.mxu0 %v670
    %1049 = vmatpush1.bf16.msra.mxu0 %v669
    %1050 = vmatprep.subr.bf16.mxu0 %v678
    %1051 = vmatpush1.bf16.msra.mxu0 %v677
    %1052 = vmatprep.subr.bf16.mxu0 %v686
    %1053 = vmatpush1.bf16.msra.mxu0 %v685
    %1054 = vmatprep.subr.bf16.mxu0 %v694
    %1055 = vmatpush1.bf16.msra.mxu0 %v693
    %1056 = vmatprep.subr.bf16.mxu0 %v702
    %1057 = vmatpush1.bf16.msra.mxu0 %v701
    %1058 = vmatprep.subr.bf16.mxu0 %v710
    %1059 = vmatpush1.bf16.msra.mxu0 %v709
    %1060 = vmatprep.subr.bf16.mxu0 %v718
    %1061 = vmatpush1.bf16.msra.mxu0 %v717
    %1062 = vmatprep.subr.bf16.mxu0 %v726
    %1063 = vmatpush1.bf16.msra.mxu0 %v725
    %1064 = vmatprep.subr.bf16.mxu0 %v734
    %1065 = vmatpush1.bf16.msra.mxu0 %v733
    %1066 = vmatprep.subr.bf16.mxu0 %v742
    %1067 = vmatpush1.bf16.msra.mxu0 %v741
    %1068 = vmatprep.subr.bf16.mxu0 %v750
    %1069 = vmatpush1.bf16.msra.mxu0 %v749
    %1070 = vmatprep.subr.bf16.mxu0 %v758
    %1071 = vmatpush1.bf16.msra.mxu0 %v757
    %1072 = vmatprep.subr.bf16.mxu0 %v766
    %1073 = vmatpush1.bf16.msra.mxu0 %v765
    %1074 = vmatprep.subr.bf16.mxu0 %v774
    %1075 = vmatpush1.bf16.msra.mxu0 %v773
    %1076 = vmatprep.subr.bf16.mxu0 %v782
    %1077 = vmatpush1.bf16.msra.mxu0 %v781
    %1078 = vmatprep.subr.bf16.mxu0 %v790
    %1079 = vmatpush1.bf16.msra.mxu0 %v789
    %1080 = vmatprep.mubr.bf16.mxu0 %v276
    %1081 = vmatmul.mubr.bf16.gmra.mrb[0].mxu0 %v275
    %v1082 = vpop.f32.mrb[0].mxu0
    %v1083 = vadd.f32 %v259, %v1082
    %v1084 = vpop.f32.mrb[0].mxu0
    %v1085 = vadd.f32 %v260, %v1084
    %v1086 = vpop.f32.mrb[0].mxu0
    %v1087 = vadd.f32 %v267, %v1086
    %v1088 = vpop.f32.mrb[0].mxu0
    %v1089 = vadd.f32 %v268, %v1088
    %1090 = vdwg.mxu0
    %v1091 = vsub.f32 0.0, %v954
    %v1092 = vsub.f32 0.0, %v956
    %v1093 = vsub.f32 0.0, %v997
    %v1094 = vsub.f32 0.0, %v999
    %v1095 = vsub.f32 0.0, %v1040
    %v1096 = vsub.f32 0.0, %v1042
    %v1097 = vsub.f32 0.0, %v1083
    %v1098 = vsub.f32 0.0, %v1085
    %v1099 = vsub.f32 0.0, %v958
    %v1100 = vsub.f32 0.0, %v960
    %v1101 = vsub.f32 0.0, %v1001
    %v1102 = vsub.f32 0.0, %v1003
    %v1103 = vsub.f32 0.0, %v1044
    %v1104 = vsub.f32 0.0, %v1046
    %v1105 = vsub.f32 0.0, %v1087
    %v1106 = vsub.f32 0.0, %v1089
    %v1107 = vmul.f32 %v1091, 1.442695
    %v1108 = vpow.pop %v1107
    %v1109 = vmul.f32 %v1092, 1.442695
    %v1110 = vpow.pop %v1109
    %v1111 = vmul.f32 %v1093, 1.442695
    %v1112 = vpow.pop %v1111
    %v1113 = vmul.f32 %v1094, 1.442695
    %v1114 = vpow.pop %v1113
    %v1115 = vmul.f32 %v1095, 1.442695
    %v1116 = vpow.pop %v1115
    %v1117 = vmul.f32 %v1096, 1.442695
    %v1118 = vpow.pop %v1117
    %v1119 = vmul.f32 %v1097, 1.442695
    %v1120 = vpow.pop %v1119
    %v1121 = vmul.f32 %v1098, 1.442695
    %v1122 = vpow.pop %v1121
    %v1123 = vmul.f32 %v1099, 1.442695
    %v1124 = vpow.pop %v1123
    %v1125 = vmul.f32 %v1100, 1.442695
    %v1126 = vpow.pop %v1125
    %v1127 = vmul.f32 %v1101, 1.442695
    %v1128 = vpow.pop %v1127
    %v1129 = vmul.f32 %v1102, 1.442695
    %v1130 = vpow.pop %v1129
    %v1131 = vmul.f32 %v1103, 1.442695
    %v1132 = vpow.pop %v1131
    %v1133 = vmul.f32 %v1104, 1.442695
    %v1134 = vpow.pop %v1133
    %v1135 = vmul.f32 %v1105, 1.442695
    %v1136 = vpow.pop %v1135
    %v1137 = vmul.f32 %v1106, 1.442695
    %v1138 = vpow.pop %v1137
    %v1139 = vadd.f32 %v1108, 1.0
    %v1140 = vadd.f32 %v1110, 1.0
    %v1141 = vadd.f32 %v1112, 1.0
    %v1142 = vadd.f32 %v1114, 1.0
    %v1143 = vadd.f32 %v1116, 1.0
    %v1144 = vadd.f32 %v1118, 1.0
    %v1145 = vadd.f32 %v1120, 1.0
    %v1146 = vadd.f32 %v1122, 1.0
    %v1147 = vadd.f32 %v1124, 1.0
    %v1148 = vadd.f32 %v1126, 1.0
    %v1149 = vadd.f32 %v1128, 1.0
    %v1150 = vadd.f32 %v1130, 1.0
    %v1151 = vadd.f32 %v1132, 1.0
    %v1152 = vadd.f32 %v1134, 1.0
    %v1153 = vadd.f32 %v1136, 1.0
    %v1154 = vadd.f32 %v1138, 1.0
    %v1155 = vrcp.pop %v1139
    %v1156 = vmul.f32 1.0, %v1155
    %v1157 = vrcp.pop %v1140
    %v1158 = vmul.f32 1.0, %v1157
    %v1159 = vrcp.pop %v1141
    %v1160 = vmul.f32 1.0, %v1159
    %v1161 = vrcp.pop %v1142
    %v1162 = vmul.f32 1.0, %v1161
    %v1163 = vrcp.pop %v1143
    %v1164 = vmul.f32 1.0, %v1163
    %v1165 = vrcp.pop %v1144
    %v1166 = vmul.f32 1.0, %v1165
    %v1167 = vrcp.pop %v1145
    %v1168 = vmul.f32 1.0, %v1167
    %v1169 = vrcp.pop %v1146
    %v1170 = vmul.f32 1.0, %v1169
    %v1171 = vrcp.pop %v1147
    %v1172 = vmul.f32 1.0, %v1171
    %v1173 = vrcp.pop %v1148
    %v1174 = vmul.f32 1.0, %v1173
    %v1175 = vrcp.pop %v1149
    %v1176 = vmul.f32 1.0, %v1175
    %v1177 = vrcp.pop %v1150
    %v1178 = vmul.f32 1.0, %v1177
    %v1179 = vrcp.pop %v1151
    %v1180 = vmul.f32 1.0, %v1179
    %v1181 = vrcp.pop %v1152
    %v1182 = vmul.f32 1.0, %v1181
    %v1183 = vrcp.pop %v1153
    %v1184 = vmul.f32 1.0, %v1183
    %v1185 = vrcp.pop %v1154
    %v1186 = vmul.f32 1.0, %v1185
    %v1187 = vmul.f32 %v954, %v1156
    %v1188 = vmul.f32 %v956, %v1158
    %v1189 = vmul.f32 %v997, %v1160
    %v1190 = vmul.f32 %v999, %v1162
    %v1191 = vmul.f32 %v1040, %v1164
    %v1192 = vmul.f32 %v1042, %v1166
    %v1193 = vmul.f32 %v1083, %v1168
    %v1194 = vmul.f32 %v1085, %v1170
    %v1195 = vmul.f32 %v958, %v1172
    %v1196 = vmul.f32 %v960, %v1174
    %v1197 = vmul.f32 %v1001, %v1176
    %v1198 = vmul.f32 %v1003, %v1178
    %v1199 = vmul.f32 %v1044, %v1180
    %v1200 = vmul.f32 %v1046, %v1182
    %v1201 = vmul.f32 %v1087, %v1184
    %v1202 = vmul.f32 %v1089, %v1186
    %v1203 = vpack.c.bf16 %v1195, %v1187
    %v1204 = vpack.c.bf16 %v1196, %v1188
    %v1205 = vpack.c.bf16 %v1197, %v1189
    %v1206 = vpack.c.bf16 %v1198, %v1190
    %v1207 = vpack.c.bf16 %v1199, %v1191
    %v1208 = vpack.c.bf16 %v1200, %v1192
    %v1209 = vpack.c.bf16 %v1201, %v1193
    %v1210 = vpack.c.bf16 %v1202, %v1194
    %v1211 = vld [vmem:[#allocation8] sm:$0xff]
    %v1212 = vld [vmem:[#allocation8 + $0x8] sm:$0xff]
    %v1213 = vld [vmem:[#allocation8 + $0x10] sm:$0xff]
    %v1214 = vld [vmem:[#allocation8 + $0x18] sm:$0xff]
    %v1215 = vld [vmem:[#allocation8 + $0x20] sm:$0xff]
    %v1216 = vld [vmem:[#allocation8 + $0x28] sm:$0xff]
    %v1217 = vld [vmem:[#allocation8 + $0x30] sm:$0xff]
    %v1218 = vld [vmem:[#allocation8 + $0x38] sm:$0xff]
    %v1219 = vld [vmem:[#allocation8 + $0x40] sm:$0xff]
    %v1220 = vld [vmem:[#allocation8 + $0x48] sm:$0xff]
    %v1221 = vld [vmem:[#allocation8 + $0x50] sm:$0xff]
    %v1222 = vld [vmem:[#allocation8 + $0x58] sm:$0xff]
    %v1223 = vld [vmem:[#allocation8 + $0x60] sm:$0xff]
    %v1224 = vld [vmem:[#allocation8 + $0x68] sm:$0xff]
    %v1225 = vld [vmem:[#allocation8 + $0x70] sm:$0xff]
    %v1226 = vld [vmem:[#allocation8 + $0x78] sm:$0xff]
    %v1227 = vld [vmem:[#allocation8 + $0x80] sm:$0xff]
    %v1228 = vld [vmem:[#allocation8 + $0x88] sm:$0xff]
    %v1229 = vld [vmem:[#allocation8 + $0x90] sm:$0xff]
    %v1230 = vld [vmem:[#allocation8 + $0x98] sm:$0xff]
    %v1231 = vld [vmem:[#allocation8 + $0xa0] sm:$0xff]
    %v1232 = vld [vmem:[#allocation8 + $0xa8] sm:$0xff]
    %v1233 = vld [vmem:[#allocation8 + $0xb0] sm:$0xff]
    %v1234 = vld [vmem:[#allocation8 + $0xb8] sm:$0xff]
    %v1235 = vld [vmem:[#allocation8 + $0xc0] sm:$0xff]
    %v1236 = vld [vmem:[#allocation8 + $0xc8] sm:$0xff]
    %v1237 = vld [vmem:[#allocation8 + $0xd0] sm:$0xff]
    %v1238 = vld [vmem:[#allocation8 + $0xd8] sm:$0xff]
    %v1239 = vld [vmem:[#allocation8 + $0xe0] sm:$0xff]
    %v1240 = vld [vmem:[#allocation8 + $0xe8] sm:$0xff]
    %v1241 = vld [vmem:[#allocation8 + $0xf0] sm:$0xff]
    %v1242 = vld [vmem:[#allocation8 + $0xf8] sm:$0xff]
    %v1243 = vld [vmem:[#allocation8 + $0x100] sm:$0xff]
    %v1244 = vld [vmem:[#allocation8 + $0x108] sm:$0xff]
    %v1245 = vld [vmem:[#allocation8 + $0x110] sm:$0xff]
    %v1246 = vld [vmem:[#allocation8 + $0x118] sm:$0xff]
    %v1247 = vld [vmem:[#allocation8 + $0x120] sm:$0xff]
    %v1248 = vld [vmem:[#allocation8 + $0x128] sm:$0xff]
    %v1249 = vld [vmem:[#allocation8 + $0x130] sm:$0xff]
    %v1250 = vld [vmem:[#allocation8 + $0x138] sm:$0xff]
    %v1251 = vld [vmem:[#allocation8 + $0x140] sm:$0xff]
    %v1252 = vld [vmem:[#allocation8 + $0x148] sm:$0xff]
    %v1253 = vld [vmem:[#allocation8 + $0x150] sm:$0xff]
    %v1254 = vld [vmem:[#allocation8 + $0x158] sm:$0xff]
    %v1255 = vld [vmem:[#allocation8 + $0x160] sm:$0xff]
    %v1256 = vld [vmem:[#allocation8 + $0x168] sm:$0xff]
    %v1257 = vld [vmem:[#allocation8 + $0x170] sm:$0xff]
    %v1258 = vld [vmem:[#allocation8 + $0x178] sm:$0xff]
    %v1259 = vld [vmem:[#allocation8 + $0x180] sm:$0xff]
    %v1260 = vld [vmem:[#allocation8 + $0x188] sm:$0xff]
    %v1261 = vld [vmem:[#allocation8 + $0x190] sm:$0xff]
    %v1262 = vld [vmem:[#allocation8 + $0x198] sm:$0xff]
    %v1263 = vld [vmem:[#allocation8 + $0x1a0] sm:$0xff]
    %v1264 = vld [vmem:[#allocation8 + $0x1a8] sm:$0xff]
    %v1265 = vld [vmem:[#allocation8 + $0x1b0] sm:$0xff]
    %v1266 = vld [vmem:[#allocation8 + $0x1b8] sm:$0xff]
    %v1267 = vld [vmem:[#allocation8 + $0x1c0] sm:$0xff]
    %v1268 = vld [vmem:[#allocation8 + $0x1c8] sm:$0xff]
    %v1269 = vld [vmem:[#allocation8 + $0x1d0] sm:$0xff]
    %v1270 = vld [vmem:[#allocation8 + $0x1d8] sm:$0xff]
    %v1271 = vld [vmem:[#allocation8 + $0x1e0] sm:$0xff]
    %v1272 = vld [vmem:[#allocation8 + $0x1e8] sm:$0xff]
    %v1273 = vld [vmem:[#allocation8 + $0x1f0] sm:$0xff]
    %v1274 = vld [vmem:[#allocation8 + $0x1f8] sm:$0xff]
    %v1275 = vld [vmem:[#allocation8 + $0x200] sm:$0xff]
    %v1276 = vld [vmem:[#allocation8 + $0x208] sm:$0xff]
    %v1277 = vld [vmem:[#allocation8 + $0x210] sm:$0xff]
    %v1278 = vld [vmem:[#allocation8 + $0x218] sm:$0xff]
    %v1279 = vld [vmem:[#allocation8 + $0x220] sm:$0xff]
    %v1280 = vld [vmem:[#allocation8 + $0x228] sm:$0xff]
    %v1281 = vld [vmem:[#allocation8 + $0x230] sm:$0xff]
    %v1282 = vld [vmem:[#allocation8 + $0x238] sm:$0xff]
    %v1283 = vld [vmem:[#allocation8 + $0x240] sm:$0xff]
    %v1284 = vld [vmem:[#allocation8 + $0x248] sm:$0xff]
    %v1285 = vld [vmem:[#allocation8 + $0x250] sm:$0xff]
    %v1286 = vld [vmem:[#allocation8 + $0x258] sm:$0xff]
    %v1287 = vld [vmem:[#allocation8 + $0x260] sm:$0xff]
    %v1288 = vld [vmem:[#allocation8 + $0x268] sm:$0xff]
    %v1289 = vld [vmem:[#allocation8 + $0x270] sm:$0xff]
    %v1290 = vld [vmem:[#allocation8 + $0x278] sm:$0xff]
    %v1291 = vld [vmem:[#allocation8 + $0x280] sm:$0xff]
    %v1292 = vld [vmem:[#allocation8 + $0x288] sm:$0xff]
    %v1293 = vld [vmem:[#allocation8 + $0x290] sm:$0xff]
    %v1294 = vld [vmem:[#allocation8 + $0x298] sm:$0xff]
    %v1295 = vld [vmem:[#allocation8 + $0x2a0] sm:$0xff]
    %v1296 = vld [vmem:[#allocation8 + $0x2a8] sm:$0xff]
    %v1297 = vld [vmem:[#allocation8 + $0x2b0] sm:$0xff]
    %v1298 = vld [vmem:[#allocation8 + $0x2b8] sm:$0xff]
    %v1299 = vld [vmem:[#allocation8 + $0x2c0] sm:$0xff]
    %v1300 = vld [vmem:[#allocation8 + $0x2c8] sm:$0xff]
    %v1301 = vld [vmem:[#allocation8 + $0x2d0] sm:$0xff]
    %v1302 = vld [vmem:[#allocation8 + $0x2d8] sm:$0xff]
    %v1303 = vld [vmem:[#allocation8 + $0x2e0] sm:$0xff]
    %v1304 = vld [vmem:[#allocation8 + $0x2e8] sm:$0xff]
    %v1305 = vld [vmem:[#allocation8 + $0x2f0] sm:$0xff]
    %v1306 = vld [vmem:[#allocation8 + $0x2f8] sm:$0xff]
    %v1307 = vld [vmem:[#allocation8 + $0x300] sm:$0xff]
    %v1308 = vld [vmem:[#allocation8 + $0x308] sm:$0xff]
    %v1309 = vld [vmem:[#allocation8 + $0x310] sm:$0xff]
    %v1310 = vld [vmem:[#allocation8 + $0x318] sm:$0xff]
    %v1311 = vld [vmem:[#allocation8 + $0x320] sm:$0xff]
    %v1312 = vld [vmem:[#allocation8 + $0x328] sm:$0xff]
    %v1313 = vld [vmem:[#allocation8 + $0x330] sm:$0xff]
    %v1314 = vld [vmem:[#allocation8 + $0x338] sm:$0xff]
    %v1315 = vld [vmem:[#allocation8 + $0x340] sm:$0xff]
    %v1316 = vld [vmem:[#allocation8 + $0x348] sm:$0xff]
    %v1317 = vld [vmem:[#allocation8 + $0x350] sm:$0xff]
    %v1318 = vld [vmem:[#allocation8 + $0x358] sm:$0xff]
    %v1319 = vld [vmem:[#allocation8 + $0x360] sm:$0xff]
    %v1320 = vld [vmem:[#allocation8 + $0x368] sm:$0xff]
    %v1321 = vld [vmem:[#allocation8 + $0x370] sm:$0xff]
    %v1322 = vld [vmem:[#allocation8 + $0x378] sm:$0xff]
    %v1323 = vld [vmem:[#allocation8 + $0x380] sm:$0xff]
    %v1324 = vld [vmem:[#allocation8 + $0x388] sm:$0xff]
    %v1325 = vld [vmem:[#allocation8 + $0x390] sm:$0xff]
    %v1326 = vld [vmem:[#allocation8 + $0x398] sm:$0xff]
    %v1327 = vld [vmem:[#allocation8 + $0x3a0] sm:$0xff]
    %v1328 = vld [vmem:[#allocation8 + $0x3a8] sm:$0xff]
    %v1329 = vld [vmem:[#allocation8 + $0x3b0] sm:$0xff]
    %v1330 = vld [vmem:[#allocation8 + $0x3b8] sm:$0xff]
    %v1331 = vld [vmem:[#allocation8 + $0x3c0] sm:$0xff]
    %v1332 = vld [vmem:[#allocation8 + $0x3c8] sm:$0xff]
    %v1333 = vld [vmem:[#allocation8 + $0x3d0] sm:$0xff]
    %v1334 = vld [vmem:[#allocation8 + $0x3d8] sm:$0xff]
    %v1335 = vld [vmem:[#allocation8 + $0x3e0] sm:$0xff]
    %v1336 = vld [vmem:[#allocation8 + $0x3e8] sm:$0xff]
    %v1337 = vld [vmem:[#allocation8 + $0x3f0] sm:$0xff]
    %v1338 = vld [vmem:[#allocation8 + $0x3f8] sm:$0xff]
    %v1339 = vld [vmem:[#allocation8 + $0x400] sm:$0xff]
    %v1340 = vld [vmem:[#allocation8 + $0x408] sm:$0xff]
    %v1341 = vld [vmem:[#allocation8 + $0x410] sm:$0xff]
    %v1342 = vld [vmem:[#allocation8 + $0x418] sm:$0xff]
    %v1343 = vld [vmem:[#allocation8 + $0x420] sm:$0xff]
    %v1344 = vld [vmem:[#allocation8 + $0x428] sm:$0xff]
    %v1345 = vld [vmem:[#allocation8 + $0x430] sm:$0xff]
    %v1346 = vld [vmem:[#allocation8 + $0x438] sm:$0xff]
    %v1347 = vld [vmem:[#allocation8 + $0x440] sm:$0xff]
    %v1348 = vld [vmem:[#allocation8 + $0x448] sm:$0xff]
    %v1349 = vld [vmem:[#allocation8 + $0x450] sm:$0xff]
    %v1350 = vld [vmem:[#allocation8 + $0x458] sm:$0xff]
    %v1351 = vld [vmem:[#allocation8 + $0x460] sm:$0xff]
    %v1352 = vld [vmem:[#allocation8 + $0x468] sm:$0xff]
    %v1353 = vld [vmem:[#allocation8 + $0x470] sm:$0xff]
    %v1354 = vld [vmem:[#allocation8 + $0x478] sm:$0xff]
    %v1355 = vld [vmem:[#allocation8 + $0x480] sm:$0xff]
    %v1356 = vld [vmem:[#allocation8 + $0x488] sm:$0xff]
    %v1357 = vld [vmem:[#allocation8 + $0x490] sm:$0xff]
    %v1358 = vld [vmem:[#allocation8 + $0x498] sm:$0xff]
    %v1359 = vld [vmem:[#allocation8 + $0x4a0] sm:$0xff]
    %v1360 = vld [vmem:[#allocation8 + $0x4a8] sm:$0xff]
    %v1361 = vld [vmem:[#allocation8 + $0x4b0] sm:$0xff]
    %v1362 = vld [vmem:[#allocation8 + $0x4b8] sm:$0xff]
    %v1363 = vld [vmem:[#allocation8 + $0x4c0] sm:$0xff]
    %v1364 = vld [vmem:[#allocation8 + $0x4c8] sm:$0xff]
    %v1365 = vld [vmem:[#allocation8 + $0x4d0] sm:$0xff]
    %v1366 = vld [vmem:[#allocation8 + $0x4d8] sm:$0xff]
    %v1367 = vld [vmem:[#allocation8 + $0x4e0] sm:$0xff]
    %v1368 = vld [vmem:[#allocation8 + $0x4e8] sm:$0xff]
    %v1369 = vld [vmem:[#allocation8 + $0x4f0] sm:$0xff]
    %v1370 = vld [vmem:[#allocation8 + $0x4f8] sm:$0xff]
    %v1371 = vld [vmem:[#allocation8 + $0x500] sm:$0xff]
    %v1372 = vld [vmem:[#allocation8 + $0x508] sm:$0xff]
    %v1373 = vld [vmem:[#allocation8 + $0x510] sm:$0xff]
    %v1374 = vld [vmem:[#allocation8 + $0x518] sm:$0xff]
    %v1375 = vld [vmem:[#allocation8 + $0x520] sm:$0xff]
    %v1376 = vld [vmem:[#allocation8 + $0x528] sm:$0xff]
    %v1377 = vld [vmem:[#allocation8 + $0x530] sm:$0xff]
    %v1378 = vld [vmem:[#allocation8 + $0x538] sm:$0xff]
    %v1379 = vld [vmem:[#allocation8 + $0x540] sm:$0xff]
    %v1380 = vld [vmem:[#allocation8 + $0x548] sm:$0xff]
    %v1381 = vld [vmem:[#allocation8 + $0x550] sm:$0xff]
    %v1382 = vld [vmem:[#allocation8 + $0x558] sm:$0xff]
    %v1383 = vld [vmem:[#allocation8 + $0x560] sm:$0xff]
    %v1384 = vld [vmem:[#allocation8 + $0x568] sm:$0xff]
    %v1385 = vld [vmem:[#allocation8 + $0x570] sm:$0xff]
    %v1386 = vld [vmem:[#allocation8 + $0x578] sm:$0xff]
    %v1387 = vld [vmem:[#allocation8 + $0x580] sm:$0xff]
    %v1388 = vld [vmem:[#allocation8 + $0x588] sm:$0xff]
    %v1389 = vld [vmem:[#allocation8 + $0x590] sm:$0xff]
    %v1390 = vld [vmem:[#allocation8 + $0x598] sm:$0xff]
    %v1391 = vld [vmem:[#allocation8 + $0x5a0] sm:$0xff]
    %v1392 = vld [vmem:[#allocation8 + $0x5a8] sm:$0xff]
    %v1393 = vld [vmem:[#allocation8 + $0x5b0] sm:$0xff]
    %v1394 = vld [vmem:[#allocation8 + $0x5b8] sm:$0xff]
    %v1395 = vld [vmem:[#allocation8 + $0x5c0] sm:$0xff]
    %v1396 = vld [vmem:[#allocation8 + $0x5c8] sm:$0xff]
    %v1397 = vld [vmem:[#allocation8 + $0x5d0] sm:$0xff]
    %v1398 = vld [vmem:[#allocation8 + $0x5d8] sm:$0xff]
    %v1399 = vld [vmem:[#allocation8 + $0x5e0] sm:$0xff]
    %v1400 = vld [vmem:[#allocation8 + $0x5e8] sm:$0xff]
    %v1401 = vld [vmem:[#allocation8 + $0x5f0] sm:$0xff]
    %v1402 = vld [vmem:[#allocation8 + $0x5f8] sm:$0xff]
    %v1403 = vld [vmem:[#allocation8 + $0x600] sm:$0xff]
    %v1404 = vld [vmem:[#allocation8 + $0x608] sm:$0xff]
    %v1405 = vld [vmem:[#allocation8 + $0x610] sm:$0xff]
    %v1406 = vld [vmem:[#allocation8 + $0x618] sm:$0xff]
    %v1407 = vld [vmem:[#allocation8 + $0x620] sm:$0xff]
    %v1408 = vld [vmem:[#allocation8 + $0x628] sm:$0xff]
    %v1409 = vld [vmem:[#allocation8 + $0x630] sm:$0xff]
    %v1410 = vld [vmem:[#allocation8 + $0x638] sm:$0xff]
    %v1411 = vld [vmem:[#allocation8 + $0x640] sm:$0xff]
    %v1412 = vld [vmem:[#allocation8 + $0x648] sm:$0xff]
    %v1413 = vld [vmem:[#allocation8 + $0x650] sm:$0xff]
    %v1414 = vld [vmem:[#allocation8 + $0x658] sm:$0xff]
    %v1415 = vld [vmem:[#allocation8 + $0x660] sm:$0xff]
    %v1416 = vld [vmem:[#allocation8 + $0x668] sm:$0xff]
    %v1417 = vld [vmem:[#allocation8 + $0x670] sm:$0xff]
    %v1418 = vld [vmem:[#allocation8 + $0x678] sm:$0xff]
    %v1419 = vld [vmem:[#allocation8 + $0x680] sm:$0xff]
    %v1420 = vld [vmem:[#allocation8 + $0x688] sm:$0xff]
    %v1421 = vld [vmem:[#allocation8 + $0x690] sm:$0xff]
    %v1422 = vld [vmem:[#allocation8 + $0x698] sm:$0xff]
    %v1423 = vld [vmem:[#allocation8 + $0x6a0] sm:$0xff]
    %v1424 = vld [vmem:[#allocation8 + $0x6a8] sm:$0xff]
    %v1425 = vld [vmem:[#allocation8 + $0x6b0] sm:$0xff]
    %v1426 = vld [vmem:[#allocation8 + $0x6b8] sm:$0xff]
    %v1427 = vld [vmem:[#allocation8 + $0x6c0] sm:$0xff]
    %v1428 = vld [vmem:[#allocation8 + $0x6c8] sm:$0xff]
    %v1429 = vld [vmem:[#allocation8 + $0x6d0] sm:$0xff]
    %v1430 = vld [vmem:[#allocation8 + $0x6d8] sm:$0xff]
    %v1431 = vld [vmem:[#allocation8 + $0x6e0] sm:$0xff]
    %v1432 = vld [vmem:[#allocation8 + $0x6e8] sm:$0xff]
    %v1433 = vld [vmem:[#allocation8 + $0x6f0] sm:$0xff]
    %v1434 = vld [vmem:[#allocation8 + $0x6f8] sm:$0xff]
    %v1435 = vld [vmem:[#allocation8 + $0x700] sm:$0xff]
    %v1436 = vld [vmem:[#allocation8 + $0x708] sm:$0xff]
    %v1437 = vld [vmem:[#allocation8 + $0x710] sm:$0xff]
    %v1438 = vld [vmem:[#allocation8 + $0x718] sm:$0xff]
    %v1439 = vld [vmem:[#allocation8 + $0x720] sm:$0xff]
    %v1440 = vld [vmem:[#allocation8 + $0x728] sm:$0xff]
    %v1441 = vld [vmem:[#allocation8 + $0x730] sm:$0xff]
    %v1442 = vld [vmem:[#allocation8 + $0x738] sm:$0xff]
    %v1443 = vld [vmem:[#allocation8 + $0x740] sm:$0xff]
    %v1444 = vld [vmem:[#allocation8 + $0x748] sm:$0xff]
    %v1445 = vld [vmem:[#allocation8 + $0x750] sm:$0xff]
    %v1446 = vld [vmem:[#allocation8 + $0x758] sm:$0xff]
    %v1447 = vld [vmem:[#allocation8 + $0x760] sm:$0xff]
    %v1448 = vld [vmem:[#allocation8 + $0x768] sm:$0xff]
    %v1449 = vld [vmem:[#allocation8 + $0x770] sm:$0xff]
    %v1450 = vld [vmem:[#allocation8 + $0x778] sm:$0xff]
    %v1451 = vld [vmem:[#allocation8 + $0x780] sm:$0xff]
    %v1452 = vld [vmem:[#allocation8 + $0x788] sm:$0xff]
    %v1453 = vld [vmem:[#allocation8 + $0x790] sm:$0xff]
    %v1454 = vld [vmem:[#allocation8 + $0x798] sm:$0xff]
    %v1455 = vld [vmem:[#allocation8 + $0x7a0] sm:$0xff]
    %v1456 = vld [vmem:[#allocation8 + $0x7a8] sm:$0xff]
    %v1457 = vld [vmem:[#allocation8 + $0x7b0] sm:$0xff]
    %v1458 = vld [vmem:[#allocation8 + $0x7b8] sm:$0xff]
    %v1459 = vld [vmem:[#allocation8 + $0x7c0] sm:$0xff]
    %v1460 = vld [vmem:[#allocation8 + $0x7c8] sm:$0xff]
    %v1461 = vld [vmem:[#allocation8 + $0x7d0] sm:$0xff]
    %v1462 = vld [vmem:[#allocation8 + $0x7d8] sm:$0xff]
    %v1463 = vld [vmem:[#allocation8 + $0x7e0] sm:$0xff]
    %v1464 = vld [vmem:[#allocation8 + $0x7e8] sm:$0xff]
    %v1465 = vld [vmem:[#allocation8 + $0x7f0] sm:$0xff]
    %v1466 = vld [vmem:[#allocation8 + $0x7f8] sm:$0xff]
    %v1467 = vld [vmem:[%s4] sm:$0xf]
    %v1469 = vlaneseq
    %v1470 = vshrl.u32 %v1469, 7
    %v1471 = vsub.s32 0, %v1470
    %v1472 = vrot.slane %v1467, %v1471
    %v1473 = vlaneseq
    %v1474 = vshrl.u32 %v1473, 7
    %v1475 = vsub.s32 1, %v1474
    %v1476 = vrot.slane %v1467, %v1475
    %v1477 = vlaneseq
    %v1478 = vshrl.u32 %v1477, 7
    %v1479 = vsub.s32 2, %v1478
    %v1480 = vrot.slane %v1467, %v1479
    %v1481 = vlaneseq
    %v1482 = vshrl.u32 %v1481, 7
    %v1483 = vsub.s32 3, %v1482
    %v1484 = vrot.slane %v1467, %v1483
    %v1745 = vunpack.c.l.b16 %v1211
    %v1746 = vunpack.c.h.b16 %v1211
    %v1747 = vunpack.c.l.b16 %v1212
    %v1748 = vunpack.c.h.b16 %v1212
    %v1749 = vunpack.c.l.b16 %v1213
    %v1750 = vunpack.c.h.b16 %v1213
    %v1751 = vunpack.c.l.b16 %v1214
    %v1752 = vunpack.c.h.b16 %v1214
    %v1753 = vunpack.c.l.b16 %v1215
    %v1754 = vunpack.c.h.b16 %v1215
    %v1755 = vunpack.c.l.b16 %v1216
    %v1756 = vunpack.c.h.b16 %v1216
    %v1757 = vunpack.c.l.b16 %v1217
    %v1758 = vunpack.c.h.b16 %v1217
    %v1759 = vunpack.c.l.b16 %v1218
    %v1760 = vunpack.c.h.b16 %v1218
    %v1761 = vunpack.c.l.b16 %v1219
    %v1762 = vunpack.c.h.b16 %v1219
    %v1763 = vunpack.c.l.b16 %v1220
    %v1764 = vunpack.c.h.b16 %v1220
    %v1765 = vunpack.c.l.b16 %v1221
    %v1766 = vunpack.c.h.b16 %v1221
    %v1767 = vunpack.c.l.b16 %v1222
    %v1768 = vunpack.c.h.b16 %v1222
    %v1769 = vunpack.c.l.b16 %v1223
    %v1770 = vunpack.c.h.b16 %v1223
    %v1771 = vunpack.c.l.b16 %v1224
    %v1772 = vunpack.c.h.b16 %v1224
    %v1773 = vunpack.c.l.b16 %v1225
    %v1774 = vunpack.c.h.b16 %v1225
    %v1775 = vunpack.c.l.b16 %v1226
    %v1776 = vunpack.c.h.b16 %v1226
    %v1777 = vunpack.c.l.b16 %v1227
    %v1778 = vunpack.c.h.b16 %v1227
    %v1779 = vunpack.c.l.b16 %v1228
    %v1780 = vunpack.c.h.b16 %v1228
    %v1781 = vunpack.c.l.b16 %v1229
    %v1782 = vunpack.c.h.b16 %v1229
    %v1783 = vunpack.c.l.b16 %v1230
    %v1784 = vunpack.c.h.b16 %v1230
    %v1785 = vunpack.c.l.b16 %v1231
    %v1786 = vunpack.c.h.b16 %v1231
    %v1787 = vunpack.c.l.b16 %v1232
    %v1788 = vunpack.c.h.b16 %v1232
    %v1789 = vunpack.c.l.b16 %v1233
    %v1790 = vunpack.c.h.b16 %v1233
    %v1791 = vunpack.c.l.b16 %v1234
    %v1792 = vunpack.c.h.b16 %v1234
    %v1793 = vunpack.c.l.b16 %v1235
    %v1794 = vunpack.c.h.b16 %v1235
    %v1795 = vunpack.c.l.b16 %v1236
    %v1796 = vunpack.c.h.b16 %v1236
    %v1797 = vunpack.c.l.b16 %v1237
    %v1798 = vunpack.c.h.b16 %v1237
    %v1799 = vunpack.c.l.b16 %v1238
    %v1800 = vunpack.c.h.b16 %v1238
    %v1801 = vunpack.c.l.b16 %v1239
    %v1802 = vunpack.c.h.b16 %v1239
    %v1803 = vunpack.c.l.b16 %v1240
    %v1804 = vunpack.c.h.b16 %v1240
    %v1805 = vunpack.c.l.b16 %v1241
    %v1806 = vunpack.c.h.b16 %v1241
    %v1807 = vunpack.c.l.b16 %v1242
    %v1808 = vunpack.c.h.b16 %v1242
    %v1809 = vunpack.c.l.b16 %v1243
    %v1810 = vunpack.c.h.b16 %v1243
    %v1811 = vunpack.c.l.b16 %v1244
    %v1812 = vunpack.c.h.b16 %v1244
    %v1813 = vunpack.c.l.b16 %v1245
    %v1814 = vunpack.c.h.b16 %v1245
    %v1815 = vunpack.c.l.b16 %v1246
    %v1816 = vunpack.c.h.b16 %v1246
    %v1817 = vunpack.c.l.b16 %v1247
    %v1818 = vunpack.c.h.b16 %v1247
    %v1819 = vunpack.c.l.b16 %v1248
    %v1820 = vunpack.c.h.b16 %v1248
    %v1821 = vunpack.c.l.b16 %v1249
    %v1822 = vunpack.c.h.b16 %v1249
    %v1823 = vunpack.c.l.b16 %v1250
    %v1824 = vunpack.c.h.b16 %v1250
    %v1825 = vunpack.c.l.b16 %v1251
    %v1826 = vunpack.c.h.b16 %v1251
    %v1827 = vunpack.c.l.b16 %v1252
    %v1828 = vunpack.c.h.b16 %v1252
    %v1829 = vunpack.c.l.b16 %v1253
    %v1830 = vunpack.c.h.b16 %v1253
    %v1831 = vunpack.c.l.b16 %v1254
    %v1832 = vunpack.c.h.b16 %v1254
    %v1833 = vunpack.c.l.b16 %v1255
    %v1834 = vunpack.c.h.b16 %v1255
    %v1835 = vunpack.c.l.b16 %v1256
    %v1836 = vunpack.c.h.b16 %v1256
    %v1837 = vunpack.c.l.b16 %v1257
    %v1838 = vunpack.c.h.b16 %v1257
    %v1839 = vunpack.c.l.b16 %v1258
    %v1840 = vunpack.c.h.b16 %v1258
    %v1841 = vunpack.c.l.b16 %v1259
    %v1842 = vunpack.c.h.b16 %v1259
    %v1843 = vunpack.c.l.b16 %v1260
    %v1844 = vunpack.c.h.b16 %v1260
    %v1845 = vunpack.c.l.b16 %v1261
    %v1846 = vunpack.c.h.b16 %v1261
    %v1847 = vunpack.c.l.b16 %v1262
    %v1848 = vunpack.c.h.b16 %v1262
    %v1849 = vunpack.c.l.b16 %v1263
    %v1850 = vunpack.c.h.b16 %v1263
    %v1851 = vunpack.c.l.b16 %v1264
    %v1852 = vunpack.c.h.b16 %v1264
    %v1853 = vunpack.c.l.b16 %v1265
    %v1854 = vunpack.c.h.b16 %v1265
    %v1855 = vunpack.c.l.b16 %v1266
    %v1856 = vunpack.c.h.b16 %v1266
    %v1857 = vunpack.c.l.b16 %v1267
    %v1858 = vunpack.c.h.b16 %v1267
    %v1859 = vunpack.c.l.b16 %v1268
    %v1860 = vunpack.c.h.b16 %v1268
    %v1861 = vunpack.c.l.b16 %v1269
    %v1862 = vunpack.c.h.b16 %v1269
    %v1863 = vunpack.c.l.b16 %v1270
    %v1864 = vunpack.c.h.b16 %v1270
    %v1865 = vunpack.c.l.b16 %v1271
    %v1866 = vunpack.c.h.b16 %v1271
    %v1867 = vunpack.c.l.b16 %v1272
    %v1868 = vunpack.c.h.b16 %v1272
    %v1869 = vunpack.c.l.b16 %v1273
    %v1870 = vunpack.c.h.b16 %v1273
    %v1871 = vunpack.c.l.b16 %v1274
    %v1872 = vunpack.c.h.b16 %v1274
    %v1873 = vunpack.c.l.b16 %v1275
    %v1874 = vunpack.c.h.b16 %v1275
    %v1875 = vunpack.c.l.b16 %v1276
    %v1876 = vunpack.c.h.b16 %v1276
    %v1877 = vunpack.c.l.b16 %v1277
    %v1878 = vunpack.c.h.b16 %v1277
    %v1879 = vunpack.c.l.b16 %v1278
    %v1880 = vunpack.c.h.b16 %v1278
    %v1881 = vunpack.c.l.b16 %v1279
    %v1882 = vunpack.c.h.b16 %v1279
    %v1883 = vunpack.c.l.b16 %v1280
    %v1884 = vunpack.c.h.b16 %v1280
    %v1885 = vunpack.c.l.b16 %v1281
    %v1886 = vunpack.c.h.b16 %v1281
    %v1887 = vunpack.c.l.b16 %v1282
    %v1888 = vunpack.c.h.b16 %v1282
    %v1889 = vunpack.c.l.b16 %v1283
    %v1890 = vunpack.c.h.b16 %v1283
    %v1891 = vunpack.c.l.b16 %v1284
    %v1892 = vunpack.c.h.b16 %v1284
    %v1893 = vunpack.c.l.b16 %v1285
    %v1894 = vunpack.c.h.b16 %v1285
    %v1895 = vunpack.c.l.b16 %v1286
    %v1896 = vunpack.c.h.b16 %v1286
    %v1897 = vunpack.c.l.b16 %v1287
    %v1898 = vunpack.c.h.b16 %v1287
    %v1899 = vunpack.c.l.b16 %v1288
    %v1900 = vunpack.c.h.b16 %v1288
    %v1901 = vunpack.c.l.b16 %v1289
    %v1902 = vunpack.c.h.b16 %v1289
    %v1903 = vunpack.c.l.b16 %v1290
    %v1904 = vunpack.c.h.b16 %v1290
    %v1905 = vunpack.c.l.b16 %v1291
    %v1906 = vunpack.c.h.b16 %v1291
    %v1907 = vunpack.c.l.b16 %v1292
    %v1908 = vunpack.c.h.b16 %v1292
    %v1909 = vunpack.c.l.b16 %v1293
    %v1910 = vunpack.c.h.b16 %v1293
    %v1911 = vunpack.c.l.b16 %v1294
    %v1912 = vunpack.c.h.b16 %v1294
    %v1913 = vunpack.c.l.b16 %v1295
    %v1914 = vunpack.c.h.b16 %v1295
    %v1915 = vunpack.c.l.b16 %v1296
    %v1916 = vunpack.c.h.b16 %v1296
    %v1917 = vunpack.c.l.b16 %v1297
    %v1918 = vunpack.c.h.b16 %v1297
    %v1919 = vunpack.c.l.b16 %v1298
    %v1920 = vunpack.c.h.b16 %v1298
    %v1921 = vunpack.c.l.b16 %v1299
    %v1922 = vunpack.c.h.b16 %v1299
    %v1923 = vunpack.c.l.b16 %v1300
    %v1924 = vunpack.c.h.b16 %v1300
    %v1925 = vunpack.c.l.b16 %v1301
    %v1926 = vunpack.c.h.b16 %v1301
    %v1927 = vunpack.c.l.b16 %v1302
    %v1928 = vunpack.c.h.b16 %v1302
    %v1929 = vunpack.c.l.b16 %v1303
    %v1930 = vunpack.c.h.b16 %v1303
    %v1931 = vunpack.c.l.b16 %v1304
    %v1932 = vunpack.c.h.b16 %v1304
    %v1933 = vunpack.c.l.b16 %v1305
    %v1934 = vunpack.c.h.b16 %v1305
    %v1935 = vunpack.c.l.b16 %v1306
    %v1936 = vunpack.c.h.b16 %v1306
    %v1937 = vunpack.c.l.b16 %v1307
    %v1938 = vunpack.c.h.b16 %v1307
    %v1939 = vunpack.c.l.b16 %v1308
    %v1940 = vunpack.c.h.b16 %v1308
    %v1941 = vunpack.c.l.b16 %v1309
    %v1942 = vunpack.c.h.b16 %v1309
    %v1943 = vunpack.c.l.b16 %v1310
    %v1944 = vunpack.c.h.b16 %v1310
    %v1945 = vunpack.c.l.b16 %v1311
    %v1946 = vunpack.c.h.b16 %v1311
    %v1947 = vunpack.c.l.b16 %v1312
    %v1948 = vunpack.c.h.b16 %v1312
    %v1949 = vunpack.c.l.b16 %v1313
    %v1950 = vunpack.c.h.b16 %v1313
    %v1951 = vunpack.c.l.b16 %v1314
    %v1952 = vunpack.c.h.b16 %v1314
    %v1953 = vunpack.c.l.b16 %v1315
    %v1954 = vunpack.c.h.b16 %v1315
    %v1955 = vunpack.c.l.b16 %v1316
    %v1956 = vunpack.c.h.b16 %v1316
    %v1957 = vunpack.c.l.b16 %v1317
    %v1958 = vunpack.c.h.b16 %v1317
    %v1959 = vunpack.c.l.b16 %v1318
    %v1960 = vunpack.c.h.b16 %v1318
    %v1961 = vunpack.c.l.b16 %v1319
    %v1962 = vunpack.c.h.b16 %v1319
    %v1963 = vunpack.c.l.b16 %v1320
    %v1964 = vunpack.c.h.b16 %v1320
    %v1965 = vunpack.c.l.b16 %v1321
    %v1966 = vunpack.c.h.b16 %v1321
    %v1967 = vunpack.c.l.b16 %v1322
    %v1968 = vunpack.c.h.b16 %v1322
    %v1969 = vunpack.c.l.b16 %v1323
    %v1970 = vunpack.c.h.b16 %v1323
    %v1971 = vunpack.c.l.b16 %v1324
    %v1972 = vunpack.c.h.b16 %v1324
    %v1973 = vunpack.c.l.b16 %v1325
    %v1974 = vunpack.c.h.b16 %v1325
    %v1975 = vunpack.c.l.b16 %v1326
    %v1976 = vunpack.c.h.b16 %v1326
    %v1977 = vunpack.c.l.b16 %v1327
    %v1978 = vunpack.c.h.b16 %v1327
    %v1979 = vunpack.c.l.b16 %v1328
    %v1980 = vunpack.c.h.b16 %v1328
    %v1981 = vunpack.c.l.b16 %v1329
    %v1982 = vunpack.c.h.b16 %v1329
    %v1983 = vunpack.c.l.b16 %v1330
    %v1984 = vunpack.c.h.b16 %v1330
    %v1985 = vunpack.c.l.b16 %v1331
    %v1986 = vunpack.c.h.b16 %v1331
    %v1987 = vunpack.c.l.b16 %v1332
    %v1988 = vunpack.c.h.b16 %v1332
    %v1989 = vunpack.c.l.b16 %v1333
    %v1990 = vunpack.c.h.b16 %v1333
    %v1991 = vunpack.c.l.b16 %v1334
    %v1992 = vunpack.c.h.b16 %v1334
    %v1993 = vunpack.c.l.b16 %v1335
    %v1994 = vunpack.c.h.b16 %v1335
    %v1995 = vunpack.c.l.b16 %v1336
    %v1996 = vunpack.c.h.b16 %v1336
    %v1997 = vunpack.c.l.b16 %v1337
    %v1998 = vunpack.c.h.b16 %v1337
    %v1999 = vunpack.c.l.b16 %v1338
    %v2000 = vunpack.c.h.b16 %v1338
    %v2001 = vunpack.c.l.b16 %v1339
    %v2002 = vunpack.c.h.b16 %v1339
    %v2003 = vunpack.c.l.b16 %v1340
    %v2004 = vunpack.c.h.b16 %v1340
    %v2005 = vunpack.c.l.b16 %v1341
    %v2006 = vunpack.c.h.b16 %v1341
    %v2007 = vunpack.c.l.b16 %v1342
    %v2008 = vunpack.c.h.b16 %v1342
    %v2009 = vunpack.c.l.b16 %v1343
    %v2010 = vunpack.c.h.b16 %v1343
    %v2011 = vunpack.c.l.b16 %v1344
    %v2012 = vunpack.c.h.b16 %v1344
    %v2013 = vunpack.c.l.b16 %v1345
    %v2014 = vunpack.c.h.b16 %v1345
    %v2015 = vunpack.c.l.b16 %v1346
    %v2016 = vunpack.c.h.b16 %v1346
    %v2017 = vunpack.c.l.b16 %v1347
    %v2018 = vunpack.c.h.b16 %v1347
    %v2019 = vunpack.c.l.b16 %v1348
    %v2020 = vunpack.c.h.b16 %v1348
    %v2021 = vunpack.c.l.b16 %v1349
    %v2022 = vunpack.c.h.b16 %v1349
    %v2023 = vunpack.c.l.b16 %v1350
    %v2024 = vunpack.c.h.b16 %v1350
    %v2025 = vunpack.c.l.b16 %v1351
    %v2026 = vunpack.c.h.b16 %v1351
    %v2027 = vunpack.c.l.b16 %v1352
    %v2028 = vunpack.c.h.b16 %v1352
    %v2029 = vunpack.c.l.b16 %v1353
    %v2030 = vunpack.c.h.b16 %v1353
    %v2031 = vunpack.c.l.b16 %v1354
    %v2032 = vunpack.c.h.b16 %v1354
    %v2033 = vunpack.c.l.b16 %v1355
    %v2034 = vunpack.c.h.b16 %v1355
    %v2035 = vunpack.c.l.b16 %v1356
    %v2036 = vunpack.c.h.b16 %v1356
    %v2037 = vunpack.c.l.b16 %v1357
    %v2038 = vunpack.c.h.b16 %v1357
    %v2039 = vunpack.c.l.b16 %v1358
    %v2040 = vunpack.c.h.b16 %v1358
    %v2041 = vunpack.c.l.b16 %v1359
    %v2042 = vunpack.c.h.b16 %v1359
    %v2043 = vunpack.c.l.b16 %v1360
    %v2044 = vunpack.c.h.b16 %v1360
    %v2045 = vunpack.c.l.b16 %v1361
    %v2046 = vunpack.c.h.b16 %v1361
    %v2047 = vunpack.c.l.b16 %v1362
    %v2048 = vunpack.c.h.b16 %v1362
    %v2049 = vunpack.c.l.b16 %v1363
    %v2050 = vunpack.c.h.b16 %v1363
    %v2051 = vunpack.c.l.b16 %v1364
    %v2052 = vunpack.c.h.b16 %v1364
    %v2053 = vunpack.c.l.b16 %v1365
    %v2054 = vunpack.c.h.b16 %v1365
    %v2055 = vunpack.c.l.b16 %v1366
    %v2056 = vunpack.c.h.b16 %v1366
    %v2057 = vunpack.c.l.b16 %v1367
    %v2058 = vunpack.c.h.b16 %v1367
    %v2059 = vunpack.c.l.b16 %v1368
    %v2060 = vunpack.c.h.b16 %v1368
    %v2061 = vunpack.c.l.b16 %v1369
    %v2062 = vunpack.c.h.b16 %v1369
    %v2063 = vunpack.c.l.b16 %v1370
    %v2064 = vunpack.c.h.b16 %v1370
    %v2065 = vunpack.c.l.b16 %v1371
    %v2066 = vunpack.c.h.b16 %v1371
    %v2067 = vunpack.c.l.b16 %v1372
    %v2068 = vunpack.c.h.b16 %v1372
    %v2069 = vunpack.c.l.b16 %v1373
    %v2070 = vunpack.c.h.b16 %v1373
    %v2071 = vunpack.c.l.b16 %v1374
    %v2072 = vunpack.c.h.b16 %v1374
    %v2073 = vunpack.c.l.b16 %v1375
    %v2074 = vunpack.c.h.b16 %v1375
    %v2075 = vunpack.c.l.b16 %v1376
    %v2076 = vunpack.c.h.b16 %v1376
    %v2077 = vunpack.c.l.b16 %v1377
    %v2078 = vunpack.c.h.b16 %v1377
    %v2079 = vunpack.c.l.b16 %v1378
    %v2080 = vunpack.c.h.b16 %v1378
    %v2081 = vunpack.c.l.b16 %v1379
    %v2082 = vunpack.c.h.b16 %v1379
    %v2083 = vunpack.c.l.b16 %v1380
    %v2084 = vunpack.c.h.b16 %v1380
    %v2085 = vunpack.c.l.b16 %v1381
    %v2086 = vunpack.c.h.b16 %v1381
    %v2087 = vunpack.c.l.b16 %v1382
    %v2088 = vunpack.c.h.b16 %v1382
    %v2089 = vunpack.c.l.b16 %v1383
    %v2090 = vunpack.c.h.b16 %v1383
    %v2091 = vunpack.c.l.b16 %v1384
    %v2092 = vunpack.c.h.b16 %v1384
    %v2093 = vunpack.c.l.b16 %v1385
    %v2094 = vunpack.c.h.b16 %v1385
    %v2095 = vunpack.c.l.b16 %v1386
    %v2096 = vunpack.c.h.b16 %v1386
    %v2097 = vunpack.c.l.b16 %v1387
    %v2098 = vunpack.c.h.b16 %v1387
    %v2099 = vunpack.c.l.b16 %v1388
    %v2100 = vunpack.c.h.b16 %v1388
    %v2101 = vunpack.c.l.b16 %v1389
    %v2102 = vunpack.c.h.b16 %v1389
    %v2103 = vunpack.c.l.b16 %v1390
    %v2104 = vunpack.c.h.b16 %v1390
    %v2105 = vunpack.c.l.b16 %v1391
    %v2106 = vunpack.c.h.b16 %v1391
    %v2107 = vunpack.c.l.b16 %v1392
    %v2108 = vunpack.c.h.b16 %v1392
    %v2109 = vunpack.c.l.b16 %v1393
    %v2110 = vunpack.c.h.b16 %v1393
    %v2111 = vunpack.c.l.b16 %v1394
    %v2112 = vunpack.c.h.b16 %v1394
    %v2113 = vunpack.c.l.b16 %v1395
    %v2114 = vunpack.c.h.b16 %v1395
    %v2115 = vunpack.c.l.b16 %v1396
    %v2116 = vunpack.c.h.b16 %v1396
    %v2117 = vunpack.c.l.b16 %v1397
    %v2118 = vunpack.c.h.b16 %v1397
    %v2119 = vunpack.c.l.b16 %v1398
    %v2120 = vunpack.c.h.b16 %v1398
    %v2121 = vunpack.c.l.b16 %v1399
    %v2122 = vunpack.c.h.b16 %v1399
    %v2123 = vunpack.c.l.b16 %v1400
    %v2124 = vunpack.c.h.b16 %v1400
    %v2125 = vunpack.c.l.b16 %v1401
    %v2126 = vunpack.c.h.b16 %v1401
    %v2127 = vunpack.c.l.b16 %v1402
    %v2128 = vunpack.c.h.b16 %v1402
    %v2129 = vunpack.c.l.b16 %v1403
    %v2130 = vunpack.c.h.b16 %v1403
    %v2131 = vunpack.c.l.b16 %v1404
    %v2132 = vunpack.c.h.b16 %v1404
    %v2133 = vunpack.c.l.b16 %v1405
    %v2134 = vunpack.c.h.b16 %v1405
    %v2135 = vunpack.c.l.b16 %v1406
    %v2136 = vunpack.c.h.b16 %v1406
    %v2137 = vunpack.c.l.b16 %v1407
    %v2138 = vunpack.c.h.b16 %v1407
    %v2139 = vunpack.c.l.b16 %v1408
    %v2140 = vunpack.c.h.b16 %v1408
    %v2141 = vunpack.c.l.b16 %v1409
    %v2142 = vunpack.c.h.b16 %v1409
    %v2143 = vunpack.c.l.b16 %v1410
    %v2144 = vunpack.c.h.b16 %v1410
    %v2145 = vunpack.c.l.b16 %v1411
    %v2146 = vunpack.c.h.b16 %v1411
    %v2147 = vunpack.c.l.b16 %v1412
    %v2148 = vunpack.c.h.b16 %v1412
    %v2149 = vunpack.c.l.b16 %v1413
    %v2150 = vunpack.c.h.b16 %v1413
    %v2151 = vunpack.c.l.b16 %v1414
    %v2152 = vunpack.c.h.b16 %v1414
    %v2153 = vunpack.c.l.b16 %v1415
    %v2154 = vunpack.c.h.b16 %v1415
    %v2155 = vunpack.c.l.b16 %v1416
    %v2156 = vunpack.c.h.b16 %v1416
    %v2157 = vunpack.c.l.b16 %v1417
    %v2158 = vunpack.c.h.b16 %v1417
    %v2159 = vunpack.c.l.b16 %v1418
    %v2160 = vunpack.c.h.b16 %v1418
    %v2161 = vunpack.c.l.b16 %v1419
    %v2162 = vunpack.c.h.b16 %v1419
    %v2163 = vunpack.c.l.b16 %v1420
    %v2164 = vunpack.c.h.b16 %v1420
    %v2165 = vunpack.c.l.b16 %v1421
    %v2166 = vunpack.c.h.b16 %v1421
    %v2167 = vunpack.c.l.b16 %v1422
    %v2168 = vunpack.c.h.b16 %v1422
    %v2169 = vunpack.c.l.b16 %v1423
    %v2170 = vunpack.c.h.b16 %v1423
    %v2171 = vunpack.c.l.b16 %v1424
    %v2172 = vunpack.c.h.b16 %v1424
    %v2173 = vunpack.c.l.b16 %v1425
    %v2174 = vunpack.c.h.b16 %v1425
    %v2175 = vunpack.c.l.b16 %v1426
    %v2176 = vunpack.c.h.b16 %v1426
    %v2177 = vunpack.c.l.b16 %v1427
    %v2178 = vunpack.c.h.b16 %v1427
    %v2179 = vunpack.c.l.b16 %v1428
    %v2180 = vunpack.c.h.b16 %v1428
    %v2181 = vunpack.c.l.b16 %v1429
    %v2182 = vunpack.c.h.b16 %v1429
    %v2183 = vunpack.c.l.b16 %v1430
    %v2184 = vunpack.c.h.b16 %v1430
    %v2185 = vunpack.c.l.b16 %v1431
    %v2186 = vunpack.c.h.b16 %v1431
    %v2187 = vunpack.c.l.b16 %v1432
    %v2188 = vunpack.c.h.b16 %v1432
    %v2189 = vunpack.c.l.b16 %v1433
    %v2190 = vunpack.c.h.b16 %v1433
    %v2191 = vunpack.c.l.b16 %v1434
    %v2192 = vunpack.c.h.b16 %v1434
    %v2193 = vunpack.c.l.b16 %v1435
    %v2194 = vunpack.c.h.b16 %v1435
    %v2195 = vunpack.c.l.b16 %v1436
    %v2196 = vunpack.c.h.b16 %v1436
    %v2197 = vunpack.c.l.b16 %v1437
    %v2198 = vunpack.c.h.b16 %v1437
    %v2199 = vunpack.c.l.b16 %v1438
    %v2200 = vunpack.c.h.b16 %v1438
    %v2201 = vunpack.c.l.b16 %v1439
    %v2202 = vunpack.c.h.b16 %v1439
    %v2203 = vunpack.c.l.b16 %v1440
    %v2204 = vunpack.c.h.b16 %v1440
    %v2205 = vunpack.c.l.b16 %v1441
    %v2206 = vunpack.c.h.b16 %v1441
    %v2207 = vunpack.c.l.b16 %v1442
    %v2208 = vunpack.c.h.b16 %v1442
    %v2209 = vunpack.c.l.b16 %v1443
    %v2210 = vunpack.c.h.b16 %v1443
    %v2211 = vunpack.c.l.b16 %v1444
    %v2212 = vunpack.c.h.b16 %v1444
    %v2213 = vunpack.c.l.b16 %v1445
    %v2214 = vunpack.c.h.b16 %v1445
    %v2215 = vunpack.c.l.b16 %v1446
    %v2216 = vunpack.c.h.b16 %v1446
    %v2217 = vunpack.c.l.b16 %v1447
    %v2218 = vunpack.c.h.b16 %v1447
    %v2219 = vunpack.c.l.b16 %v1448
    %v2220 = vunpack.c.h.b16 %v1448
    %v2221 = vunpack.c.l.b16 %v1449
    %v2222 = vunpack.c.h.b16 %v1449
    %v2223 = vunpack.c.l.b16 %v1450
    %v2224 = vunpack.c.h.b16 %v1450
    %v2225 = vunpack.c.l.b16 %v1451
    %v2226 = vunpack.c.h.b16 %v1451
    %v2227 = vunpack.c.l.b16 %v1452
    %v2228 = vunpack.c.h.b16 %v1452
    %v2229 = vunpack.c.l.b16 %v1453
    %v2230 = vunpack.c.h.b16 %v1453
    %v2231 = vunpack.c.l.b16 %v1454
    %v2232 = vunpack.c.h.b16 %v1454
    %v2233 = vunpack.c.l.b16 %v1455
    %v2234 = vunpack.c.h.b16 %v1455
    %v2235 = vunpack.c.l.b16 %v1456
    %v2236 = vunpack.c.h.b16 %v1456
    %v2237 = vunpack.c.l.b16 %v1457
    %v2238 = vunpack.c.h.b16 %v1457
    %v2239 = vunpack.c.l.b16 %v1458
    %v2240 = vunpack.c.h.b16 %v1458
    %v2241 = vunpack.c.l.b16 %v1459
    %v2242 = vunpack.c.h.b16 %v1459
    %v2243 = vunpack.c.l.b16 %v1460
    %v2244 = vunpack.c.h.b16 %v1460
    %v2245 = vunpack.c.l.b16 %v1461
    %v2246 = vunpack.c.h.b16 %v1461
    %v2247 = vunpack.c.l.b16 %v1462
    %v2248 = vunpack.c.h.b16 %v1462
    %v2249 = vunpack.c.l.b16 %v1463
    %v2250 = vunpack.c.h.b16 %v1463
    %v2251 = vunpack.c.l.b16 %v1464
    %v2252 = vunpack.c.h.b16 %v1464
    %v2253 = vunpack.c.l.b16 %v1465
    %v2254 = vunpack.c.h.b16 %v1465
    %v2255 = vunpack.c.l.b16 %v1466
    %v2256 = vunpack.c.h.b16 %v1466
    %v2257 = vpack.c.b16 %v1749, %v1745
    %v2258 = vpack.c.b16 %v1750, %v1746
    %v2259 = vpack.c.b16 %v1751, %v1747
    %v2260 = vpack.c.b16 %v1752, %v1748
    %v2261 = vpack.c.b16 %v1757, %v1753
    %v2262 = vpack.c.b16 %v1758, %v1754
    %v2263 = vpack.c.b16 %v1759, %v1755
    %v2264 = vpack.c.b16 %v1760, %v1756
    %v2265 = vpack.c.b16 %v1765, %v1761
    %v2266 = vpack.c.b16 %v1766, %v1762
    %v2267 = vpack.c.b16 %v1767, %v1763
    %v2268 = vpack.c.b16 %v1768, %v1764
    %v2269 = vpack.c.b16 %v1773, %v1769
    %v2270 = vpack.c.b16 %v1774, %v1770
    %v2271 = vpack.c.b16 %v1775, %v1771
    %v2272 = vpack.c.b16 %v1776, %v1772
    %v2273 = vpack.c.b16 %v1781, %v1777
    %v2274 = vpack.c.b16 %v1782, %v1778
    %v2275 = vpack.c.b16 %v1783, %v1779
    %v2276 = vpack.c.b16 %v1784, %v1780
    %v2277 = vpack.c.b16 %v1789, %v1785
    %v2278 = vpack.c.b16 %v1790, %v1786
    %v2279 = vpack.c.b16 %v1791, %v1787
    %v2280 = vpack.c.b16 %v1792, %v1788
    %v2281 = vpack.c.b16 %v1797, %v1793
    %v2282 = vpack.c.b16 %v1798, %v1794
    %v2283 = vpack.c.b16 %v1799, %v1795
    %v2284 = vpack.c.b16 %v1800, %v1796
    %v2285 = vpack.c.b16 %v1805, %v1801
    %v2286 = vpack.c.b16 %v1806, %v1802
    %v2287 = vpack.c.b16 %v1807, %v1803
    %v2288 = vpack.c.b16 %v1808, %v1804
    %v2289 = vpack.c.b16 %v1813, %v1809
    %v2290 = vpack.c.b16 %v1814, %v1810
    %v2291 = vpack.c.b16 %v1815, %v1811
    %v2292 = vpack.c.b16 %v1816, %v1812
    %v2293 = vpack.c.b16 %v1821, %v1817
    %v2294 = vpack.c.b16 %v1822, %v1818
    %v2295 = vpack.c.b16 %v1823, %v1819
    %v2296 = vpack.c.b16 %v1824, %v1820
    %v2297 = vpack.c.b16 %v1829, %v1825
    %v2298 = vpack.c.b16 %v1830, %v1826
    %v2299 = vpack.c.b16 %v1831, %v1827
    %v2300 = vpack.c.b16 %v1832, %v1828
    %v2301 = vpack.c.b16 %v1837, %v1833
    %v2302 = vpack.c.b16 %v1838, %v1834
    %v2303 = vpack.c.b16 %v1839, %v1835
    %v2304 = vpack.c.b16 %v1840, %v1836
    %v2305 = vpack.c.b16 %v1845, %v1841
    %v2306 = vpack.c.b16 %v1846, %v1842
    %v2307 = vpack.c.b16 %v1847, %v1843
    %v2308 = vpack.c.b16 %v1848, %v1844
    %v2309 = vpack.c.b16 %v1853, %v1849
    %v2310 = vpack.c.b16 %v1854, %v1850
    %v2311 = vpack.c.b16 %v1855, %v1851
    %v2312 = vpack.c.b16 %v1856, %v1852
    %v2313 = vpack.c.b16 %v1861, %v1857
    %v2314 = vpack.c.b16 %v1862, %v1858
    %v2315 = vpack.c.b16 %v1863, %v1859
    %v2316 = vpack.c.b16 %v1864, %v1860
    %v2317 = vpack.c.b16 %v1869, %v1865
    %v2318 = vpack.c.b16 %v1870, %v1866
    %v2319 = vpack.c.b16 %v1871, %v1867
    %v2320 = vpack.c.b16 %v1872, %v1868
    %v2321 = vpack.c.b16 %v1877, %v1873
    %v2322 = vpack.c.b16 %v1878, %v1874
    %v2323 = vpack.c.b16 %v1879, %v1875
    %v2324 = vpack.c.b16 %v1880, %v1876
    %v2325 = vpack.c.b16 %v1885, %v1881
    %v2326 = vpack.c.b16 %v1886, %v1882
    %v2327 = vpack.c.b16 %v1887, %v1883
    %v2328 = vpack.c.b16 %v1888, %v1884
    %v2329 = vpack.c.b16 %v1893, %v1889
    %v2330 = vpack.c.b16 %v1894, %v1890
    %v2331 = vpack.c.b16 %v1895, %v1891
    %v2332 = vpack.c.b16 %v1896, %v1892
    %v2333 = vpack.c.b16 %v1901, %v1897
    %v2334 = vpack.c.b16 %v1902, %v1898
    %v2335 = vpack.c.b16 %v1903, %v1899
    %v2336 = vpack.c.b16 %v1904, %v1900
    %v2337 = vpack.c.b16 %v1909, %v1905
    %v2338 = vpack.c.b16 %v1910, %v1906
    %v2339 = vpack.c.b16 %v1911, %v1907
    %v2340 = vpack.c.b16 %v1912, %v1908
    %v2341 = vpack.c.b16 %v1917, %v1913
    %v2342 = vpack.c.b16 %v1918, %v1914
    %v2343 = vpack.c.b16 %v1919, %v1915
    %v2344 = vpack.c.b16 %v1920, %v1916
    %v2345 = vpack.c.b16 %v1925, %v1921
    %v2346 = vpack.c.b16 %v1926, %v1922
    %v2347 = vpack.c.b16 %v1927, %v1923
    %v2348 = vpack.c.b16 %v1928, %v1924
    %v2349 = vpack.c.b16 %v1933, %v1929
    %v2350 = vpack.c.b16 %v1934, %v1930
    %v2351 = vpack.c.b16 %v1935, %v1931
    %v2352 = vpack.c.b16 %v1936, %v1932
    %v2353 = vpack.c.b16 %v1941, %v1937
    %v2354 = vpack.c.b16 %v1942, %v1938
    %v2355 = vpack.c.b16 %v1943, %v1939
    %v2356 = vpack.c.b16 %v1944, %v1940
    %v2357 = vpack.c.b16 %v1949, %v1945
    %v2358 = vpack.c.b16 %v1950, %v1946
    %v2359 = vpack.c.b16 %v1951, %v1947
    %v2360 = vpack.c.b16 %v1952, %v1948
    %v2361 = vpack.c.b16 %v1957, %v1953
    %v2362 = vpack.c.b16 %v1958, %v1954
    %v2363 = vpack.c.b16 %v1959, %v1955
    %v2364 = vpack.c.b16 %v1960, %v1956
    %v2365 = vpack.c.b16 %v1965, %v1961
    %v2366 = vpack.c.b16 %v1966, %v1962
    %v2367 = vpack.c.b16 %v1967, %v1963
    %v2368 = vpack.c.b16 %v1968, %v1964
    %v2369 = vpack.c.b16 %v1973, %v1969
    %v2370 = vpack.c.b16 %v1974, %v1970
    %v2371 = vpack.c.b16 %v1975, %v1971
    %v2372 = vpack.c.b16 %v1976, %v1972
    %v2373 = vpack.c.b16 %v1981, %v1977
    %v2374 = vpack.c.b16 %v1982, %v1978
    %v2375 = vpack.c.b16 %v1983, %v1979
    %v2376 = vpack.c.b16 %v1984, %v1980
    %v2377 = vpack.c.b16 %v1989, %v1985
    %v2378 = vpack.c.b16 %v1990, %v1986
    %v2379 = vpack.c.b16 %v1991, %v1987
    %v2380 = vpack.c.b16 %v1992, %v1988
    %v2381 = vpack.c.b16 %v1997, %v1993
    %v2382 = vpack.c.b16 %v1998, %v1994
    %v2383 = vpack.c.b16 %v1999, %v1995
    %v2384 = vpack.c.b16 %v2000, %v1996
    %v2385 = vpack.c.b16 %v2005, %v2001
    %v2386 = vpack.c.b16 %v2006, %v2002
    %v2387 = vpack.c.b16 %v2007, %v2003
    %v2388 = vpack.c.b16 %v2008, %v2004
    %v2389 = vpack.c.b16 %v2013, %v2009
    %v2390 = vpack.c.b16 %v2014, %v2010
    %v2391 = vpack.c.b16 %v2015, %v2011
    %v2392 = vpack.c.b16 %v2016, %v2012
    %v2393 = vpack.c.b16 %v2021, %v2017
    %v2394 = vpack.c.b16 %v2022, %v2018
    %v2395 = vpack.c.b16 %v2023, %v2019
    %v2396 = vpack.c.b16 %v2024, %v2020
    %v2397 = vpack.c.b16 %v2029, %v2025
    %v2398 = vpack.c.b16 %v2030, %v2026
    %v2399 = vpack.c.b16 %v2031, %v2027
    %v2400 = vpack.c.b16 %v2032, %v2028
    %v2401 = vpack.c.b16 %v2037, %v2033
    %v2402 = vpack.c.b16 %v2038, %v2034
    %v2403 = vpack.c.b16 %v2039, %v2035
    %v2404 = vpack.c.b16 %v2040, %v2036
    %v2405 = vpack.c.b16 %v2045, %v2041
    %v2406 = vpack.c.b16 %v2046, %v2042
    %v2407 = vpack.c.b16 %v2047, %v2043
    %v2408 = vpack.c.b16 %v2048, %v2044
    %v2409 = vpack.c.b16 %v2053, %v2049
    %v2410 = vpack.c.b16 %v2054, %v2050
    %v2411 = vpack.c.b16 %v2055, %v2051
    %v2412 = vpack.c.b16 %v2056, %v2052
    %v2413 = vpack.c.b16 %v2061, %v2057
    %v2414 = vpack.c.b16 %v2062, %v2058
    %v2415 = vpack.c.b16 %v2063, %v2059
    %v2416 = vpack.c.b16 %v2064, %v2060
    %v2417 = vpack.c.b16 %v2069, %v2065
    %v2418 = vpack.c.b16 %v2070, %v2066
    %v2419 = vpack.c.b16 %v2071, %v2067
    %v2420 = vpack.c.b16 %v2072, %v2068
    %v2421 = vpack.c.b16 %v2077, %v2073
    %v2422 = vpack.c.b16 %v2078, %v2074
    %v2423 = vpack.c.b16 %v2079, %v2075
    %v2424 = vpack.c.b16 %v2080, %v2076
    %v2425 = vpack.c.b16 %v2085, %v2081
    %v2426 = vpack.c.b16 %v2086, %v2082
    %v2427 = vpack.c.b16 %v2087, %v2083
    %v2428 = vpack.c.b16 %v2088, %v2084
    %v2429 = vpack.c.b16 %v2093, %v2089
    %v2430 = vpack.c.b16 %v2094, %v2090
    %v2431 = vpack.c.b16 %v2095, %v2091
    %v2432 = vpack.c.b16 %v2096, %v2092
    %v2433 = vpack.c.b16 %v2101, %v2097
    %v2434 = vpack.c.b16 %v2102, %v2098
    %v2435 = vpack.c.b16 %v2103, %v2099
    %v2436 = vpack.c.b16 %v2104, %v2100
    %v2437 = vpack.c.b16 %v2109, %v2105
    %v2438 = vpack.c.b16 %v2110, %v2106
    %v2439 = vpack.c.b16 %v2111, %v2107
    %v2440 = vpack.c.b16 %v2112, %v2108
    %v2441 = vpack.c.b16 %v2117, %v2113
    %v2442 = vpack.c.b16 %v2118, %v2114
    %v2443 = vpack.c.b16 %v2119, %v2115
    %v2444 = vpack.c.b16 %v2120, %v2116
    %v2445 = vpack.c.b16 %v2125, %v2121
    %v2446 = vpack.c.b16 %v2126, %v2122
    %v2447 = vpack.c.b16 %v2127, %v2123
    %v2448 = vpack.c.b16 %v2128, %v2124
    %v2449 = vpack.c.b16 %v2133, %v2129
    %v2450 = vpack.c.b16 %v2134, %v2130
    %v2451 = vpack.c.b16 %v2135, %v2131
    %v2452 = vpack.c.b16 %v2136, %v2132
    %v2453 = vpack.c.b16 %v2141, %v2137
    %v2454 = vpack.c.b16 %v2142, %v2138
    %v2455 = vpack.c.b16 %v2143, %v2139
    %v2456 = vpack.c.b16 %v2144, %v2140
    %v2457 = vpack.c.b16 %v2149, %v2145
    %v2458 = vpack.c.b16 %v2150, %v2146
    %v2459 = vpack.c.b16 %v2151, %v2147
    %v2460 = vpack.c.b16 %v2152, %v2148
    %v2461 = vpack.c.b16 %v2157, %v2153
    %v2462 = vpack.c.b16 %v2158, %v2154
    %v2463 = vpack.c.b16 %v2159, %v2155
    %v2464 = vpack.c.b16 %v2160, %v2156
    %v2465 = vpack.c.b16 %v2165, %v2161
    %v2466 = vpack.c.b16 %v2166, %v2162
    %v2467 = vpack.c.b16 %v2167, %v2163
    %v2468 = vpack.c.b16 %v2168, %v2164
    %v2469 = vpack.c.b16 %v2173, %v2169
    %v2470 = vpack.c.b16 %v2174, %v2170
    %v2471 = vpack.c.b16 %v2175, %v2171
    %v2472 = vpack.c.b16 %v2176, %v2172
    %v2473 = vpack.c.b16 %v2181, %v2177
    %v2474 = vpack.c.b16 %v2182, %v2178
    %v2475 = vpack.c.b16 %v2183, %v2179
    %v2476 = vpack.c.b16 %v2184, %v2180
    %v2477 = vpack.c.b16 %v2189, %v2185
    %v2478 = vpack.c.b16 %v2190, %v2186
    %v2479 = vpack.c.b16 %v2191, %v2187
    %v2480 = vpack.c.b16 %v2192, %v2188
    %v2481 = vpack.c.b16 %v2197, %v2193
    %v2482 = vpack.c.b16 %v2198, %v2194
    %v2483 = vpack.c.b16 %v2199, %v2195
    %v2484 = vpack.c.b16 %v2200, %v2196
    %v2485 = vpack.c.b16 %v2205, %v2201
    %v2486 = vpack.c.b16 %v2206, %v2202
    %v2487 = vpack.c.b16 %v2207, %v2203
    %v2488 = vpack.c.b16 %v2208, %v2204
    %v2489 = vpack.c.b16 %v2213, %v2209
    %v2490 = vpack.c.b16 %v2214, %v2210
    %v2491 = vpack.c.b16 %v2215, %v2211
    %v2492 = vpack.c.b16 %v2216, %v2212
    %v2493 = vpack.c.b16 %v2221, %v2217
    %v2494 = vpack.c.b16 %v2222, %v2218
    %v2495 = vpack.c.b16 %v2223, %v2219
    %v2496 = vpack.c.b16 %v2224, %v2220
    %v2497 = vpack.c.b16 %v2229, %v2225
    %v2498 = vpack.c.b16 %v2230, %v2226
    %v2499 = vpack.c.b16 %v2231, %v2227
    %v2500 = vpack.c.b16 %v2232, %v2228
    %v2501 = vpack.c.b16 %v2237, %v2233
    %v2502 = vpack.c.b16 %v2238, %v2234
    %v2503 = vpack.c.b16 %v2239, %v2235
    %v2504 = vpack.c.b16 %v2240, %v2236
    %v2505 = vpack.c.b16 %v2245, %v2241
    %v2506 = vpack.c.b16 %v2246, %v2242
    %v2507 = vpack.c.b16 %v2247, %v2243
    %v2508 = vpack.c.b16 %v2248, %v2244
    %v2509 = vpack.c.b16 %v2253, %v2249
    %v2510 = vpack.c.b16 %v2254, %v2250
    %v2511 = vpack.c.b16 %v2255, %v2251
    %v2512 = vpack.c.b16 %v2256, %v2252
    %2769 = vmatprep.subr.bf16.mxu0 %v2258
    %2770 = vmatpush1.bf16.msra.mxu0 %v2257
    %2771 = vmatprep.subr.bf16.mxu0 %v2262
    %2772 = vmatpush1.bf16.msra.mxu0 %v2261
    %2773 = vmatprep.subr.bf16.mxu0 %v2266
    %2774 = vmatpush1.bf16.msra.mxu0 %v2265
    %2775 = vmatprep.subr.bf16.mxu0 %v2270
    %2776 = vmatpush1.bf16.msra.mxu0 %v2269
    %2777 = vmatprep.subr.bf16.mxu0 %v2274
    %2778 = vmatpush1.bf16.msra.mxu0 %v2273
    %2779 = vmatprep.subr.bf16.mxu0 %v2278
    %2780 = vmatpush1.bf16.msra.mxu0 %v2277
    %2781 = vmatprep.subr.bf16.mxu0 %v2282
    %2782 = vmatpush1.bf16.msra.mxu0 %v2281
    %2783 = vmatprep.subr.bf16.mxu0 %v2286
    %2784 = vmatpush1.bf16.msra.mxu0 %v2285
    %2785 = vmatprep.subr.bf16.mxu0 %v2290
    %2786 = vmatpush1.bf16.msra.mxu0 %v2289
    %2787 = vmatprep.subr.bf16.mxu0 %v2294
    %2788 = vmatpush1.bf16.msra.mxu0 %v2293
    %2789 = vmatprep.subr.bf16.mxu0 %v2298
    %2790 = vmatpush1.bf16.msra.mxu0 %v2297
    %2791 = vmatprep.subr.bf16.mxu0 %v2302
    %2792 = vmatpush1.bf16.msra.mxu0 %v2301
    %2793 = vmatprep.subr.bf16.mxu0 %v2306
    %2794 = vmatpush1.bf16.msra.mxu0 %v2305
    %2795 = vmatprep.subr.bf16.mxu0 %v2310
    %2796 = vmatpush1.bf16.msra.mxu0 %v2309
    %2797 = vmatprep.subr.bf16.mxu0 %v2314
    %2798 = vmatpush1.bf16.msra.mxu0 %v2313
    %2799 = vmatprep.subr.bf16.mxu0 %v2318
    %2800 = vmatpush1.bf16.msra.mxu0 %v2317
    %2801 = vmatprep.mubr.bf16.mxu0 %v1204
    %2802 = vmatmul.mubr.bf16.gmra.mrb[0].mxu0 %v1203
    %v2803 = vpop.f32.mrb[0].mxu0
    %v2804 = vadd.f32 %v1472, %v2803
    %v2805 = vpop.f32.mrb[0].mxu0
    %v2806 = vadd.f32 %v1476, %v2805
    %v2807 = vpop.f32.mrb[0].mxu0
    %v2808 = vadd.f32 %v1472, %v2807
    %v2809 = vpop.f32.mrb[0].mxu0
    %v2810 = vadd.f32 %v1476, %v2809
    %2811 = vdwg.mxu0
    %2812 = vmatprep.subr.bf16.mxu0 %v2322
    %2813 = vmatpush1.bf16.msra.mxu0 %v2321
    %2814 = vmatprep.subr.bf16.mxu0 %v2326
    %2815 = vmatpush1.bf16.msra.mxu0 %v2325
    %2816 = vmatprep.subr.bf16.mxu0 %v2330
    %2817 = vmatpush1.bf16.msra.mxu0 %v2329
    %2818 = vmatprep.subr.bf16.mxu0 %v2334
    %2819 = vmatpush1.bf16.msra.mxu0 %v2333
    %2820 = vmatprep.subr.bf16.mxu0 %v2338
    %2821 = vmatpush1.bf16.msra.mxu0 %v2337
    %2822 = vmatprep.subr.bf16.mxu0 %v2342
    %2823 = vmatpush1.bf16.msra.mxu0 %v2341
    %2824 = vmatprep.subr.bf16.mxu0 %v2346
    %2825 = vmatpush1.bf16.msra.mxu0 %v2345
    %2826 = vmatprep.subr.bf16.mxu0 %v2350
    %2827 = vmatpush1.bf16.msra.mxu0 %v2349
    %2828 = vmatprep.subr.bf16.mxu0 %v2354
    %2829 = vmatpush1.bf16.msra.mxu0 %v2353
    %2830 = vmatprep.subr.bf16.mxu0 %v2358
    %2831 = vmatpush1.bf16.msra.mxu0 %v2357
    %2832 = vmatprep.subr.bf16.mxu0 %v2362
    %2833 = vmatpush1.bf16.msra.mxu0 %v2361
    %2834 = vmatprep.subr.bf16.mxu0 %v2366
    %2835 = vmatpush1.bf16.msra.mxu0 %v2365
    %2836 = vmatprep.subr.bf16.mxu0 %v2370
    %2837 = vmatpush1.bf16.msra.mxu0 %v2369
    %2838 = vmatprep.subr.bf16.mxu0 %v2374
    %2839 = vmatpush1.bf16.msra.mxu0 %v2373
    %2840 = vmatprep.subr.bf16.mxu0 %v2378
    %2841 = vmatpush1.bf16.msra.mxu0 %v2377
    %2842 = vmatprep.subr.bf16.mxu0 %v2382
    %2843 = vmatpush1.bf16.msra.mxu0 %v2381
    %2844 = vmatprep.mubr.bf16.mxu0 %v1206
    %2845 = vmatmul.mubr.bf16.gmra.mrb[0].mxu0 %v1205
    %v2846 = vpop.f32.mrb[0].mxu0
    %v2847 = vadd.f32 %v2804, %v2846
    %v2848 = vpop.f32.mrb[0].mxu0
    %v2849 = vadd.f32 %v2806, %v2848
    %v2850 = vpop.f32.mrb[0].mxu0
    %v2851 = vadd.f32 %v2808, %v2850
    %v2852 = vpop.f32.mrb[0].mxu0
    %v2853 = vadd.f32 %v2810, %v2852
    %2854 = vdwg.mxu0
    %2855 = vmatprep.subr.bf16.mxu0 %v2386
    %2856 = vmatpush1.bf16.msra.mxu0 %v2385
    %2857 = vmatprep.subr.bf16.mxu0 %v2390
    %2858 = vmatpush1.bf16.msra.mxu0 %v2389
    %2859 = vmatprep.subr.bf16.mxu0 %v2394
    %2860 = vmatpush1.bf16.msra.mxu0 %v2393
    %2861 = vmatprep.subr.bf16.mxu0 %v2398
    %2862 = vmatpush1.bf16.msra.mxu0 %v2397
    %2863 = vmatprep.subr.bf16.mxu0 %v2402
    %2864 = vmatpush1.bf16.msra.mxu0 %v2401
    %2865 = vmatprep.subr.bf16.mxu0 %v2406
    %2866 = vmatpush1.bf16.msra.mxu0 %v2405
    %2867 = vmatprep.subr.bf16.mxu0 %v2410
    %2868 = vmatpush1.bf16.msra.mxu0 %v2409
    %2869 = vmatprep.subr.bf16.mxu0 %v2414
    %2870 = vmatpush1.bf16.msra.mxu0 %v2413
    %2871 = vmatprep.subr.bf16.mxu0 %v2418
    %2872 = vmatpush1.bf16.msra.mxu0 %v2417
    %2873 = vmatprep.subr.bf16.mxu0 %v2422
    %2874 = vmatpush1.bf16.msra.mxu0 %v2421
    %2875 = vmatprep.subr.bf16.mxu0 %v2426
    %2876 = vmatpush1.bf16.msra.mxu0 %v2425
    %2877 = vmatprep.subr.bf16.mxu0 %v2430
    %2878 = vmatpush1.bf16.msra.mxu0 %v2429
    %2879 = vmatprep.subr.bf16.mxu0 %v2434
    %2880 = vmatpush1.bf16.msra.mxu0 %v2433
    %2881 = vmatprep.subr.bf16.mxu0 %v2438
    %2882 = vmatpush1.bf16.msra.mxu0 %v2437
    %2883 = vmatprep.subr.bf16.mxu0 %v2442
    %2884 = vmatpush1.bf16.msra.mxu0 %v2441
    %2885 = vmatprep.subr.bf16.mxu0 %v2446
    %2886 = vmatpush1.bf16.msra.mxu0 %v2445
    %2887 = vmatprep.mubr.bf16.mxu0 %v1208
    %2888 = vmatmul.mubr.bf16.gmra.mrb[0].mxu0 %v1207
    %v2889 = vpop.f32.mrb[0].mxu0
    %v2890 = vadd.f32 %v2847, %v2889
    %v2891 = vpop.f32.mrb[0].mxu0
    %v2892 = vadd.f32 %v2849, %v2891
    %v2893 = vpop.f32.mrb[0].mxu0
    %v2894 = vadd.f32 %v2851, %v2893
    %v2895 = vpop.f32.mrb[0].mxu0
    %v2896 = vadd.f32 %v2853, %v2895
    %2897 = vdwg.mxu0
    %2898 = vmatprep.subr.bf16.mxu0 %v2450
    %2899 = vmatpush1.bf16.msra.mxu0 %v2449
    %2900 = vmatprep.subr.bf16.mxu0 %v2454
    %2901 = vmatpush1.bf16.msra.mxu0 %v2453
    %2902 = vmatprep.subr.bf16.mxu0 %v2458
    %2903 = vmatpush1.bf16.msra.mxu0 %v2457
    %2904 = vmatprep.subr.bf16.mxu0 %v2462
    %2905 = vmatpush1.bf16.msra.mxu0 %v2461
    %2906 = vmatprep.subr.bf16.mxu0 %v2466
    %2907 = vmatpush1.bf16.msra.mxu0 %v2465
    %2908 = vmatprep.subr.bf16.mxu0 %v2470
    %2909 = vmatpush1.bf16.msra.mxu0 %v2469
    %2910 = vmatprep.subr.bf16.mxu0 %v2474
    %2911 = vmatpush1.bf16.msra.mxu0 %v2473
    %2912 = vmatprep.subr.bf16.mxu0 %v2478
    %2913 = vmatpush1.bf16.msra.mxu0 %v2477
    %2914 = vmatprep.subr.bf16.mxu0 %v2482
    %2915 = vmatpush1.bf16.msra.mxu0 %v2481
    %2916 = vmatprep.subr.bf16.mxu0 %v2486
    %2917 = vmatpush1.bf16.msra.mxu0 %v2485
    %2918 = vmatprep.subr.bf16.mxu0 %v2490
    %2919 = vmatpush1.bf16.msra.mxu0 %v2489
    %2920 = vmatprep.subr.bf16.mxu0 %v2494
    %2921 = vmatpush1.bf16.msra.mxu0 %v2493
    %2922 = vmatprep.subr.bf16.mxu0 %v2498
    %2923 = vmatpush1.bf16.msra.mxu0 %v2497
    %2924 = vmatprep.subr.bf16.mxu0 %v2502
    %2925 = vmatpush1.bf16.msra.mxu0 %v2501
    %2926 = vmatprep.subr.bf16.mxu0 %v2506
    %2927 = vmatpush1.bf16.msra.mxu0 %v2505
    %2928 = vmatprep.subr.bf16.mxu0 %v2510
    %2929 = vmatpush1.bf16.msra.mxu0 %v2509
    %2930 = vmatprep.mubr.bf16.mxu0 %v1210
    %2931 = vmatmul.mubr.bf16.gmra.mrb[0].mxu0 %v1209
    %v2932 = vpop.f32.mrb[0].mxu0
    %v2933 = vadd.f32 %v2890, %v2932
    %v2934 = vpop.f32.mrb[0].mxu0
    %v2935 = vadd.f32 %v2892, %v2934
    %v2936 = vpop.f32.mrb[0].mxu0
    %v2937 = vadd.f32 %v2894, %v2936
    %v2938 = vpop.f32.mrb[0].mxu0
    %v2939 = vadd.f32 %v2896, %v2938
    %2940 = vdwg.mxu0
    %2941 = vmatprep.subr.bf16.mxu0 %v2260
    %2942 = vmatpush1.bf16.msra.mxu0 %v2259
    %2943 = vmatprep.subr.bf16.mxu0 %v2264
    %2944 = vmatpush1.bf16.msra.mxu0 %v2263
    %2945 = vmatprep.subr.bf16.mxu0 %v2268
    %2946 = vmatpush1.bf16.msra.mxu0 %v2267
    %2947 = vmatprep.subr.bf16.mxu0 %v2272
    %2948 = vmatpush1.bf16.msra.mxu0 %v2271
    %2949 = vmatprep.subr.bf16.mxu0 %v2276
    %2950 = vmatpush1.bf16.msra.mxu0 %v2275
    %2951 = vmatprep.subr.bf16.mxu0 %v2280
    %2952 = vmatpush1.bf16.msra.mxu0 %v2279
    %2953 = vmatprep.subr.bf16.mxu0 %v2284
    %2954 = vmatpush1.bf16.msra.mxu0 %v2283
    %2955 = vmatprep.subr.bf16.mxu0 %v2288
    %2956 = vmatpush1.bf16.msra.mxu0 %v2287
    %2957 = vmatprep.subr.bf16.mxu0 %v2292
    %2958 = vmatpush1.bf16.msra.mxu0 %v2291
    %2959 = vmatprep.subr.bf16.mxu0 %v2296
    %2960 = vmatpush1.bf16.msra.mxu0 %v2295
    %2961 = vmatprep.subr.bf16.mxu0 %v2300
    %2962 = vmatpush1.bf16.msra.mxu0 %v2299
    %2963 = vmatprep.subr.bf16.mxu0 %v2304
    %2964 = vmatpush1.bf16.msra.mxu0 %v2303
    %2965 = vmatprep.subr.bf16.mxu0 %v2308
    %2966 = vmatpush1.bf16.msra.mxu0 %v2307
    %2967 = vmatprep.subr.bf16.mxu0 %v2312
    %2968 = vmatpush1.bf16.msra.mxu0 %v2311
    %2969 = vmatprep.subr.bf16.mxu0 %v2316
    %2970 = vmatpush1.bf16.msra.mxu0 %v2315
    %2971 = vmatprep.subr.bf16.mxu0 %v2320
    %2972 = vmatpush1.bf16.msra.mxu0 %v2319
    %2973 = vmatprep.mubr.bf16.mxu0 %v1204
    %2974 = vmatmul.mubr.bf16.gmra.mrb[0].mxu0 %v1203
    %v2975 = vpop.f32.mrb[0].mxu0
    %v2976 = vadd.f32 %v1480, %v2975
    %v2977 = vpop.f32.mrb[0].mxu0
    %v2978 = vadd.f32 %v1484, %v2977
    %v2979 = vpop.f32.mrb[0].mxu0
    %v2980 = vadd.f32 %v1480, %v2979
    %v2981 = vpop.f32.mrb[0].mxu0
    %v2982 = vadd.f32 %v1484, %v2981
    %2983 = vdwg.mxu0
    %2984 = vmatprep.subr.bf16.mxu0 %v2324
    %2985 = vmatpush1.bf16.msra.mxu0 %v2323
    %2986 = vmatprep.subr.bf16.mxu0 %v2328
    %2987 = vmatpush1.bf16.msra.mxu0 %v2327
    %2988 = vmatprep.subr.bf16.mxu0 %v2332
    %2989 = vmatpush1.bf16.msra.mxu0 %v2331
    %2990 = vmatprep.subr.bf16.mxu0 %v2336
    %2991 = vmatpush1.bf16.msra.mxu0 %v2335
    %2992 = vmatprep.subr.bf16.mxu0 %v2340
    %2993 = vmatpush1.bf16.msra.mxu0 %v2339
    %2994 = vmatprep.subr.bf16.mxu0 %v2344
    %2995 = vmatpush1.bf16.msra.mxu0 %v2343
    %2996 = vmatprep.subr.bf16.mxu0 %v2348
    %2997 = vmatpush1.bf16.msra.mxu0 %v2347
    %2998 = vmatprep.subr.bf16.mxu0 %v2352
    %2999 = vmatpush1.bf16.msra.mxu0 %v2351
    %3000 = vmatprep.subr.bf16.mxu0 %v2356
    %3001 = vmatpush1.bf16.msra.mxu0 %v2355
    %3002 = vmatprep.subr.bf16.mxu0 %v2360
    %3003 = vmatpush1.bf16.msra.mxu0 %v2359
    %3004 = vmatprep.subr.bf16.mxu0 %v2364
    %3005 = vmatpush1.bf16.msra.mxu0 %v2363
    %3006 = vmatprep.subr.bf16.mxu0 %v2368
    %3007 = vmatpush1.bf16.msra.mxu0 %v2367
    %3008 = vmatprep.subr.bf16.mxu0 %v2372
    %3009 = vmatpush1.bf16.msra.mxu0 %v2371
    %3010 = vmatprep.subr.bf16.mxu0 %v2376
    %3011 = vmatpush1.bf16.msra.mxu0 %v2375
    %3012 = vmatprep.subr.bf16.mxu0 %v2380
    %3013 = vmatpush1.bf16.msra.mxu0 %v2379
    %3014 = vmatprep.subr.bf16.mxu0 %v2384
    %3015 = vmatpush1.bf16.msra.mxu0 %v2383
    %3016 = vmatprep.mubr.bf16.mxu0 %v1206
    %3017 = vmatmul.mubr.bf16.gmra.mrb[0].mxu0 %v1205
    %v3018 = vpop.f32.mrb[0].mxu0
    %v3019 = vadd.f32 %v2976, %v3018
    %v3020 = vpop.f32.mrb[0].mxu0
    %v3021 = vadd.f32 %v2978, %v3020
    %v3022 = vpop.f32.mrb[0].mxu0
    %v3023 = vadd.f32 %v2980, %v3022
    %v3024 = vpop.f32.mrb[0].mxu0
    %v3025 = vadd.f32 %v2982, %v3024
    %3026 = vdwg.mxu0
    %3027 = vmatprep.subr.bf16.mxu0 %v2388
    %3028 = vmatpush1.bf16.msra.mxu0 %v2387
    %3029 = vmatprep.subr.bf16.mxu0 %v2392
    %3030 = vmatpush1.bf16.msra.mxu0 %v2391
    %3031 = vmatprep.subr.bf16.mxu0 %v2396
    %3032 = vmatpush1.bf16.msra.mxu0 %v2395
    %3033 = vmatprep.subr.bf16.mxu0 %v2400
    %3034 = vmatpush1.bf16.msra.mxu0 %v2399
    %3035 = vmatprep.subr.bf16.mxu0 %v2404
    %3036 = vmatpush1.bf16.msra.mxu0 %v2403
    %3037 = vmatprep.subr.bf16.mxu0 %v2408
    %3038 = vmatpush1.bf16.msra.mxu0 %v2407
    %3039 = vmatprep.subr.bf16.mxu0 %v2412
    %3040 = vmatpush1.bf16.msra.mxu0 %v2411
    %3041 = vmatprep.subr.bf16.mxu0 %v2416
    %3042 = vmatpush1.bf16.msra.mxu0 %v2415
    %3043 = vmatprep.subr.bf16.mxu0 %v2420
    %3044 = vmatpush1.bf16.msra.mxu0 %v2419
    %3045 = vmatprep.subr.bf16.mxu0 %v2424
    %3046 = vmatpush1.bf16.msra.mxu0 %v2423
    %3047 = vmatprep.subr.bf16.mxu0 %v2428
    %3048 = vmatpush1.bf16.msra.mxu0 %v2427
    %3049 = vmatprep.subr.bf16.mxu0 %v2432
    %3050 = vmatpush1.bf16.msra.mxu0 %v2431
    %3051 = vmatprep.subr.bf16.mxu0 %v2436
    %3052 = vmatpush1.bf16.msra.mxu0 %v2435
    %3053 = vmatprep.subr.bf16.mxu0 %v2440
    %3054 = vmatpush1.bf16.msra.mxu0 %v2439
    %3055 = vmatprep.subr.bf16.mxu0 %v2444
    %3056 = vmatpush1.bf16.msra.mxu0 %v2443
    %3057 = vmatprep.subr.bf16.mxu0 %v2448
    %3058 = vmatpush1.bf16.msra.mxu0 %v2447
    %3059 = vmatprep.mubr.bf16.mxu0 %v1208
    %3060 = vmatmul.mubr.bf16.gmra.mrb[0].mxu0 %v1207
    %v3061 = vpop.f32.mrb[0].mxu0
    %v3062 = vadd.f32 %v3019, %v3061
    %v3063 = vpop.f32.mrb[0].mxu0
    %v3064 = vadd.f32 %v3021, %v3063
    %v3065 = vpop.f32.mrb[0].mxu0
    %v3066 = vadd.f32 %v3023, %v3065
    %v3067 = vpop.f32.mrb[0].mxu0
    %v3068 = vadd.f32 %v3025, %v3067
    %3069 = vdwg.mxu0
    %3070 = vmatprep.subr.bf16.mxu0 %v2452
    %3071 = vmatpush1.bf16.msra.mxu0 %v2451
    %3072 = vmatprep.subr.bf16.mxu0 %v2456
    %3073 = vmatpush1.bf16.msra.mxu0 %v2455
    %3074 = vmatprep.subr.bf16.mxu0 %v2460
    %3075 = vmatpush1.bf16.msra.mxu0 %v2459
    %3076 = vmatprep.subr.bf16.mxu0 %v2464
    %3077 = vmatpush1.bf16.msra.mxu0 %v2463
    %3078 = vmatprep.subr.bf16.mxu0 %v2468
    %3079 = vmatpush1.bf16.msra.mxu0 %v2467
    %3080 = vmatprep.subr.bf16.mxu0 %v2472
    %3081 = vmatpush1.bf16.msra.mxu0 %v2471
    %3082 = vmatprep.subr.bf16.mxu0 %v2476
    %3083 = vmatpush1.bf16.msra.mxu0 %v2475
    %3084 = vmatprep.subr.bf16.mxu0 %v2480
    %3085 = vmatpush1.bf16.msra.mxu0 %v2479
    %3086 = vmatprep.subr.bf16.mxu0 %v2484
    %3087 = vmatpush1.bf16.msra.mxu0 %v2483
    %3088 = vmatprep.subr.bf16.mxu0 %v2488
    %3089 = vmatpush1.bf16.msra.mxu0 %v2487
    %3090 = vmatprep.subr.bf16.mxu0 %v2492
    %3091 = vmatpush1.bf16.msra.mxu0 %v2491
    %3092 = vmatprep.subr.bf16.mxu0 %v2496
    %3093 = vmatpush1.bf16.msra.mxu0 %v2495
    %3094 = vmatprep.subr.bf16.mxu0 %v2500
    %3095 = vmatpush1.bf16.msra.mxu0 %v2499
    %3096 = vmatprep.subr.bf16.mxu0 %v2504
    %3097 = vmatpush1.bf16.msra.mxu0 %v2503
    %3098 = vmatprep.subr.bf16.mxu0 %v2508
    %3099 = vmatpush1.bf16.msra.mxu0 %v2507
    %3100 = vmatprep.subr.bf16.mxu0 %v2512
    %3101 = vmatpush1.bf16.msra.mxu0 %v2511
    %3102 = vmatprep.mubr.bf16.mxu0 %v1210
    %3103 = vmatmul.mubr.bf16.gmra.mrb[0].mxu0 %v1209
    %v3104 = vpop.f32.mrb[0].mxu0
    %v3105 = vadd.f32 %v3062, %v3104
    %v3106 = vpop.f32.mrb[0].mxu0
    %v3107 = vadd.f32 %v3064, %v3106
    %v3108 = vpop.f32.mrb[0].mxu0
    %v3109 = vadd.f32 %v3066, %v3108
    %v3110 = vpop.f32.mrb[0].mxu0
    %v3111 = vadd.f32 %v3068, %v3110
    %3112 = vdwg.mxu0
    %v3113 = vsub.f32 0.0, %v2933
    %v3114 = vsub.f32 0.0, %v2935
    %v3115 = vsub.f32 0.0, %v3105
    %v3116 = vsub.f32 0.0, %v3107
    %v3117 = vsub.f32 0.0, %v2937
    %v3118 = vsub.f32 0.0, %v2939
    %v3119 = vsub.f32 0.0, %v3109
    %v3120 = vsub.f32 0.0, %v3111
    %v3121 = vmul.f32 %v3113, 1.442695
    %v3122 = vpow.pop %v3121
    %v3123 = vmul.f32 %v3114, 1.442695
    %v3124 = vpow.pop %v3123
    %v3125 = vmul.f32 %v3115, 1.442695
    %v3126 = vpow.pop %v3125
    %v3127 = vmul.f32 %v3116, 1.442695
    %v3128 = vpow.pop %v3127
    %v3129 = vmul.f32 %v3117, 1.442695
    %v3130 = vpow.pop %v3129
    %v3131 = vmul.f32 %v3118, 1.442695
    %v3132 = vpow.pop %v3131
    %v3133 = vmul.f32 %v3119, 1.442695
    %v3134 = vpow.pop %v3133
    %v3135 = vmul.f32 %v3120, 1.442695
    %v3136 = vpow.pop %v3135
    %v3137 = vadd.f32 %v3122, 1.0
    %v3138 = vadd.f32 %v3124, 1.0
    %v3139 = vadd.f32 %v3126, 1.0
    %v3140 = vadd.f32 %v3128, 1.0
    %v3141 = vadd.f32 %v3130, 1.0
    %v3142 = vadd.f32 %v3132, 1.0
    %v3143 = vadd.f32 %v3134, 1.0
    %v3144 = vadd.f32 %v3136, 1.0
    %v3145 = vrcp.pop %v3137
    %v3146 = vmul.f32 1.0, %v3145
    %v3147 = vrcp.pop %v3138
    %v3148 = vmul.f32 1.0, %v3147
    %v3149 = vrcp.pop %v3139
    %v3150 = vmul.f32 1.0, %v3149
    %v3151 = vrcp.pop %v3140
    %v3152 = vmul.f32 1.0, %v3151
    %v3153 = vrcp.pop %v3141
    %v3154 = vmul.f32 1.0, %v3153
    %v3155 = vrcp.pop %v3142
    %v3156 = vmul.f32 1.0, %v3155
    %v3157 = vrcp.pop %v3143
    %v3158 = vmul.f32 1.0, %v3157
    %v3159 = vrcp.pop %v3144
    %v3160 = vmul.f32 1.0, %v3159
    %v3161 = vmul.f32 %v2933, %v3146
    %v3162 = vmul.f32 %v2935, %v3148
    %v3163 = vmul.f32 %v3105, %v3150
    %v3164 = vmul.f32 %v3107, %v3152
    %v3165 = vmul.f32 %v2937, %v3154
    %v3166 = vmul.f32 %v2939, %v3156
    %v3167 = vmul.f32 %v3109, %v3158
    %v3168 = vmul.f32 %v3111, %v3160
    %v3169 = vpack.c.bf16 %v3165, %v3161
    %v3170 = vpack.c.bf16 %v3166, %v3162
    %v3171 = vpack.c.bf16 %v3167, %v3163
    %v3172 = vpack.c.bf16 %v3168, %v3164
    %v3173 = vld [vmem:[#allocation10] sm:$0xff]
    %v3174 = vld [vmem:[#allocation10 + $0x8] sm:$0xff]
    %v3175 = vld [vmem:[#allocation10 + $0x10] sm:$0xff]
    %v3176 = vld [vmem:[#allocation10 + $0x18] sm:$0xff]
    %v3177 = vld [vmem:[#allocation10 + $0x20] sm:$0xff]
    %v3178 = vld [vmem:[#allocation10 + $0x28] sm:$0xff]
    %v3179 = vld [vmem:[#allocation10 + $0x30] sm:$0xff]
    %v3180 = vld [vmem:[#allocation10 + $0x38] sm:$0xff]
    %v3181 = vld [vmem:[#allocation10 + $0x40] sm:$0xff]
    %v3182 = vld [vmem:[#allocation10 + $0x48] sm:$0xff]
    %v3183 = vld [vmem:[#allocation10 + $0x50] sm:$0xff]
    %v3184 = vld [vmem:[#allocation10 + $0x58] sm:$0xff]
    %v3185 = vld [vmem:[#allocation10 + $0x60] sm:$0xff]
    %v3186 = vld [vmem:[#allocation10 + $0x68] sm:$0xff]
    %v3187 = vld [vmem:[#allocation10 + $0x70] sm:$0xff]
    %v3188 = vld [vmem:[#allocation10 + $0x78] sm:$0xff]
    %v3189 = vld [vmem:[#allocation10 + $0x80] sm:$0xff]
    %v3190 = vld [vmem:[#allocation10 + $0x88] sm:$0xff]
    %v3191 = vld [vmem:[#allocation10 + $0x90] sm:$0xff]
    %v3192 = vld [vmem:[#allocation10 + $0x98] sm:$0xff]
    %v3193 = vld [vmem:[#allocation10 + $0xa0] sm:$0xff]
    %v3194 = vld [vmem:[#allocation10 + $0xa8] sm:$0xff]
    %v3195 = vld [vmem:[#allocation10 + $0xb0] sm:$0xff]
    %v3196 = vld [vmem:[#allocation10 + $0xb8] sm:$0xff]
    %v3197 = vld [vmem:[#allocation10 + $0xc0] sm:$0xff]
    %v3198 = vld [vmem:[#allocation10 + $0xc8] sm:$0xff]
    %v3199 = vld [vmem:[#allocation10 + $0xd0] sm:$0xff]
    %v3200 = vld [vmem:[#allocation10 + $0xd8] sm:$0xff]
    %v3201 = vld [vmem:[#allocation10 + $0xe0] sm:$0xff]
    %v3202 = vld [vmem:[#allocation10 + $0xe8] sm:$0xff]
    %v3203 = vld [vmem:[#allocation10 + $0xf0] sm:$0xff]
    %v3204 = vld [vmem:[#allocation10 + $0xf8] sm:$0xff]
    %v3205 = vld [vmem:[#allocation10 + $0x100] sm:$0xff]
    %v3206 = vld [vmem:[#allocation10 + $0x108] sm:$0xff]
    %v3207 = vld [vmem:[#allocation10 + $0x110] sm:$0xff]
    %v3208 = vld [vmem:[#allocation10 + $0x118] sm:$0xff]
    %v3209 = vld [vmem:[#allocation10 + $0x120] sm:$0xff]
    %v3210 = vld [vmem:[#allocation10 + $0x128] sm:$0xff]
    %v3211 = vld [vmem:[#allocation10 + $0x130] sm:$0xff]
    %v3212 = vld [vmem:[#allocation10 + $0x138] sm:$0xff]
    %v3213 = vld [vmem:[#allocation10 + $0x140] sm:$0xff]
    %v3214 = vld [vmem:[#allocation10 + $0x148] sm:$0xff]
    %v3215 = vld [vmem:[#allocation10 + $0x150] sm:$0xff]
    %v3216 = vld [vmem:[#allocation10 + $0x158] sm:$0xff]
    %v3217 = vld [vmem:[#allocation10 + $0x160] sm:$0xff]
    %v3218 = vld [vmem:[#allocation10 + $0x168] sm:$0xff]
    %v3219 = vld [vmem:[#allocation10 + $0x170] sm:$0xff]
    %v3220 = vld [vmem:[#allocation10 + $0x178] sm:$0xff]
    %v3221 = vld [vmem:[#allocation10 + $0x180] sm:$0xff]
    %v3222 = vld [vmem:[#allocation10 + $0x188] sm:$0xff]
    %v3223 = vld [vmem:[#allocation10 + $0x190] sm:$0xff]
    %v3224 = vld [vmem:[#allocation10 + $0x198] sm:$0xff]
    %v3225 = vld [vmem:[#allocation10 + $0x1a0] sm:$0xff]
    %v3226 = vld [vmem:[#allocation10 + $0x1a8] sm:$0xff]
    %v3227 = vld [vmem:[#allocation10 + $0x1b0] sm:$0xff]
    %v3228 = vld [vmem:[#allocation10 + $0x1b8] sm:$0xff]
    %v3229 = vld [vmem:[#allocation10 + $0x1c0] sm:$0xff]
    %v3230 = vld [vmem:[#allocation10 + $0x1c8] sm:$0xff]
    %v3231 = vld [vmem:[#allocation10 + $0x1d0] sm:$0xff]
    %v3232 = vld [vmem:[#allocation10 + $0x1d8] sm:$0xff]
    %v3233 = vld [vmem:[#allocation10 + $0x1e0] sm:$0xff]
    %v3234 = vld [vmem:[#allocation10 + $0x1e8] sm:$0xff]
    %v3235 = vld [vmem:[#allocation10 + $0x1f0] sm:$0xff]
    %v3236 = vld [vmem:[#allocation10 + $0x1f8] sm:$0xff]
    %v3237 = vld [vmem:[#allocation10 + $0x200] sm:$0xff]
    %v3238 = vld [vmem:[#allocation10 + $0x208] sm:$0xff]
    %v3239 = vld [vmem:[#allocation10 + $0x210] sm:$0xff]
    %v3240 = vld [vmem:[#allocation10 + $0x218] sm:$0xff]
    %v3241 = vld [vmem:[#allocation10 + $0x220] sm:$0xff]
    %v3242 = vld [vmem:[#allocation10 + $0x228] sm:$0xff]
    %v3243 = vld [vmem:[#allocation10 + $0x230] sm:$0xff]
    %v3244 = vld [vmem:[#allocation10 + $0x238] sm:$0xff]
    %v3245 = vld [vmem:[#allocation10 + $0x240] sm:$0xff]
    %v3246 = vld [vmem:[#allocation10 + $0x248] sm:$0xff]
    %v3247 = vld [vmem:[#allocation10 + $0x250] sm:$0xff]
    %v3248 = vld [vmem:[#allocation10 + $0x258] sm:$0xff]
    %v3249 = vld [vmem:[#allocation10 + $0x260] sm:$0xff]
    %v3250 = vld [vmem:[#allocation10 + $0x268] sm:$0xff]
    %v3251 = vld [vmem:[#allocation10 + $0x270] sm:$0xff]
    %v3252 = vld [vmem:[#allocation10 + $0x278] sm:$0xff]
    %v3253 = vld [vmem:[#allocation10 + $0x280] sm:$0xff]
    %v3254 = vld [vmem:[#allocation10 + $0x288] sm:$0xff]
    %v3255 = vld [vmem:[#allocation10 + $0x290] sm:$0xff]
    %v3256 = vld [vmem:[#allocation10 + $0x298] sm:$0xff]
    %v3257 = vld [vmem:[#allocation10 + $0x2a0] sm:$0xff]
    %v3258 = vld [vmem:[#allocation10 + $0x2a8] sm:$0xff]
    %v3259 = vld [vmem:[#allocation10 + $0x2b0] sm:$0xff]
    %v3260 = vld [vmem:[#allocation10 + $0x2b8] sm:$0xff]
    %v3261 = vld [vmem:[#allocation10 + $0x2c0] sm:$0xff]
    %v3262 = vld [vmem:[#allocation10 + $0x2c8] sm:$0xff]
    %v3263 = vld [vmem:[#allocation10 + $0x2d0] sm:$0xff]
    %v3264 = vld [vmem:[#allocation10 + $0x2d8] sm:$0xff]
    %v3265 = vld [vmem:[#allocation10 + $0x2e0] sm:$0xff]
    %v3266 = vld [vmem:[#allocation10 + $0x2e8] sm:$0xff]
    %v3267 = vld [vmem:[#allocation10 + $0x2f0] sm:$0xff]
    %v3268 = vld [vmem:[#allocation10 + $0x2f8] sm:$0xff]
    %v3269 = vld [vmem:[#allocation10 + $0x300] sm:$0xff]
    %v3270 = vld [vmem:[#allocation10 + $0x308] sm:$0xff]
    %v3271 = vld [vmem:[#allocation10 + $0x310] sm:$0xff]
    %v3272 = vld [vmem:[#allocation10 + $0x318] sm:$0xff]
    %v3273 = vld [vmem:[#allocation10 + $0x320] sm:$0xff]
    %v3274 = vld [vmem:[#allocation10 + $0x328] sm:$0xff]
    %v3275 = vld [vmem:[#allocation10 + $0x330] sm:$0xff]
    %v3276 = vld [vmem:[#allocation10 + $0x338] sm:$0xff]
    %v3277 = vld [vmem:[#allocation10 + $0x340] sm:$0xff]
    %v3278 = vld [vmem:[#allocation10 + $0x348] sm:$0xff]
    %v3279 = vld [vmem:[#allocation10 + $0x350] sm:$0xff]
    %v3280 = vld [vmem:[#allocation10 + $0x358] sm:$0xff]
    %v3281 = vld [vmem:[#allocation10 + $0x360] sm:$0xff]
    %v3282 = vld [vmem:[#allocation10 + $0x368] sm:$0xff]
    %v3283 = vld [vmem:[#allocation10 + $0x370] sm:$0xff]
    %v3284 = vld [vmem:[#allocation10 + $0x378] sm:$0xff]
    %v3285 = vld [vmem:[#allocation10 + $0x380] sm:$0xff]
    %v3286 = vld [vmem:[#allocation10 + $0x388] sm:$0xff]
    %v3287 = vld [vmem:[#allocation10 + $0x390] sm:$0xff]
    %v3288 = vld [vmem:[#allocation10 + $0x398] sm:$0xff]
    %v3289 = vld [vmem:[#allocation10 + $0x3a0] sm:$0xff]
    %v3290 = vld [vmem:[#allocation10 + $0x3a8] sm:$0xff]
    %v3291 = vld [vmem:[#allocation10 + $0x3b0] sm:$0xff]
    %v3292 = vld [vmem:[#allocation10 + $0x3b8] sm:$0xff]
    %v3293 = vld [vmem:[#allocation10 + $0x3c0] sm:$0xff]
    %v3294 = vld [vmem:[#allocation10 + $0x3c8] sm:$0xff]
    %v3295 = vld [vmem:[#allocation10 + $0x3d0] sm:$0xff]
    %v3296 = vld [vmem:[#allocation10 + $0x3d8] sm:$0xff]
    %v3297 = vld [vmem:[#allocation10 + $0x3e0] sm:$0xff]
    %v3298 = vld [vmem:[#allocation10 + $0x3e8] sm:$0xff]
    %v3299 = vld [vmem:[#allocation10 + $0x3f0] sm:$0xff]
    %v3300 = vld [vmem:[#allocation10 + $0x3f8] sm:$0xff]
    %v3301 = vld [vmem:[#allocation10 + $0x400] sm:$0xff]
    %v3302 = vld [vmem:[#allocation10 + $0x408] sm:$0xff]
    %v3303 = vld [vmem:[#allocation10 + $0x410] sm:$0xff]
    %v3304 = vld [vmem:[#allocation10 + $0x418] sm:$0xff]
    %v3305 = vld [vmem:[#allocation10 + $0x420] sm:$0xff]
    %v3306 = vld [vmem:[#allocation10 + $0x428] sm:$0xff]
    %v3307 = vld [vmem:[#allocation10 + $0x430] sm:$0xff]
    %v3308 = vld [vmem:[#allocation10 + $0x438] sm:$0xff]
    %v3309 = vld [vmem:[#allocation10 + $0x440] sm:$0xff]
    %v3310 = vld [vmem:[#allocation10 + $0x448] sm:$0xff]
    %v3311 = vld [vmem:[#allocation10 + $0x450] sm:$0xff]
    %v3312 = vld [vmem:[#allocation10 + $0x458] sm:$0xff]
    %v3313 = vld [vmem:[#allocation10 + $0x460] sm:$0xff]
    %v3314 = vld [vmem:[#allocation10 + $0x468] sm:$0xff]
    %v3315 = vld [vmem:[#allocation10 + $0x470] sm:$0xff]
    %v3316 = vld [vmem:[#allocation10 + $0x478] sm:$0xff]
    %v3317 = vld [vmem:[#allocation10 + $0x480] sm:$0xff]
    %v3318 = vld [vmem:[#allocation10 + $0x488] sm:$0xff]
    %v3319 = vld [vmem:[#allocation10 + $0x490] sm:$0xff]
    %v3320 = vld [vmem:[#allocation10 + $0x498] sm:$0xff]
    %v3321 = vld [vmem:[#allocation10 + $0x4a0] sm:$0xff]
    %v3322 = vld [vmem:[#allocation10 + $0x4a8] sm:$0xff]
    %v3323 = vld [vmem:[#allocation10 + $0x4b0] sm:$0xff]
    %v3324 = vld [vmem:[#allocation10 + $0x4b8] sm:$0xff]
    %v3325 = vld [vmem:[#allocation10 + $0x4c0] sm:$0xff]
    %v3326 = vld [vmem:[#allocation10 + $0x4c8] sm:$0xff]
    %v3327 = vld [vmem:[#allocation10 + $0x4d0] sm:$0xff]
    %v3328 = vld [vmem:[#allocation10 + $0x4d8] sm:$0xff]
    %v3329 = vld [vmem:[#allocation10 + $0x4e0] sm:$0xff]
    %v3330 = vld [vmem:[#allocation10 + $0x4e8] sm:$0xff]
    %v3331 = vld [vmem:[#allocation10 + $0x4f0] sm:$0xff]
    %v3332 = vld [vmem:[#allocation10 + $0x4f8] sm:$0xff]
    %v3333 = vld [vmem:[#allocation10 + $0x500] sm:$0xff]
    %v3334 = vld [vmem:[#allocation10 + $0x508] sm:$0xff]
    %v3335 = vld [vmem:[#allocation10 + $0x510] sm:$0xff]
    %v3336 = vld [vmem:[#allocation10 + $0x518] sm:$0xff]
    %v3337 = vld [vmem:[#allocation10 + $0x520] sm:$0xff]
    %v3338 = vld [vmem:[#allocation10 + $0x528] sm:$0xff]
    %v3339 = vld [vmem:[#allocation10 + $0x530] sm:$0xff]
    %v3340 = vld [vmem:[#allocation10 + $0x538] sm:$0xff]
    %v3341 = vld [vmem:[#allocation10 + $0x540] sm:$0xff]
    %v3342 = vld [vmem:[#allocation10 + $0x548] sm:$0xff]
    %v3343 = vld [vmem:[#allocation10 + $0x550] sm:$0xff]
    %v3344 = vld [vmem:[#allocation10 + $0x558] sm:$0xff]
    %v3345 = vld [vmem:[#allocation10 + $0x560] sm:$0xff]
    %v3346 = vld [vmem:[#allocation10 + $0x568] sm:$0xff]
    %v3347 = vld [vmem:[#allocation10 + $0x570] sm:$0xff]
    %v3348 = vld [vmem:[#allocation10 + $0x578] sm:$0xff]
    %v3349 = vld [vmem:[#allocation10 + $0x580] sm:$0xff]
    %v3350 = vld [vmem:[#allocation10 + $0x588] sm:$0xff]
    %v3351 = vld [vmem:[#allocation10 + $0x590] sm:$0xff]
    %v3352 = vld [vmem:[#allocation10 + $0x598] sm:$0xff]
    %v3353 = vld [vmem:[#allocation10 + $0x5a0] sm:$0xff]
    %v3354 = vld [vmem:[#allocation10 + $0x5a8] sm:$0xff]
    %v3355 = vld [vmem:[#allocation10 + $0x5b0] sm:$0xff]
    %v3356 = vld [vmem:[#allocation10 + $0x5b8] sm:$0xff]
    %v3357 = vld [vmem:[#allocation10 + $0x5c0] sm:$0xff]
    %v3358 = vld [vmem:[#allocation10 + $0x5c8] sm:$0xff]
    %v3359 = vld [vmem:[#allocation10 + $0x5d0] sm:$0xff]
    %v3360 = vld [vmem:[#allocation10 + $0x5d8] sm:$0xff]
    %v3361 = vld [vmem:[#allocation10 + $0x5e0] sm:$0xff]
    %v3362 = vld [vmem:[#allocation10 + $0x5e8] sm:$0xff]
    %v3363 = vld [vmem:[#allocation10 + $0x5f0] sm:$0xff]
    %v3364 = vld [vmem:[#allocation10 + $0x5f8] sm:$0xff]
    %v3365 = vld [vmem:[#allocation10 + $0x600] sm:$0xff]
    %v3366 = vld [vmem:[#allocation10 + $0x608] sm:$0xff]
    %v3367 = vld [vmem:[#allocation10 + $0x610] sm:$0xff]
    %v3368 = vld [vmem:[#allocation10 + $0x618] sm:$0xff]
    %v3369 = vld [vmem:[#allocation10 + $0x620] sm:$0xff]
    %v3370 = vld [vmem:[#allocation10 + $0x628] sm:$0xff]
    %v3371 = vld [vmem:[#allocation10 + $0x630] sm:$0xff]
    %v3372 = vld [vmem:[#allocation10 + $0x638] sm:$0xff]
    %v3373 = vld [vmem:[#allocation10 + $0x640] sm:$0xff]
    %v3374 = vld [vmem:[#allocation10 + $0x648] sm:$0xff]
    %v3375 = vld [vmem:[#allocation10 + $0x650] sm:$0xff]
    %v3376 = vld [vmem:[#allocation10 + $0x658] sm:$0xff]
    %v3377 = vld [vmem:[#allocation10 + $0x660] sm:$0xff]
    %v3378 = vld [vmem:[#allocation10 + $0x668] sm:$0xff]
    %v3379 = vld [vmem:[#allocation10 + $0x670] sm:$0xff]
    %v3380 = vld [vmem:[#allocation10 + $0x678] sm:$0xff]
    %v3381 = vld [vmem:[#allocation10 + $0x680] sm:$0xff]
    %v3382 = vld [vmem:[#allocation10 + $0x688] sm:$0xff]
    %v3383 = vld [vmem:[#allocation10 + $0x690] sm:$0xff]
    %v3384 = vld [vmem:[#allocation10 + $0x698] sm:$0xff]
    %v3385 = vld [vmem:[#allocation10 + $0x6a0] sm:$0xff]
    %v3386 = vld [vmem:[#allocation10 + $0x6a8] sm:$0xff]
    %v3387 = vld [vmem:[#allocation10 + $0x6b0] sm:$0xff]
    %v3388 = vld [vmem:[#allocation10 + $0x6b8] sm:$0xff]
    %v3389 = vld [vmem:[#allocation10 + $0x6c0] sm:$0xff]
    %v3390 = vld [vmem:[#allocation10 + $0x6c8] sm:$0xff]
    %v3391 = vld [vmem:[#allocation10 + $0x6d0] sm:$0xff]
    %v3392 = vld [vmem:[#allocation10 + $0x6d8] sm:$0xff]
    %v3393 = vld [vmem:[#allocation10 + $0x6e0] sm:$0xff]
    %v3394 = vld [vmem:[#allocation10 + $0x6e8] sm:$0xff]
    %v3395 = vld [vmem:[#allocation10 + $0x6f0] sm:$0xff]
    %v3396 = vld [vmem:[#allocation10 + $0x6f8] sm:$0xff]
    %v3397 = vld [vmem:[#allocation10 + $0x700] sm:$0xff]
    %v3398 = vld [vmem:[#allocation10 + $0x708] sm:$0xff]
    %v3399 = vld [vmem:[#allocation10 + $0x710] sm:$0xff]
    %v3400 = vld [vmem:[#allocation10 + $0x718] sm:$0xff]
    %v3401 = vld [vmem:[#allocation10 + $0x720] sm:$0xff]
    %v3402 = vld [vmem:[#allocation10 + $0x728] sm:$0xff]
    %v3403 = vld [vmem:[#allocation10 + $0x730] sm:$0xff]
    %v3404 = vld [vmem:[#allocation10 + $0x738] sm:$0xff]
    %v3405 = vld [vmem:[#allocation10 + $0x740] sm:$0xff]
    %v3406 = vld [vmem:[#allocation10 + $0x748] sm:$0xff]
    %v3407 = vld [vmem:[#allocation10 + $0x750] sm:$0xff]
    %v3408 = vld [vmem:[#allocation10 + $0x758] sm:$0xff]
    %v3409 = vld [vmem:[#allocation10 + $0x760] sm:$0xff]
    %v3410 = vld [vmem:[#allocation10 + $0x768] sm:$0xff]
    %v3411 = vld [vmem:[#allocation10 + $0x770] sm:$0xff]
    %v3412 = vld [vmem:[#allocation10 + $0x778] sm:$0xff]
    %v3413 = vld [vmem:[#allocation10 + $0x780] sm:$0xff]
    %v3414 = vld [vmem:[#allocation10 + $0x788] sm:$0xff]
    %v3415 = vld [vmem:[#allocation10 + $0x790] sm:$0xff]
    %v3416 = vld [vmem:[#allocation10 + $0x798] sm:$0xff]
    %v3417 = vld [vmem:[#allocation10 + $0x7a0] sm:$0xff]
    %v3418 = vld [vmem:[#allocation10 + $0x7a8] sm:$0xff]
    %v3419 = vld [vmem:[#allocation10 + $0x7b0] sm:$0xff]
    %v3420 = vld [vmem:[#allocation10 + $0x7b8] sm:$0xff]
    %v3421 = vld [vmem:[#allocation10 + $0x7c0] sm:$0xff]
    %v3422 = vld [vmem:[#allocation10 + $0x7c8] sm:$0xff]
    %v3423 = vld [vmem:[#allocation10 + $0x7d0] sm:$0xff]
    %v3424 = vld [vmem:[#allocation10 + $0x7d8] sm:$0xff]
    %v3425 = vld [vmem:[#allocation10 + $0x7e0] sm:$0xff]
    %v3426 = vld [vmem:[#allocation10 + $0x7e8] sm:$0xff]
    %v3427 = vld [vmem:[#allocation10 + $0x7f0] sm:$0xff]
    %v3428 = vld [vmem:[#allocation10 + $0x7f8] sm:$0xff]
    %v3429 = vld [vmem:[%s6] sm:$0xff]
    %v3431 = vlaneseq
    %v3432 = vshrl.u32 %v3431, 7
    %v3433 = vsub.s32 0, %v3432
    %v3434 = vrot.slane %v3429, %v3433
    %v3435 = vlaneseq
    %v3436 = vshrl.u32 %v3435, 7
    %v3437 = vsub.s32 1, %v3436
    %v3438 = vrot.slane %v3429, %v3437
    %v3439 = vlaneseq
    %v3440 = vshrl.u32 %v3439, 7
    %v3441 = vsub.s32 2, %v3440
    %v3442 = vrot.slane %v3429, %v3441
    %v3443 = vlaneseq
    %v3444 = vshrl.u32 %v3443, 7
    %v3445 = vsub.s32 3, %v3444
    %v3446 = vrot.slane %v3429, %v3445
    %v3447 = vlaneseq
    %v3448 = vshrl.u32 %v3447, 7
    %v3449 = vsub.s32 4, %v3448
    %v3450 = vrot.slane %v3429, %v3449
    %v3451 = vlaneseq
    %v3452 = vshrl.u32 %v3451, 7
    %v3453 = vsub.s32 5, %v3452
    %v3454 = vrot.slane %v3429, %v3453
    %v3455 = vlaneseq
    %v3456 = vshrl.u32 %v3455, 7
    %v3457 = vsub.s32 6, %v3456
    %v3458 = vrot.slane %v3429, %v3457
    %v3459 = vlaneseq
    %v3460 = vshrl.u32 %v3459, 7
    %v3461 = vsub.s32 7, %v3460
    %v3462 = vrot.slane %v3429, %v3461
    %v3727 = vunpack.c.l.b16 %v3173
    %v3728 = vunpack.c.h.b16 %v3173
    %v3729 = vunpack.c.l.b16 %v3174
    %v3730 = vunpack.c.h.b16 %v3174
    %v3731 = vunpack.c.l.b16 %v3175
    %v3732 = vunpack.c.h.b16 %v3175
    %v3733 = vunpack.c.l.b16 %v3176
    %v3734 = vunpack.c.h.b16 %v3176
    %v3735 = vunpack.c.l.b16 %v3177
    %v3736 = vunpack.c.h.b16 %v3177
    %v3737 = vunpack.c.l.b16 %v3178
    %v3738 = vunpack.c.h.b16 %v3178
    %v3739 = vunpack.c.l.b16 %v3179
    %v3740 = vunpack.c.h.b16 %v3179
    %v3741 = vunpack.c.l.b16 %v3180
    %v3742 = vunpack.c.h.b16 %v3180
    %v3743 = vunpack.c.l.b16 %v3181
    %v3744 = vunpack.c.h.b16 %v3181
    %v3745 = vunpack.c.l.b16 %v3182
    %v3746 = vunpack.c.h.b16 %v3182
    %v3747 = vunpack.c.l.b16 %v3183
    %v3748 = vunpack.c.h.b16 %v3183
    %v3749 = vunpack.c.l.b16 %v3184
    %v3750 = vunpack.c.h.b16 %v3184
    %v3751 = vunpack.c.l.b16 %v3185
    %v3752 = vunpack.c.h.b16 %v3185
    %v3753 = vunpack.c.l.b16 %v3186
    %v3754 = vunpack.c.h.b16 %v3186
    %v3755 = vunpack.c.l.b16 %v3187
    %v3756 = vunpack.c.h.b16 %v3187
    %v3757 = vunpack.c.l.b16 %v3188
    %v3758 = vunpack.c.h.b16 %v3188
    %v3759 = vunpack.c.l.b16 %v3189
    %v3760 = vunpack.c.h.b16 %v3189
    %v3761 = vunpack.c.l.b16 %v3190
    %v3762 = vunpack.c.h.b16 %v3190
    %v3763 = vunpack.c.l.b16 %v3191
    %v3764 = vunpack.c.h.b16 %v3191
    %v3765 = vunpack.c.l.b16 %v3192
    %v3766 = vunpack.c.h.b16 %v3192
    %v3767 = vunpack.c.l.b16 %v3193
    %v3768 = vunpack.c.h.b16 %v3193
    %v3769 = vunpack.c.l.b16 %v3194
    %v3770 = vunpack.c.h.b16 %v3194
    %v3771 = vunpack.c.l.b16 %v3195
    %v3772 = vunpack.c.h.b16 %v3195
    %v3773 = vunpack.c.l.b16 %v3196
    %v3774 = vunpack.c.h.b16 %v3196
    %v3775 = vunpack.c.l.b16 %v3197
    %v3776 = vunpack.c.h.b16 %v3197
    %v3777 = vunpack.c.l.b16 %v3198
    %v3778 = vunpack.c.h.b16 %v3198
    %v3779 = vunpack.c.l.b16 %v3199
    %v3780 = vunpack.c.h.b16 %v3199
    %v3781 = vunpack.c.l.b16 %v3200
    %v3782 = vunpack.c.h.b16 %v3200
    %v3783 = vunpack.c.l.b16 %v3201
    %v3784 = vunpack.c.h.b16 %v3201
    %v3785 = vunpack.c.l.b16 %v3202
    %v3786 = vunpack.c.h.b16 %v3202
    %v3787 = vunpack.c.l.b16 %v3203
    %v3788 = vunpack.c.h.b16 %v3203
    %v3789 = vunpack.c.l.b16 %v3204
    %v3790 = vunpack.c.h.b16 %v3204
    %v3791 = vunpack.c.l.b16 %v3205
    %v3792 = vunpack.c.h.b16 %v3205
    %v3793 = vunpack.c.l.b16 %v3206
    %v3794 = vunpack.c.h.b16 %v3206
    %v3795 = vunpack.c.l.b16 %v3207
    %v3796 = vunpack.c.h.b16 %v3207
    %v3797 = vunpack.c.l.b16 %v3208
    %v3798 = vunpack.c.h.b16 %v3208
    %v3799 = vunpack.c.l.b16 %v3209
    %v3800 = vunpack.c.h.b16 %v3209
    %v3801 = vunpack.c.l.b16 %v3210
    %v3802 = vunpack.c.h.b16 %v3210
    %v3803 = vunpack.c.l.b16 %v3211
    %v3804 = vunpack.c.h.b16 %v3211
    %v3805 = vunpack.c.l.b16 %v3212
    %v3806 = vunpack.c.h.b16 %v3212
    %v3807 = vunpack.c.l.b16 %v3213
    %v3808 = vunpack.c.h.b16 %v3213
    %v3809 = vunpack.c.l.b16 %v3214
    %v3810 = vunpack.c.h.b16 %v3214
    %v3811 = vunpack.c.l.b16 %v3215
    %v3812 = vunpack.c.h.b16 %v3215
    %v3813 = vunpack.c.l.b16 %v3216
    %v3814 = vunpack.c.h.b16 %v3216
    %v3815 = vunpack.c.l.b16 %v3217
    %v3816 = vunpack.c.h.b16 %v3217
    %v3817 = vunpack.c.l.b16 %v3218
    %v3818 = vunpack.c.h.b16 %v3218
    %v3819 = vunpack.c.l.b16 %v3219
    %v3820 = vunpack.c.h.b16 %v3219
    %v3821 = vunpack.c.l.b16 %v3220
    %v3822 = vunpack.c.h.b16 %v3220
    %v3823 = vunpack.c.l.b16 %v3221
    %v3824 = vunpack.c.h.b16 %v3221
    %v3825 = vunpack.c.l.b16 %v3222
    %v3826 = vunpack.c.h.b16 %v3222
    %v3827 = vunpack.c.l.b16 %v3223
    %v3828 = vunpack.c.h.b16 %v3223
    %v3829 = vunpack.c.l.b16 %v3224
    %v3830 = vunpack.c.h.b16 %v3224
    %v3831 = vunpack.c.l.b16 %v3225
    %v3832 = vunpack.c.h.b16 %v3225
    %v3833 = vunpack.c.l.b16 %v3226
    %v3834 = vunpack.c.h.b16 %v3226
    %v3835 = vunpack.c.l.b16 %v3227
    %v3836 = vunpack.c.h.b16 %v3227
    %v3837 = vunpack.c.l.b16 %v3228
    %v3838 = vunpack.c.h.b16 %v3228
    %v3839 = vunpack.c.l.b16 %v3229
    %v3840 = vunpack.c.h.b16 %v3229
    %v3841 = vunpack.c.l.b16 %v3230
    %v3842 = vunpack.c.h.b16 %v3230
    %v3843 = vunpack.c.l.b16 %v3231
    %v3844 = vunpack.c.h.b16 %v3231
    %v3845 = vunpack.c.l.b16 %v3232
    %v3846 = vunpack.c.h.b16 %v3232
    %v3847 = vunpack.c.l.b16 %v3233
    %v3848 = vunpack.c.h.b16 %v3233
    %v3849 = vunpack.c.l.b16 %v3234
    %v3850 = vunpack.c.h.b16 %v3234
    %v3851 = vunpack.c.l.b16 %v3235
    %v3852 = vunpack.c.h.b16 %v3235
    %v3853 = vunpack.c.l.b16 %v3236
    %v3854 = vunpack.c.h.b16 %v3236
    %v3855 = vunpack.c.l.b16 %v3237
    %v3856 = vunpack.c.h.b16 %v3237
    %v3857 = vunpack.c.l.b16 %v3238
    %v3858 = vunpack.c.h.b16 %v3238
    %v3859 = vunpack.c.l.b16 %v3239
    %v3860 = vunpack.c.h.b16 %v3239
    %v3861 = vunpack.c.l.b16 %v3240
    %v3862 = vunpack.c.h.b16 %v3240
    %v3863 = vunpack.c.l.b16 %v3241
    %v3864 = vunpack.c.h.b16 %v3241
    %v3865 = vunpack.c.l.b16 %v3242
    %v3866 = vunpack.c.h.b16 %v3242
    %v3867 = vunpack.c.l.b16 %v3243
    %v3868 = vunpack.c.h.b16 %v3243
    %v3869 = vunpack.c.l.b16 %v3244
    %v3870 = vunpack.c.h.b16 %v3244
    %v3871 = vunpack.c.l.b16 %v3245
    %v3872 = vunpack.c.h.b16 %v3245
    %v3873 = vunpack.c.l.b16 %v3246
    %v3874 = vunpack.c.h.b16 %v3246
    %v3875 = vunpack.c.l.b16 %v3247
    %v3876 = vunpack.c.h.b16 %v3247
    %v3877 = vunpack.c.l.b16 %v3248
    %v3878 = vunpack.c.h.b16 %v3248
    %v3879 = vunpack.c.l.b16 %v3249
    %v3880 = vunpack.c.h.b16 %v3249
    %v3881 = vunpack.c.l.b16 %v3250
    %v3882 = vunpack.c.h.b16 %v3250
    %v3883 = vunpack.c.l.b16 %v3251
    %v3884 = vunpack.c.h.b16 %v3251
    %v3885 = vunpack.c.l.b16 %v3252
    %v3886 = vunpack.c.h.b16 %v3252
    %v3887 = vunpack.c.l.b16 %v3253
    %v3888 = vunpack.c.h.b16 %v3253
    %v3889 = vunpack.c.l.b16 %v3254
    %v3890 = vunpack.c.h.b16 %v3254
    %v3891 = vunpack.c.l.b16 %v3255
    %v3892 = vunpack.c.h.b16 %v3255
    %v3893 = vunpack.c.l.b16 %v3256
    %v3894 = vunpack.c.h.b16 %v3256
    %v3895 = vunpack.c.l.b16 %v3257
    %v3896 = vunpack.c.h.b16 %v3257
    %v3897 = vunpack.c.l.b16 %v3258
    %v3898 = vunpack.c.h.b16 %v3258
    %v3899 = vunpack.c.l.b16 %v3259
    %v3900 = vunpack.c.h.b16 %v3259
    %v3901 = vunpack.c.l.b16 %v3260
    %v3902 = vunpack.c.h.b16 %v3260
    %v3903 = vunpack.c.l.b16 %v3261
    %v3904 = vunpack.c.h.b16 %v3261
    %v3905 = vunpack.c.l.b16 %v3262
    %v3906 = vunpack.c.h.b16 %v3262
    %v3907 = vunpack.c.l.b16 %v3263
    %v3908 = vunpack.c.h.b16 %v3263
    %v3909 = vunpack.c.l.b16 %v3264
    %v3910 = vunpack.c.h.b16 %v3264
    %v3911 = vunpack.c.l.b16 %v3265
    %v3912 = vunpack.c.h.b16 %v3265
    %v3913 = vunpack.c.l.b16 %v3266
    %v3914 = vunpack.c.h.b16 %v3266
    %v3915 = vunpack.c.l.b16 %v3267
    %v3916 = vunpack.c.h.b16 %v3267
    %v3917 = vunpack.c.l.b16 %v3268
    %v3918 = vunpack.c.h.b16 %v3268
    %v3919 = vunpack.c.l.b16 %v3269
    %v3920 = vunpack.c.h.b16 %v3269
    %v3921 = vunpack.c.l.b16 %v3270
    %v3922 = vunpack.c.h.b16 %v3270
    %v3923 = vunpack.c.l.b16 %v3271
    %v3924 = vunpack.c.h.b16 %v3271
    %v3925 = vunpack.c.l.b16 %v3272
    %v3926 = vunpack.c.h.b16 %v3272
    %v3927 = vunpack.c.l.b16 %v3273
    %v3928 = vunpack.c.h.b16 %v3273
    %v3929 = vunpack.c.l.b16 %v3274
    %v3930 = vunpack.c.h.b16 %v3274
    %v3931 = vunpack.c.l.b16 %v3275
    %v3932 = vunpack.c.h.b16 %v3275
    %v3933 = vunpack.c.l.b16 %v3276
    %v3934 = vunpack.c.h.b16 %v3276
    %v3935 = vunpack.c.l.b16 %v3277
    %v3936 = vunpack.c.h.b16 %v3277
    %v3937 = vunpack.c.l.b16 %v3278
    %v3938 = vunpack.c.h.b16 %v3278
    %v3939 = vunpack.c.l.b16 %v3279
    %v3940 = vunpack.c.h.b16 %v3279
    %v3941 = vunpack.c.l.b16 %v3280
    %v3942 = vunpack.c.h.b16 %v3280
    %v3943 = vunpack.c.l.b16 %v3281
    %v3944 = vunpack.c.h.b16 %v3281
    %v3945 = vunpack.c.l.b16 %v3282
    %v3946 = vunpack.c.h.b16 %v3282
    %v3947 = vunpack.c.l.b16 %v3283
    %v3948 = vunpack.c.h.b16 %v3283
    %v3949 = vunpack.c.l.b16 %v3284
    %v3950 = vunpack.c.h.b16 %v3284
    %v3951 = vunpack.c.l.b16 %v3285
    %v3952 = vunpack.c.h.b16 %v3285
    %v3953 = vunpack.c.l.b16 %v3286
    %v3954 = vunpack.c.h.b16 %v3286
    %v3955 = vunpack.c.l.b16 %v3287
    %v3956 = vunpack.c.h.b16 %v3287
    %v3957 = vunpack.c.l.b16 %v3288
    %v3958 = vunpack.c.h.b16 %v3288
    %v3959 = vunpack.c.l.b16 %v3289
    %v3960 = vunpack.c.h.b16 %v3289
    %v3961 = vunpack.c.l.b16 %v3290
    %v3962 = vunpack.c.h.b16 %v3290
    %v3963 = vunpack.c.l.b16 %v3291
    %v3964 = vunpack.c.h.b16 %v3291
    %v3965 = vunpack.c.l.b16 %v3292
    %v3966 = vunpack.c.h.b16 %v3292
    %v3967 = vunpack.c.l.b16 %v3293
    %v3968 = vunpack.c.h.b16 %v3293
    %v3969 = vunpack.c.l.b16 %v3294
    %v3970 = vunpack.c.h.b16 %v3294
    %v3971 = vunpack.c.l.b16 %v3295
    %v3972 = vunpack.c.h.b16 %v3295
    %v3973 = vunpack.c.l.b16 %v3296
    %v3974 = vunpack.c.h.b16 %v3296
    %v3975 = vunpack.c.l.b16 %v3297
    %v3976 = vunpack.c.h.b16 %v3297
    %v3977 = vunpack.c.l.b16 %v3298
    %v3978 = vunpack.c.h.b16 %v3298
    %v3979 = vunpack.c.l.b16 %v3299
    %v3980 = vunpack.c.h.b16 %v3299
    %v3981 = vunpack.c.l.b16 %v3300
    %v3982 = vunpack.c.h.b16 %v3300
    %v3983 = vunpack.c.l.b16 %v3301
    %v3984 = vunpack.c.h.b16 %v3301
    %v3985 = vunpack.c.l.b16 %v3302
    %v3986 = vunpack.c.h.b16 %v3302
    %v3987 = vunpack.c.l.b16 %v3303
    %v3988 = vunpack.c.h.b16 %v3303
    %v3989 = vunpack.c.l.b16 %v3304
    %v3990 = vunpack.c.h.b16 %v3304
    %v3991 = vunpack.c.l.b16 %v3305
    %v3992 = vunpack.c.h.b16 %v3305
    %v3993 = vunpack.c.l.b16 %v3306
    %v3994 = vunpack.c.h.b16 %v3306
    %v3995 = vunpack.c.l.b16 %v3307
    %v3996 = vunpack.c.h.b16 %v3307
    %v3997 = vunpack.c.l.b16 %v3308
    %v3998 = vunpack.c.h.b16 %v3308
    %v3999 = vunpack.c.l.b16 %v3309
    %v4000 = vunpack.c.h.b16 %v3309
    %v4001 = vunpack.c.l.b16 %v3310
    %v4002 = vunpack.c.h.b16 %v3310
    %v4003 = vunpack.c.l.b16 %v3311
    %v4004 = vunpack.c.h.b16 %v3311
    %v4005 = vunpack.c.l.b16 %v3312
    %v4006 = vunpack.c.h.b16 %v3312
    %v4007 = vunpack.c.l.b16 %v3313
    %v4008 = vunpack.c.h.b16 %v3313
    %v4009 = vunpack.c.l.b16 %v3314
    %v4010 = vunpack.c.h.b16 %v3314
    %v4011 = vunpack.c.l.b16 %v3315
    %v4012 = vunpack.c.h.b16 %v3315
    %v4013 = vunpack.c.l.b16 %v3316
    %v4014 = vunpack.c.h.b16 %v3316
    %v4015 = vunpack.c.l.b16 %v3317
    %v4016 = vunpack.c.h.b16 %v3317
    %v4017 = vunpack.c.l.b16 %v3318
    %v4018 = vunpack.c.h.b16 %v3318
    %v4019 = vunpack.c.l.b16 %v3319
    %v4020 = vunpack.c.h.b16 %v3319
    %v4021 = vunpack.c.l.b16 %v3320
    %v4022 = vunpack.c.h.b16 %v3320
    %v4023 = vunpack.c.l.b16 %v3321
    %v4024 = vunpack.c.h.b16 %v3321
    %v4025 = vunpack.c.l.b16 %v3322
    %v4026 = vunpack.c.h.b16 %v3322
    %v4027 = vunpack.c.l.b16 %v3323
    %v4028 = vunpack.c.h.b16 %v3323
    %v4029 = vunpack.c.l.b16 %v3324
    %v4030 = vunpack.c.h.b16 %v3324
    %v4031 = vunpack.c.l.b16 %v3325
    %v4032 = vunpack.c.h.b16 %v3325
    %v4033 = vunpack.c.l.b16 %v3326
    %v4034 = vunpack.c.h.b16 %v3326
    %v4035 = vunpack.c.l.b16 %v3327
    %v4036 = vunpack.c.h.b16 %v3327
    %v4037 = vunpack.c.l.b16 %v3328
    %v4038 = vunpack.c.h.b16 %v3328
    %v4039 = vunpack.c.l.b16 %v3329
    %v4040 = vunpack.c.h.b16 %v3329
    %v4041 = vunpack.c.l.b16 %v3330
    %v4042 = vunpack.c.h.b16 %v3330
    %v4043 = vunpack.c.l.b16 %v3331
    %v4044 = vunpack.c.h.b16 %v3331
    %v4045 = vunpack.c.l.b16 %v3332
    %v4046 = vunpack.c.h.b16 %v3332
    %v4047 = vunpack.c.l.b16 %v3333
    %v4048 = vunpack.c.h.b16 %v3333
    %v4049 = vunpack.c.l.b16 %v3334
    %v4050 = vunpack.c.h.b16 %v3334
    %v4051 = vunpack.c.l.b16 %v3335
    %v4052 = vunpack.c.h.b16 %v3335
    %v4053 = vunpack.c.l.b16 %v3336
    %v4054 = vunpack.c.h.b16 %v3336
    %v4055 = vunpack.c.l.b16 %v3337
    %v4056 = vunpack.c.h.b16 %v3337
    %v4057 = vunpack.c.l.b16 %v3338
    %v4058 = vunpack.c.h.b16 %v3338
    %v4059 = vunpack.c.l.b16 %v3339
    %v4060 = vunpack.c.h.b16 %v3339
    %v4061 = vunpack.c.l.b16 %v3340
    %v4062 = vunpack.c.h.b16 %v3340
    %v4063 = vunpack.c.l.b16 %v3341
    %v4064 = vunpack.c.h.b16 %v3341
    %v4065 = vunpack.c.l.b16 %v3342
    %v4066 = vunpack.c.h.b16 %v3342
    %v4067 = vunpack.c.l.b16 %v3343
    %v4068 = vunpack.c.h.b16 %v3343
    %v4069 = vunpack.c.l.b16 %v3344
    %v4070 = vunpack.c.h.b16 %v3344
    %v4071 = vunpack.c.l.b16 %v3345
    %v4072 = vunpack.c.h.b16 %v3345
    %v4073 = vunpack.c.l.b16 %v3346
    %v4074 = vunpack.c.h.b16 %v3346
    %v4075 = vunpack.c.l.b16 %v3347
    %v4076 = vunpack.c.h.b16 %v3347
    %v4077 = vunpack.c.l.b16 %v3348
    %v4078 = vunpack.c.h.b16 %v3348
    %v4079 = vunpack.c.l.b16 %v3349
    %v4080 = vunpack.c.h.b16 %v3349
    %v4081 = vunpack.c.l.b16 %v3350
    %v4082 = vunpack.c.h.b16 %v3350
    %v4083 = vunpack.c.l.b16 %v3351
    %v4084 = vunpack.c.h.b16 %v3351
    %v4085 = vunpack.c.l.b16 %v3352
    %v4086 = vunpack.c.h.b16 %v3352
    %v4087 = vunpack.c.l.b16 %v3353
    %v4088 = vunpack.c.h.b16 %v3353
    %v4089 = vunpack.c.l.b16 %v3354
    %v4090 = vunpack.c.h.b16 %v3354
    %v4091 = vunpack.c.l.b16 %v3355
    %v4092 = vunpack.c.h.b16 %v3355
    %v4093 = vunpack.c.l.b16 %v3356
    %v4094 = vunpack.c.h.b16 %v3356
    %v4095 = vunpack.c.l.b16 %v3357
    %v4096 = vunpack.c.h.b16 %v3357
    %v4097 = vunpack.c.l.b16 %v3358
    %v4098 = vunpack.c.h.b16 %v3358
    %v4099 = vunpack.c.l.b16 %v3359
    %v4100 = vunpack.c.h.b16 %v3359
    %v4101 = vunpack.c.l.b16 %v3360
    %v4102 = vunpack.c.h.b16 %v3360
    %v4103 = vunpack.c.l.b16 %v3361
    %v4104 = vunpack.c.h.b16 %v3361
    %v4105 = vunpack.c.l.b16 %v3362
    %v4106 = vunpack.c.h.b16 %v3362
    %v4107 = vunpack.c.l.b16 %v3363
    %v4108 = vunpack.c.h.b16 %v3363
    %v4109 = vunpack.c.l.b16 %v3364
    %v4110 = vunpack.c.h.b16 %v3364
    %v4111 = vunpack.c.l.b16 %v3365
    %v4112 = vunpack.c.h.b16 %v3365
    %v4113 = vunpack.c.l.b16 %v3366
    %v4114 = vunpack.c.h.b16 %v3366
    %v4115 = vunpack.c.l.b16 %v3367
    %v4116 = vunpack.c.h.b16 %v3367
    %v4117 = vunpack.c.l.b16 %v3368
    %v4118 = vunpack.c.h.b16 %v3368
    %v4119 = vunpack.c.l.b16 %v3369
    %v4120 = vunpack.c.h.b16 %v3369
    %v4121 = vunpack.c.l.b16 %v3370
    %v4122 = vunpack.c.h.b16 %v3370
    %v4123 = vunpack.c.l.b16 %v3371
    %v4124 = vunpack.c.h.b16 %v3371
    %v4125 = vunpack.c.l.b16 %v3372
    %v4126 = vunpack.c.h.b16 %v3372
    %v4127 = vunpack.c.l.b16 %v3373
    %v4128 = vunpack.c.h.b16 %v3373
    %v4129 = vunpack.c.l.b16 %v3374
    %v4130 = vunpack.c.h.b16 %v3374
    %v4131 = vunpack.c.l.b16 %v3375
    %v4132 = vunpack.c.h.b16 %v3375
    %v4133 = vunpack.c.l.b16 %v3376
    %v4134 = vunpack.c.h.b16 %v3376
    %v4135 = vunpack.c.l.b16 %v3377
    %v4136 = vunpack.c.h.b16 %v3377
    %v4137 = vunpack.c.l.b16 %v3378
    %v4138 = vunpack.c.h.b16 %v3378
    %v4139 = vunpack.c.l.b16 %v3379
    %v4140 = vunpack.c.h.b16 %v3379
    %v4141 = vunpack.c.l.b16 %v3380
    %v4142 = vunpack.c.h.b16 %v3380
    %v4143 = vunpack.c.l.b16 %v3381
    %v4144 = vunpack.c.h.b16 %v3381
    %v4145 = vunpack.c.l.b16 %v3382
    %v4146 = vunpack.c.h.b16 %v3382
    %v4147 = vunpack.c.l.b16 %v3383
    %v4148 = vunpack.c.h.b16 %v3383
    %v4149 = vunpack.c.l.b16 %v3384
    %v4150 = vunpack.c.h.b16 %v3384
    %v4151 = vunpack.c.l.b16 %v3385
    %v4152 = vunpack.c.h.b16 %v3385
    %v4153 = vunpack.c.l.b16 %v3386
    %v4154 = vunpack.c.h.b16 %v3386
    %v4155 = vunpack.c.l.b16 %v3387
    %v4156 = vunpack.c.h.b16 %v3387
    %v4157 = vunpack.c.l.b16 %v3388
    %v4158 = vunpack.c.h.b16 %v3388
    %v4159 = vunpack.c.l.b16 %v3389
    %v4160 = vunpack.c.h.b16 %v3389
    %v4161 = vunpack.c.l.b16 %v3390
    %v4162 = vunpack.c.h.b16 %v3390
    %v4163 = vunpack.c.l.b16 %v3391
    %v4164 = vunpack.c.h.b16 %v3391
    %v4165 = vunpack.c.l.b16 %v3392
    %v4166 = vunpack.c.h.b16 %v3392
    %v4167 = vunpack.c.l.b16 %v3393
    %v4168 = vunpack.c.h.b16 %v3393
    %v4169 = vunpack.c.l.b16 %v3394
    %v4170 = vunpack.c.h.b16 %v3394
    %v4171 = vunpack.c.l.b16 %v3395
    %v4172 = vunpack.c.h.b16 %v3395
    %v4173 = vunpack.c.l.b16 %v3396
    %v4174 = vunpack.c.h.b16 %v3396
    %v4175 = vunpack.c.l.b16 %v3397
    %v4176 = vunpack.c.h.b16 %v3397
    %v4177 = vunpack.c.l.b16 %v3398
    %v4178 = vunpack.c.h.b16 %v3398
    %v4179 = vunpack.c.l.b16 %v3399
    %v4180 = vunpack.c.h.b16 %v3399
    %v4181 = vunpack.c.l.b16 %v3400
    %v4182 = vunpack.c.h.b16 %v3400
    %v4183 = vunpack.c.l.b16 %v3401
    %v4184 = vunpack.c.h.b16 %v3401
    %v4185 = vunpack.c.l.b16 %v3402
    %v4186 = vunpack.c.h.b16 %v3402
    %v4187 = vunpack.c.l.b16 %v3403
    %v4188 = vunpack.c.h.b16 %v3403
    %v4189 = vunpack.c.l.b16 %v3404
    %v4190 = vunpack.c.h.b16 %v3404
    %v4191 = vunpack.c.l.b16 %v3405
    %v4192 = vunpack.c.h.b16 %v3405
    %v4193 = vunpack.c.l.b16 %v3406
    %v4194 = vunpack.c.h.b16 %v3406
    %v4195 = vunpack.c.l.b16 %v3407
    %v4196 = vunpack.c.h.b16 %v3407
    %v4197 = vunpack.c.l.b16 %v3408
    %v4198 = vunpack.c.h.b16 %v3408
    %v4199 = vunpack.c.l.b16 %v3409
    %v4200 = vunpack.c.h.b16 %v3409
    %v4201 = vunpack.c.l.b16 %v3410
    %v4202 = vunpack.c.h.b16 %v3410
    %v4203 = vunpack.c.l.b16 %v3411
    %v4204 = vunpack.c.h.b16 %v3411
    %v4205 = vunpack.c.l.b16 %v3412
    %v4206 = vunpack.c.h.b16 %v3412
    %v4207 = vunpack.c.l.b16 %v3413
    %v4208 = vunpack.c.h.b16 %v3413
    %v4209 = vunpack.c.l.b16 %v3414
    %v4210 = vunpack.c.h.b16 %v3414
    %v4211 = vunpack.c.l.b16 %v3415
    %v4212 = vunpack.c.h.b16 %v3415
    %v4213 = vunpack.c.l.b16 %v3416
    %v4214 = vunpack.c.h.b16 %v3416
    %v4215 = vunpack.c.l.b16 %v3417
    %v4216 = vunpack.c.h.b16 %v3417
    %v4217 = vunpack.c.l.b16 %v3418
    %v4218 = vunpack.c.h.b16 %v3418
    %v4219 = vunpack.c.l.b16 %v3419
    %v4220 = vunpack.c.h.b16 %v3419
    %v4221 = vunpack.c.l.b16 %v3420
    %v4222 = vunpack.c.h.b16 %v3420
    %v4223 = vunpack.c.l.b16 %v3421
    %v4224 = vunpack.c.h.b16 %v3421
    %v4225 = vunpack.c.l.b16 %v3422
    %v4226 = vunpack.c.h.b16 %v3422
    %v4227 = vunpack.c.l.b16 %v3423
    %v4228 = vunpack.c.h.b16 %v3423
    %v4229 = vunpack.c.l.b16 %v3424
    %v4230 = vunpack.c.h.b16 %v3424
    %v4231 = vunpack.c.l.b16 %v3425
    %v4232 = vunpack.c.h.b16 %v3425
    %v4233 = vunpack.c.l.b16 %v3426
    %v4234 = vunpack.c.h.b16 %v3426
    %v4235 = vunpack.c.l.b16 %v3427
    %v4236 = vunpack.c.h.b16 %v3427
    %v4237 = vunpack.c.l.b16 %v3428
    %v4238 = vunpack.c.h.b16 %v3428
    %v4239 = vpack.c.b16 %v3735, %v3727
    %v4240 = vpack.c.b16 %v3736, %v3728
    %v4241 = vpack.c.b16 %v3737, %v3729
    %v4242 = vpack.c.b16 %v3738, %v3730
    %v4243 = vpack.c.b16 %v3739, %v3731
    %v4244 = vpack.c.b16 %v3740, %v3732
    %v4245 = vpack.c.b16 %v3741, %v3733
    %v4246 = vpack.c.b16 %v3742, %v3734
    %v4247 = vpack.c.b16 %v3751, %v3743
    %v4248 = vpack.c.b16 %v3752, %v3744
    %v4249 = vpack.c.b16 %v3753, %v3745
    %v4250 = vpack.c.b16 %v3754, %v3746
    %v4251 = vpack.c.b16 %v3755, %v3747
    %v4252 = vpack.c.b16 %v3756, %v3748
    %v4253 = vpack.c.b16 %v3757, %v3749
    %v4254 = vpack.c.b16 %v3758, %v3750
    %v4255 = vpack.c.b16 %v3767, %v3759
    %v4256 = vpack.c.b16 %v3768, %v3760
    %v4257 = vpack.c.b16 %v3769, %v3761
    %v4258 = vpack.c.b16 %v3770, %v3762
    %v4259 = vpack.c.b16 %v3771, %v3763
    %v4260 = vpack.c.b16 %v3772, %v3764
    %v4261 = vpack.c.b16 %v3773, %v3765
    %v4262 = vpack.c.b16 %v3774, %v3766
    %v4263 = vpack.c.b16 %v3783, %v3775
    %v4264 = vpack.c.b16 %v3784, %v3776
    %v4265 = vpack.c.b16 %v3785, %v3777
    %v4266 = vpack.c.b16 %v3786, %v3778
    %v4267 = vpack.c.b16 %v3787, %v3779
    %v4268 = vpack.c.b16 %v3788, %v3780
    %v4269 = vpack.c.b16 %v3789, %v3781
    %v4270 = vpack.c.b16 %v3790, %v3782
    %v4271 = vpack.c.b16 %v3799, %v3791
    %v4272 = vpack.c.b16 %v3800, %v3792
    %v4273 = vpack.c.b16 %v3801, %v3793
    %v4274 = vpack.c.b16 %v3802, %v3794
    %v4275 = vpack.c.b16 %v3803, %v3795
    %v4276 = vpack.c.b16 %v3804, %v3796
    %v4277 = vpack.c.b16 %v3805, %v3797
    %v4278 = vpack.c.b16 %v3806, %v3798
    %v4279 = vpack.c.b16 %v3815, %v3807
    %v4280 = vpack.c.b16 %v3816, %v3808
    %v4281 = vpack.c.b16 %v3817, %v3809
    %v4282 = vpack.c.b16 %v3818, %v3810
    %v4283 = vpack.c.b16 %v3819, %v3811
    %v4284 = vpack.c.b16 %v3820, %v3812
    %v4285 = vpack.c.b16 %v3821, %v3813
    %v4286 = vpack.c.b16 %v3822, %v3814
    %v4287 = vpack.c.b16 %v3831, %v3823
    %v4288 = vpack.c.b16 %v3832, %v3824
    %v4289 = vpack.c.b16 %v3833, %v3825
    %v4290 = vpack.c.b16 %v3834, %v3826
    %v4291 = vpack.c.b16 %v3835, %v3827
    %v4292 = vpack.c.b16 %v3836, %v3828
    %v4293 = vpack.c.b16 %v3837, %v3829
    %v4294 = vpack.c.b16 %v3838, %v3830
    %v4295 = vpack.c.b16 %v3847, %v3839
    %v4296 = vpack.c.b16 %v3848, %v3840
    %v4297 = vpack.c.b16 %v3849, %v3841
    %v4298 = vpack.c.b16 %v3850, %v3842
    %v4299 = vpack.c.b16 %v3851, %v3843
    %v4300 = vpack.c.b16 %v3852, %v3844
    %v4301 = vpack.c.b16 %v3853, %v3845
    %v4302 = vpack.c.b16 %v3854, %v3846
    %v4303 = vpack.c.b16 %v3863, %v3855
    %v4304 = vpack.c.b16 %v3864, %v3856
    %v4305 = vpack.c.b16 %v3865, %v3857
    %v4306 = vpack.c.b16 %v3866, %v3858
    %v4307 = vpack.c.b16 %v3867, %v3859
    %v4308 = vpack.c.b16 %v3868, %v3860
    %v4309 = vpack.c.b16 %v3869, %v3861
    %v4310 = vpack.c.b16 %v3870, %v3862
    %v4311 = vpack.c.b16 %v3879, %v3871
    %v4312 = vpack.c.b16 %v3880, %v3872
    %v4313 = vpack.c.b16 %v3881, %v3873
    %v4314 = vpack.c.b16 %v3882, %v3874
    %v4315 = vpack.c.b16 %v3883, %v3875
    %v4316 = vpack.c.b16 %v3884, %v3876
    %v4317 = vpack.c.b16 %v3885, %v3877
    %v4318 = vpack.c.b16 %v3886, %v3878
    %v4319 = vpack.c.b16 %v3895, %v3887
    %v4320 = vpack.c.b16 %v3896, %v3888
    %v4321 = vpack.c.b16 %v3897, %v3889
    %v4322 = vpack.c.b16 %v3898, %v3890
    %v4323 = vpack.c.b16 %v3899, %v3891
    %v4324 = vpack.c.b16 %v3900, %v3892
    %v4325 = vpack.c.b16 %v3901, %v3893
    %v4326 = vpack.c.b16 %v3902, %v3894
    %v4327 = vpack.c.b16 %v3911, %v3903
    %v4328 = vpack.c.b16 %v3912, %v3904
    %v4329 = vpack.c.b16 %v3913, %v3905
    %v4330 = vpack.c.b16 %v3914, %v3906
    %v4331 = vpack.c.b16 %v3915, %v3907
    %v4332 = vpack.c.b16 %v3916, %v3908
    %v4333 = vpack.c.b16 %v3917, %v3909
    %v4334 = vpack.c.b16 %v3918, %v3910
    %v4335 = vpack.c.b16 %v3927, %v3919
    %v4336 = vpack.c.b16 %v3928, %v3920
    %v4337 = vpack.c.b16 %v3929, %v3921
    %v4338 = vpack.c.b16 %v3930, %v3922
    %v4339 = vpack.c.b16 %v3931, %v3923
    %v4340 = vpack.c.b16 %v3932, %v3924
    %v4341 = vpack.c.b16 %v3933, %v3925
    %v4342 = vpack.c.b16 %v3934, %v3926
    %v4343 = vpack.c.b16 %v3943, %v3935
    %v4344 = vpack.c.b16 %v3944, %v3936
    %v4345 = vpack.c.b16 %v3945, %v3937
    %v4346 = vpack.c.b16 %v3946, %v3938
    %v4347 = vpack.c.b16 %v3947, %v3939
    %v4348 = vpack.c.b16 %v3948, %v3940
    %v4349 = vpack.c.b16 %v3949, %v3941
    %v4350 = vpack.c.b16 %v3950, %v3942
    %v4351 = vpack.c.b16 %v3959, %v3951
    %v4352 = vpack.c.b16 %v3960, %v3952
    %v4353 = vpack.c.b16 %v3961, %v3953
    %v4354 = vpack.c.b16 %v3962, %v3954
    %v4355 = vpack.c.b16 %v3963, %v3955
    %v4356 = vpack.c.b16 %v3964, %v3956
    %v4357 = vpack.c.b16 %v3965, %v3957
    %v4358 = vpack.c.b16 %v3966, %v3958
    %v4359 = vpack.c.b16 %v3975, %v3967
    %v4360 = vpack.c.b16 %v3976, %v3968
    %v4361 = vpack.c.b16 %v3977, %v3969
    %v4362 = vpack.c.b16 %v3978, %v3970
    %v4363 = vpack.c.b16 %v3979, %v3971
    %v4364 = vpack.c.b16 %v3980, %v3972
    %v4365 = vpack.c.b16 %v3981, %v3973
    %v4366 = vpack.c.b16 %v3982, %v3974
    %v4367 = vpack.c.b16 %v3991, %v3983
    %v4368 = vpack.c.b16 %v3992, %v3984
    %v4369 = vpack.c.b16 %v3993, %v3985
    %v4370 = vpack.c.b16 %v3994, %v3986
    %v4371 = vpack.c.b16 %v3995, %v3987
    %v4372 = vpack.c.b16 %v3996, %v3988
    %v4373 = vpack.c.b16 %v3997, %v3989
    %v4374 = vpack.c.b16 %v3998, %v3990
    %v4375 = vpack.c.b16 %v4007, %v3999
    %v4376 = vpack.c.b16 %v4008, %v4000
    %v4377 = vpack.c.b16 %v4009, %v4001
    %v4378 = vpack.c.b16 %v4010, %v4002
    %v4379 = vpack.c.b16 %v4011, %v4003
    %v4380 = vpack.c.b16 %v4012, %v4004
    %v4381 = vpack.c.b16 %v4013, %v4005
    %v4382 = vpack.c.b16 %v4014, %v4006
    %v4383 = vpack.c.b16 %v4023, %v4015
    %v4384 = vpack.c.b16 %v4024, %v4016
    %v4385 = vpack.c.b16 %v4025, %v4017
    %v4386 = vpack.c.b16 %v4026, %v4018
    %v4387 = vpack.c.b16 %v4027, %v4019
    %v4388 = vpack.c.b16 %v4028, %v4020
    %v4389 = vpack.c.b16 %v4029, %v4021
    %v4390 = vpack.c.b16 %v4030, %v4022
    %v4391 = vpack.c.b16 %v4039, %v4031
    %v4392 = vpack.c.b16 %v4040, %v4032
    %v4393 = vpack.c.b16 %v4041, %v4033
    %v4394 = vpack.c.b16 %v4042, %v4034
    %v4395 = vpack.c.b16 %v4043, %v4035
    %v4396 = vpack.c.b16 %v4044, %v4036
    %v4397 = vpack.c.b16 %v4045, %v4037
    %v4398 = vpack.c.b16 %v4046, %v4038
    %v4399 = vpack.c.b16 %v4055, %v4047
    %v4400 = vpack.c.b16 %v4056, %v4048
    %v4401 = vpack.c.b16 %v4057, %v4049
    %v4402 = vpack.c.b16 %v4058, %v4050
    %v4403 = vpack.c.b16 %v4059, %v4051
    %v4404 = vpack.c.b16 %v4060, %v4052
    %v4405 = vpack.c.b16 %v4061, %v4053
    %v4406 = vpack.c.b16 %v4062, %v4054
    %v4407 = vpack.c.b16 %v4071, %v4063
    %v4408 = vpack.c.b16 %v4072, %v4064
    %v4409 = vpack.c.b16 %v4073, %v4065
    %v4410 = vpack.c.b16 %v4074, %v4066
    %v4411 = vpack.c.b16 %v4075, %v4067
    %v4412 = vpack.c.b16 %v4076, %v4068
    %v4413 = vpack.c.b16 %v4077, %v4069
    %v4414 = vpack.c.b16 %v4078, %v4070
    %v4415 = vpack.c.b16 %v4087, %v4079
    %v4416 = vpack.c.b16 %v4088, %v4080
    %v4417 = vpack.c.b16 %v4089, %v4081
    %v4418 = vpack.c.b16 %v4090, %v4082
    %v4419 = vpack.c.b16 %v4091, %v4083
    %v4420 = vpack.c.b16 %v4092, %v4084
    %v4421 = vpack.c.b16 %v4093, %v4085
    %v4422 = vpack.c.b16 %v4094, %v4086
    %v4423 = vpack.c.b16 %v4103, %v4095
    %v4424 = vpack.c.b16 %v4104, %v4096
    %v4425 = vpack.c.b16 %v4105, %v4097
    %v4426 = vpack.c.b16 %v4106, %v4098
    %v4427 = vpack.c.b16 %v4107, %v4099
    %v4428 = vpack.c.b16 %v4108, %v4100
    %v4429 = vpack.c.b16 %v4109, %v4101
    %v4430 = vpack.c.b16 %v4110, %v4102
    %v4431 = vpack.c.b16 %v4119, %v4111
    %v4432 = vpack.c.b16 %v4120, %v4112
    %v4433 = vpack.c.b16 %v4121, %v4113
    %v4434 = vpack.c.b16 %v4122, %v4114
    %v4435 = vpack.c.b16 %v4123, %v4115
    %v4436 = vpack.c.b16 %v4124, %v4116
    %v4437 = vpack.c.b16 %v4125, %v4117
    %v4438 = vpack.c.b16 %v4126, %v4118
    %v4439 = vpack.c.b16 %v4135, %v4127
    %v4440 = vpack.c.b16 %v4136, %v4128
    %v4441 = vpack.c.b16 %v4137, %v4129
    %v4442 = vpack.c.b16 %v4138, %v4130
    %v4443 = vpack.c.b16 %v4139, %v4131
    %v4444 = vpack.c.b16 %v4140, %v4132
    %v4445 = vpack.c.b16 %v4141, %v4133
    %v4446 = vpack.c.b16 %v4142, %v4134
    %v4447 = vpack.c.b16 %v4151, %v4143
    %v4448 = vpack.c.b16 %v4152, %v4144
    %v4449 = vpack.c.b16 %v4153, %v4145
    %v4450 = vpack.c.b16 %v4154, %v4146
    %v4451 = vpack.c.b16 %v4155, %v4147
    %v4452 = vpack.c.b16 %v4156, %v4148
    %v4453 = vpack.c.b16 %v4157, %v4149
    %v4454 = vpack.c.b16 %v4158, %v4150
    %v4455 = vpack.c.b16 %v4167, %v4159
    %v4456 = vpack.c.b16 %v4168, %v4160
    %v4457 = vpack.c.b16 %v4169, %v4161
    %v4458 = vpack.c.b16 %v4170, %v4162
    %v4459 = vpack.c.b16 %v4171, %v4163
    %v4460 = vpack.c.b16 %v4172, %v4164
    %v4461 = vpack.c.b16 %v4173, %v4165
    %v4462 = vpack.c.b16 %v4174, %v4166
    %v4463 = vpack.c.b16 %v4183, %v4175
    %v4464 = vpack.c.b16 %v4184, %v4176
    %v4465 = vpack.c.b16 %v4185, %v4177
    %v4466 = vpack.c.b16 %v4186, %v4178
    %v4467 = vpack.c.b16 %v4187, %v4179
    %v4468 = vpack.c.b16 %v4188, %v4180
    %v4469 = vpack.c.b16 %v4189, %v4181
    %v4470 = vpack.c.b16 %v4190, %v4182
    %v4471 = vpack.c.b16 %v4199, %v4191
    %v4472 = vpack.c.b16 %v4200, %v4192
    %v4473 = vpack.c.b16 %v4201, %v4193
    %v4474 = vpack.c.b16 %v4202, %v4194
    %v4475 = vpack.c.b16 %v4203, %v4195
    %v4476 = vpack.c.b16 %v4204, %v4196
    %v4477 = vpack.c.b16 %v4205, %v4197
    %v4478 = vpack.c.b16 %v4206, %v4198
    %v4479 = vpack.c.b16 %v4215, %v4207
    %v4480 = vpack.c.b16 %v4216, %v4208
    %v4481 = vpack.c.b16 %v4217, %v4209
    %v4482 = vpack.c.b16 %v4218, %v4210
    %v4483 = vpack.c.b16 %v4219, %v4211
    %v4484 = vpack.c.b16 %v4220, %v4212
    %v4485 = vpack.c.b16 %v4221, %v4213
    %v4486 = vpack.c.b16 %v4222, %v4214
    %v4487 = vpack.c.b16 %v4231, %v4223
    %v4488 = vpack.c.b16 %v4232, %v4224
    %v4489 = vpack.c.b16 %v4233, %v4225
    %v4490 = vpack.c.b16 %v4234, %v4226
    %v4491 = vpack.c.b16 %v4235, %v4227
    %v4492 = vpack.c.b16 %v4236, %v4228
    %v4493 = vpack.c.b16 %v4237, %v4229
    %v4494 = vpack.c.b16 %v4238, %v4230
    %4751 = vmatprep.subr.bf16.mxu0 %v4240
    %4752 = vmatpush1.bf16.msra.mxu0 %v4239
    %4753 = vmatprep.subr.bf16.mxu0 %v4248
    %4754 = vmatpush1.bf16.msra.mxu0 %v4247
    %4755 = vmatprep.subr.bf16.mxu0 %v4256
    %4756 = vmatpush1.bf16.msra.mxu0 %v4255
    %4757 = vmatprep.subr.bf16.mxu0 %v4264
    %4758 = vmatpush1.bf16.msra.mxu0 %v4263
    %4759 = vmatprep.subr.bf16.mxu0 %v4272
    %4760 = vmatpush1.bf16.msra.mxu0 %v4271
    %4761 = vmatprep.subr.bf16.mxu0 %v4280
    %4762 = vmatpush1.bf16.msra.mxu0 %v4279
    %4763 = vmatprep.subr.bf16.mxu0 %v4288
    %4764 = vmatpush1.bf16.msra.mxu0 %v4287
    %4765 = vmatprep.subr.bf16.mxu0 %v4296
    %4766 = vmatpush1.bf16.msra.mxu0 %v4295
    %4767 = vmatprep.subr.bf16.mxu0 %v4304
    %4768 = vmatpush1.bf16.msra.mxu0 %v4303
    %4769 = vmatprep.subr.bf16.mxu0 %v4312
    %4770 = vmatpush1.bf16.msra.mxu0 %v4311
    %4771 = vmatprep.subr.bf16.mxu0 %v4320
    %4772 = vmatpush1.bf16.msra.mxu0 %v4319
    %4773 = vmatprep.subr.bf16.mxu0 %v4328
    %4774 = vmatpush1.bf16.msra.mxu0 %v4327
    %4775 = vmatprep.subr.bf16.mxu0 %v4336
    %4776 = vmatpush1.bf16.msra.mxu0 %v4335
    %4777 = vmatprep.subr.bf16.mxu0 %v4344
    %4778 = vmatpush1.bf16.msra.mxu0 %v4343
    %4779 = vmatprep.subr.bf16.mxu0 %v4352
    %4780 = vmatpush1.bf16.msra.mxu0 %v4351
    %4781 = vmatprep.subr.bf16.mxu0 %v4360
    %4782 = vmatpush1.bf16.msra.mxu0 %v4359
    %4783 = vmatprep.mubr.bf16.mxu0 %v3170
    %4784 = vmatmul.mubr.bf16.gmra.mrb[0].mxu0 %v3169
    %v4785 = vpop.f32.mrb[0].mxu0
    %v4786 = vadd.f32 %v3434, %v4785
    %v4787 = vpop.f32.mrb[0].mxu0
    %v4788 = vadd.f32 %v3438, %v4787
    %v4789 = vpop.f32.mrb[0].mxu0
    %v4790 = vadd.f32 %v3434, %v4789
    %v4791 = vpop.f32.mrb[0].mxu0
    %v4792 = vadd.f32 %v3438, %v4791
    %4793 = vdwg.mxu0
    %4794 = vmatprep.subr.bf16.mxu0 %v4368
    %4795 = vmatpush1.bf16.msra.mxu0 %v4367
    %4796 = vmatprep.subr.bf16.mxu0 %v4376
    %4797 = vmatpush1.bf16.msra.mxu0 %v4375
    %4798 = vmatprep.subr.bf16.mxu0 %v4384
    %4799 = vmatpush1.bf16.msra.mxu0 %v4383
    %4800 = vmatprep.subr.bf16.mxu0 %v4392
    %4801 = vmatpush1.bf16.msra.mxu0 %v4391
    %4802 = vmatprep.subr.bf16.mxu0 %v4400
    %4803 = vmatpush1.bf16.msra.mxu0 %v4399
    %4804 = vmatprep.subr.bf16.mxu0 %v4408
    %4805 = vmatpush1.bf16.msra.mxu0 %v4407
    %4806 = vmatprep.subr.bf16.mxu0 %v4416
    %4807 = vmatpush1.bf16.msra.mxu0 %v4415
    %4808 = vmatprep.subr.bf16.mxu0 %v4424
    %4809 = vmatpush1.bf16.msra.mxu0 %v4423
    %4810 = vmatprep.subr.bf16.mxu0 %v4432
    %4811 = vmatpush1.bf16.msra.mxu0 %v4431
    %4812 = vmatprep.subr.bf16.mxu0 %v4440
    %4813 = vmatpush1.bf16.msra.mxu0 %v4439
    %4814 = vmatprep.subr.bf16.mxu0 %v4448
    %4815 = vmatpush1.bf16.msra.mxu0 %v4447
    %4816 = vmatprep.subr.bf16.mxu0 %v4456
    %4817 = vmatpush1.bf16.msra.mxu0 %v4455
    %4818 = vmatprep.subr.bf16.mxu0 %v4464
    %4819 = vmatpush1.bf16.msra.mxu0 %v4463
    %4820 = vmatprep.subr.bf16.mxu0 %v4472
    %4821 = vmatpush1.bf16.msra.mxu0 %v4471
    %4822 = vmatprep.subr.bf16.mxu0 %v4480
    %4823 = vmatpush1.bf16.msra.mxu0 %v4479
    %4824 = vmatprep.subr.bf16.mxu0 %v4488
    %4825 = vmatpush1.bf16.msra.mxu0 %v4487
    %4826 = vmatprep.mubr.bf16.mxu0 %v3172
    %4827 = vmatmul.mubr.bf16.gmra.mrb[0].mxu0 %v3171
    %v4828 = vpop.f32.mrb[0].mxu0
    %v4829 = vadd.f32 %v4786, %v4828
    %v4830 = vpop.f32.mrb[0].mxu0
    %v4831 = vadd.f32 %v4788, %v4830
    %v4832 = vpop.f32.mrb[0].mxu0
    %v4833 = vadd.f32 %v4790, %v4832
    %v4834 = vpop.f32.mrb[0].mxu0
    %v4835 = vadd.f32 %v4792, %v4834
    %4836 = vdwg.mxu0
    %4837 = vmatprep.subr.bf16.mxu0 %v4242
    %4838 = vmatpush1.bf16.msra.mxu0 %v4241
    %4839 = vmatprep.subr.bf16.mxu0 %v4250
    %4840 = vmatpush1.bf16.msra.mxu0 %v4249
    %4841 = vmatprep.subr.bf16.mxu0 %v4258
    %4842 = vmatpush1.bf16.msra.mxu0 %v4257
    %4843 = vmatprep.subr.bf16.mxu0 %v4266
    %4844 = vmatpush1.bf16.msra.mxu0 %v4265
    %4845 = vmatprep.subr.bf16.mxu0 %v4274
    %4846 = vmatpush1.bf16.msra.mxu0 %v4273
    %4847 = vmatprep.subr.bf16.mxu0 %v4282
    %4848 = vmatpush1.bf16.msra.mxu0 %v4281
    %4849 = vmatprep.subr.bf16.mxu0 %v4290
    %4850 = vmatpush1.bf16.msra.mxu0 %v4289
    %4851 = vmatprep.subr.bf16.mxu0 %v4298
    %4852 = vmatpush1.bf16.msra.mxu0 %v4297
    %4853 = vmatprep.subr.bf16.mxu0 %v4306
    %4854 = vmatpush1.bf16.msra.mxu0 %v4305
    %4855 = vmatprep.subr.bf16.mxu0 %v4314
    %4856 = vmatpush1.bf16.msra.mxu0 %v4313
    %4857 = vmatprep.subr.bf16.mxu0 %v4322
    %4858 = vmatpush1.bf16.msra.mxu0 %v4321
    %4859 = vmatprep.subr.bf16.mxu0 %v4330
    %4860 = vmatpush1.bf16.msra.mxu0 %v4329
    %4861 = vmatprep.subr.bf16.mxu0 %v4338
    %4862 = vmatpush1.bf16.msra.mxu0 %v4337
    %4863 = vmatprep.subr.bf16.mxu0 %v4346
    %4864 = vmatpush1.bf16.msra.mxu0 %v4345
    %4865 = vmatprep.subr.bf16.mxu0 %v4354
    %4866 = vmatpush1.bf16.msra.mxu0 %v4353
    %4867 = vmatprep.subr.bf16.mxu0 %v4362
    %4868 = vmatpush1.bf16.msra.mxu0 %v4361
    %4869 = vmatprep.mubr.bf16.mxu0 %v3170
    %4870 = vmatmul.mubr.bf16.gmra.mrb[0].mxu0 %v3169
    %v4871 = vpop.f32.mrb[0].mxu0
    %v4872 = vadd.f32 %v3442, %v4871
    %v4873 = vpop.f32.mrb[0].mxu0
    %v4874 = vadd.f32 %v3446, %v4873
    %v4875 = vpop.f32.mrb[0].mxu0
    %v4876 = vadd.f32 %v3442, %v4875
    %v4877 = vpop.f32.mrb[0].mxu0
    %v4878 = vadd.f32 %v3446, %v4877
    %4879 = vdwg.mxu0
    %4880 = vmatprep.subr.bf16.mxu0 %v4370
    %4881 = vmatpush1.bf16.msra.mxu0 %v4369
    %4882 = vmatprep.subr.bf16.mxu0 %v4378
    %4883 = vmatpush1.bf16.msra.mxu0 %v4377
    %4884 = vmatprep.subr.bf16.mxu0 %v4386
    %4885 = vmatpush1.bf16.msra.mxu0 %v4385
    %4886 = vmatprep.subr.bf16.mxu0 %v4394
    %4887 = vmatpush1.bf16.msra.mxu0 %v4393
    %4888 = vmatprep.subr.bf16.mxu0 %v4402
    %4889 = vmatpush1.bf16.msra.mxu0 %v4401
    %4890 = vmatprep.subr.bf16.mxu0 %v4410
    %4891 = vmatpush1.bf16.msra.mxu0 %v4409
    %4892 = vmatprep.subr.bf16.mxu0 %v4418
    %4893 = vmatpush1.bf16.msra.mxu0 %v4417
    %4894 = vmatprep.subr.bf16.mxu0 %v4426
    %4895 = vmatpush1.bf16.msra.mxu0 %v4425
    %4896 = vmatprep.subr.bf16.mxu0 %v4434
    %4897 = vmatpush1.bf16.msra.mxu0 %v4433
    %4898 = vmatprep.subr.bf16.mxu0 %v4442
    %4899 = vmatpush1.bf16.msra.mxu0 %v4441
    %4900 = vmatprep.subr.bf16.mxu0 %v4450
    %4901 = vmatpush1.bf16.msra.mxu0 %v4449
    %4902 = vmatprep.subr.bf16.mxu0 %v4458
    %4903 = vmatpush1.bf16.msra.mxu0 %v4457
    %4904 = vmatprep.subr.bf16.mxu0 %v4466
    %4905 = vmatpush1.bf16.msra.mxu0 %v4465
    %4906 = vmatprep.subr.bf16.mxu0 %v4474
    %4907 = vmatpush1.bf16.msra.mxu0 %v4473
    %4908 = vmatprep.subr.bf16.mxu0 %v4482
    %4909 = vmatpush1.bf16.msra.mxu0 %v4481
    %4910 = vmatprep.subr.bf16.mxu0 %v4490
    %4911 = vmatpush1.bf16.msra.mxu0 %v4489
    %4912 = vmatprep.mubr.bf16.mxu0 %v3172
    %4913 = vmatmul.mubr.bf16.gmra.mrb[0].mxu0 %v3171
    %v4914 = vpop.f32.mrb[0].mxu0
    %v4915 = vadd.f32 %v4872, %v4914
    %v4916 = vpop.f32.mrb[0].mxu0
    %v4917 = vadd.f32 %v4874, %v4916
    %v4918 = vpop.f32.mrb[0].mxu0
    %v4919 = vadd.f32 %v4876, %v4918
    %v4920 = vpop.f32.mrb[0].mxu0
    %v4921 = vadd.f32 %v4878, %v4920
    %4922 = vdwg.mxu0
    %4923 = vmatprep.subr.bf16.mxu0 %v4244
    %4924 = vmatpush1.bf16.msra.mxu0 %v4243
    %4925 = vmatprep.subr.bf16.mxu0 %v4252
    %4926 = vmatpush1.bf16.msra.mxu0 %v4251
    %4927 = vmatprep.subr.bf16.mxu0 %v4260
    %4928 = vmatpush1.bf16.msra.mxu0 %v4259
    %4929 = vmatprep.subr.bf16.mxu0 %v4268
    %4930 = vmatpush1.bf16.msra.mxu0 %v4267
    %4931 = vmatprep.subr.bf16.mxu0 %v4276
    %4932 = vmatpush1.bf16.msra.mxu0 %v4275
    %4933 = vmatprep.subr.bf16.mxu0 %v4284
    %4934 = vmatpush1.bf16.msra.mxu0 %v4283
    %4935 = vmatprep.subr.bf16.mxu0 %v4292
    %4936 = vmatpush1.bf16.msra.mxu0 %v4291
    %4937 = vmatprep.subr.bf16.mxu0 %v4300
    %4938 = vmatpush1.bf16.msra.mxu0 %v4299
    %4939 = vmatprep.subr.bf16.mxu0 %v4308
    %4940 = vmatpush1.bf16.msra.mxu0 %v4307
    %4941 = vmatprep.subr.bf16.mxu0 %v4316
    %4942 = vmatpush1.bf16.msra.mxu0 %v4315
    %4943 = vmatprep.subr.bf16.mxu0 %v4324
    %4944 = vmatpush1.bf16.msra.mxu0 %v4323
    %4945 = vmatprep.subr.bf16.mxu0 %v4332
    %4946 = vmatpush1.bf16.msra.mxu0 %v4331
    %4947 = vmatprep.subr.bf16.mxu0 %v4340
    %4948 = vmatpush1.bf16.msra.mxu0 %v4339
    %4949 = vmatprep.subr.bf16.mxu0 %v4348
    %4950 = vmatpush1.bf16.msra.mxu0 %v4347
    %4951 = vmatprep.subr.bf16.mxu0 %v4356
    %4952 = vmatpush1.bf16.msra.mxu0 %v4355
    %4953 = vmatprep.subr.bf16.mxu0 %v4364
    %4954 = vmatpush1.bf16.msra.mxu0 %v4363
    %4955 = vmatprep.mubr.bf16.mxu0 %v3170
    %4956 = vmatmul.mubr.bf16.gmra.mrb[0].mxu0 %v3169
    %v4957 = vpop.f32.mrb[0].mxu0
    %v4958 = vadd.f32 %v3450, %v4957
    %v4959 = vpop.f32.mrb[0].mxu0
    %v4960 = vadd.f32 %v3454, %v4959
    %v4961 = vpop.f32.mrb[0].mxu0
    %v4962 = vadd.f32 %v3450, %v4961
    %v4963 = vpop.f32.mrb[0].mxu0
    %v4964 = vadd.f32 %v3454, %v4963
    %4965 = vdwg.mxu0
    %4966 = vmatprep.subr.bf16.mxu0 %v4372
    %4967 = vmatpush1.bf16.msra.mxu0 %v4371
    %4968 = vmatprep.subr.bf16.mxu0 %v4380
    %4969 = vmatpush1.bf16.msra.mxu0 %v4379
    %4970 = vmatprep.subr.bf16.mxu0 %v4388
    %4971 = vmatpush1.bf16.msra.mxu0 %v4387
    %4972 = vmatprep.subr.bf16.mxu0 %v4396
    %4973 = vmatpush1.bf16.msra.mxu0 %v4395
    %4974 = vmatprep.subr.bf16.mxu0 %v4404
    %4975 = vmatpush1.bf16.msra.mxu0 %v4403
    %4976 = vmatprep.subr.bf16.mxu0 %v4412
    %4977 = vmatpush1.bf16.msra.mxu0 %v4411
    %4978 = vmatprep.subr.bf16.mxu0 %v4420
    %4979 = vmatpush1.bf16.msra.mxu0 %v4419
    %4980 = vmatprep.subr.bf16.mxu0 %v4428
    %4981 = vmatpush1.bf16.msra.mxu0 %v4427
    %4982 = vmatprep.subr.bf16.mxu0 %v4436
    %4983 = vmatpush1.bf16.msra.mxu0 %v4435
    %4984 = vmatprep.subr.bf16.mxu0 %v4444
    %4985 = vmatpush1.bf16.msra.mxu0 %v4443
    %4986 = vmatprep.subr.bf16.mxu0 %v4452
    %4987 = vmatpush1.bf16.msra.mxu0 %v4451
    %4988 = vmatprep.subr.bf16.mxu0 %v4460
    %4989 = vmatpush1.bf16.msra.mxu0 %v4459
    %4990 = vmatprep.subr.bf16.mxu0 %v4468
    %4991 = vmatpush1.bf16.msra.mxu0 %v4467
    %4992 = vmatprep.subr.bf16.mxu0 %v4476
    %4993 = vmatpush1.bf16.msra.mxu0 %v4475
    %4994 = vmatprep.subr.bf16.mxu0 %v4484
    %4995 = vmatpush1.bf16.msra.mxu0 %v4483
    %4996 = vmatprep.subr.bf16.mxu0 %v4492
    %4997 = vmatpush1.bf16.msra.mxu0 %v4491
    %4998 = vmatprep.mubr.bf16.mxu0 %v3172
    %4999 = vmatmul.mubr.bf16.gmra.mrb[0].mxu0 %v3171
    %v5000 = vpop.f32.mrb[0].mxu0
    %v5001 = vadd.f32 %v4958, %v5000
    %v5002 = vpop.f32.mrb[0].mxu0
    %v5003 = vadd.f32 %v4960, %v5002
    %v5004 = vpop.f32.mrb[0].mxu0
    %v5005 = vadd.f32 %v4962, %v5004
    %v5006 = vpop.f32.mrb[0].mxu0
    %v5007 = vadd.f32 %v4964, %v5006
    %5008 = vdwg.mxu0
    %5009 = vmatprep.subr.bf16.mxu0 %v4246
    %5010 = vmatpush1.bf16.msra.mxu0 %v4245
    %5011 = vmatprep.subr.bf16.mxu0 %v4254
    %5012 = vmatpush1.bf16.msra.mxu0 %v4253
    %5013 = vmatprep.subr.bf16.mxu0 %v4262
    %5014 = vmatpush1.bf16.msra.mxu0 %v4261
    %5015 = vmatprep.subr.bf16.mxu0 %v4270
    %5016 = vmatpush1.bf16.msra.mxu0 %v4269
    %5017 = vmatprep.subr.bf16.mxu0 %v4278
    %5018 = vmatpush1.bf16.msra.mxu0 %v4277
    %5019 = vmatprep.subr.bf16.mxu0 %v4286
    %5020 = vmatpush1.bf16.msra.mxu0 %v4285
    %5021 = vmatprep.subr.bf16.mxu0 %v4294
    %5022 = vmatpush1.bf16.msra.mxu0 %v4293
    %5023 = vmatprep.subr.bf16.mxu0 %v4302
    %5024 = vmatpush1.bf16.msra.mxu0 %v4301
    %5025 = vmatprep.subr.bf16.mxu0 %v4310
    %5026 = vmatpush1.bf16.msra.mxu0 %v4309
    %5027 = vmatprep.subr.bf16.mxu0 %v4318
    %5028 = vmatpush1.bf16.msra.mxu0 %v4317
    %5029 = vmatprep.subr.bf16.mxu0 %v4326
    %5030 = vmatpush1.bf16.msra.mxu0 %v4325
    %5031 = vmatprep.subr.bf16.mxu0 %v4334
    %5032 = vmatpush1.bf16.msra.mxu0 %v4333
    %5033 = vmatprep.subr.bf16.mxu0 %v4342
    %5034 = vmatpush1.bf16.msra.mxu0 %v4341
    %5035 = vmatprep.subr.bf16.mxu0 %v4350
    %5036 = vmatpush1.bf16.msra.mxu0 %v4349
    %5037 = vmatprep.subr.bf16.mxu0 %v4358
    %5038 = vmatpush1.bf16.msra.mxu0 %v4357
    %5039 = vmatprep.subr.bf16.mxu0 %v4366
    %5040 = vmatpush1.bf16.msra.mxu0 %v4365
    %5041 = vmatprep.mubr.bf16.mxu0 %v3170
    %5042 = vmatmul.mubr.bf16.gmra.mrb[0].mxu0 %v3169
    %v5043 = vpop.f32.mrb[0].mxu0
    %v5044 = vadd.f32 %v3458, %v5043
    %v5045 = vpop.f32.mrb[0].mxu0
    %v5046 = vadd.f32 %v3462, %v5045
    %v5047 = vpop.f32.mrb[0].mxu0
    %v5048 = vadd.f32 %v3458, %v5047
    %v5049 = vpop.f32.mrb[0].mxu0
    %v5050 = vadd.f32 %v3462, %v5049
    %5051 = vdwg.mxu0
    %5052 = vmatprep.subr.bf16.mxu0 %v4374
    %5053 = vmatpush1.bf16.msra.mxu0 %v4373
    %5054 = vmatprep.subr.bf16.mxu0 %v4382
    %5055 = vmatpush1.bf16.msra.mxu0 %v4381
    %5056 = vmatprep.subr.bf16.mxu0 %v4390
    %5057 = vmatpush1.bf16.msra.mxu0 %v4389
    %5058 = vmatprep.subr.bf16.mxu0 %v4398
    %5059 = vmatpush1.bf16.msra.mxu0 %v4397
    %5060 = vmatprep.subr.bf16.mxu0 %v4406
    %5061 = vmatpush1.bf16.msra.mxu0 %v4405
    %5062 = vmatprep.subr.bf16.mxu0 %v4414
    %5063 = vmatpush1.bf16.msra.mxu0 %v4413
    %5064 = vmatprep.subr.bf16.mxu0 %v4422
    %5065 = vmatpush1.bf16.msra.mxu0 %v4421
    %5066 = vmatprep.subr.bf16.mxu0 %v4430
    %5067 = vmatpush1.bf16.msra.mxu0 %v4429
    %5068 = vmatprep.subr.bf16.mxu0 %v4438
    %5069 = vmatpush1.bf16.msra.mxu0 %v4437
    %5070 = vmatprep.subr.bf16.mxu0 %v4446
    %5071 = vmatpush1.bf16.msra.mxu0 %v4445
    %5072 = vmatprep.subr.bf16.mxu0 %v4454
    %5073 = vmatpush1.bf16.msra.mxu0 %v4453
    %5074 = vmatprep.subr.bf16.mxu0 %v4462
    %5075 = vmatpush1.bf16.msra.mxu0 %v4461
    %5076 = vmatprep.subr.bf16.mxu0 %v4470
    %5077 = vmatpush1.bf16.msra.mxu0 %v4469
    %5078 = vmatprep.subr.bf16.mxu0 %v4478
    %5079 = vmatpush1.bf16.msra.mxu0 %v4477
    %5080 = vmatprep.subr.bf16.mxu0 %v4486
    %5081 = vmatpush1.bf16.msra.mxu0 %v4485
    %5082 = vmatprep.subr.bf16.mxu0 %v4494
    %5083 = vmatpush1.bf16.msra.mxu0 %v4493
    %5084 = vmatprep.mubr.bf16.mxu0 %v3172
    %5085 = vmatmul.mubr.bf16.gmra.mrb[0].mxu0 %v3171
    %v5086 = vpop.f32.mrb[0].mxu0
    %v5087 = vadd.f32 %v5044, %v5086
    %v5088 = vpop.f32.mrb[0].mxu0
    %v5089 = vadd.f32 %v5046, %v5088
    %v5090 = vpop.f32.mrb[0].mxu0
    %v5091 = vadd.f32 %v5048, %v5090
    %v5092 = vpop.f32.mrb[0].mxu0
    %v5093 = vadd.f32 %v5050, %v5092
    %5094 = vdwg.mxu0
    %v5095 = vsub.f32 0.0, %v4829
    %v5096 = vsub.f32 0.0, %v4831
    %v5097 = vsub.f32 0.0, %v4915
    %v5098 = vsub.f32 0.0, %v4917
    %v5099 = vsub.f32 0.0, %v5001
    %v5100 = vsub.f32 0.0, %v5003
    %v5101 = vsub.f32 0.0, %v5087
    %v5102 = vsub.f32 0.0, %v5089
    %v5103 = vsub.f32 0.0, %v4833
    %v5104 = vsub.f32 0.0, %v4835
    %v5105 = vsub.f32 0.0, %v4919
    %v5106 = vsub.f32 0.0, %v4921
    %v5107 = vsub.f32 0.0, %v5005
    %v5108 = vsub.f32 0.0, %v5007
    %v5109 = vsub.f32 0.0, %v5091
    %v5110 = vsub.f32 0.0, %v5093
    %v5111 = vmul.f32 %v5095, 1.442695
    %v5112 = vpow.pop %v5111
    %v5113 = vmul.f32 %v5096, 1.442695
    %v5114 = vpow.pop %v5113
    %v5115 = vmul.f32 %v5097, 1.442695
    %v5116 = vpow.pop %v5115
    %v5117 = vmul.f32 %v5098, 1.442695
    %v5118 = vpow.pop %v5117
    %v5119 = vmul.f32 %v5099, 1.442695
    %v5120 = vpow.pop %v5119
    %v5121 = vmul.f32 %v5100, 1.442695
    %v5122 = vpow.pop %v5121
    %v5123 = vmul.f32 %v5101, 1.442695
    %v5124 = vpow.pop %v5123
    %v5125 = vmul.f32 %v5102, 1.442695
    %v5126 = vpow.pop %v5125
    %v5127 = vmul.f32 %v5103, 1.442695
    %v5128 = vpow.pop %v5127
    %v5129 = vmul.f32 %v5104, 1.442695
    %v5130 = vpow.pop %v5129
    %v5131 = vmul.f32 %v5105, 1.442695
    %v5132 = vpow.pop %v5131
    %v5133 = vmul.f32 %v5106, 1.442695
    %v5134 = vpow.pop %v5133
    %v5135 = vmul.f32 %v5107, 1.442695
    %v5136 = vpow.pop %v5135
    %v5137 = vmul.f32 %v5108, 1.442695
    %v5138 = vpow.pop %v5137
    %v5139 = vmul.f32 %v5109, 1.442695
    %v5140 = vpow.pop %v5139
    %v5141 = vmul.f32 %v5110, 1.442695
    %v5142 = vpow.pop %v5141
    %v5143 = vadd.f32 %v5112, 1.0
    %v5144 = vadd.f32 %v5114, 1.0
    %v5145 = vadd.f32 %v5116, 1.0
    %v5146 = vadd.f32 %v5118, 1.0
    %v5147 = vadd.f32 %v5120, 1.0
    %v5148 = vadd.f32 %v5122, 1.0
    %v5149 = vadd.f32 %v5124, 1.0
    %v5150 = vadd.f32 %v5126, 1.0
    %v5151 = vadd.f32 %v5128, 1.0
    %v5152 = vadd.f32 %v5130, 1.0
    %v5153 = vadd.f32 %v5132, 1.0
    %v5154 = vadd.f32 %v5134, 1.0
    %v5155 = vadd.f32 %v5136, 1.0
    %v5156 = vadd.f32 %v5138, 1.0
    %v5157 = vadd.f32 %v5140, 1.0
    %v5158 = vadd.f32 %v5142, 1.0
    %v5159 = vrcp.pop %v5143
    %v5160 = vmul.f32 1.0, %v5159
    %v5161 = vrcp.pop %v5144
    %v5162 = vmul.f32 1.0, %v5161
    %v5163 = vrcp.pop %v5145
    %v5164 = vmul.f32 1.0, %v5163
    %v5165 = vrcp.pop %v5146
    %v5166 = vmul.f32 1.0, %v5165
    %v5167 = vrcp.pop %v5147
    %v5168 = vmul.f32 1.0, %v5167
    %v5169 = vrcp.pop %v5148
    %v5170 = vmul.f32 1.0, %v5169
    %v5171 = vrcp.pop %v5149
    %v5172 = vmul.f32 1.0, %v5171
    %v5173 = vrcp.pop %v5150
    %v5174 = vmul.f32 1.0, %v5173
    %v5175 = vrcp.pop %v5151
    %v5176 = vmul.f32 1.0, %v5175
    %v5177 = vrcp.pop %v5152
    %v5178 = vmul.f32 1.0, %v5177
    %v5179 = vrcp.pop %v5153
    %v5180 = vmul.f32 1.0, %v5179
    %v5181 = vrcp.pop %v5154
    %v5182 = vmul.f32 1.0, %v5181
    %v5183 = vrcp.pop %v5155
    %v5184 = vmul.f32 1.0, %v5183
    %v5185 = vrcp.pop %v5156
    %v5186 = vmul.f32 1.0, %v5185
    %v5187 = vrcp.pop %v5157
    %v5188 = vmul.f32 1.0, %v5187
    %v5189 = vrcp.pop %v5158
    %v5190 = vmul.f32 1.0, %v5189
    %v5191 = vmul.f32 %v4829, %v5160
    %v5192 = vmul.f32 %v4831, %v5162
    %v5193 = vmul.f32 %v4915, %v5164
    %v5194 = vmul.f32 %v4917, %v5166
    %v5195 = vmul.f32 %v5001, %v5168
    %v5196 = vmul.f32 %v5003, %v5170
    %v5197 = vmul.f32 %v5087, %v5172
    %v5198 = vmul.f32 %v5089, %v5174
    %v5199 = vmul.f32 %v4833, %v5176
    %v5200 = vmul.f32 %v4835, %v5178
    %v5201 = vmul.f32 %v4919, %v5180
    %v5202 = vmul.f32 %v4921, %v5182
    %v5203 = vmul.f32 %v5005, %v5184
    %v5204 = vmul.f32 %v5007, %v5186
    %v5205 = vmul.f32 %v5091, %v5188
    %v5206 = vmul.f32 %v5093, %v5190
    %v5207 = vpack.c.bf16 %v5199, %v5191
    %v5208 = vpack.c.bf16 %v5200, %v5192
    %v5209 = vpack.c.bf16 %v5201, %v5193
    %v5210 = vpack.c.bf16 %v5202, %v5194
    %v5211 = vpack.c.bf16 %v5203, %v5195
    %v5212 = vpack.c.bf16 %v5204, %v5196
    %v5213 = vpack.c.bf16 %v5205, %v5197
    %v5214 = vpack.c.bf16 %v5206, %v5198
    %v5215 = vld [vmem:[#allocation11] sm:$0xff]
    %v5216 = vld [vmem:[#allocation11 + $0x8] sm:$0xff]
    %v5217 = vld [vmem:[#allocation11 + $0x10] sm:$0xff]
    %v5218 = vld [vmem:[#allocation11 + $0x18] sm:$0xff]
    %v5219 = vld [vmem:[#allocation11 + $0x20] sm:$0xff]
    %v5220 = vld [vmem:[#allocation11 + $0x28] sm:$0xff]
    %v5221 = vld [vmem:[#allocation11 + $0x30] sm:$0xff]
    %v5222 = vld [vmem:[#allocation11 + $0x38] sm:$0xff]
    %v5223 = vld [vmem:[#allocation11 + $0x40] sm:$0xff]
    %v5224 = vld [vmem:[#allocation11 + $0x48] sm:$0xff]
    %v5225 = vld [vmem:[#allocation11 + $0x50] sm:$0xff]
    %v5226 = vld [vmem:[#allocation11 + $0x58] sm:$0xff]
    %v5227 = vld [vmem:[#allocation11 + $0x60] sm:$0xff]
    %v5228 = vld [vmem:[#allocation11 + $0x68] sm:$0xff]
    %v5229 = vld [vmem:[#allocation11 + $0x70] sm:$0xff]
    %v5230 = vld [vmem:[#allocation11 + $0x78] sm:$0xff]
    %v5231 = vld [vmem:[#allocation11 + $0x80] sm:$0xff]
    %v5232 = vld [vmem:[#allocation11 + $0x88] sm:$0xff]
    %v5233 = vld [vmem:[#allocation11 + $0x90] sm:$0xff]
    %v5234 = vld [vmem:[#allocation11 + $0x98] sm:$0xff]
    %v5235 = vld [vmem:[#allocation11 + $0xa0] sm:$0xff]
    %v5236 = vld [vmem:[#allocation11 + $0xa8] sm:$0xff]
    %v5237 = vld [vmem:[#allocation11 + $0xb0] sm:$0xff]
    %v5238 = vld [vmem:[#allocation11 + $0xb8] sm:$0xff]
    %v5239 = vld [vmem:[#allocation11 + $0xc0] sm:$0xff]
    %v5240 = vld [vmem:[#allocation11 + $0xc8] sm:$0xff]
    %v5241 = vld [vmem:[#allocation11 + $0xd0] sm:$0xff]
    %v5242 = vld [vmem:[#allocation11 + $0xd8] sm:$0xff]
    %v5243 = vld [vmem:[#allocation11 + $0xe0] sm:$0xff]
    %v5244 = vld [vmem:[#allocation11 + $0xe8] sm:$0xff]
    %v5245 = vld [vmem:[#allocation11 + $0xf0] sm:$0xff]
    %v5246 = vld [vmem:[#allocation11 + $0xf8] sm:$0xff]
    %v5247 = vld [vmem:[#allocation11 + $0x100] sm:$0xff]
    %v5248 = vld [vmem:[#allocation11 + $0x108] sm:$0xff]
    %v5249 = vld [vmem:[#allocation11 + $0x110] sm:$0xff]
    %v5250 = vld [vmem:[#allocation11 + $0x118] sm:$0xff]
    %v5251 = vld [vmem:[#allocation11 + $0x120] sm:$0xff]
    %v5252 = vld [vmem:[#allocation11 + $0x128] sm:$0xff]
    %v5253 = vld [vmem:[#allocation11 + $0x130] sm:$0xff]
    %v5254 = vld [vmem:[#allocation11 + $0x138] sm:$0xff]
    %v5255 = vld [vmem:[#allocation11 + $0x140] sm:$0xff]
    %v5256 = vld [vmem:[#allocation11 + $0x148] sm:$0xff]
    %v5257 = vld [vmem:[#allocation11 + $0x150] sm:$0xff]
    %v5258 = vld [vmem:[#allocation11 + $0x158] sm:$0xff]
    %v5259 = vld [vmem:[#allocation11 + $0x160] sm:$0xff]
    %v5260 = vld [vmem:[#allocation11 + $0x168] sm:$0xff]
    %v5261 = vld [vmem:[#allocation11 + $0x170] sm:$0xff]
    %v5262 = vld [vmem:[#allocation11 + $0x178] sm:$0xff]
    %v5263 = vld [vmem:[#allocation11 + $0x180] sm:$0xff]
    %v5264 = vld [vmem:[#allocation11 + $0x188] sm:$0xff]
    %v5265 = vld [vmem:[#allocation11 + $0x190] sm:$0xff]
    %v5266 = vld [vmem:[#allocation11 + $0x198] sm:$0xff]
    %v5267 = vld [vmem:[#allocation11 + $0x1a0] sm:$0xff]
    %v5268 = vld [vmem:[#allocation11 + $0x1a8] sm:$0xff]
    %v5269 = vld [vmem:[#allocation11 + $0x1b0] sm:$0xff]
    %v5270 = vld [vmem:[#allocation11 + $0x1b8] sm:$0xff]
    %v5271 = vld [vmem:[#allocation11 + $0x1c0] sm:$0xff]
    %v5272 = vld [vmem:[#allocation11 + $0x1c8] sm:$0xff]
    %v5273 = vld [vmem:[#allocation11 + $0x1d0] sm:$0xff]
    %v5274 = vld [vmem:[#allocation11 + $0x1d8] sm:$0xff]
    %v5275 = vld [vmem:[#allocation11 + $0x1e0] sm:$0xff]
    %v5276 = vld [vmem:[#allocation11 + $0x1e8] sm:$0xff]
    %v5277 = vld [vmem:[#allocation11 + $0x1f0] sm:$0xff]
    %v5278 = vld [vmem:[#allocation11 + $0x1f8] sm:$0xff]
    %v5279 = vld [vmem:[#allocation11 + $0x200] sm:$0xff]
    %v5280 = vld [vmem:[#allocation11 + $0x208] sm:$0xff]
    %v5281 = vld [vmem:[#allocation11 + $0x210] sm:$0xff]
    %v5282 = vld [vmem:[#allocation11 + $0x218] sm:$0xff]
    %v5283 = vld [vmem:[#allocation11 + $0x220] sm:$0xff]
    %v5284 = vld [vmem:[#allocation11 + $0x228] sm:$0xff]
    %v5285 = vld [vmem:[#allocation11 + $0x230] sm:$0xff]
    %v5286 = vld [vmem:[#allocation11 + $0x238] sm:$0xff]
    %v5287 = vld [vmem:[#allocation11 + $0x240] sm:$0xff]
    %v5288 = vld [vmem:[#allocation11 + $0x248] sm:$0xff]
    %v5289 = vld [vmem:[#allocation11 + $0x250] sm:$0xff]
    %v5290 = vld [vmem:[#allocation11 + $0x258] sm:$0xff]
    %v5291 = vld [vmem:[#allocation11 + $0x260] sm:$0xff]
    %v5292 = vld [vmem:[#allocation11 + $0x268] sm:$0xff]
    %v5293 = vld [vmem:[#allocation11 + $0x270] sm:$0xff]
    %v5294 = vld [vmem:[#allocation11 + $0x278] sm:$0xff]
    %v5295 = vld [vmem:[#allocation11 + $0x280] sm:$0xff]
    %v5296 = vld [vmem:[#allocation11 + $0x288] sm:$0xff]
    %v5297 = vld [vmem:[#allocation11 + $0x290] sm:$0xff]
    %v5298 = vld [vmem:[#allocation11 + $0x298] sm:$0xff]
    %v5299 = vld [vmem:[#allocation11 + $0x2a0] sm:$0xff]
    %v5300 = vld [vmem:[#allocation11 + $0x2a8] sm:$0xff]
    %v5301 = vld [vmem:[#allocation11 + $0x2b0] sm:$0xff]
    %v5302 = vld [vmem:[#allocation11 + $0x2b8] sm:$0xff]
    %v5303 = vld [vmem:[#allocation11 + $0x2c0] sm:$0xff]
    %v5304 = vld [vmem:[#allocation11 + $0x2c8] sm:$0xff]
    %v5305 = vld [vmem:[#allocation11 + $0x2d0] sm:$0xff]
    %v5306 = vld [vmem:[#allocation11 + $0x2d8] sm:$0xff]
    %v5307 = vld [vmem:[#allocation11 + $0x2e0] sm:$0xff]
    %v5308 = vld [vmem:[#allocation11 + $0x2e8] sm:$0xff]
    %v5309 = vld [vmem:[#allocation11 + $0x2f0] sm:$0xff]
    %v5310 = vld [vmem:[#allocation11 + $0x2f8] sm:$0xff]
    %v5311 = vld [vmem:[#allocation11 + $0x300] sm:$0xff]
    %v5312 = vld [vmem:[#allocation11 + $0x308] sm:$0xff]
    %v5313 = vld [vmem:[#allocation11 + $0x310] sm:$0xff]
    %v5314 = vld [vmem:[#allocation11 + $0x318] sm:$0xff]
    %v5315 = vld [vmem:[#allocation11 + $0x320] sm:$0xff]
    %v5316 = vld [vmem:[#allocation11 + $0x328] sm:$0xff]
    %v5317 = vld [vmem:[#allocation11 + $0x330] sm:$0xff]
    %v5318 = vld [vmem:[#allocation11 + $0x338] sm:$0xff]
    %v5319 = vld [vmem:[#allocation11 + $0x340] sm:$0xff]
    %v5320 = vld [vmem:[#allocation11 + $0x348] sm:$0xff]
    %v5321 = vld [vmem:[#allocation11 + $0x350] sm:$0xff]
    %v5322 = vld [vmem:[#allocation11 + $0x358] sm:$0xff]
    %v5323 = vld [vmem:[#allocation11 + $0x360] sm:$0xff]
    %v5324 = vld [vmem:[#allocation11 + $0x368] sm:$0xff]
    %v5325 = vld [vmem:[#allocation11 + $0x370] sm:$0xff]
    %v5326 = vld [vmem:[#allocation11 + $0x378] sm:$0xff]
    %v5327 = vld [vmem:[#allocation11 + $0x380] sm:$0xff]
    %v5328 = vld [vmem:[#allocation11 + $0x388] sm:$0xff]
    %v5329 = vld [vmem:[#allocation11 + $0x390] sm:$0xff]
    %v5330 = vld [vmem:[#allocation11 + $0x398] sm:$0xff]
    %v5331 = vld [vmem:[#allocation11 + $0x3a0] sm:$0xff]
    %v5332 = vld [vmem:[#allocation11 + $0x3a8] sm:$0xff]
    %v5333 = vld [vmem:[#allocation11 + $0x3b0] sm:$0xff]
    %v5334 = vld [vmem:[#allocation11 + $0x3b8] sm:$0xff]
    %v5335 = vld [vmem:[#allocation11 + $0x3c0] sm:$0xff]
    %v5336 = vld [vmem:[#allocation11 + $0x3c8] sm:$0xff]
    %v5337 = vld [vmem:[#allocation11 + $0x3d0] sm:$0xff]
    %v5338 = vld [vmem:[#allocation11 + $0x3d8] sm:$0xff]
    %v5339 = vld [vmem:[#allocation11 + $0x3e0] sm:$0xff]
    %v5340 = vld [vmem:[#allocation11 + $0x3e8] sm:$0xff]
    %v5341 = vld [vmem:[#allocation11 + $0x3f0] sm:$0xff]
    %v5342 = vld [vmem:[#allocation11 + $0x3f8] sm:$0xff]
    %v5343 = vld [vmem:[%s8] sm:$0x3]
    %v5345 = vlaneseq
    %v5346 = vshrl.u32 %v5345, 7
    %v5347 = vsub.s32 0, %v5346
    %v5348 = vrot.slane %v5343, %v5347
    %v5349 = vlaneseq
    %v5350 = vshrl.u32 %v5349, 7
    %v5351 = vsub.s32 1, %v5350
    %v5352 = vrot.slane %v5343, %v5351
    %v5483 = vunpack.c.l.b16 %v5215
    %v5484 = vunpack.c.h.b16 %v5215
    %v5485 = vunpack.c.l.b16 %v5216
    %v5486 = vunpack.c.h.b16 %v5216
    %v5487 = vunpack.c.l.b16 %v5217
    %v5488 = vunpack.c.h.b16 %v5217
    %v5489 = vunpack.c.l.b16 %v5218
    %v5490 = vunpack.c.h.b16 %v5218
    %v5491 = vunpack.c.l.b16 %v5219
    %v5492 = vunpack.c.h.b16 %v5219
    %v5493 = vunpack.c.l.b16 %v5220
    %v5494 = vunpack.c.h.b16 %v5220
    %v5495 = vunpack.c.l.b16 %v5221
    %v5496 = vunpack.c.h.b16 %v5221
    %v5497 = vunpack.c.l.b16 %v5222
    %v5498 = vunpack.c.h.b16 %v5222
    %v5499 = vunpack.c.l.b16 %v5223
    %v5500 = vunpack.c.h.b16 %v5223
    %v5501 = vunpack.c.l.b16 %v5224
    %v5502 = vunpack.c.h.b16 %v5224
    %v5503 = vunpack.c.l.b16 %v5225
    %v5504 = vunpack.c.h.b16 %v5225
    %v5505 = vunpack.c.l.b16 %v5226
    %v5506 = vunpack.c.h.b16 %v5226
    %v5507 = vunpack.c.l.b16 %v5227
    %v5508 = vunpack.c.h.b16 %v5227
    %v5509 = vunpack.c.l.b16 %v5228
    %v5510 = vunpack.c.h.b16 %v5228
    %v5511 = vunpack.c.l.b16 %v5229
    %v5512 = vunpack.c.h.b16 %v5229
    %v5513 = vunpack.c.l.b16 %v5230
    %v5514 = vunpack.c.h.b16 %v5230
    %v5515 = vunpack.c.l.b16 %v5231
    %v5516 = vunpack.c.h.b16 %v5231
    %v5517 = vunpack.c.l.b16 %v5232
    %v5518 = vunpack.c.h.b16 %v5232
    %v5519 = vunpack.c.l.b16 %v5233
    %v5520 = vunpack.c.h.b16 %v5233
    %v5521 = vunpack.c.l.b16 %v5234
    %v5522 = vunpack.c.h.b16 %v5234
    %v5523 = vunpack.c.l.b16 %v5235
    %v5524 = vunpack.c.h.b16 %v5235
    %v5525 = vunpack.c.l.b16 %v5236
    %v5526 = vunpack.c.h.b16 %v5236
    %v5527 = vunpack.c.l.b16 %v5237
    %v5528 = vunpack.c.h.b16 %v5237
    %v5529 = vunpack.c.l.b16 %v5238
    %v5530 = vunpack.c.h.b16 %v5238
    %v5531 = vunpack.c.l.b16 %v5239
    %v5532 = vunpack.c.h.b16 %v5239
    %v5533 = vunpack.c.l.b16 %v5240
    %v5534 = vunpack.c.h.b16 %v5240
    %v5535 = vunpack.c.l.b16 %v5241
    %v5536 = vunpack.c.h.b16 %v5241
    %v5537 = vunpack.c.l.b16 %v5242
    %v5538 = vunpack.c.h.b16 %v5242
    %v5539 = vunpack.c.l.b16 %v5243
    %v5540 = vunpack.c.h.b16 %v5243
    %v5541 = vunpack.c.l.b16 %v5244
    %v5542 = vunpack.c.h.b16 %v5244
    %v5543 = vunpack.c.l.b16 %v5245
    %v5544 = vunpack.c.h.b16 %v5245
    %v5545 = vunpack.c.l.b16 %v5246
    %v5546 = vunpack.c.h.b16 %v5246
    %v5547 = vunpack.c.l.b16 %v5247
    %v5548 = vunpack.c.h.b16 %v5247
    %v5549 = vunpack.c.l.b16 %v5248
    %v5550 = vunpack.c.h.b16 %v5248
    %v5551 = vunpack.c.l.b16 %v5249
    %v5552 = vunpack.c.h.b16 %v5249
    %v5553 = vunpack.c.l.b16 %v5250
    %v5554 = vunpack.c.h.b16 %v5250
    %v5555 = vunpack.c.l.b16 %v5251
    %v5556 = vunpack.c.h.b16 %v5251
    %v5557 = vunpack.c.l.b16 %v5252
    %v5558 = vunpack.c.h.b16 %v5252
    %v5559 = vunpack.c.l.b16 %v5253
    %v5560 = vunpack.c.h.b16 %v5253
    %v5561 = vunpack.c.l.b16 %v5254
    %v5562 = vunpack.c.h.b16 %v5254
    %v5563 = vunpack.c.l.b16 %v5255
    %v5564 = vunpack.c.h.b16 %v5255
    %v5565 = vunpack.c.l.b16 %v5256
    %v5566 = vunpack.c.h.b16 %v5256
    %v5567 = vunpack.c.l.b16 %v5257
    %v5568 = vunpack.c.h.b16 %v5257
    %v5569 = vunpack.c.l.b16 %v5258
    %v5570 = vunpack.c.h.b16 %v5258
    %v5571 = vunpack.c.l.b16 %v5259
    %v5572 = vunpack.c.h.b16 %v5259
    %v5573 = vunpack.c.l.b16 %v5260
    %v5574 = vunpack.c.h.b16 %v5260
    %v5575 = vunpack.c.l.b16 %v5261
    %v5576 = vunpack.c.h.b16 %v5261
    %v5577 = vunpack.c.l.b16 %v5262
    %v5578 = vunpack.c.h.b16 %v5262
    %v5579 = vunpack.c.l.b16 %v5263
    %v5580 = vunpack.c.h.b16 %v5263
    %v5581 = vunpack.c.l.b16 %v5264
    %v5582 = vunpack.c.h.b16 %v5264
    %v5583 = vunpack.c.l.b16 %v5265
    %v5584 = vunpack.c.h.b16 %v5265
    %v5585 = vunpack.c.l.b16 %v5266
    %v5586 = vunpack.c.h.b16 %v5266
    %v5587 = vunpack.c.l.b16 %v5267
    %v5588 = vunpack.c.h.b16 %v5267
    %v5589 = vunpack.c.l.b16 %v5268
    %v5590 = vunpack.c.h.b16 %v5268
    %v5591 = vunpack.c.l.b16 %v5269
    %v5592 = vunpack.c.h.b16 %v5269
    %v5593 = vunpack.c.l.b16 %v5270
    %v5594 = vunpack.c.h.b16 %v5270
    %v5595 = vunpack.c.l.b16 %v5271
    %v5596 = vunpack.c.h.b16 %v5271
    %v5597 = vunpack.c.l.b16 %v5272
    %v5598 = vunpack.c.h.b16 %v5272
    %v5599 = vunpack.c.l.b16 %v5273
    %v5600 = vunpack.c.h.b16 %v5273
    %v5601 = vunpack.c.l.b16 %v5274
    %v5602 = vunpack.c.h.b16 %v5274
    %v5603 = vunpack.c.l.b16 %v5275
    %v5604 = vunpack.c.h.b16 %v5275
    %v5605 = vunpack.c.l.b16 %v5276
    %v5606 = vunpack.c.h.b16 %v5276
    %v5607 = vunpack.c.l.b16 %v5277
    %v5608 = vunpack.c.h.b16 %v5277
    %v5609 = vunpack.c.l.b16 %v5278
    %v5610 = vunpack.c.h.b16 %v5278
    %v5611 = vunpack.c.l.b16 %v5279
    %v5612 = vunpack.c.h.b16 %v5279
    %v5613 = vunpack.c.l.b16 %v5280
    %v5614 = vunpack.c.h.b16 %v5280
    %v5615 = vunpack.c.l.b16 %v5281
    %v5616 = vunpack.c.h.b16 %v5281
    %v5617 = vunpack.c.l.b16 %v5282
    %v5618 = vunpack.c.h.b16 %v5282
    %v5619 = vunpack.c.l.b16 %v5283
    %v5620 = vunpack.c.h.b16 %v5283
    %v5621 = vunpack.c.l.b16 %v5284
    %v5622 = vunpack.c.h.b16 %v5284
    %v5623 = vunpack.c.l.b16 %v5285
    %v5624 = vunpack.c.h.b16 %v5285
    %v5625 = vunpack.c.l.b16 %v5286
    %v5626 = vunpack.c.h.b16 %v5286
    %v5627 = vunpack.c.l.b16 %v5287
    %v5628 = vunpack.c.h.b16 %v5287
    %v5629 = vunpack.c.l.b16 %v5288
    %v5630 = vunpack.c.h.b16 %v5288
    %v5631 = vunpack.c.l.b16 %v5289
    %v5632 = vunpack.c.h.b16 %v5289
    %v5633 = vunpack.c.l.b16 %v5290
    %v5634 = vunpack.c.h.b16 %v5290
    %v5635 = vunpack.c.l.b16 %v5291
    %v5636 = vunpack.c.h.b16 %v5291
    %v5637 = vunpack.c.l.b16 %v5292
    %v5638 = vunpack.c.h.b16 %v5292
    %v5639 = vunpack.c.l.b16 %v5293
    %v5640 = vunpack.c.h.b16 %v5293
    %v5641 = vunpack.c.l.b16 %v5294
    %v5642 = vunpack.c.h.b16 %v5294
    %v5643 = vunpack.c.l.b16 %v5295
    %v5644 = vunpack.c.h.b16 %v5295
    %v5645 = vunpack.c.l.b16 %v5296
    %v5646 = vunpack.c.h.b16 %v5296
    %v5647 = vunpack.c.l.b16 %v5297
    %v5648 = vunpack.c.h.b16 %v5297
    %v5649 = vunpack.c.l.b16 %v5298
    %v5650 = vunpack.c.h.b16 %v5298
    %v5651 = vunpack.c.l.b16 %v5299
    %v5652 = vunpack.c.h.b16 %v5299
    %v5653 = vunpack.c.l.b16 %v5300
    %v5654 = vunpack.c.h.b16 %v5300
    %v5655 = vunpack.c.l.b16 %v5301
    %v5656 = vunpack.c.h.b16 %v5301
    %v5657 = vunpack.c.l.b16 %v5302
    %v5658 = vunpack.c.h.b16 %v5302
    %v5659 = vunpack.c.l.b16 %v5303
    %v5660 = vunpack.c.h.b16 %v5303
    %v5661 = vunpack.c.l.b16 %v5304
    %v5662 = vunpack.c.h.b16 %v5304
    %v5663 = vunpack.c.l.b16 %v5305
    %v5664 = vunpack.c.h.b16 %v5305
    %v5665 = vunpack.c.l.b16 %v5306
    %v5666 = vunpack.c.h.b16 %v5306
    %v5667 = vunpack.c.l.b16 %v5307
    %v5668 = vunpack.c.h.b16 %v5307
    %v5669 = vunpack.c.l.b16 %v5308
    %v5670 = vunpack.c.h.b16 %v5308
    %v5671 = vunpack.c.l.b16 %v5309
    %v5672 = vunpack.c.h.b16 %v5309
    %v5673 = vunpack.c.l.b16 %v5310
    %v5674 = vunpack.c.h.b16 %v5310
    %v5675 = vunpack.c.l.b16 %v5311
    %v5676 = vunpack.c.h.b16 %v5311
    %v5677 = vunpack.c.l.b16 %v5312
    %v5678 = vunpack.c.h.b16 %v5312
    %v5679 = vunpack.c.l.b16 %v5313
    %v5680 = vunpack.c.h.b16 %v5313
    %v5681 = vunpack.c.l.b16 %v5314
    %v5682 = vunpack.c.h.b16 %v5314
    %v5683 = vunpack.c.l.b16 %v5315
    %v5684 = vunpack.c.h.b16 %v5315
    %v5685 = vunpack.c.l.b16 %v5316
    %v5686 = vunpack.c.h.b16 %v5316
    %v5687 = vunpack.c.l.b16 %v5317
    %v5688 = vunpack.c.h.b16 %v5317
    %v5689 = vunpack.c.l.b16 %v5318
    %v5690 = vunpack.c.h.b16 %v5318
    %v5691 = vunpack.c.l.b16 %v5319
    %v5692 = vunpack.c.h.b16 %v5319
    %v5693 = vunpack.c.l.b16 %v5320
    %v5694 = vunpack.c.h.b16 %v5320
    %v5695 = vunpack.c.l.b16 %v5321
    %v5696 = vunpack.c.h.b16 %v5321
    %v5697 = vunpack.c.l.b16 %v5322
    %v5698 = vunpack.c.h.b16 %v5322
    %v5699 = vunpack.c.l.b16 %v5323
    %v5700 = vunpack.c.h.b16 %v5323
    %v5701 = vunpack.c.l.b16 %v5324
    %v5702 = vunpack.c.h.b16 %v5324
    %v5703 = vunpack.c.l.b16 %v5325
    %v5704 = vunpack.c.h.b16 %v5325
    %v5705 = vunpack.c.l.b16 %v5326
    %v5706 = vunpack.c.h.b16 %v5326
    %v5707 = vunpack.c.l.b16 %v5327
    %v5708 = vunpack.c.h.b16 %v5327
    %v5709 = vunpack.c.l.b16 %v5328
    %v5710 = vunpack.c.h.b16 %v5328
    %v5711 = vunpack.c.l.b16 %v5329
    %v5712 = vunpack.c.h.b16 %v5329
    %v5713 = vunpack.c.l.b16 %v5330
    %v5714 = vunpack.c.h.b16 %v5330
    %v5715 = vunpack.c.l.b16 %v5331
    %v5716 = vunpack.c.h.b16 %v5331
    %v5717 = vunpack.c.l.b16 %v5332
    %v5718 = vunpack.c.h.b16 %v5332
    %v5719 = vunpack.c.l.b16 %v5333
    %v5720 = vunpack.c.h.b16 %v5333
    %v5721 = vunpack.c.l.b16 %v5334
    %v5722 = vunpack.c.h.b16 %v5334
    %v5723 = vunpack.c.l.b16 %v5335
    %v5724 = vunpack.c.h.b16 %v5335
    %v5725 = vunpack.c.l.b16 %v5336
    %v5726 = vunpack.c.h.b16 %v5336
    %v5727 = vunpack.c.l.b16 %v5337
    %v5728 = vunpack.c.h.b16 %v5337
    %v5729 = vunpack.c.l.b16 %v5338
    %v5730 = vunpack.c.h.b16 %v5338
    %v5731 = vunpack.c.l.b16 %v5339
    %v5732 = vunpack.c.h.b16 %v5339
    %v5733 = vunpack.c.l.b16 %v5340
    %v5734 = vunpack.c.h.b16 %v5340
    %v5735 = vunpack.c.l.b16 %v5341
    %v5736 = vunpack.c.h.b16 %v5341
    %v5737 = vunpack.c.l.b16 %v5342
    %v5738 = vunpack.c.h.b16 %v5342
    %v5739 = vpack.c.b16 %v5485, %v5483
    %v5740 = vpack.c.b16 %v5486, %v5484
    %v5741 = vpack.c.b16 %v5489, %v5487
    %v5742 = vpack.c.b16 %v5490, %v5488
    %v5743 = vpack.c.b16 %v5493, %v5491
    %v5744 = vpack.c.b16 %v5494, %v5492
    %v5745 = vpack.c.b16 %v5497, %v5495
    %v5746 = vpack.c.b16 %v5498, %v5496
    %v5747 = vpack.c.b16 %v5501, %v5499
    %v5748 = vpack.c.b16 %v5502, %v5500
    %v5749 = vpack.c.b16 %v5505, %v5503
    %v5750 = vpack.c.b16 %v5506, %v5504
    %v5751 = vpack.c.b16 %v5509, %v5507
    %v5752 = vpack.c.b16 %v5510, %v5508
    %v5753 = vpack.c.b16 %v5513, %v5511
    %v5754 = vpack.c.b16 %v5514, %v5512
    %v5755 = vpack.c.b16 %v5517, %v5515
    %v5756 = vpack.c.b16 %v5518, %v5516
    %v5757 = vpack.c.b16 %v5521, %v5519
    %v5758 = vpack.c.b16 %v5522, %v5520
    %v5759 = vpack.c.b16 %v5525, %v5523
    %v5760 = vpack.c.b16 %v5526, %v5524
    %v5761 = vpack.c.b16 %v5529, %v5527
    %v5762 = vpack.c.b16 %v5530, %v5528
    %v5763 = vpack.c.b16 %v5533, %v5531
    %v5764 = vpack.c.b16 %v5534, %v5532
    %v5765 = vpack.c.b16 %v5537, %v5535
    %v5766 = vpack.c.b16 %v5538, %v5536
    %v5767 = vpack.c.b16 %v5541, %v5539
    %v5768 = vpack.c.b16 %v5542, %v5540
    %v5769 = vpack.c.b16 %v5545, %v5543
    %v5770 = vpack.c.b16 %v5546, %v5544
    %v5771 = vpack.c.b16 %v5549, %v5547
    %v5772 = vpack.c.b16 %v5550, %v5548
    %v5773 = vpack.c.b16 %v5553, %v5551
    %v5774 = vpack.c.b16 %v5554, %v5552
    %v5775 = vpack.c.b16 %v5557, %v5555
    %v5776 = vpack.c.b16 %v5558, %v5556
    %v5777 = vpack.c.b16 %v5561, %v5559
    %v5778 = vpack.c.b16 %v5562, %v5560
    %v5779 = vpack.c.b16 %v5565, %v5563
    %v5780 = vpack.c.b16 %v5566, %v5564
    %v5781 = vpack.c.b16 %v5569, %v5567
    %v5782 = vpack.c.b16 %v5570, %v5568
    %v5783 = vpack.c.b16 %v5573, %v5571
    %v5784 = vpack.c.b16 %v5574, %v5572
    %v5785 = vpack.c.b16 %v5577, %v5575
    %v5786 = vpack.c.b16 %v5578, %v5576
    %v5787 = vpack.c.b16 %v5581, %v5579
    %v5788 = vpack.c.b16 %v5582, %v5580
    %v5789 = vpack.c.b16 %v5585, %v5583
    %v5790 = vpack.c.b16 %v5586, %v5584
    %v5791 = vpack.c.b16 %v5589, %v5587
    %v5792 = vpack.c.b16 %v5590, %v5588
    %v5793 = vpack.c.b16 %v5593, %v5591
    %v5794 = vpack.c.b16 %v5594, %v5592
    %v5795 = vpack.c.b16 %v5597, %v5595
    %v5796 = vpack.c.b16 %v5598, %v5596
    %v5797 = vpack.c.b16 %v5601, %v5599
    %v5798 = vpack.c.b16 %v5602, %v5600
    %v5799 = vpack.c.b16 %v5605, %v5603
    %v5800 = vpack.c.b16 %v5606, %v5604
    %v5801 = vpack.c.b16 %v5609, %v5607
    %v5802 = vpack.c.b16 %v5610, %v5608
    %v5803 = vpack.c.b16 %v5613, %v5611
    %v5804 = vpack.c.b16 %v5614, %v5612
    %v5805 = vpack.c.b16 %v5617, %v5615
    %v5806 = vpack.c.b16 %v5618, %v5616
    %v5807 = vpack.c.b16 %v5621, %v5619
    %v5808 = vpack.c.b16 %v5622, %v5620
    %v5809 = vpack.c.b16 %v5625, %v5623
    %v5810 = vpack.c.b16 %v5626, %v5624
    %v5811 = vpack.c.b16 %v5629, %v5627
    %v5812 = vpack.c.b16 %v5630, %v5628
    %v5813 = vpack.c.b16 %v5633, %v5631
    %v5814 = vpack.c.b16 %v5634, %v5632
    %v5815 = vpack.c.b16 %v5637, %v5635
    %v5816 = vpack.c.b16 %v5638, %v5636
    %v5817 = vpack.c.b16 %v5641, %v5639
    %v5818 = vpack.c.b16 %v5642, %v5640
    %v5819 = vpack.c.b16 %v5645, %v5643
    %v5820 = vpack.c.b16 %v5646, %v5644
    %v5821 = vpack.c.b16 %v5649, %v5647
    %v5822 = vpack.c.b16 %v5650, %v5648
    %v5823 = vpack.c.b16 %v5653, %v5651
    %v5824 = vpack.c.b16 %v5654, %v5652
    %v5825 = vpack.c.b16 %v5657, %v5655
    %v5826 = vpack.c.b16 %v5658, %v5656
    %v5827 = vpack.c.b16 %v5661, %v5659
    %v5828 = vpack.c.b16 %v5662, %v5660
    %v5829 = vpack.c.b16 %v5665, %v5663
    %v5830 = vpack.c.b16 %v5666, %v5664
    %v5831 = vpack.c.b16 %v5669, %v5667
    %v5832 = vpack.c.b16 %v5670, %v5668
    %v5833 = vpack.c.b16 %v5673, %v5671
    %v5834 = vpack.c.b16 %v5674, %v5672
    %v5835 = vpack.c.b16 %v5677, %v5675
    %v5836 = vpack.c.b16 %v5678, %v5676
    %v5837 = vpack.c.b16 %v5681, %v5679
    %v5838 = vpack.c.b16 %v5682, %v5680
    %v5839 = vpack.c.b16 %v5685, %v5683
    %v5840 = vpack.c.b16 %v5686, %v5684
    %v5841 = vpack.c.b16 %v5689, %v5687
    %v5842 = vpack.c.b16 %v5690, %v5688
    %v5843 = vpack.c.b16 %v5693, %v5691
    %v5844 = vpack.c.b16 %v5694, %v5692
    %v5845 = vpack.c.b16 %v5697, %v5695
    %v5846 = vpack.c.b16 %v5698, %v5696
    %v5847 = vpack.c.b16 %v5701, %v5699
    %v5848 = vpack.c.b16 %v5702, %v5700
    %v5849 = vpack.c.b16 %v5705, %v5703
    %v5850 = vpack.c.b16 %v5706, %v5704
    %v5851 = vpack.c.b16 %v5709, %v5707
    %v5852 = vpack.c.b16 %v5710, %v5708
    %v5853 = vpack.c.b16 %v5713, %v5711
    %v5854 = vpack.c.b16 %v5714, %v5712
    %v5855 = vpack.c.b16 %v5717, %v5715
    %v5856 = vpack.c.b16 %v5718, %v5716
    %v5857 = vpack.c.b16 %v5721, %v5719
    %v5858 = vpack.c.b16 %v5722, %v5720
    %v5859 = vpack.c.b16 %v5725, %v5723
    %v5860 = vpack.c.b16 %v5726, %v5724
    %v5861 = vpack.c.b16 %v5729, %v5727
    %v5862 = vpack.c.b16 %v5730, %v5728
    %v5863 = vpack.c.b16 %v5733, %v5731
    %v5864 = vpack.c.b16 %v5734, %v5732
    %v5865 = vpack.c.b16 %v5737, %v5735
    %v5866 = vpack.c.b16 %v5738, %v5736
    %5995 = vmatprep.subr.bf16.mxu0 %v5740
    %5996 = vmatpush1.bf16.msra.mxu0 %v5739
    %5997 = vmatprep.subr.bf16.mxu0 %v5742
    %5998 = vmatpush1.bf16.msra.mxu0 %v5741
    %5999 = vmatprep.subr.bf16.mxu0 %v5744
    %6000 = vmatpush1.bf16.msra.mxu0 %v5743
    %6001 = vmatprep.subr.bf16.mxu0 %v5746
    %6002 = vmatpush1.bf16.msra.mxu0 %v5745
    %6003 = vmatprep.subr.bf16.mxu0 %v5748
    %6004 = vmatpush1.bf16.msra.mxu0 %v5747
    %6005 = vmatprep.subr.bf16.mxu0 %v5750
    %6006 = vmatpush1.bf16.msra.mxu0 %v5749
    %6007 = vmatprep.subr.bf16.mxu0 %v5752
    %6008 = vmatpush1.bf16.msra.mxu0 %v5751
    %6009 = vmatprep.subr.bf16.mxu0 %v5754
    %6010 = vmatpush1.bf16.msra.mxu0 %v5753
    %6011 = vmatprep.subr.bf16.mxu0 %v5756
    %6012 = vmatpush1.bf16.msra.mxu0 %v5755
    %6013 = vmatprep.subr.bf16.mxu0 %v5758
    %6014 = vmatpush1.bf16.msra.mxu0 %v5757
    %6015 = vmatprep.subr.bf16.mxu0 %v5760
    %6016 = vmatpush1.bf16.msra.mxu0 %v5759
    %6017 = vmatprep.subr.bf16.mxu0 %v5762
    %6018 = vmatpush1.bf16.msra.mxu0 %v5761
    %6019 = vmatprep.subr.bf16.mxu0 %v5764
    %6020 = vmatpush1.bf16.msra.mxu0 %v5763
    %6021 = vmatprep.subr.bf16.mxu0 %v5766
    %6022 = vmatpush1.bf16.msra.mxu0 %v5765
    %6023 = vmatprep.subr.bf16.mxu0 %v5768
    %6024 = vmatpush1.bf16.msra.mxu0 %v5767
    %6025 = vmatprep.subr.bf16.mxu0 %v5770
    %6026 = vmatpush1.bf16.msra.mxu0 %v5769
    %6027 = vmatprep.mubr.bf16.mxu0 %v5208
    %6028 = vmatmul.mubr.bf16.gmra.mrb[0].mxu0 %v5207
    %v6029 = vpop.f32.mrb[0].mxu0
    %v6030 = vadd.f32 %v5348, %v6029
    %v6031 = vpop.f32.mrb[0].mxu0
    %v6032 = vadd.f32 %v5352, %v6031
    %v6033 = vpop.f32.mrb[0].mxu0
    %v6034 = vadd.f32 %v5348, %v6033
    %v6035 = vpop.f32.mrb[0].mxu0
    %v6036 = vadd.f32 %v5352, %v6035
    %6037 = vdwg.mxu0
    %6038 = vmatprep.subr.bf16.mxu0 %v5772
    %6039 = vmatpush1.bf16.msra.mxu0 %v5771
    %6040 = vmatprep.subr.bf16.mxu0 %v5774
    %6041 = vmatpush1.bf16.msra.mxu0 %v5773
    %6042 = vmatprep.subr.bf16.mxu0 %v5776
    %6043 = vmatpush1.bf16.msra.mxu0 %v5775
    %6044 = vmatprep.subr.bf16.mxu0 %v5778
    %6045 = vmatpush1.bf16.msra.mxu0 %v5777
    %6046 = vmatprep.subr.bf16.mxu0 %v5780
    %6047 = vmatpush1.bf16.msra.mxu0 %v5779
    %6048 = vmatprep.subr.bf16.mxu0 %v5782
    %6049 = vmatpush1.bf16.msra.mxu0 %v5781
    %6050 = vmatprep.subr.bf16.mxu0 %v5784
    %6051 = vmatpush1.bf16.msra.mxu0 %v5783
    %6052 = vmatprep.subr.bf16.mxu0 %v5786
    %6053 = vmatpush1.bf16.msra.mxu0 %v5785
    %6054 = vmatprep.subr.bf16.mxu0 %v5788
    %6055 = vmatpush1.bf16.msra.mxu0 %v5787
    %6056 = vmatprep.subr.bf16.mxu0 %v5790
    %6057 = vmatpush1.bf16.msra.mxu0 %v5789
    %6058 = vmatprep.subr.bf16.mxu0 %v5792
    %6059 = vmatpush1.bf16.msra.mxu0 %v5791
    %6060 = vmatprep.subr.bf16.mxu0 %v5794
    %6061 = vmatpush1.bf16.msra.mxu0 %v5793
    %6062 = vmatprep.subr.bf16.mxu0 %v5796
    %6063 = vmatpush1.bf16.msra.mxu0 %v5795
    %6064 = vmatprep.subr.bf16.mxu0 %v5798
    %6065 = vmatpush1.bf16.msra.mxu0 %v5797
    %6066 = vmatprep.subr.bf16.mxu0 %v5800
    %6067 = vmatpush1.bf16.msra.mxu0 %v5799
    %6068 = vmatprep.subr.bf16.mxu0 %v5802
    %6069 = vmatpush1.bf16.msra.mxu0 %v5801
    %6070 = vmatprep.mubr.bf16.mxu0 %v5210
    %6071 = vmatmul.mubr.bf16.gmra.mrb[0].mxu0 %v5209
    %v6072 = vpop.f32.mrb[0].mxu0
    %v6073 = vadd.f32 %v6030, %v6072
    %v6074 = vpop.f32.mrb[0].mxu0
    %v6075 = vadd.f32 %v6032, %v6074
    %v6076 = vpop.f32.mrb[0].mxu0
    %v6077 = vadd.f32 %v6034, %v6076
    %v6078 = vpop.f32.mrb[0].mxu0
    %v6079 = vadd.f32 %v6036, %v6078
    %6080 = vdwg.mxu0
    %6081 = vmatprep.subr.bf16.mxu0 %v5804
    %6082 = vmatpush1.bf16.msra.mxu0 %v5803
    %6083 = vmatprep.subr.bf16.mxu0 %v5806
    %6084 = vmatpush1.bf16.msra.mxu0 %v5805
    %6085 = vmatprep.subr.bf16.mxu0 %v5808
    %6086 = vmatpush1.bf16.msra.mxu0 %v5807
    %6087 = vmatprep.subr.bf16.mxu0 %v5810
    %6088 = vmatpush1.bf16.msra.mxu0 %v5809
    %6089 = vmatprep.subr.bf16.mxu0 %v5812
    %6090 = vmatpush1.bf16.msra.mxu0 %v5811
    %6091 = vmatprep.subr.bf16.mxu0 %v5814
    %6092 = vmatpush1.bf16.msra.mxu0 %v5813
    %6093 = vmatprep.subr.bf16.mxu0 %v5816
    %6094 = vmatpush1.bf16.msra.mxu0 %v5815
    %6095 = vmatprep.subr.bf16.mxu0 %v5818
    %6096 = vmatpush1.bf16.msra.mxu0 %v5817
    %6097 = vmatprep.subr.bf16.mxu0 %v5820
    %6098 = vmatpush1.bf16.msra.mxu0 %v5819
    %6099 = vmatprep.subr.bf16.mxu0 %v5822
    %6100 = vmatpush1.bf16.msra.mxu0 %v5821
    %6101 = vmatprep.subr.bf16.mxu0 %v5824
    %6102 = vmatpush1.bf16.msra.mxu0 %v5823
    %6103 = vmatprep.subr.bf16.mxu0 %v5826
    %6104 = vmatpush1.bf16.msra.mxu0 %v5825
    %6105 = vmatprep.subr.bf16.mxu0 %v5828
    %6106 = vmatpush1.bf16.msra.mxu0 %v5827
    %6107 = vmatprep.subr.bf16.mxu0 %v5830
    %6108 = vmatpush1.bf16.msra.mxu0 %v5829
    %6109 = vmatprep.subr.bf16.mxu0 %v5832
    %6110 = vmatpush1.bf16.msra.mxu0 %v5831
    %6111 = vmatprep.subr.bf16.mxu0 %v5834
    %6112 = vmatpush1.bf16.msra.mxu0 %v5833
    %6113 = vmatprep.mubr.bf16.mxu0 %v5212
    %6114 = vmatmul.mubr.bf16.gmra.mrb[0].mxu0 %v5211
    %v6115 = vpop.f32.mrb[0].mxu0
    %v6116 = vadd.f32 %v6073, %v6115
    %v6117 = vpop.f32.mrb[0].mxu0
    %v6118 = vadd.f32 %v6075, %v6117
    %v6119 = vpop.f32.mrb[0].mxu0
    %v6120 = vadd.f32 %v6077, %v6119
    %v6121 = vpop.f32.mrb[0].mxu0
    %v6122 = vadd.f32 %v6079, %v6121
    %6123 = vdwg.mxu0
    %6124 = vmatprep.subr.bf16.mxu0 %v5836
    %6125 = vmatpush1.bf16.msra.mxu0 %v5835
    %6126 = vmatprep.subr.bf16.mxu0 %v5838
    %6127 = vmatpush1.bf16.msra.mxu0 %v5837
    %6128 = vmatprep.subr.bf16.mxu0 %v5840
    %6129 = vmatpush1.bf16.msra.mxu0 %v5839
    %6130 = vmatprep.subr.bf16.mxu0 %v5842
    %6131 = vmatpush1.bf16.msra.mxu0 %v5841
    %6132 = vmatprep.subr.bf16.mxu0 %v5844
    %6133 = vmatpush1.bf16.msra.mxu0 %v5843
    %6134 = vmatprep.subr.bf16.mxu0 %v5846
    %6135 = vmatpush1.bf16.msra.mxu0 %v5845
    %6136 = vmatprep.subr.bf16.mxu0 %v5848
    %6137 = vmatpush1.bf16.msra.mxu0 %v5847
    %6138 = vmatprep.subr.bf16.mxu0 %v5850
    %6139 = vmatpush1.bf16.msra.mxu0 %v5849
    %6140 = vmatprep.subr.bf16.mxu0 %v5852
    %6141 = vmatpush1.bf16.msra.mxu0 %v5851
    %6142 = vmatprep.subr.bf16.mxu0 %v5854
    %6143 = vmatpush1.bf16.msra.mxu0 %v5853
    %6144 = vmatprep.subr.bf16.mxu0 %v5856
    %6145 = vmatpush1.bf16.msra.mxu0 %v5855
    %6146 = vmatprep.subr.bf16.mxu0 %v5858
    %6147 = vmatpush1.bf16.msra.mxu0 %v5857
    %6148 = vmatprep.subr.bf16.mxu0 %v5860
    %6149 = vmatpush1.bf16.msra.mxu0 %v5859
    %6150 = vmatprep.subr.bf16.mxu0 %v5862
    %6151 = vmatpush1.bf16.msra.mxu0 %v5861
    %6152 = vmatprep.subr.bf16.mxu0 %v5864
    %6153 = vmatpush1.bf16.msra.mxu0 %v5863
    %6154 = vmatprep.subr.bf16.mxu0 %v5866
    %6155 = vmatpush1.bf16.msra.mxu0 %v5865
    %6156 = vmatprep.mubr.bf16.mxu0 %v5214
    %6157 = vmatmul.mubr.bf16.gmra.mrb[0].mxu0 %v5213
    %v6158 = vpop.f32.mrb[0].mxu0
    %v6159 = vadd.f32 %v6116, %v6158
    %v6160 = vpop.f32.mrb[0].mxu0
    %v6161 = vadd.f32 %v6118, %v6160
    %v6162 = vpop.f32.mrb[0].mxu0
    %v6163 = vadd.f32 %v6120, %v6162
    %v6164 = vpop.f32.mrb[0].mxu0
    %v6165 = vadd.f32 %v6122, %v6164
    %6166 = vdwg.mxu0
    %v6167 = vtanh.pop %v6159
    %v6168 = vtanh.pop %v6161
    %v6169 = vtanh.pop %v6163
    %v6170 = vtanh.pop %v6165
    %6171 = vst [vmem:[#allocation13] sm:$0xff] %v6167
    %6172 = vst [vmem:[#allocation13 + $0x8] sm:$0xff] %v6168
    %6173 = vst [vmem:[#allocation13 + $0x10] sm:$0xff] %v6169
    %6174 = vst [vmem:[#allocation13 + $0x18] sm:$0xff] %v6170
    // Predicated region
    $region62: #{tpu_custom_call.1} parent=1 // pred_check
      _
    $region63: #{tpu_custom_call.1} parent=1 // pred_check_branch
      %6176 = sbr.rel (0) target = $region65
    $region64: #{tpu_custom_call.1} parent=1 // pred_region
      %s6178 = ssub.s32 512, 512
      %6179 = vsyncadd [#allocation4], %s6178
      %s6180 = sshll.u32 [#allocation13], 4
      %s6181 = int_to_ptr.vmem [resolvable:$true] %s6180
      %6186 = dma.vmem_to_hbm [thread:$0]  %s6181, 512, %s9, [#allocation4], 256, 256, 16
    $region65: #{tpu_custom_call.1} parent=1 // pred_fallthru
      _
    // Predicated region
    $region66: #{tpu_custom_call.1} parent=1 // pred_check
      _
    $region67: #{tpu_custom_call.1} parent=1 // pred_check_branch
      %6188 = sbr.rel (0) target = $region69
    $region68: #{tpu_custom_call.1} parent=1 // pred_region
      %6189 = dma.done [#allocation4], 512
    $region69: #{tpu_custom_call.1} parent=1 // pred_fallthru
      _
    %6190 = vsyncpa [#allocation3], 1
    %6191 = vsyncpa [#allocation6], 1
    %6192 = vsyncpa [#allocation9], 1
    %6193 = vsyncpa [#allocation12], 1
    %6194 = vsyncpa [#allocation4], 1

</llo_original>
